<compile_context>
chip_gen: v7x
topology: tpu7x:2x2x1
jax: 0.10.0
libtpu: 0.0.40
codegen_flags: <defaults>
</compile_context>

<pallas_src>
import jax
import jax.numpy as jnp
from jax import lax
from jax.experimental import pallas as pl
from jax.experimental.pallas import tpu as pltpu


def _round_up(x, m):
    return ((x + m - 1) // m) * m


# ----------------------------------------------------------------------------
# Fused forward kernel factory.  One grid step = one (batch-tile, time-chunk):
# run all LSTM layers over the chunk (state carried across chunks in VMEM scratch),
# then the FC head + CE partial sum for the chunk.
# Gate order / equations follow torch.nn.LSTM: gates = x W_ih^T + b + h W_hh^T,
# split [i, f, g, o]; c = f*c + i*g; h = o*tanh(c).
# ----------------------------------------------------------------------------
def _make_fused_kernel(num_layers, TCHUNK, BT, T_real, B_real, Hp, V_real, with_loss):
    def kernel(*refs):
        it = iter(refs)
        x_ref = next(it)                                     # (TCHUNK*BT, E) bf16
        layer_refs = [(next(it), next(it), next(it)) for _ in range(num_layers)]
        fcw_ref = next(it)                                   # (Hp, Vp) bf16
        fcb_ref = next(it)                                   # (1, Vp) f32
        tgt_ref = next(it) if with_loss else None            # (TCHUNK, BT) int32
        logits_ref = next(it)                                # (TCHUNK*BT, Vp) f32
        loss_ref = next(it) if with_loss else None           # (1, 1) f32 SMEM
        gx_sc = next(it)                                     # (TCHUNK*BT, 4Hp) f32
        act_sc = next(it)                                    # (TCHUNK*BT, Hp) f32
        h_sc = next(it)                                      # (L, BT, Hp) f32
        c_sc = next(it)                                      # (L, BT, Hp) f32

        kchunk = pl.program_id(1)

        # New batch tile -> reset recurrent state (time-chunk axis is innermost).
        @pl.when(kchunk == 0)
        def _():
            h_sc[...] = jnp.zeros(h_sc.shape, h_sc.dtype)
            c_sc[...] = jnp.zeros(c_sc.shape, c_sc.dtype)

        for layer in range(num_layers):
            wih_ref, whh_ref, b_ref = layer_refs[layer]

            # Input projection for the whole chunk: one big MXU matmul (bf16 -> f32).
            if layer == 0:
                inp = x_ref[...]
            else:
                inp = act_sc[...].astype(jnp.bfloat16)
            gx_sc[...] = (
                jnp.dot(inp, wih_ref[...], preferred_element_type=jnp.float32)
                + b_ref[...]
            )

            h0 = h_sc[layer]
            c0 = c_sc[layer]

            def step(s, carry, whh_ref=whh_ref):
                h, c = carry
                row = pl.multiple_of(s * BT, BT)
                gates = gx_sc[pl.ds(row, BT), :] + jnp.dot(
                    h.astype(jnp.bfloat16), whh_ref[...],
                    preferred_element_type=jnp.float32)
                # 128-lane-aligned gate slices (Hp is a multiple of 128).
                i_g = jax.nn.sigmoid(gates[:, 0 * Hp:1 * Hp])
                f_g = jax.nn.sigmoid(gates[:, 1 * Hp:2 * Hp])
                g_g = jnp.tanh(gates[:, 2 * Hp:3 * Hp])
                o_g = jax.nn.sigmoid(gates[:, 3 * Hp:4 * Hp])
                c_new = f_g * c + i_g * g_g
                h_new = o_g * jnp.tanh(c_new)
                act_sc[pl.ds(row, BT), :] = h_new
                return (h_new, c_new)

            h_fin, c_fin = lax.fori_loop(
                0, TCHUNK, step, (h0, c0),
                unroll=(TCHUNK if TCHUNK <= 8 else 8))
            h_sc[layer] = h_fin
            c_sc[layer] = c_fin

        # FC head for the chunk: one lane-dense matmul + one lane-dense store.
        logits = (
            jnp.dot(act_sc[...].astype(jnp.bfloat16), fcw_ref[...],
                    preferred_element_type=jnp.float32)
            + fcb_ref[...]
        )
        logits_ref[...] = logits

        if with_loss:
            Vp = logits.shape[-1]
            logits3 = logits.reshape(TCHUNK, BT, Vp)
            tgt = tgt_ref[...]                               # (TCHUNK, BT) int32
            col = lax.broadcasted_iota(jnp.int32, (TCHUNK, BT, Vp), 2)
            neg_big = jnp.float32(-1e30)
            lm = jnp.where(col < V_real, logits3, neg_big)   # mask vocab padding
            m = jnp.max(lm, axis=-1, keepdims=True)
            lse = jnp.log(jnp.sum(jnp.exp(lm - m), axis=-1, keepdims=True)) + m
            onehot = (col == tgt[:, :, None]).astype(jnp.float32)
            tgt_logit = jnp.sum(logits3 * onehot, axis=-1, keepdims=True)
            # Mask padded time steps / padded batch rows.
            t_ids = (lax.broadcasted_iota(jnp.int32, (TCHUNK, BT, 1), 0)
                     + kchunk * TCHUNK)
            b_ids = (lax.broadcasted_iota(jnp.int32, (TCHUNK, BT, 1), 1)
                     + pl.program_id(0) * BT)
            valid = ((t_ids < T_real) & (b_ids < B_real)).astype(jnp.float32)
            loss_ref[0, 0] = jnp.sum((lse - tgt_logit) * valid)

    return kernel


# ----------------------------------------------------------------------------
# Wrapper: embedding gather + layout/padding glue + single pallas_call.
# ----------------------------------------------------------------------------
def midi_lstm_forward(emb, lstm_weights, fc_w_t, fc_b2, vocab_size, idx,
                      targets=None):
    """emb: (V, E) f32.  lstm_weights: [(w_ih_t bf16 (in_pad,4Hp), w_hh_t bf16
    (Hp,4Hp), bias f32 (1,4Hp)), ...].  fc_w_t: (Hp, Vp) bf16.  fc_b2: (1, Vp) f32.
    idx / targets: (B, T) int."""
    B, T = idx.shape
    E = emb.shape[1]
    Hp, Vp = fc_w_t.shape
    V = vocab_size
    num_layers = len(lstm_weights)
    with_loss = targets is not None

    # ---- batch tiling (parallel grid axis; 2 tiles fills both v7x TCs) ----
    Bp = _round_up(B, 8)
    nbt = 2 if (Bp >= 16 and Bp % 16 == 0 and T % 8 == 0) else 1
    BT = Bp // nbt

    # ---- time chunking: bound per-step VMEM residency (gx/act/logits/x/tgt) ----
    bytes_per_t = BT * (16 * Hp + 4 * Hp + 8 * Vp + 4 * E + 8)
    tc_max = max(1, (8 * 1024 * 1024) // bytes_per_t)
    TCHUNK = min(T, tc_max)
    if TCHUNK < T:                       # multiple chunks -> keep blocks 8-aligned
        TCHUNK = max(8, (TCHUNK // 8) * 8)
    n_chunks = -(-T // TCHUNK)
    Tp = n_chunks * TCHUNK
    CR = TCHUNK * BT                     # rows per (batch-tile, time-chunk) block

    # ---- embedding gather, time-major, padded, tile-ordered, bf16 ----
    x = emb[idx.T].astype(jnp.bfloat16)                       # (T, B, E)
    x = jnp.pad(x, ((0, Tp - T), (0, Bp - B), (0, 0)))        # (Tp, Bp, E)
    x = (x.reshape(Tp, nbt, BT, E).transpose(1, 0, 2, 3)
         .reshape(nbt * Tp * BT, E))                          # (tile, t, b) order

    inputs = [x]
    in_specs = [pl.BlockSpec((CR, E), lambda b, k: (b * n_chunks + k, 0))]
    for (w_ih_t, w_hh_t, bias2) in lstm_weights:
        inputs += [w_ih_t, w_hh_t, bias2]
        in_specs += [
            pl.BlockSpec(w_ih_t.shape, lambda b, k: (0, 0)),
            pl.BlockSpec(w_hh_t.shape, lambda b, k: (0, 0)),
            pl.BlockSpec(bias2.shape, lambda b, k: (0, 0)),
        ]
    inputs += [fc_w_t, fc_b2]
    in_specs += [pl.BlockSpec((Hp, Vp), lambda b, k: (0, 0)),
                 pl.BlockSpec((1, Vp), lambda b, k: (0, 0))]

    out_shape = [jax.ShapeDtypeStruct((nbt * Tp * BT, Vp), jnp.float32)]
    out_specs = [pl.BlockSpec((CR, Vp), lambda b, k: (b * n_chunks + k, 0))]

    if with_loss:
        tgt = targets.astype(jnp.int32).T                     # (T, B)
        tgt = jnp.pad(tgt, ((0, Tp - T), (0, Bp - B)))        # (Tp, Bp)
        tgt = (tgt.reshape(Tp, nbt, BT).transpose(1, 0, 2)
               .reshape(nbt * Tp, BT))
        inputs.append(tgt)
        in_specs.append(
            pl.BlockSpec((TCHUNK, BT), lambda b, k: (b * n_chunks + k, 0)))
        # Per-(tile, chunk) CE partial sums, emitted as SMEM scalars.
        out_shape.append(jax.ShapeDtypeStruct((nbt, n_chunks), jnp.float32))
        out_specs.append(pl.BlockSpec((1, 1), lambda b, k: (b, k),
                                      memory_space=pltpu.MemorySpace.SMEM))

    kernel = _make_fused_kernel(num_layers, TCHUNK, BT, T, B, Hp, V, with_loss)

    results = pl.pallas_call(
        kernel,
        grid=(nbt, n_chunks),
        out_shape=tuple(out_shape),
        in_specs=in_specs,
        out_specs=tuple(out_specs),
        scratch_shapes=[
            pltpu.VMEM((CR, 4 * Hp), jnp.float32),            # chunk input projection
            pltpu.VMEM((CR, Hp), jnp.float32),                # chunk layer activations
            pltpu.VMEM((num_layers, BT, Hp), jnp.float32),    # h state (per layer)
            pltpu.VMEM((num_layers, BT, Hp), jnp.float32),    # c state (per layer)
        ],
        compiler_params=pltpu.CompilerParams(
            dimension_semantics=("parallel", "arbitrary"),
            vmem_limit_bytes=64 * 1024 * 1024),
    )(*inputs)

    logits_flat = results[0]                                  # (nbt*Tp*BT, Vp)
    logits = (logits_flat.reshape(nbt, Tp, BT, Vp).transpose(1, 0, 2, 3)
              .reshape(Tp, Bp, Vp)[:T, :B, :V].transpose(1, 0, 2))   # (B, T, V)
    loss = results[1].sum() / (B * T) if with_loss else None
    return logits, loss


# ----------------------------------------------------------------------------
# MIDILSTM module: parameters created deterministically, stored pre-transposed,
# gate-block-padded (Hp multiple of 128), vocab-padded (Vp multiple of 128), bf16.
# ----------------------------------------------------------------------------
def _pack_gate_weight(w, H, Hp, in_pad):
    """torch-layout (4H, in) -> (in_pad, 4Hp) with each i/f/g/o block padded to Hp."""
    in_dim = w.shape[1]
    w4 = w.reshape(4, H, in_dim)
    w4 = jnp.pad(w4, ((0, 0), (0, Hp - H), (0, 0)))
    wt = jnp.transpose(w4, (2, 0, 1)).reshape(in_dim, 4 * Hp)
    if in_pad > in_dim:
        wt = jnp.pad(wt, ((0, in_pad - in_dim), (0, 0)))
    return wt.astype(jnp.bfloat16)


def _pack_gate_bias(b, H, Hp):
    b4 = jnp.pad(b.reshape(4, H), ((0, 0), (0, Hp - H)))
    return b4.reshape(1, 4 * Hp).astype(jnp.float32)


class MIDILSTM:
    def __init__(self, vocab_size, n_emb, hidden_size, num_layers, dropout, key):
        self.vocab_size = vocab_size
        self.n_emb = n_emb
        self.hidden_size = hidden_size
        self.num_layers = num_layers
        self.dropout = dropout
        # TODO(synk): inter-layer dropout (train-mode only) is not applied.

        H = hidden_size
        Hp = _round_up(H, 128)
        Vp = _round_up(vocab_size, 128)
        self.Hp, self.Vp = Hp, Vp

        keys = jax.random.split(key, 2 + 4 * num_layers + 2)
        k = 1.0 / jnp.sqrt(hidden_size)
        ki = iter(keys)

        # Embedding ~ N(0, 1) (torch default), kept f32.
        self.emb = jax.random.normal(next(ki), (vocab_size, n_emb), jnp.float32)

        # LSTM params per layer, uniform(-k, k) (torch default), pre-transposed,
        # gate-block padded to Hp, biases pre-summed, weights bf16.
        self.lstm_weights = []
        for layer in range(num_layers):
            in_sz = n_emb if layer == 0 else H
            in_pad = n_emb if layer == 0 else Hp
            w_ih = jax.random.uniform(next(ki), (4 * H, in_sz), jnp.float32, -k, k)
            w_hh = jax.random.uniform(next(ki), (4 * H, H), jnp.float32, -k, k)
            b_ih = jax.random.uniform(next(ki), (4 * H,), jnp.float32, -k, k)
            b_hh = jax.random.uniform(next(ki), (4 * H,), jnp.float32, -k, k)
            self.lstm_weights.append((
                _pack_gate_weight(w_ih, H, Hp, in_pad),       # (in_pad, 4Hp) bf16
                _pack_gate_weight(w_hh, H, Hp, Hp),           # (Hp, 4Hp) bf16
                _pack_gate_bias(b_ih + b_hh, H, Hp),          # (1, 4Hp) f32
            ))

        # FC: Linear(H, vocab), uniform(-1/sqrt(H), 1/sqrt(H)); padded + bf16.
        fc_w = jax.random.uniform(next(ki), (vocab_size, H), jnp.float32, -k, k)
        fc_b = jax.random.uniform(next(ki), (vocab_size,), jnp.float32, -k, k)
        fc_w_t = jnp.pad(jnp.transpose(fc_w), ((0, Hp - H), (0, Vp - vocab_size)))
        self.fc_w_t = fc_w_t.astype(jnp.bfloat16)             # (Hp, Vp)
        self.fc_b2 = jnp.pad(fc_b, (0, Vp - vocab_size)).reshape(1, Vp)  # (1, Vp) f32

    def forward(self, idx, targets=None):
        return midi_lstm_forward(self.emb, self.lstm_weights, self.fc_w_t,
                                 self.fc_b2, self.vocab_size, idx, targets)

    # TODO(synk): generate() (autoregressive multinomial sampling loop) not ported.


if __name__ == "__main__":
    vocab_size, n_emb, hidden_size, num_layers, dropout = 32, 16, 32, 2, 0.0
    B, T = 2, 8

    key = jax.random.PRNGKey(0)
    k_model, k_idx, k_tgt = jax.random.split(key, 3)

    model = MIDILSTM(vocab_size, n_emb, hidden_size, num_layers, dropout, k_model)

    idx = jax.random.randint(k_idx, (B, T), 0, vocab_size, dtype=jnp.int32)
    targets = jax.random.randint(k_tgt, (B, T), 0, vocab_size, dtype=jnp.int32)

    logits, loss = model.forward(idx, targets)
    jax.block_until_ready(logits)
    jax.block_until_ready(loss)

    assert logits.shape == (B, T, vocab_size)
    assert loss.shape == ()
    assert bool(jnp.isfinite(loss))
    assert bool(jnp.all(jnp.isfinite(logits)))

    # targets=None path (no-loss kernel variant)
    logits2, loss2 = model.forward(idx, None)
    jax.block_until_ready(logits2)
    assert logits2.shape == (B, T, vocab_size)
    assert loss2 is None

    print("KERNEL_OK")
</pallas_src>

<mosaic_0001>
module attributes {stable_mosaic.version = 11 : i64} {
  func.func @kernel(%arg0: i32, %arg1: i32, %arg2: memref<64x16xbf16, #tpu.memory_space<vmem>>, %arg3: memref<16x512xbf16, #tpu.memory_space<vmem>>, %arg4: memref<128x512xbf16, #tpu.memory_space<vmem>>, %arg5: memref<1x512xf32, #tpu.memory_space<vmem>>, %arg6: memref<128x512xbf16, #tpu.memory_space<vmem>>, %arg7: memref<128x512xbf16, #tpu.memory_space<vmem>>, %arg8: memref<1x512xf32, #tpu.memory_space<vmem>>, %arg9: memref<128x128xbf16, #tpu.memory_space<vmem>>, %arg10: memref<1x128xf32, #tpu.memory_space<vmem>>, %arg11: memref<8x8xi32, #tpu.memory_space<vmem>>, %arg12: memref<64x128xf32, #tpu.memory_space<vmem>>, %arg13: memref<1x1xf32, #tpu.memory_space<smem>>, %arg14: memref<64x512xf32, #tpu.memory_space<vmem>>, %arg15: memref<64x128xf32, #tpu.memory_space<vmem>>, %arg16: memref<2x8x128xf32, #tpu.memory_space<vmem>>, %arg17: memref<2x8x128xf32, #tpu.memory_space<vmem>>) attributes {dimension_semantics = [#tpu.dimension_semantics<parallel>, #tpu.dimension_semantics<arbitrary>], iteration_bounds = array<i64: 1, 1>, scalar_prefetch = 0 : i64, scratch_operands = 4 : i64, tpu.core_type = #tpu.core_type<tc>, window_params = [{transform_indices = @transform_0, window_bounds = array<i64: 64, 16>}, {pipeline_mode = #tpu.pipeline_mode<synchronous>, transform_indices = @transform_1, window_bounds = array<i64: 16, 512>}, {pipeline_mode = #tpu.pipeline_mode<synchronous>, transform_indices = @transform_2, window_bounds = array<i64: 128, 512>}, {pipeline_mode = #tpu.pipeline_mode<synchronous>, transform_indices = @transform_3, window_bounds = array<i64: 1, 512>}, {pipeline_mode = #tpu.pipeline_mode<synchronous>, transform_indices = @transform_4, window_bounds = array<i64: 128, 512>}, {pipeline_mode = #tpu.pipeline_mode<synchronous>, transform_indices = @transform_5, window_bounds = array<i64: 128, 512>}, {pipeline_mode = #tpu.pipeline_mode<synchronous>, transform_indices = @transform_6, window_bounds = array<i64: 1, 512>}, {pipeline_mode = #tpu.pipeline_mode<synchronous>, transform_indices = @transform_7, window_bounds = array<i64: 128, 128>}, {pipeline_mode = #tpu.pipeline_mode<synchronous>, transform_indices = @transform_8, window_bounds = array<i64: 1, 128>}, {transform_indices = @transform_9, window_bounds = array<i64: 8, 8>}, {transform_indices = @transform_10, window_bounds = array<i64: 64, 128>}, {transform_indices = @transform_11, window_bounds = array<i64: 1, 1>}]} {
    %c0_i32 = arith.constant 0 : i32
    %0 = arith.cmpi eq, %arg1, %c0_i32 : i32
    %1 = arith.extui %0 : i1 to i32
    %c0_i32_0 = arith.constant 0 : i32
    %2 = arith.cmpi ne, %1, %c0_i32_0 : i32
    scf.if %2 {
      %cst_216 = arith.constant 0.000000e+00 : f32
      %652 = vector.broadcast %cst_216 : f32 to vector<2x8x128xf32>
      %c0_217 = arith.constant 0 : index
      %c0_218 = arith.constant 0 : index
      %c0_219 = arith.constant 0 : index
      %653 = vector.load %arg16[%c0_217, %c0_218, %c0_219] : memref<2x8x128xf32, #tpu.memory_space<vmem>>, vector<2x8x128xf32>
      tpu.vector_store %arg16[%c0_217, %c0_218, %c0_219], %652 {strides = array<i32>} : memref<2x8x128xf32, #tpu.memory_space<vmem>>, vector<2x8x128xf32>,
      %cst_220 = arith.constant 0.000000e+00 : f32
      %654 = vector.broadcast %cst_220 : f32 to vector<2x8x128xf32>
      %c0_221 = arith.constant 0 : index
      %c0_222 = arith.constant 0 : index
      %c0_223 = arith.constant 0 : index
      %655 = vector.load %arg17[%c0_221, %c0_222, %c0_223] : memref<2x8x128xf32, #tpu.memory_space<vmem>>, vector<2x8x128xf32>
      tpu.vector_store %arg17[%c0_221, %c0_222, %c0_223], %654 {strides = array<i32>} : memref<2x8x128xf32, #tpu.memory_space<vmem>>, vector<2x8x128xf32>,
    } else {
    }
    %c0 = arith.constant 0 : index
    %c0_1 = arith.constant 0 : index
    %3 = vector.load %arg2[%c0, %c0_1] : memref<64x16xbf16, #tpu.memory_space<vmem>>, vector<64x16xbf16>
    %c0_2 = arith.constant 0 : index
    %c0_3 = arith.constant 0 : index
    %4 = vector.load %arg3[%c0_2, %c0_3] : memref<16x512xbf16, #tpu.memory_space<vmem>>, vector<16x512xbf16>
    %cst = arith.constant dense<0.000000e+00> : vector<64x512xf32>
    %5 = tpu.matmul %3, %4, %cst {dimension_numbers = #tpu.dot_dimension_numbers<[1], [0], [0], [1], [0, 0, 1, 1], [], []>} : vector<64x16xbf16>, vector<16x512xbf16>, vector<64x512xf32> -> vector<64x512xf32>
    %c0_4 = arith.constant 0 : index
    %c0_5 = arith.constant 0 : index
    %6 = vector.load %arg5[%c0_4, %c0_5] : memref<1x512xf32, #tpu.memory_space<vmem>>, vector<1x512xf32>
    %7 = vector.broadcast %6 : vector<1x512xf32> to vector<64x512xf32>
    %8 = arith.addf %5, %7 : vector<64x512xf32>
    %c0_6 = arith.constant 0 : index
    %c0_7 = arith.constant 0 : index
    %9 = vector.load %arg14[%c0_6, %c0_7] : memref<64x512xf32, #tpu.memory_space<vmem>>, vector<64x512xf32>
    tpu.vector_store %arg14[%c0_6, %c0_7], %8 {strides = array<i32>} : memref<64x512xf32, #tpu.memory_space<vmem>>, vector<64x512xf32>,
    %c0_8 = arith.constant 0 : index
    %c0_9 = arith.constant 0 : index
    %c0_10 = arith.constant 0 : index
    %10 = vector.load %arg16[%c0_8, %c0_9, %c0_10] : memref<2x8x128xf32, #tpu.memory_space<vmem>>, vector<1x8x128xf32>
    %11 = vector.shape_cast %10 : vector<1x8x128xf32> to vector<8x128xf32>
    %c0_11 = arith.constant 0 : index
    %c0_12 = arith.constant 0 : index
    %c0_13 = arith.constant 0 : index
    %12 = vector.load %arg17[%c0_11, %c0_12, %c0_13] : memref<2x8x128xf32, #tpu.memory_space<vmem>>, vector<1x8x128xf32>
    %13 = vector.shape_cast %12 : vector<1x8x128xf32> to vector<8x128xf32>
    %c0_i32_14 = arith.constant 0 : i32
    %c8_i32 = arith.constant 8 : i32
    %14 = arith.muli %c0_i32_14, %c8_i32 : i32
    %15 = tpu.assume_multiple %14, 8 : i32
    %16 = arith.index_cast %15 : i32 to index
    %c0_15 = arith.constant 0 : index
    %17 = vector.load %arg14[%16, %c0_15] : memref<64x512xf32, #tpu.memory_space<vmem>>, vector<8x512xf32>
    %18 = arith.truncf %11 : vector<8x128xf32> to vector<8x128xbf16>
    %c0_16 = arith.constant 0 : index
    %c0_17 = arith.constant 0 : index
    %19 = vector.load %arg4[%c0_16, %c0_17] : memref<128x512xbf16, #tpu.memory_space<vmem>>, vector<128x512xbf16>
    %cst_18 = arith.constant dense<0.000000e+00> : vector<8x512xf32>
    %20 = tpu.matmul %18, %19, %cst_18 {dimension_numbers = #tpu.dot_dimension_numbers<[1], [0], [0], [1], [0, 0, 1, 1], [], []>} : vector<8x128xbf16>, vector<128x512xbf16>, vector<8x512xf32> -> vector<8x512xf32>
    %21 = arith.addf %17, %20 : vector<8x512xf32>
    %22 = vector.extract_strided_slice %21 {offsets = [0, 0], sizes = [8, 128], strides = [1, 1]} : vector<8x512xf32> to vector<8x128xf32>
    %23 = arith.negf %22 : vector<8x128xf32>
    %24 = math.exp %23 : vector<8x128xf32>
    %cst_19 = arith.constant 1.000000e+00 : f32
    %25 = vector.broadcast %cst_19 : f32 to vector<8x128xf32>
    %26 = arith.addf %25, %24 : vector<8x128xf32>
    %27 = arith.divf %25, %26 : vector<8x128xf32>
    %28 = vector.extract_strided_slice %21 {offsets = [0, 128], sizes = [8, 128], strides = [1, 1]} : vector<8x512xf32> to vector<8x128xf32>
    %29 = arith.negf %28 : vector<8x128xf32>
    %30 = math.exp %29 : vector<8x128xf32>
    %cst_20 = arith.constant 1.000000e+00 : f32
    %31 = vector.broadcast %cst_20 : f32 to vector<8x128xf32>
    %32 = arith.addf %31, %30 : vector<8x128xf32>
    %33 = arith.divf %31, %32 : vector<8x128xf32>
    %34 = vector.extract_strided_slice %21 {offsets = [0, 256], sizes = [8, 128], strides = [1, 1]} : vector<8x512xf32> to vector<8x128xf32>
    %35 = math.tanh %34 : vector<8x128xf32>
    %36 = vector.extract_strided_slice %21 {offsets = [0, 384], sizes = [8, 128], strides = [1, 1]} : vector<8x512xf32> to vector<8x128xf32>
    %37 = arith.negf %36 : vector<8x128xf32>
    %38 = math.exp %37 : vector<8x128xf32>
    %cst_21 = arith.constant 1.000000e+00 : f32
    %39 = vector.broadcast %cst_21 : f32 to vector<8x128xf32>
    %40 = arith.addf %39, %38 : vector<8x128xf32>
    %41 = arith.divf %39, %40 : vector<8x128xf32>
    %42 = arith.mulf %33, %13 : vector<8x128xf32>
    %43 = arith.mulf %27, %35 : vector<8x128xf32>
    %44 = arith.addf %42, %43 : vector<8x128xf32>
    %45 = math.tanh %44 : vector<8x128xf32>
    %46 = arith.mulf %41, %45 : vector<8x128xf32>
    %47 = arith.index_cast %15 : i32 to index
    %c0_22 = arith.constant 0 : index
    %48 = vector.load %arg15[%47, %c0_22] : memref<64x128xf32, #tpu.memory_space<vmem>>, vector<8x128xf32>
    tpu.vector_store %arg15[%47, %c0_22], %46 {strides = array<i32>} : memref<64x128xf32, #tpu.memory_space<vmem>>, vector<8x128xf32>,
    %c1_i32 = arith.constant 1 : i32
    %c8_i32_23 = arith.constant 8 : i32
    %49 = arith.muli %c1_i32, %c8_i32_23 : i32
    %50 = tpu.assume_multiple %49, 8 : i32
    %51 = arith.index_cast %50 : i32 to index
    %c0_24 = arith.constant 0 : index
    %52 = vector.load %arg14[%51, %c0_24] : memref<64x512xf32, #tpu.memory_space<vmem>>, vector<8x512xf32>
    %53 = arith.truncf %46 : vector<8x128xf32> to vector<8x128xbf16>
    %c0_25 = arith.constant 0 : index
    %c0_26 = arith.constant 0 : index
    %54 = vector.load %arg4[%c0_25, %c0_26] : memref<128x512xbf16, #tpu.memory_space<vmem>>, vector<128x512xbf16>
    %cst_27 = arith.constant dense<0.000000e+00> : vector<8x512xf32>
    %55 = tpu.matmul %53, %54, %cst_27 {dimension_numbers = #tpu.dot_dimension_numbers<[1], [0], [0], [1], [0, 0, 1, 1], [], []>} : vector<8x128xbf16>, vector<128x512xbf16>, vector<8x512xf32> -> vector<8x512xf32>
    %56 = arith.addf %52, %55 : vector<8x512xf32>
    %57 = vector.extract_strided_slice %56 {offsets = [0, 0], sizes = [8, 128], strides = [1, 1]} : vector<8x512xf32> to vector<8x128xf32>
    %58 = arith.negf %57 : vector<8x128xf32>
    %59 = math.exp %58 : vector<8x128xf32>
    %cst_28 = arith.constant 1.000000e+00 : f32
    %60 = vector.broadcast %cst_28 : f32 to vector<8x128xf32>
    %61 = arith.addf %60, %59 : vector<8x128xf32>
    %62 = arith.divf %60, %61 : vector<8x128xf32>
    %63 = vector.extract_strided_slice %56 {offsets = [0, 128], sizes = [8, 128], strides = [1, 1]} : vector<8x512xf32> to vector<8x128xf32>
    %64 = arith.negf %63 : vector<8x128xf32>
    %65 = math.exp %64 : vector<8x128xf32>
    %cst_29 = arith.constant 1.000000e+00 : f32
    %66 = vector.broadcast %cst_29 : f32 to vector<8x128xf32>
    %67 = arith.addf %66, %65 : vector<8x128xf32>
    %68 = arith.divf %66, %67 : vector<8x128xf32>
    %69 = vector.extract_strided_slice %56 {offsets = [0, 256], sizes = [8, 128], strides = [1, 1]} : vector<8x512xf32> to vector<8x128xf32>
    %70 = math.tanh %69 : vector<8x128xf32>
    %71 = vector.extract_strided_slice %56 {offsets = [0, 384], sizes = [8, 128], strides = [1, 1]} : vector<8x512xf32> to vector<8x128xf32>
    %72 = arith.negf %71 : vector<8x128xf32>
    %73 = math.exp %72 : vector<8x128xf32>
    %cst_30 = arith.constant 1.000000e+00 : f32
    %74 = vector.broadcast %cst_30 : f32 to vector<8x128xf32>
    %75 = arith.addf %74, %73 : vector<8x128xf32>
    %76 = arith.divf %74, %75 : vector<8x128xf32>
    %77 = arith.mulf %68, %44 : vector<8x128xf32>
    %78 = arith.mulf %62, %70 : vector<8x128xf32>
    %79 = arith.addf %77, %78 : vector<8x128xf32>
    %80 = math.tanh %79 : vector<8x128xf32>
    %81 = arith.mulf %76, %80 : vector<8x128xf32>
    %82 = arith.index_cast %50 : i32 to index
    %c0_31 = arith.constant 0 : index
    %83 = vector.load %arg15[%82, %c0_31] : memref<64x128xf32, #tpu.memory_space<vmem>>, vector<8x128xf32>
    tpu.vector_store %arg15[%82, %c0_31], %81 {strides = array<i32>} : memref<64x128xf32, #tpu.memory_space<vmem>>, vector<8x128xf32>,
    %c2_i32 = arith.constant 2 : i32
    %c8_i32_32 = arith.constant 8 : i32
    %84 = arith.muli %c2_i32, %c8_i32_32 : i32
    %85 = tpu.assume_multiple %84, 8 : i32
    %86 = arith.index_cast %85 : i32 to index
    %c0_33 = arith.constant 0 : index
    %87 = vector.load %arg14[%86, %c0_33] : memref<64x512xf32, #tpu.memory_space<vmem>>, vector<8x512xf32>
    %88 = arith.truncf %81 : vector<8x128xf32> to vector<8x128xbf16>
    %c0_34 = arith.constant 0 : index
    %c0_35 = arith.constant 0 : index
    %89 = vector.load %arg4[%c0_34, %c0_35] : memref<128x512xbf16, #tpu.memory_space<vmem>>, vector<128x512xbf16>
    %cst_36 = arith.constant dense<0.000000e+00> : vector<8x512xf32>
    %90 = tpu.matmul %88, %89, %cst_36 {dimension_numbers = #tpu.dot_dimension_numbers<[1], [0], [0], [1], [0, 0, 1, 1], [], []>} : vector<8x128xbf16>, vector<128x512xbf16>, vector<8x512xf32> -> vector<8x512xf32>
    %91 = arith.addf %87, %90 : vector<8x512xf32>
    %92 = vector.extract_strided_slice %91 {offsets = [0, 0], sizes = [8, 128], strides = [1, 1]} : vector<8x512xf32> to vector<8x128xf32>
    %93 = arith.negf %92 : vector<8x128xf32>
    %94 = math.exp %93 : vector<8x128xf32>
    %cst_37 = arith.constant 1.000000e+00 : f32
    %95 = vector.broadcast %cst_37 : f32 to vector<8x128xf32>
    %96 = arith.addf %95, %94 : vector<8x128xf32>
    %97 = arith.divf %95, %96 : vector<8x128xf32>
    %98 = vector.extract_strided_slice %91 {offsets = [0, 128], sizes = [8, 128], strides = [1, 1]} : vector<8x512xf32> to vector<8x128xf32>
    %99 = arith.negf %98 : vector<8x128xf32>
    %100 = math.exp %99 : vector<8x128xf32>
    %cst_38 = arith.constant 1.000000e+00 : f32
    %101 = vector.broadcast %cst_38 : f32 to vector<8x128xf32>
    %102 = arith.addf %101, %100 : vector<8x128xf32>
    %103 = arith.divf %101, %102 : vector<8x128xf32>
    %104 = vector.extract_strided_slice %91 {offsets = [0, 256], sizes = [8, 128], strides = [1, 1]} : vector<8x512xf32> to vector<8x128xf32>
    %105 = math.tanh %104 : vector<8x128xf32>
    %106 = vector.extract_strided_slice %91 {offsets = [0, 384], sizes = [8, 128], strides = [1, 1]} : vector<8x512xf32> to vector<8x128xf32>
    %107 = arith.negf %106 : vector<8x128xf32>
    %108 = math.exp %107 : vector<8x128xf32>
    %cst_39 = arith.constant 1.000000e+00 : f32
    %109 = vector.broadcast %cst_39 : f32 to vector<8x128xf32>
    %110 = arith.addf %109, %108 : vector<8x128xf32>
    %111 = arith.divf %109, %110 : vector<8x128xf32>
    %112 = arith.mulf %103, %79 : vector<8x128xf32>
    %113 = arith.mulf %97, %105 : vector<8x128xf32>
    %114 = arith.addf %112, %113 : vector<8x128xf32>
    %115 = math.tanh %114 : vector<8x128xf32>
    %116 = arith.mulf %111, %115 : vector<8x128xf32>
    %117 = arith.index_cast %85 : i32 to index
    %c0_40 = arith.constant 0 : index
    %118 = vector.load %arg15[%117, %c0_40] : memref<64x128xf32, #tpu.memory_space<vmem>>, vector<8x128xf32>
    tpu.vector_store %arg15[%117, %c0_40], %116 {strides = array<i32>} : memref<64x128xf32, #tpu.memory_space<vmem>>, vector<8x128xf32>,
    %c3_i32 = arith.constant 3 : i32
    %c8_i32_41 = arith.constant 8 : i32
    %119 = arith.muli %c3_i32, %c8_i32_41 : i32
    %120 = tpu.assume_multiple %119, 8 : i32
    %121 = arith.index_cast %120 : i32 to index
    %c0_42 = arith.constant 0 : index
    %122 = vector.load %arg14[%121, %c0_42] : memref<64x512xf32, #tpu.memory_space<vmem>>, vector<8x512xf32>
    %123 = arith.truncf %116 : vector<8x128xf32> to vector<8x128xbf16>
    %c0_43 = arith.constant 0 : index
    %c0_44 = arith.constant 0 : index
    %124 = vector.load %arg4[%c0_43, %c0_44] : memref<128x512xbf16, #tpu.memory_space<vmem>>, vector<128x512xbf16>
    %cst_45 = arith.constant dense<0.000000e+00> : vector<8x512xf32>
    %125 = tpu.matmul %123, %124, %cst_45 {dimension_numbers = #tpu.dot_dimension_numbers<[1], [0], [0], [1], [0, 0, 1, 1], [], []>} : vector<8x128xbf16>, vector<128x512xbf16>, vector<8x512xf32> -> vector<8x512xf32>
    %126 = arith.addf %122, %125 : vector<8x512xf32>
    %127 = vector.extract_strided_slice %126 {offsets = [0, 0], sizes = [8, 128], strides = [1, 1]} : vector<8x512xf32> to vector<8x128xf32>
    %128 = arith.negf %127 : vector<8x128xf32>
    %129 = math.exp %128 : vector<8x128xf32>
    %cst_46 = arith.constant 1.000000e+00 : f32
    %130 = vector.broadcast %cst_46 : f32 to vector<8x128xf32>
    %131 = arith.addf %130, %129 : vector<8x128xf32>
    %132 = arith.divf %130, %131 : vector<8x128xf32>
    %133 = vector.extract_strided_slice %126 {offsets = [0, 128], sizes = [8, 128], strides = [1, 1]} : vector<8x512xf32> to vector<8x128xf32>
    %134 = arith.negf %133 : vector<8x128xf32>
    %135 = math.exp %134 : vector<8x128xf32>
    %cst_47 = arith.constant 1.000000e+00 : f32
    %136 = vector.broadcast %cst_47 : f32 to vector<8x128xf32>
    %137 = arith.addf %136, %135 : vector<8x128xf32>
    %138 = arith.divf %136, %137 : vector<8x128xf32>
    %139 = vector.extract_strided_slice %126 {offsets = [0, 256], sizes = [8, 128], strides = [1, 1]} : vector<8x512xf32> to vector<8x128xf32>
    %140 = math.tanh %139 : vector<8x128xf32>
    %141 = vector.extract_strided_slice %126 {offsets = [0, 384], sizes = [8, 128], strides = [1, 1]} : vector<8x512xf32> to vector<8x128xf32>
    %142 = arith.negf %141 : vector<8x128xf32>
    %143 = math.exp %142 : vector<8x128xf32>
    %cst_48 = arith.constant 1.000000e+00 : f32
    %144 = vector.broadcast %cst_48 : f32 to vector<8x128xf32>
    %145 = arith.addf %144, %143 : vector<8x128xf32>
    %146 = arith.divf %144, %145 : vector<8x128xf32>
    %147 = arith.mulf %138, %114 : vector<8x128xf32>
    %148 = arith.mulf %132, %140 : vector<8x128xf32>
    %149 = arith.addf %147, %148 : vector<8x128xf32>
    %150 = math.tanh %149 : vector<8x128xf32>
    %151 = arith.mulf %146, %150 : vector<8x128xf32>
    %152 = arith.index_cast %120 : i32 to index
    %c0_49 = arith.constant 0 : index
    %153 = vector.load %arg15[%152, %c0_49] : memref<64x128xf32, #tpu.memory_space<vmem>>, vector<8x128xf32>
    tpu.vector_store %arg15[%152, %c0_49], %151 {strides = array<i32>} : memref<64x128xf32, #tpu.memory_space<vmem>>, vector<8x128xf32>,
    %c4_i32 = arith.constant 4 : i32
    %c8_i32_50 = arith.constant 8 : i32
    %154 = arith.muli %c4_i32, %c8_i32_50 : i32
    %155 = tpu.assume_multiple %154, 8 : i32
    %156 = arith.index_cast %155 : i32 to index
    %c0_51 = arith.constant 0 : index
    %157 = vector.load %arg14[%156, %c0_51] : memref<64x512xf32, #tpu.memory_space<vmem>>, vector<8x512xf32>
    %158 = arith.truncf %151 : vector<8x128xf32> to vector<8x128xbf16>
    %c0_52 = arith.constant 0 : index
    %c0_53 = arith.constant 0 : index
    %159 = vector.load %arg4[%c0_52, %c0_53] : memref<128x512xbf16, #tpu.memory_space<vmem>>, vector<128x512xbf16>
    %cst_54 = arith.constant dense<0.000000e+00> : vector<8x512xf32>
    %160 = tpu.matmul %158, %159, %cst_54 {dimension_numbers = #tpu.dot_dimension_numbers<[1], [0], [0], [1], [0, 0, 1, 1], [], []>} : vector<8x128xbf16>, vector<128x512xbf16>, vector<8x512xf32> -> vector<8x512xf32>
    %161 = arith.addf %157, %160 : vector<8x512xf32>
    %162 = vector.extract_strided_slice %161 {offsets = [0, 0], sizes = [8, 128], strides = [1, 1]} : vector<8x512xf32> to vector<8x128xf32>
    %163 = arith.negf %162 : vector<8x128xf32>
    %164 = math.exp %163 : vector<8x128xf32>
    %cst_55 = arith.constant 1.000000e+00 : f32
    %165 = vector.broadcast %cst_55 : f32 to vector<8x128xf32>
    %166 = arith.addf %165, %164 : vector<8x128xf32>
    %167 = arith.divf %165, %166 : vector<8x128xf32>
    %168 = vector.extract_strided_slice %161 {offsets = [0, 128], sizes = [8, 128], strides = [1, 1]} : vector<8x512xf32> to vector<8x128xf32>
    %169 = arith.negf %168 : vector<8x128xf32>
    %170 = math.exp %169 : vector<8x128xf32>
    %cst_56 = arith.constant 1.000000e+00 : f32
    %171 = vector.broadcast %cst_56 : f32 to vector<8x128xf32>
    %172 = arith.addf %171, %170 : vector<8x128xf32>
    %173 = arith.divf %171, %172 : vector<8x128xf32>
    %174 = vector.extract_strided_slice %161 {offsets = [0, 256], sizes = [8, 128], strides = [1, 1]} : vector<8x512xf32> to vector<8x128xf32>
    %175 = math.tanh %174 : vector<8x128xf32>
    %176 = vector.extract_strided_slice %161 {offsets = [0, 384], sizes = [8, 128], strides = [1, 1]} : vector<8x512xf32> to vector<8x128xf32>
    %177 = arith.negf %176 : vector<8x128xf32>
    %178 = math.exp %177 : vector<8x128xf32>
    %cst_57 = arith.constant 1.000000e+00 : f32
    %179 = vector.broadcast %cst_57 : f32 to vector<8x128xf32>
    %180 = arith.addf %179, %178 : vector<8x128xf32>
    %181 = arith.divf %179, %180 : vector<8x128xf32>
    %182 = arith.mulf %173, %149 : vector<8x128xf32>
    %183 = arith.mulf %167, %175 : vector<8x128xf32>
    %184 = arith.addf %182, %183 : vector<8x128xf32>
    %185 = math.tanh %184 : vector<8x128xf32>
    %186 = arith.mulf %181, %185 : vector<8x128xf32>
    %187 = arith.index_cast %155 : i32 to index
    %c0_58 = arith.constant 0 : index
    %188 = vector.load %arg15[%187, %c0_58] : memref<64x128xf32, #tpu.memory_space<vmem>>, vector<8x128xf32>
    tpu.vector_store %arg15[%187, %c0_58], %186 {strides = array<i32>} : memref<64x128xf32, #tpu.memory_space<vmem>>, vector<8x128xf32>,
    %c5_i32 = arith.constant 5 : i32
    %c8_i32_59 = arith.constant 8 : i32
    %189 = arith.muli %c5_i32, %c8_i32_59 : i32
    %190 = tpu.assume_multiple %189, 8 : i32
    %191 = arith.index_cast %190 : i32 to index
    %c0_60 = arith.constant 0 : index
    %192 = vector.load %arg14[%191, %c0_60] : memref<64x512xf32, #tpu.memory_space<vmem>>, vector<8x512xf32>
    %193 = arith.truncf %186 : vector<8x128xf32> to vector<8x128xbf16>
    %c0_61 = arith.constant 0 : index
    %c0_62 = arith.constant 0 : index
    %194 = vector.load %arg4[%c0_61, %c0_62] : memref<128x512xbf16, #tpu.memory_space<vmem>>, vector<128x512xbf16>
    %cst_63 = arith.constant dense<0.000000e+00> : vector<8x512xf32>
    %195 = tpu.matmul %193, %194, %cst_63 {dimension_numbers = #tpu.dot_dimension_numbers<[1], [0], [0], [1], [0, 0, 1, 1], [], []>} : vector<8x128xbf16>, vector<128x512xbf16>, vector<8x512xf32> -> vector<8x512xf32>
    %196 = arith.addf %192, %195 : vector<8x512xf32>
    %197 = vector.extract_strided_slice %196 {offsets = [0, 0], sizes = [8, 128], strides = [1, 1]} : vector<8x512xf32> to vector<8x128xf32>
    %198 = arith.negf %197 : vector<8x128xf32>
    %199 = math.exp %198 : vector<8x128xf32>
    %cst_64 = arith.constant 1.000000e+00 : f32
    %200 = vector.broadcast %cst_64 : f32 to vector<8x128xf32>
    %201 = arith.addf %200, %199 : vector<8x128xf32>
    %202 = arith.divf %200, %201 : vector<8x128xf32>
    %203 = vector.extract_strided_slice %196 {offsets = [0, 128], sizes = [8, 128], strides = [1, 1]} : vector<8x512xf32> to vector<8x128xf32>
    %204 = arith.negf %203 : vector<8x128xf32>
    %205 = math.exp %204 : vector<8x128xf32>
    %cst_65 = arith.constant 1.000000e+00 : f32
    %206 = vector.broadcast %cst_65 : f32 to vector<8x128xf32>
    %207 = arith.addf %206, %205 : vector<8x128xf32>
    %208 = arith.divf %206, %207 : vector<8x128xf32>
    %209 = vector.extract_strided_slice %196 {offsets = [0, 256], sizes = [8, 128], strides = [1, 1]} : vector<8x512xf32> to vector<8x128xf32>
    %210 = math.tanh %209 : vector<8x128xf32>
    %211 = vector.extract_strided_slice %196 {offsets = [0, 384], sizes = [8, 128], strides = [1, 1]} : vector<8x512xf32> to vector<8x128xf32>
    %212 = arith.negf %211 : vector<8x128xf32>
    %213 = math.exp %212 : vector<8x128xf32>
    %cst_66 = arith.constant 1.000000e+00 : f32
    %214 = vector.broadcast %cst_66 : f32 to vector<8x128xf32>
    %215 = arith.addf %214, %213 : vector<8x128xf32>
    %216 = arith.divf %214, %215 : vector<8x128xf32>
    %217 = arith.mulf %208, %184 : vector<8x128xf32>
    %218 = arith.mulf %202, %210 : vector<8x128xf32>
    %219 = arith.addf %217, %218 : vector<8x128xf32>
    %220 = math.tanh %219 : vector<8x128xf32>
    %221 = arith.mulf %216, %220 : vector<8x128xf32>
    %222 = arith.index_cast %190 : i32 to index
    %c0_67 = arith.constant 0 : index
    %223 = vector.load %arg15[%222, %c0_67] : memref<64x128xf32, #tpu.memory_space<vmem>>, vector<8x128xf32>
    tpu.vector_store %arg15[%222, %c0_67], %221 {strides = array<i32>} : memref<64x128xf32, #tpu.memory_space<vmem>>, vector<8x128xf32>,
    %c6_i32 = arith.constant 6 : i32
    %c8_i32_68 = arith.constant 8 : i32
    %224 = arith.muli %c6_i32, %c8_i32_68 : i32
    %225 = tpu.assume_multiple %224, 8 : i32
    %226 = arith.index_cast %225 : i32 to index
    %c0_69 = arith.constant 0 : index
    %227 = vector.load %arg14[%226, %c0_69] : memref<64x512xf32, #tpu.memory_space<vmem>>, vector<8x512xf32>
    %228 = arith.truncf %221 : vector<8x128xf32> to vector<8x128xbf16>
    %c0_70 = arith.constant 0 : index
    %c0_71 = arith.constant 0 : index
    %229 = vector.load %arg4[%c0_70, %c0_71] : memref<128x512xbf16, #tpu.memory_space<vmem>>, vector<128x512xbf16>
    %cst_72 = arith.constant dense<0.000000e+00> : vector<8x512xf32>
    %230 = tpu.matmul %228, %229, %cst_72 {dimension_numbers = #tpu.dot_dimension_numbers<[1], [0], [0], [1], [0, 0, 1, 1], [], []>} : vector<8x128xbf16>, vector<128x512xbf16>, vector<8x512xf32> -> vector<8x512xf32>
    %231 = arith.addf %227, %230 : vector<8x512xf32>
    %232 = vector.extract_strided_slice %231 {offsets = [0, 0], sizes = [8, 128], strides = [1, 1]} : vector<8x512xf32> to vector<8x128xf32>
    %233 = arith.negf %232 : vector<8x128xf32>
    %234 = math.exp %233 : vector<8x128xf32>
    %cst_73 = arith.constant 1.000000e+00 : f32
    %235 = vector.broadcast %cst_73 : f32 to vector<8x128xf32>
    %236 = arith.addf %235, %234 : vector<8x128xf32>
    %237 = arith.divf %235, %236 : vector<8x128xf32>
    %238 = vector.extract_strided_slice %231 {offsets = [0, 128], sizes = [8, 128], strides = [1, 1]} : vector<8x512xf32> to vector<8x128xf32>
    %239 = arith.negf %238 : vector<8x128xf32>
    %240 = math.exp %239 : vector<8x128xf32>
    %cst_74 = arith.constant 1.000000e+00 : f32
    %241 = vector.broadcast %cst_74 : f32 to vector<8x128xf32>
    %242 = arith.addf %241, %240 : vector<8x128xf32>
    %243 = arith.divf %241, %242 : vector<8x128xf32>
    %244 = vector.extract_strided_slice %231 {offsets = [0, 256], sizes = [8, 128], strides = [1, 1]} : vector<8x512xf32> to vector<8x128xf32>
    %245 = math.tanh %244 : vector<8x128xf32>
    %246 = vector.extract_strided_slice %231 {offsets = [0, 384], sizes = [8, 128], strides = [1, 1]} : vector<8x512xf32> to vector<8x128xf32>
    %247 = arith.negf %246 : vector<8x128xf32>
    %248 = math.exp %247 : vector<8x128xf32>
    %cst_75 = arith.constant 1.000000e+00 : f32
    %249 = vector.broadcast %cst_75 : f32 to vector<8x128xf32>
    %250 = arith.addf %249, %248 : vector<8x128xf32>
    %251 = arith.divf %249, %250 : vector<8x128xf32>
    %252 = arith.mulf %243, %219 : vector<8x128xf32>
    %253 = arith.mulf %237, %245 : vector<8x128xf32>
    %254 = arith.addf %252, %253 : vector<8x128xf32>
    %255 = math.tanh %254 : vector<8x128xf32>
    %256 = arith.mulf %251, %255 : vector<8x128xf32>
    %257 = arith.index_cast %225 : i32 to index
    %c0_76 = arith.constant 0 : index
    %258 = vector.load %arg15[%257, %c0_76] : memref<64x128xf32, #tpu.memory_space<vmem>>, vector<8x128xf32>
    tpu.vector_store %arg15[%257, %c0_76], %256 {strides = array<i32>} : memref<64x128xf32, #tpu.memory_space<vmem>>, vector<8x128xf32>,
    %c7_i32 = arith.constant 7 : i32
    %c8_i32_77 = arith.constant 8 : i32
    %259 = arith.muli %c7_i32, %c8_i32_77 : i32
    %260 = tpu.assume_multiple %259, 8 : i32
    %261 = arith.index_cast %260 : i32 to index
    %c0_78 = arith.constant 0 : index
    %262 = vector.load %arg14[%261, %c0_78] : memref<64x512xf32, #tpu.memory_space<vmem>>, vector<8x512xf32>
    %263 = arith.truncf %256 : vector<8x128xf32> to vector<8x128xbf16>
    %c0_79 = arith.constant 0 : index
    %c0_80 = arith.constant 0 : index
    %264 = vector.load %arg4[%c0_79, %c0_80] : memref<128x512xbf16, #tpu.memory_space<vmem>>, vector<128x512xbf16>
    %cst_81 = arith.constant dense<0.000000e+00> : vector<8x512xf32>
    %265 = tpu.matmul %263, %264, %cst_81 {dimension_numbers = #tpu.dot_dimension_numbers<[1], [0], [0], [1], [0, 0, 1, 1], [], []>} : vector<8x128xbf16>, vector<128x512xbf16>, vector<8x512xf32> -> vector<8x512xf32>
    %266 = arith.addf %262, %265 : vector<8x512xf32>
    %267 = vector.extract_strided_slice %266 {offsets = [0, 0], sizes = [8, 128], strides = [1, 1]} : vector<8x512xf32> to vector<8x128xf32>
    %268 = arith.negf %267 : vector<8x128xf32>
    %269 = math.exp %268 : vector<8x128xf32>
    %cst_82 = arith.constant 1.000000e+00 : f32
    %270 = vector.broadcast %cst_82 : f32 to vector<8x128xf32>
    %271 = arith.addf %270, %269 : vector<8x128xf32>
    %272 = arith.divf %270, %271 : vector<8x128xf32>
    %273 = vector.extract_strided_slice %266 {offsets = [0, 128], sizes = [8, 128], strides = [1, 1]} : vector<8x512xf32> to vector<8x128xf32>
    %274 = arith.negf %273 : vector<8x128xf32>
    %275 = math.exp %274 : vector<8x128xf32>
    %cst_83 = arith.constant 1.000000e+00 : f32
    %276 = vector.broadcast %cst_83 : f32 to vector<8x128xf32>
    %277 = arith.addf %276, %275 : vector<8x128xf32>
    %278 = arith.divf %276, %277 : vector<8x128xf32>
    %279 = vector.extract_strided_slice %266 {offsets = [0, 256], sizes = [8, 128], strides = [1, 1]} : vector<8x512xf32> to vector<8x128xf32>
    %280 = math.tanh %279 : vector<8x128xf32>
    %281 = vector.extract_strided_slice %266 {offsets = [0, 384], sizes = [8, 128], strides = [1, 1]} : vector<8x512xf32> to vector<8x128xf32>
    %282 = arith.negf %281 : vector<8x128xf32>
    %283 = math.exp %282 : vector<8x128xf32>
    %cst_84 = arith.constant 1.000000e+00 : f32
    %284 = vector.broadcast %cst_84 : f32 to vector<8x128xf32>
    %285 = arith.addf %284, %283 : vector<8x128xf32>
    %286 = arith.divf %284, %285 : vector<8x128xf32>
    %287 = arith.mulf %278, %254 : vector<8x128xf32>
    %288 = arith.mulf %272, %280 : vector<8x128xf32>
    %289 = arith.addf %287, %288 : vector<8x128xf32>
    %290 = math.tanh %289 : vector<8x128xf32>
    %291 = arith.mulf %286, %290 : vector<8x128xf32>
    %292 = arith.index_cast %260 : i32 to index
    %c0_85 = arith.constant 0 : index
    %293 = vector.load %arg15[%292, %c0_85] : memref<64x128xf32, #tpu.memory_space<vmem>>, vector<8x128xf32>
    tpu.vector_store %arg15[%292, %c0_85], %291 {strides = array<i32>} : memref<64x128xf32, #tpu.memory_space<vmem>>, vector<8x128xf32>,
    %c8_i32_86 = arith.constant 8 : i32
    %c0_87 = arith.constant 0 : index
    %c0_88 = arith.constant 0 : index
    %c0_89 = arith.constant 0 : index
    %294 = vector.load %arg16[%c0_87, %c0_88, %c0_89] : memref<2x8x128xf32, #tpu.memory_space<vmem>>, vector<1x8x128xf32>
    %295 = vector.shape_cast %294 : vector<1x8x128xf32> to vector<8x128xf32>
    %296 = vector.shape_cast %291 : vector<8x128xf32> to vector<1x8x128xf32>
    tpu.vector_store %arg16[%c0_87, %c0_88, %c0_89], %296 {strides = array<i32>} : memref<2x8x128xf32, #tpu.memory_space<vmem>>, vector<1x8x128xf32>,
    %c0_90 = arith.constant 0 : index
    %c0_91 = arith.constant 0 : index
    %c0_92 = arith.constant 0 : index
    %297 = vector.load %arg17[%c0_90, %c0_91, %c0_92] : memref<2x8x128xf32, #tpu.memory_space<vmem>>, vector<1x8x128xf32>
    %298 = vector.shape_cast %297 : vector<1x8x128xf32> to vector<8x128xf32>
    %299 = vector.shape_cast %289 : vector<8x128xf32> to vector<1x8x128xf32>
    tpu.vector_store %arg17[%c0_90, %c0_91, %c0_92], %299 {strides = array<i32>} : memref<2x8x128xf32, #tpu.memory_space<vmem>>, vector<1x8x128xf32>,
    %c0_93 = arith.constant 0 : index
    %c0_94 = arith.constant 0 : index
    %300 = vector.load %arg15[%c0_93, %c0_94] : memref<64x128xf32, #tpu.memory_space<vmem>>, vector<64x128xf32>
    %301 = arith.truncf %300 : vector<64x128xf32> to vector<64x128xbf16>
    %c0_95 = arith.constant 0 : index
    %c0_96 = arith.constant 0 : index
    %302 = vector.load %arg6[%c0_95, %c0_96] : memref<128x512xbf16, #tpu.memory_space<vmem>>, vector<128x512xbf16>
    %cst_97 = arith.constant dense<0.000000e+00> : vector<64x512xf32>
    %303 = tpu.matmul %301, %302, %cst_97 {dimension_numbers = #tpu.dot_dimension_numbers<[1], [0], [0], [1], [0, 0, 1, 1], [], []>} : vector<64x128xbf16>, vector<128x512xbf16>, vector<64x512xf32> -> vector<64x512xf32>
    %c0_98 = arith.constant 0 : index
    %c0_99 = arith.constant 0 : index
    %304 = vector.load %arg8[%c0_98, %c0_99] : memref<1x512xf32, #tpu.memory_space<vmem>>, vector<1x512xf32>
    %305 = vector.broadcast %304 : vector<1x512xf32> to vector<64x512xf32>
    %306 = arith.addf %303, %305 : vector<64x512xf32>
    %c0_100 = arith.constant 0 : index
    %c0_101 = arith.constant 0 : index
    %307 = vector.load %arg14[%c0_100, %c0_101] : memref<64x512xf32, #tpu.memory_space<vmem>>, vector<64x512xf32>
    tpu.vector_store %arg14[%c0_100, %c0_101], %306 {strides = array<i32>} : memref<64x512xf32, #tpu.memory_space<vmem>>, vector<64x512xf32>,
    %c1 = arith.constant 1 : index
    %c0_102 = arith.constant 0 : index
    %c0_103 = arith.constant 0 : index
    %308 = vector.load %arg16[%c1, %c0_102, %c0_103] : memref<2x8x128xf32, #tpu.memory_space<vmem>>, vector<1x8x128xf32>
    %309 = vector.shape_cast %308 : vector<1x8x128xf32> to vector<8x128xf32>
    %c1_104 = arith.constant 1 : index
    %c0_105 = arith.constant 0 : index
    %c0_106 = arith.constant 0 : index
    %310 = vector.load %arg17[%c1_104, %c0_105, %c0_106] : memref<2x8x128xf32, #tpu.memory_space<vmem>>, vector<1x8x128xf32>
    %311 = vector.shape_cast %310 : vector<1x8x128xf32> to vector<8x128xf32>
    %c0_i32_107 = arith.constant 0 : i32
    %c8_i32_108 = arith.constant 8 : i32
    %312 = arith.muli %c0_i32_107, %c8_i32_108 : i32
    %313 = tpu.assume_multiple %312, 8 : i32
    %314 = arith.index_cast %313 : i32 to index
    %c0_109 = arith.constant 0 : index
    %315 = vector.load %arg14[%314, %c0_109] : memref<64x512xf32, #tpu.memory_space<vmem>>, vector<8x512xf32>
    %316 = arith.truncf %309 : vector<8x128xf32> to vector<8x128xbf16>
    %c0_110 = arith.constant 0 : index
    %c0_111 = arith.constant 0 : index
    %317 = vector.load %arg7[%c0_110, %c0_111] : memref<128x512xbf16, #tpu.memory_space<vmem>>, vector<128x512xbf16>
    %cst_112 = arith.constant dense<0.000000e+00> : vector<8x512xf32>
    %318 = tpu.matmul %316, %317, %cst_112 {dimension_numbers = #tpu.dot_dimension_numbers<[1], [0], [0], [1], [0, 0, 1, 1], [], []>} : vector<8x128xbf16>, vector<128x512xbf16>, vector<8x512xf32> -> vector<8x512xf32>
    %319 = arith.addf %315, %318 : vector<8x512xf32>
    %320 = vector.extract_strided_slice %319 {offsets = [0, 0], sizes = [8, 128], strides = [1, 1]} : vector<8x512xf32> to vector<8x128xf32>
    %321 = arith.negf %320 : vector<8x128xf32>
    %322 = math.exp %321 : vector<8x128xf32>
    %cst_113 = arith.constant 1.000000e+00 : f32
    %323 = vector.broadcast %cst_113 : f32 to vector<8x128xf32>
    %324 = arith.addf %323, %322 : vector<8x128xf32>
    %325 = arith.divf %323, %324 : vector<8x128xf32>
    %326 = vector.extract_strided_slice %319 {offsets = [0, 128], sizes = [8, 128], strides = [1, 1]} : vector<8x512xf32> to vector<8x128xf32>
    %327 = arith.negf %326 : vector<8x128xf32>
    %328 = math.exp %327 : vector<8x128xf32>
    %cst_114 = arith.constant 1.000000e+00 : f32
    %329 = vector.broadcast %cst_114 : f32 to vector<8x128xf32>
    %330 = arith.addf %329, %328 : vector<8x128xf32>
    %331 = arith.divf %329, %330 : vector<8x128xf32>
    %332 = vector.extract_strided_slice %319 {offsets = [0, 256], sizes = [8, 128], strides = [1, 1]} : vector<8x512xf32> to vector<8x128xf32>
    %333 = math.tanh %332 : vector<8x128xf32>
    %334 = vector.extract_strided_slice %319 {offsets = [0, 384], sizes = [8, 128], strides = [1, 1]} : vector<8x512xf32> to vector<8x128xf32>
    %335 = arith.negf %334 : vector<8x128xf32>
    %336 = math.exp %335 : vector<8x128xf32>
    %cst_115 = arith.constant 1.000000e+00 : f32
    %337 = vector.broadcast %cst_115 : f32 to vector<8x128xf32>
    %338 = arith.addf %337, %336 : vector<8x128xf32>
    %339 = arith.divf %337, %338 : vector<8x128xf32>
    %340 = arith.mulf %331, %311 : vector<8x128xf32>
    %341 = arith.mulf %325, %333 : vector<8x128xf32>
    %342 = arith.addf %340, %341 : vector<8x128xf32>
    %343 = math.tanh %342 : vector<8x128xf32>
    %344 = arith.mulf %339, %343 : vector<8x128xf32>
    %345 = arith.index_cast %313 : i32 to index
    %c0_116 = arith.constant 0 : index
    %346 = vector.load %arg15[%345, %c0_116] : memref<64x128xf32, #tpu.memory_space<vmem>>, vector<8x128xf32>
    tpu.vector_store %arg15[%345, %c0_116], %344 {strides = array<i32>} : memref<64x128xf32, #tpu.memory_space<vmem>>, vector<8x128xf32>,
    %c1_i32_117 = arith.constant 1 : i32
    %c8_i32_118 = arith.constant 8 : i32
    %347 = arith.muli %c1_i32_117, %c8_i32_118 : i32
    %348 = tpu.assume_multiple %347, 8 : i32
    %349 = arith.index_cast %348 : i32 to index
    %c0_119 = arith.constant 0 : index
    %350 = vector.load %arg14[%349, %c0_119] : memref<64x512xf32, #tpu.memory_space<vmem>>, vector<8x512xf32>
    %351 = arith.truncf %344 : vector<8x128xf32> to vector<8x128xbf16>
    %c0_120 = arith.constant 0 : index
    %c0_121 = arith.constant 0 : index
    %352 = vector.load %arg7[%c0_120, %c0_121] : memref<128x512xbf16, #tpu.memory_space<vmem>>, vector<128x512xbf16>
    %cst_122 = arith.constant dense<0.000000e+00> : vector<8x512xf32>
    %353 = tpu.matmul %351, %352, %cst_122 {dimension_numbers = #tpu.dot_dimension_numbers<[1], [0], [0], [1], [0, 0, 1, 1], [], []>} : vector<8x128xbf16>, vector<128x512xbf16>, vector<8x512xf32> -> vector<8x512xf32>
    %354 = arith.addf %350, %353 : vector<8x512xf32>
    %355 = vector.extract_strided_slice %354 {offsets = [0, 0], sizes = [8, 128], strides = [1, 1]} : vector<8x512xf32> to vector<8x128xf32>
    %356 = arith.negf %355 : vector<8x128xf32>
    %357 = math.exp %356 : vector<8x128xf32>
    %cst_123 = arith.constant 1.000000e+00 : f32
    %358 = vector.broadcast %cst_123 : f32 to vector<8x128xf32>
    %359 = arith.addf %358, %357 : vector<8x128xf32>
    %360 = arith.divf %358, %359 : vector<8x128xf32>
    %361 = vector.extract_strided_slice %354 {offsets = [0, 128], sizes = [8, 128], strides = [1, 1]} : vector<8x512xf32> to vector<8x128xf32>
    %362 = arith.negf %361 : vector<8x128xf32>
    %363 = math.exp %362 : vector<8x128xf32>
    %cst_124 = arith.constant 1.000000e+00 : f32
    %364 = vector.broadcast %cst_124 : f32 to vector<8x128xf32>
    %365 = arith.addf %364, %363 : vector<8x128xf32>
    %366 = arith.divf %364, %365 : vector<8x128xf32>
    %367 = vector.extract_strided_slice %354 {offsets = [0, 256], sizes = [8, 128], strides = [1, 1]} : vector<8x512xf32> to vector<8x128xf32>
    %368 = math.tanh %367 : vector<8x128xf32>
    %369 = vector.extract_strided_slice %354 {offsets = [0, 384], sizes = [8, 128], strides = [1, 1]} : vector<8x512xf32> to vector<8x128xf32>
    %370 = arith.negf %369 : vector<8x128xf32>
    %371 = math.exp %370 : vector<8x128xf32>
    %cst_125 = arith.constant 1.000000e+00 : f32
    %372 = vector.broadcast %cst_125 : f32 to vector<8x128xf32>
    %373 = arith.addf %372, %371 : vector<8x128xf32>
    %374 = arith.divf %372, %373 : vector<8x128xf32>
    %375 = arith.mulf %366, %342 : vector<8x128xf32>
    %376 = arith.mulf %360, %368 : vector<8x128xf32>
    %377 = arith.addf %375, %376 : vector<8x128xf32>
    %378 = math.tanh %377 : vector<8x128xf32>
    %379 = arith.mulf %374, %378 : vector<8x128xf32>
    %380 = arith.index_cast %348 : i32 to index
    %c0_126 = arith.constant 0 : index
    %381 = vector.load %arg15[%380, %c0_126] : memref<64x128xf32, #tpu.memory_space<vmem>>, vector<8x128xf32>
    tpu.vector_store %arg15[%380, %c0_126], %379 {strides = array<i32>} : memref<64x128xf32, #tpu.memory_space<vmem>>, vector<8x128xf32>,
    %c2_i32_127 = arith.constant 2 : i32
    %c8_i32_128 = arith.constant 8 : i32
    %382 = arith.muli %c2_i32_127, %c8_i32_128 : i32
    %383 = tpu.assume_multiple %382, 8 : i32
    %384 = arith.index_cast %383 : i32 to index
    %c0_129 = arith.constant 0 : index
    %385 = vector.load %arg14[%384, %c0_129] : memref<64x512xf32, #tpu.memory_space<vmem>>, vector<8x512xf32>
    %386 = arith.truncf %379 : vector<8x128xf32> to vector<8x128xbf16>
    %c0_130 = arith.constant 0 : index
    %c0_131 = arith.constant 0 : index
    %387 = vector.load %arg7[%c0_130, %c0_131] : memref<128x512xbf16, #tpu.memory_space<vmem>>, vector<128x512xbf16>
    %cst_132 = arith.constant dense<0.000000e+00> : vector<8x512xf32>
    %388 = tpu.matmul %386, %387, %cst_132 {dimension_numbers = #tpu.dot_dimension_numbers<[1], [0], [0], [1], [0, 0, 1, 1], [], []>} : vector<8x128xbf16>, vector<128x512xbf16>, vector<8x512xf32> -> vector<8x512xf32>
    %389 = arith.addf %385, %388 : vector<8x512xf32>
    %390 = vector.extract_strided_slice %389 {offsets = [0, 0], sizes = [8, 128], strides = [1, 1]} : vector<8x512xf32> to vector<8x128xf32>
    %391 = arith.negf %390 : vector<8x128xf32>
    %392 = math.exp %391 : vector<8x128xf32>
    %cst_133 = arith.constant 1.000000e+00 : f32
    %393 = vector.broadcast %cst_133 : f32 to vector<8x128xf32>
    %394 = arith.addf %393, %392 : vector<8x128xf32>
    %395 = arith.divf %393, %394 : vector<8x128xf32>
    %396 = vector.extract_strided_slice %389 {offsets = [0, 128], sizes = [8, 128], strides = [1, 1]} : vector<8x512xf32> to vector<8x128xf32>
    %397 = arith.negf %396 : vector<8x128xf32>
    %398 = math.exp %397 : vector<8x128xf32>
    %cst_134 = arith.constant 1.000000e+00 : f32
    %399 = vector.broadcast %cst_134 : f32 to vector<8x128xf32>
    %400 = arith.addf %399, %398 : vector<8x128xf32>
    %401 = arith.divf %399, %400 : vector<8x128xf32>
    %402 = vector.extract_strided_slice %389 {offsets = [0, 256], sizes = [8, 128], strides = [1, 1]} : vector<8x512xf32> to vector<8x128xf32>
    %403 = math.tanh %402 : vector<8x128xf32>
    %404 = vector.extract_strided_slice %389 {offsets = [0, 384], sizes = [8, 128], strides = [1, 1]} : vector<8x512xf32> to vector<8x128xf32>
    %405 = arith.negf %404 : vector<8x128xf32>
    %406 = math.exp %405 : vector<8x128xf32>
    %cst_135 = arith.constant 1.000000e+00 : f32
    %407 = vector.broadcast %cst_135 : f32 to vector<8x128xf32>
    %408 = arith.addf %407, %406 : vector<8x128xf32>
    %409 = arith.divf %407, %408 : vector<8x128xf32>
    %410 = arith.mulf %401, %377 : vector<8x128xf32>
    %411 = arith.mulf %395, %403 : vector<8x128xf32>
    %412 = arith.addf %410, %411 : vector<8x128xf32>
    %413 = math.tanh %412 : vector<8x128xf32>
    %414 = arith.mulf %409, %413 : vector<8x128xf32>
    %415 = arith.index_cast %383 : i32 to index
    %c0_136 = arith.constant 0 : index
    %416 = vector.load %arg15[%415, %c0_136] : memref<64x128xf32, #tpu.memory_space<vmem>>, vector<8x128xf32>
    tpu.vector_store %arg15[%415, %c0_136], %414 {strides = array<i32>} : memref<64x128xf32, #tpu.memory_space<vmem>>, vector<8x128xf32>,
    %c3_i32_137 = arith.constant 3 : i32
    %c8_i32_138 = arith.constant 8 : i32
    %417 = arith.muli %c3_i32_137, %c8_i32_138 : i32
    %418 = tpu.assume_multiple %417, 8 : i32
    %419 = arith.index_cast %418 : i32 to index
    %c0_139 = arith.constant 0 : index
    %420 = vector.load %arg14[%419, %c0_139] : memref<64x512xf32, #tpu.memory_space<vmem>>, vector<8x512xf32>
    %421 = arith.truncf %414 : vector<8x128xf32> to vector<8x128xbf16>
    %c0_140 = arith.constant 0 : index
    %c0_141 = arith.constant 0 : index
    %422 = vector.load %arg7[%c0_140, %c0_141] : memref<128x512xbf16, #tpu.memory_space<vmem>>, vector<128x512xbf16>
    %cst_142 = arith.constant dense<0.000000e+00> : vector<8x512xf32>
    %423 = tpu.matmul %421, %422, %cst_142 {dimension_numbers = #tpu.dot_dimension_numbers<[1], [0], [0], [1], [0, 0, 1, 1], [], []>} : vector<8x128xbf16>, vector<128x512xbf16>, vector<8x512xf32> -> vector<8x512xf32>
    %424 = arith.addf %420, %423 : vector<8x512xf32>
    %425 = vector.extract_strided_slice %424 {offsets = [0, 0], sizes = [8, 128], strides = [1, 1]} : vector<8x512xf32> to vector<8x128xf32>
    %426 = arith.negf %425 : vector<8x128xf32>
    %427 = math.exp %426 : vector<8x128xf32>
    %cst_143 = arith.constant 1.000000e+00 : f32
    %428 = vector.broadcast %cst_143 : f32 to vector<8x128xf32>
    %429 = arith.addf %428, %427 : vector<8x128xf32>
    %430 = arith.divf %428, %429 : vector<8x128xf32>
    %431 = vector.extract_strided_slice %424 {offsets = [0, 128], sizes = [8, 128], strides = [1, 1]} : vector<8x512xf32> to vector<8x128xf32>
    %432 = arith.negf %431 : vector<8x128xf32>
    %433 = math.exp %432 : vector<8x128xf32>
    %cst_144 = arith.constant 1.000000e+00 : f32
    %434 = vector.broadcast %cst_144 : f32 to vector<8x128xf32>
    %435 = arith.addf %434, %433 : vector<8x128xf32>
    %436 = arith.divf %434, %435 : vector<8x128xf32>
    %437 = vector.extract_strided_slice %424 {offsets = [0, 256], sizes = [8, 128], strides = [1, 1]} : vector<8x512xf32> to vector<8x128xf32>
    %438 = math.tanh %437 : vector<8x128xf32>
    %439 = vector.extract_strided_slice %424 {offsets = [0, 384], sizes = [8, 128], strides = [1, 1]} : vector<8x512xf32> to vector<8x128xf32>
    %440 = arith.negf %439 : vector<8x128xf32>
    %441 = math.exp %440 : vector<8x128xf32>
    %cst_145 = arith.constant 1.000000e+00 : f32
    %442 = vector.broadcast %cst_145 : f32 to vector<8x128xf32>
    %443 = arith.addf %442, %441 : vector<8x128xf32>
    %444 = arith.divf %442, %443 : vector<8x128xf32>
    %445 = arith.mulf %436, %412 : vector<8x128xf32>
    %446 = arith.mulf %430, %438 : vector<8x128xf32>
    %447 = arith.addf %445, %446 : vector<8x128xf32>
    %448 = math.tanh %447 : vector<8x128xf32>
    %449 = arith.mulf %444, %448 : vector<8x128xf32>
    %450 = arith.index_cast %418 : i32 to index
    %c0_146 = arith.constant 0 : index
    %451 = vector.load %arg15[%450, %c0_146] : memref<64x128xf32, #tpu.memory_space<vmem>>, vector<8x128xf32>
    tpu.vector_store %arg15[%450, %c0_146], %449 {strides = array<i32>} : memref<64x128xf32, #tpu.memory_space<vmem>>, vector<8x128xf32>,
    %c4_i32_147 = arith.constant 4 : i32
    %c8_i32_148 = arith.constant 8 : i32
    %452 = arith.muli %c4_i32_147, %c8_i32_148 : i32
    %453 = tpu.assume_multiple %452, 8 : i32
    %454 = arith.index_cast %453 : i32 to index
    %c0_149 = arith.constant 0 : index
    %455 = vector.load %arg14[%454, %c0_149] : memref<64x512xf32, #tpu.memory_space<vmem>>, vector<8x512xf32>
    %456 = arith.truncf %449 : vector<8x128xf32> to vector<8x128xbf16>
    %c0_150 = arith.constant 0 : index
    %c0_151 = arith.constant 0 : index
    %457 = vector.load %arg7[%c0_150, %c0_151] : memref<128x512xbf16, #tpu.memory_space<vmem>>, vector<128x512xbf16>
    %cst_152 = arith.constant dense<0.000000e+00> : vector<8x512xf32>
    %458 = tpu.matmul %456, %457, %cst_152 {dimension_numbers = #tpu.dot_dimension_numbers<[1], [0], [0], [1], [0, 0, 1, 1], [], []>} : vector<8x128xbf16>, vector<128x512xbf16>, vector<8x512xf32> -> vector<8x512xf32>
    %459 = arith.addf %455, %458 : vector<8x512xf32>
    %460 = vector.extract_strided_slice %459 {offsets = [0, 0], sizes = [8, 128], strides = [1, 1]} : vector<8x512xf32> to vector<8x128xf32>
    %461 = arith.negf %460 : vector<8x128xf32>
    %462 = math.exp %461 : vector<8x128xf32>
    %cst_153 = arith.constant 1.000000e+00 : f32
    %463 = vector.broadcast %cst_153 : f32 to vector<8x128xf32>
    %464 = arith.addf %463, %462 : vector<8x128xf32>
    %465 = arith.divf %463, %464 : vector<8x128xf32>
    %466 = vector.extract_strided_slice %459 {offsets = [0, 128], sizes = [8, 128], strides = [1, 1]} : vector<8x512xf32> to vector<8x128xf32>
    %467 = arith.negf %466 : vector<8x128xf32>
    %468 = math.exp %467 : vector<8x128xf32>
    %cst_154 = arith.constant 1.000000e+00 : f32
    %469 = vector.broadcast %cst_154 : f32 to vector<8x128xf32>
    %470 = arith.addf %469, %468 : vector<8x128xf32>
    %471 = arith.divf %469, %470 : vector<8x128xf32>
    %472 = vector.extract_strided_slice %459 {offsets = [0, 256], sizes = [8, 128], strides = [1, 1]} : vector<8x512xf32> to vector<8x128xf32>
    %473 = math.tanh %472 : vector<8x128xf32>
    %474 = vector.extract_strided_slice %459 {offsets = [0, 384], sizes = [8, 128], strides = [1, 1]} : vector<8x512xf32> to vector<8x128xf32>
    %475 = arith.negf %474 : vector<8x128xf32>
    %476 = math.exp %475 : vector<8x128xf32>
    %cst_155 = arith.constant 1.000000e+00 : f32
    %477 = vector.broadcast %cst_155 : f32 to vector<8x128xf32>
    %478 = arith.addf %477, %476 : vector<8x128xf32>
    %479 = arith.divf %477, %478 : vector<8x128xf32>
    %480 = arith.mulf %471, %447 : vector<8x128xf32>
    %481 = arith.mulf %465, %473 : vector<8x128xf32>
    %482 = arith.addf %480, %481 : vector<8x128xf32>
    %483 = math.tanh %482 : vector<8x128xf32>
    %484 = arith.mulf %479, %483 : vector<8x128xf32>
    %485 = arith.index_cast %453 : i32 to index
    %c0_156 = arith.constant 0 : index
    %486 = vector.load %arg15[%485, %c0_156] : memref<64x128xf32, #tpu.memory_space<vmem>>, vector<8x128xf32>
    tpu.vector_store %arg15[%485, %c0_156], %484 {strides = array<i32>} : memref<64x128xf32, #tpu.memory_space<vmem>>, vector<8x128xf32>,
    %c5_i32_157 = arith.constant 5 : i32
    %c8_i32_158 = arith.constant 8 : i32
    %487 = arith.muli %c5_i32_157, %c8_i32_158 : i32
    %488 = tpu.assume_multiple %487, 8 : i32
    %489 = arith.index_cast %488 : i32 to index
    %c0_159 = arith.constant 0 : index
    %490 = vector.load %arg14[%489, %c0_159] : memref<64x512xf32, #tpu.memory_space<vmem>>, vector<8x512xf32>
    %491 = arith.truncf %484 : vector<8x128xf32> to vector<8x128xbf16>
    %c0_160 = arith.constant 0 : index
    %c0_161 = arith.constant 0 : index
    %492 = vector.load %arg7[%c0_160, %c0_161] : memref<128x512xbf16, #tpu.memory_space<vmem>>, vector<128x512xbf16>
    %cst_162 = arith.constant dense<0.000000e+00> : vector<8x512xf32>
    %493 = tpu.matmul %491, %492, %cst_162 {dimension_numbers = #tpu.dot_dimension_numbers<[1], [0], [0], [1], [0, 0, 1, 1], [], []>} : vector<8x128xbf16>, vector<128x512xbf16>, vector<8x512xf32> -> vector<8x512xf32>
    %494 = arith.addf %490, %493 : vector<8x512xf32>
    %495 = vector.extract_strided_slice %494 {offsets = [0, 0], sizes = [8, 128], strides = [1, 1]} : vector<8x512xf32> to vector<8x128xf32>
    %496 = arith.negf %495 : vector<8x128xf32>
    %497 = math.exp %496 : vector<8x128xf32>
    %cst_163 = arith.constant 1.000000e+00 : f32
    %498 = vector.broadcast %cst_163 : f32 to vector<8x128xf32>
    %499 = arith.addf %498, %497 : vector<8x128xf32>
    %500 = arith.divf %498, %499 : vector<8x128xf32>
    %501 = vector.extract_strided_slice %494 {offsets = [0, 128], sizes = [8, 128], strides = [1, 1]} : vector<8x512xf32> to vector<8x128xf32>
    %502 = arith.negf %501 : vector<8x128xf32>
    %503 = math.exp %502 : vector<8x128xf32>
    %cst_164 = arith.constant 1.000000e+00 : f32
    %504 = vector.broadcast %cst_164 : f32 to vector<8x128xf32>
    %505 = arith.addf %504, %503 : vector<8x128xf32>
    %506 = arith.divf %504, %505 : vector<8x128xf32>
    %507 = vector.extract_strided_slice %494 {offsets = [0, 256], sizes = [8, 128], strides = [1, 1]} : vector<8x512xf32> to vector<8x128xf32>
    %508 = math.tanh %507 : vector<8x128xf32>
    %509 = vector.extract_strided_slice %494 {offsets = [0, 384], sizes = [8, 128], strides = [1, 1]} : vector<8x512xf32> to vector<8x128xf32>
    %510 = arith.negf %509 : vector<8x128xf32>
    %511 = math.exp %510 : vector<8x128xf32>
    %cst_165 = arith.constant 1.000000e+00 : f32
    %512 = vector.broadcast %cst_165 : f32 to vector<8x128xf32>
    %513 = arith.addf %512, %511 : vector<8x128xf32>
    %514 = arith.divf %512, %513 : vector<8x128xf32>
    %515 = arith.mulf %506, %482 : vector<8x128xf32>
    %516 = arith.mulf %500, %508 : vector<8x128xf32>
    %517 = arith.addf %515, %516 : vector<8x128xf32>
    %518 = math.tanh %517 : vector<8x128xf32>
    %519 = arith.mulf %514, %518 : vector<8x128xf32>
    %520 = arith.index_cast %488 : i32 to index
    %c0_166 = arith.constant 0 : index
    %521 = vector.load %arg15[%520, %c0_166] : memref<64x128xf32, #tpu.memory_space<vmem>>, vector<8x128xf32>
    tpu.vector_store %arg15[%520, %c0_166], %519 {strides = array<i32>} : memref<64x128xf32, #tpu.memory_space<vmem>>, vector<8x128xf32>,
    %c6_i32_167 = arith.constant 6 : i32
    %c8_i32_168 = arith.constant 8 : i32
    %522 = arith.muli %c6_i32_167, %c8_i32_168 : i32
    %523 = tpu.assume_multiple %522, 8 : i32
    %524 = arith.index_cast %523 : i32 to index
    %c0_169 = arith.constant 0 : index
    %525 = vector.load %arg14[%524, %c0_169] : memref<64x512xf32, #tpu.memory_space<vmem>>, vector<8x512xf32>
    %526 = arith.truncf %519 : vector<8x128xf32> to vector<8x128xbf16>
    %c0_170 = arith.constant 0 : index
    %c0_171 = arith.constant 0 : index
    %527 = vector.load %arg7[%c0_170, %c0_171] : memref<128x512xbf16, #tpu.memory_space<vmem>>, vector<128x512xbf16>
    %cst_172 = arith.constant dense<0.000000e+00> : vector<8x512xf32>
    %528 = tpu.matmul %526, %527, %cst_172 {dimension_numbers = #tpu.dot_dimension_numbers<[1], [0], [0], [1], [0, 0, 1, 1], [], []>} : vector<8x128xbf16>, vector<128x512xbf16>, vector<8x512xf32> -> vector<8x512xf32>
    %529 = arith.addf %525, %528 : vector<8x512xf32>
    %530 = vector.extract_strided_slice %529 {offsets = [0, 0], sizes = [8, 128], strides = [1, 1]} : vector<8x512xf32> to vector<8x128xf32>
    %531 = arith.negf %530 : vector<8x128xf32>
    %532 = math.exp %531 : vector<8x128xf32>
    %cst_173 = arith.constant 1.000000e+00 : f32
    %533 = vector.broadcast %cst_173 : f32 to vector<8x128xf32>
    %534 = arith.addf %533, %532 : vector<8x128xf32>
    %535 = arith.divf %533, %534 : vector<8x128xf32>
    %536 = vector.extract_strided_slice %529 {offsets = [0, 128], sizes = [8, 128], strides = [1, 1]} : vector<8x512xf32> to vector<8x128xf32>
    %537 = arith.negf %536 : vector<8x128xf32>
    %538 = math.exp %537 : vector<8x128xf32>
    %cst_174 = arith.constant 1.000000e+00 : f32
    %539 = vector.broadcast %cst_174 : f32 to vector<8x128xf32>
    %540 = arith.addf %539, %538 : vector<8x128xf32>
    %541 = arith.divf %539, %540 : vector<8x128xf32>
    %542 = vector.extract_strided_slice %529 {offsets = [0, 256], sizes = [8, 128], strides = [1, 1]} : vector<8x512xf32> to vector<8x128xf32>
    %543 = math.tanh %542 : vector<8x128xf32>
    %544 = vector.extract_strided_slice %529 {offsets = [0, 384], sizes = [8, 128], strides = [1, 1]} : vector<8x512xf32> to vector<8x128xf32>
    %545 = arith.negf %544 : vector<8x128xf32>
    %546 = math.exp %545 : vector<8x128xf32>
    %cst_175 = arith.constant 1.000000e+00 : f32
    %547 = vector.broadcast %cst_175 : f32 to vector<8x128xf32>
    %548 = arith.addf %547, %546 : vector<8x128xf32>
    %549 = arith.divf %547, %548 : vector<8x128xf32>
    %550 = arith.mulf %541, %517 : vector<8x128xf32>
    %551 = arith.mulf %535, %543 : vector<8x128xf32>
    %552 = arith.addf %550, %551 : vector<8x128xf32>
    %553 = math.tanh %552 : vector<8x128xf32>
    %554 = arith.mulf %549, %553 : vector<8x128xf32>
    %555 = arith.index_cast %523 : i32 to index
    %c0_176 = arith.constant 0 : index
    %556 = vector.load %arg15[%555, %c0_176] : memref<64x128xf32, #tpu.memory_space<vmem>>, vector<8x128xf32>
    tpu.vector_store %arg15[%555, %c0_176], %554 {strides = array<i32>} : memref<64x128xf32, #tpu.memory_space<vmem>>, vector<8x128xf32>,
    %c7_i32_177 = arith.constant 7 : i32
    %c8_i32_178 = arith.constant 8 : i32
    %557 = arith.muli %c7_i32_177, %c8_i32_178 : i32
    %558 = tpu.assume_multiple %557, 8 : i32
    %559 = arith.index_cast %558 : i32 to index
    %c0_179 = arith.constant 0 : index
    %560 = vector.load %arg14[%559, %c0_179] : memref<64x512xf32, #tpu.memory_space<vmem>>, vector<8x512xf32>
    %561 = arith.truncf %554 : vector<8x128xf32> to vector<8x128xbf16>
    %c0_180 = arith.constant 0 : index
    %c0_181 = arith.constant 0 : index
    %562 = vector.load %arg7[%c0_180, %c0_181] : memref<128x512xbf16, #tpu.memory_space<vmem>>, vector<128x512xbf16>
    %cst_182 = arith.constant dense<0.000000e+00> : vector<8x512xf32>
    %563 = tpu.matmul %561, %562, %cst_182 {dimension_numbers = #tpu.dot_dimension_numbers<[1], [0], [0], [1], [0, 0, 1, 1], [], []>} : vector<8x128xbf16>, vector<128x512xbf16>, vector<8x512xf32> -> vector<8x512xf32>
    %564 = arith.addf %560, %563 : vector<8x512xf32>
    %565 = vector.extract_strided_slice %564 {offsets = [0, 0], sizes = [8, 128], strides = [1, 1]} : vector<8x512xf32> to vector<8x128xf32>
    %566 = arith.negf %565 : vector<8x128xf32>
    %567 = math.exp %566 : vector<8x128xf32>
    %cst_183 = arith.constant 1.000000e+00 : f32
    %568 = vector.broadcast %cst_183 : f32 to vector<8x128xf32>
    %569 = arith.addf %568, %567 : vector<8x128xf32>
    %570 = arith.divf %568, %569 : vector<8x128xf32>
    %571 = vector.extract_strided_slice %564 {offsets = [0, 128], sizes = [8, 128], strides = [1, 1]} : vector<8x512xf32> to vector<8x128xf32>
    %572 = arith.negf %571 : vector<8x128xf32>
    %573 = math.exp %572 : vector<8x128xf32>
    %cst_184 = arith.constant 1.000000e+00 : f32
    %574 = vector.broadcast %cst_184 : f32 to vector<8x128xf32>
    %575 = arith.addf %574, %573 : vector<8x128xf32>
    %576 = arith.divf %574, %575 : vector<8x128xf32>
    %577 = vector.extract_strided_slice %564 {offsets = [0, 256], sizes = [8, 128], strides = [1, 1]} : vector<8x512xf32> to vector<8x128xf32>
    %578 = math.tanh %577 : vector<8x128xf32>
    %579 = vector.extract_strided_slice %564 {offsets = [0, 384], sizes = [8, 128], strides = [1, 1]} : vector<8x512xf32> to vector<8x128xf32>
    %580 = arith.negf %579 : vector<8x128xf32>
    %581 = math.exp %580 : vector<8x128xf32>
    %cst_185 = arith.constant 1.000000e+00 : f32
    %582 = vector.broadcast %cst_185 : f32 to vector<8x128xf32>
    %583 = arith.addf %582, %581 : vector<8x128xf32>
    %584 = arith.divf %582, %583 : vector<8x128xf32>
    %585 = arith.mulf %576, %552 : vector<8x128xf32>
    %586 = arith.mulf %570, %578 : vector<8x128xf32>
    %587 = arith.addf %585, %586 : vector<8x128xf32>
    %588 = math.tanh %587 : vector<8x128xf32>
    %589 = arith.mulf %584, %588 : vector<8x128xf32>
    %590 = arith.index_cast %558 : i32 to index
    %c0_186 = arith.constant 0 : index
    %591 = vector.load %arg15[%590, %c0_186] : memref<64x128xf32, #tpu.memory_space<vmem>>, vector<8x128xf32>
    tpu.vector_store %arg15[%590, %c0_186], %589 {strides = array<i32>} : memref<64x128xf32, #tpu.memory_space<vmem>>, vector<8x128xf32>,
    %c8_i32_187 = arith.constant 8 : i32
    %c1_188 = arith.constant 1 : index
    %c0_189 = arith.constant 0 : index
    %c0_190 = arith.constant 0 : index
    %592 = vector.load %arg16[%c1_188, %c0_189, %c0_190] : memref<2x8x128xf32, #tpu.memory_space<vmem>>, vector<1x8x128xf32>
    %593 = vector.shape_cast %592 : vector<1x8x128xf32> to vector<8x128xf32>
    %594 = vector.shape_cast %589 : vector<8x128xf32> to vector<1x8x128xf32>
    tpu.vector_store %arg16[%c1_188, %c0_189, %c0_190], %594 {strides = array<i32>} : memref<2x8x128xf32, #tpu.memory_space<vmem>>, vector<1x8x128xf32>,
    %c1_191 = arith.constant 1 : index
    %c0_192 = arith.constant 0 : index
    %c0_193 = arith.constant 0 : index
    %595 = vector.load %arg17[%c1_191, %c0_192, %c0_193] : memref<2x8x128xf32, #tpu.memory_space<vmem>>, vector<1x8x128xf32>
    %596 = vector.shape_cast %595 : vector<1x8x128xf32> to vector<8x128xf32>
    %597 = vector.shape_cast %587 : vector<8x128xf32> to vector<1x8x128xf32>
    tpu.vector_store %arg17[%c1_191, %c0_192, %c0_193], %597 {strides = array<i32>} : memref<2x8x128xf32, #tpu.memory_space<vmem>>, vector<1x8x128xf32>,
    %c0_194 = arith.constant 0 : index
    %c0_195 = arith.constant 0 : index
    %598 = vector.load %arg15[%c0_194, %c0_195] : memref<64x128xf32, #tpu.memory_space<vmem>>, vector<64x128xf32>
    %599 = arith.truncf %598 : vector<64x128xf32> to vector<64x128xbf16>
    %c0_196 = arith.constant 0 : index
    %c0_197 = arith.constant 0 : index
    %600 = vector.load %arg9[%c0_196, %c0_197] : memref<128x128xbf16, #tpu.memory_space<vmem>>, vector<128x128xbf16>
    %cst_198 = arith.constant dense<0.000000e+00> : vector<64x128xf32>
    %601 = tpu.matmul %599, %600, %cst_198 {dimension_numbers = #tpu.dot_dimension_numbers<[1], [0], [0], [1], [0, 0, 1, 1], [], []>} : vector<64x128xbf16>, vector<128x128xbf16>, vector<64x128xf32> -> vector<64x128xf32>
    %c0_199 = arith.constant 0 : index
    %c0_200 = arith.constant 0 : index
    %602 = vector.load %arg10[%c0_199, %c0_200] : memref<1x128xf32, #tpu.memory_space<vmem>>, vector<1x128xf32>
    %603 = vector.broadcast %602 : vector<1x128xf32> to vector<64x128xf32>
    %604 = arith.addf %601, %603 : vector<64x128xf32>
    %c0_201 = arith.constant 0 : index
    %c0_202 = arith.constant 0 : index
    %605 = vector.load %arg12[%c0_201, %c0_202] : memref<64x128xf32, #tpu.memory_space<vmem>>, vector<64x128xf32>
    tpu.vector_store %arg12[%c0_201, %c0_202], %604 {strides = array<i32>} : memref<64x128xf32, #tpu.memory_space<vmem>>, vector<64x128xf32>,
    %606 = vector.shape_cast %604 : vector<64x128xf32> to vector<8x8x128xf32>
    %c0_203 = arith.constant 0 : index
    %c0_204 = arith.constant 0 : index
    %607 = vector.load %arg11[%c0_203, %c0_204] : memref<8x8xi32, #tpu.memory_space<vmem>>, vector<8x8xi32>
    %608 = tpu.iota {dimensions = array<i32: 2>} : vector<8x8x128xi32>
    %c32_i32 = arith.constant 32 : i32
    %609 = vector.broadcast %c32_i32 : i32 to vector<8x8x128xi32>
    %610 = arith.cmpi slt, %608, %609 : vector<8x8x128xi32>
    %cst_205 = arith.constant -1.000000e+30 : f32
    %611 = vector.broadcast %cst_205 : f32 to vector<8x8x128xf32>
    %612 = arith.select %610, %606, %611 : vector<8x8x128xi1>, vector<8x8x128xf32>
    %cst_206 = arith.constant dense<0xFF800000> : vector<8x8xf32>
    %613 = vector.multi_reduction <maximumf>, %612, %cst_206 [2] : vector<8x8x128xf32> to vector<8x8xf32>
    %614 = vector.shape_cast %613 : vector<8x8xf32> to vector<8x8x1xf32>
    %615 = vector.broadcast %614 : vector<8x8x1xf32> to vector<8x8x128xf32>
    %616 = arith.subf %612, %615 : vector<8x8x128xf32>
    %617 = math.exp %616 : vector<8x8x128xf32>
    %cst_207 = arith.constant dense<0.000000e+00> : vector<8x8xf32>
    %618 = vector.multi_reduction <add>, %617, %cst_207 [2] : vector<8x8x128xf32> to vector<8x8xf32>
    %619 = vector.shape_cast %618 : vector<8x8xf32> to vector<8x8x1xf32>
    %620 = math.log %619 : vector<8x8x1xf32>
    %621 = arith.addf %620, %614 : vector<8x8x1xf32>
    %622 = vector.shape_cast %607 : vector<8x8xi32> to vector<8x8x1xi32>
    %623 = vector.broadcast %622 : vector<8x8x1xi32> to vector<8x8x128xi32>
    %624 = arith.cmpi eq, %608, %623 : vector<8x8x128xi32>
    %625 = arith.extui %624 : vector<8x8x128xi1> to vector<8x8x128xi32>
    %626 = arith.sitofp %625 : vector<8x8x128xi32> to vector<8x8x128xf32>
    %627 = arith.mulf %606, %626 : vector<8x8x128xf32>
    %cst_208 = arith.constant dense<0.000000e+00> : vector<8x8xf32>
    %628 = vector.multi_reduction <add>, %627, %cst_208 [2] : vector<8x8x128xf32> to vector<8x8xf32>
    %629 = vector.shape_cast %628 : vector<8x8xf32> to vector<8x8x1xf32>
    %630 = tpu.iota {dimensions = array<i32: 0>} : vector<8x8x1xi32>
    %c8_i32_209 = arith.constant 8 : i32
    %631 = arith.muli %arg1, %c8_i32_209 : i32
    %632 = vector.broadcast %631 : i32 to vector<8x8x1xi32>
    %633 = arith.addi %630, %632 : vector<8x8x1xi32>
    %634 = tpu.iota {dimensions = array<i32: 1>} : vector<8x8x1xi32>
    %c8_i32_210 = arith.constant 8 : i32
    %635 = arith.muli %arg0, %c8_i32_210 : i32
    %636 = vector.broadcast %635 : i32 to vector<8x8x1xi32>
    %637 = arith.addi %634, %636 : vector<8x8x1xi32>
    %c8_i32_211 = arith.constant 8 : i32
    %638 = vector.broadcast %c8_i32_211 : i32 to vector<8x8x1xi32>
    %639 = arith.cmpi slt, %633, %638 : vector<8x8x1xi32>
    %c2_i32_212 = arith.constant 2 : i32
    %640 = vector.broadcast %c2_i32_212 : i32 to vector<8x8x1xi32>
    %641 = arith.cmpi slt, %637, %640 : vector<8x8x1xi32>
    %642 = arith.andi %639, %641 : vector<8x8x1xi1>
    %643 = arith.extui %642 : vector<8x8x1xi1> to vector<8x8x1xi32>
    %644 = arith.sitofp %643 : vector<8x8x1xi32> to vector<8x8x1xf32>
    %645 = arith.subf %621, %629 : vector<8x8x1xf32>
    %646 = arith.mulf %645, %644 : vector<8x8x1xf32>
    %647 = vector.shape_cast %646 : vector<8x8x1xf32> to vector<1x8x8x1xf32>
    %cst_213 = arith.constant dense<0.000000e+00> : vector<1xf32>
    %648 = vector.multi_reduction <add>, %647, %cst_213 [1, 2, 3] : vector<1x8x8x1xf32> to vector<1xf32>
    %649 = vector.shape_cast %648 : vector<1xf32> to vector<1x1x1x1xf32>
    %650 = vector.extract %649[0, 0, 0, 0] : f32 from vector<1x1x1x1xf32>
    %c0_214 = arith.constant 0 : index
    %c0_215 = arith.constant 0 : index
    %651 = memref.load %arg13[%c0_214, %c0_215] : memref<1x1xf32, #tpu.memory_space<smem>>
    memref.store %650, %arg13[%c0_214, %c0_215] : memref<1x1xf32, #tpu.memory_space<smem>>
    return
  }
  func.func @transform_0(%arg0: i32, %arg1: i32) -> (i32, i32) {
    %c1_i32 = arith.constant 1 : i32
    %0 = arith.muli %arg0, %c1_i32 : i32
    %1 = arith.addi %0, %arg1 : i32
    %c0_i32 = arith.constant 0 : i32
    %c0_i32_0 = arith.constant 0 : i32
    return %1, %c0_i32 : i32, i32
  }
  func.func @transform_1(%arg0: i32, %arg1: i32) -> (i32, i32) {
    %c0_i32 = arith.constant 0 : i32
    %c0_i32_0 = arith.constant 0 : i32
    %c0_i32_1 = arith.constant 0 : i32
    return %c0_i32, %c0_i32_0 : i32, i32
  }
  func.func @transform_2(%arg0: i32, %arg1: i32) -> (i32, i32) {
    %c0_i32 = arith.constant 0 : i32
    %c0_i32_0 = arith.constant 0 : i32
    %c0_i32_1 = arith.constant 0 : i32
    return %c0_i32, %c0_i32_0 : i32, i32
  }
  func.func @transform_3(%arg0: i32, %arg1: i32) -> (i32, i32) {
    %c0_i32 = arith.constant 0 : i32
    %c0_i32_0 = arith.constant 0 : i32
    %c0_i32_1 = arith.constant 0 : i32
    return %c0_i32, %c0_i32_0 : i32, i32
  }
  func.func @transform_4(%arg0: i32, %arg1: i32) -> (i32, i32) {
    %c0_i32 = arith.constant 0 : i32
    %c0_i32_0 = arith.constant 0 : i32
    %c0_i32_1 = arith.constant 0 : i32
    return %c0_i32, %c0_i32_0 : i32, i32
  }
  func.func @transform_5(%arg0: i32, %arg1: i32) -> (i32, i32) {
    %c0_i32 = arith.constant 0 : i32
    %c0_i32_0 = arith.constant 0 : i32
    %c0_i32_1 = arith.constant 0 : i32
    return %c0_i32, %c0_i32_0 : i32, i32
  }
  func.func @transform_6(%arg0: i32, %arg1: i32) -> (i32, i32) {
    %c0_i32 = arith.constant 0 : i32
    %c0_i32_0 = arith.constant 0 : i32
    %c0_i32_1 = arith.constant 0 : i32
    return %c0_i32, %c0_i32_0 : i32, i32
  }
  func.func @transform_7(%arg0: i32, %arg1: i32) -> (i32, i32) {
    %c0_i32 = arith.constant 0 : i32
    %c0_i32_0 = arith.constant 0 : i32
    %c0_i32_1 = arith.constant 0 : i32
    return %c0_i32, %c0_i32_0 : i32, i32
  }
  func.func @transform_8(%arg0: i32, %arg1: i32) -> (i32, i32) {
    %c0_i32 = arith.constant 0 : i32
    %c0_i32_0 = arith.constant 0 : i32
    %c0_i32_1 = arith.constant 0 : i32
    return %c0_i32, %c0_i32_0 : i32, i32
  }
  func.func @transform_9(%arg0: i32, %arg1: i32) -> (i32, i32) {
    %c1_i32 = arith.constant 1 : i32
    %0 = arith.muli %arg0, %c1_i32 : i32
    %1 = arith.addi %0, %arg1 : i32
    %c0_i32 = arith.constant 0 : i32
    %c0_i32_0 = arith.constant 0 : i32
    return %1, %c0_i32 : i32, i32
  }
  func.func @transform_10(%arg0: i32, %arg1: i32) -> (i32, i32) {
    %c1_i32 = arith.constant 1 : i32
    %0 = arith.muli %arg0, %c1_i32 : i32
    %1 = arith.addi %0, %arg1 : i32
    %c0_i32 = arith.constant 0 : i32
    %c0_i32_0 = arith.constant 0 : i32
    return %1, %c0_i32 : i32, i32
  }
  func.func @transform_11(%arg0: i32, %arg1: i32) -> (i32, i32) {
    %c0_i32 = arith.constant 0 : i32
    return %arg0, %arg1 : i32, i32
  }
}

</mosaic_0001>

<llo_original>
// kernel: tpu_custom_call.1
$region0: #{tpu_custom_call.1}
  #allocation0 [shape = 'u32[]', space=smem, size = 0x4, offset = 0x4, fixed_abs, tag = 'smem constant byte address 0x4 - core index']
  #allocation1 [shape = 'u32[144,128]{1,0:T(1,128)}', space=vmem, size = 0x12000, scoped, tag = 'internal scratch']
  #allocation2 [shape = 'f32[64,512]{1,0:T(8,128)}', space=vmem, size = 0x20000, scoped, tag = 'scratch operand']
  #allocation3 [shape = 'f32[64,128]{1,0:T(8,128)}', space=vmem, size = 0x8000, scoped, tag = 'scratch operand']
  #allocation4 [shape = 'f32[2,8,128]{2,1,0:T(8,128)}', space=vmem, size = 0x2000, scoped, tag = 'scratch operand']
  #allocation5 [shape = 'f32[2,8,128]{2,1,0:T(8,128)}', space=vmem, size = 0x2000, scoped, tag = 'scratch operand']
  %s0 = inlined_call_operand.hbm [shape: bf16[64,16], index: 0, kind: input, shape index: {}]
  %s1 = inlined_call_operand.hbm [shape: bf16[16,512], index: 1, kind: input, shape index: {}]
  %s2 = inlined_call_operand.hbm [shape: bf16[128,512], index: 2, kind: input, shape index: {}]
  %s3 = inlined_call_operand.hbm [shape: f32[1,512], index: 3, kind: input, shape index: {}]
  %s4 = inlined_call_operand.hbm [shape: bf16[128,512], index: 4, kind: input, shape index: {}]
  %s5 = inlined_call_operand.hbm [shape: bf16[128,512], index: 5, kind: input, shape index: {}]
  %s6 = inlined_call_operand.hbm [shape: f32[1,512], index: 6, kind: input, shape index: {}]
  %s7 = inlined_call_operand.hbm [shape: bf16[128,128], index: 7, kind: input, shape index: {}]
  %s8 = inlined_call_operand.hbm [shape: f32[1,128], index: 8, kind: input, shape index: {}]
  %s9 = inlined_call_operand.hbm [shape: s32[8,8], index: 9, kind: input, shape index: {}]
  %s10 = inlined_call_operand.hbm [shape: f32[64,128], index: 10, kind: output, shape index: {0}]
  %s11 = inlined_call_operand.hbm [shape: f32[1,1], index: 11, kind: output, shape index: {1}]
  %12 = xla_tuple %s10, %s11
  %s13 = sld [smem:[#allocation0]]
  $region102: #{tpu_custom_call.1} parent=0
    _
  %s15 = ssub.s32 1, %s13
  %s16 = scalar_select 0, %s15, %s13
  $region1: #{tpu_custom_call.1} parent=0
    #allocation6 [shape = 'u8[16384]{0}', space=vmem, size = 0x4000, scoped, tag = 'input window, operand 0, single buffered']
    #allocation7 [shape = 's32[1]{0}', space=sflag, size = 0x4, scoped, tag = 'scoped memory for tpu_custom_call.1']
    #allocation8 [shape = 's32[1]{0}', space=sflag, size = 0x4, scoped, tag = 'scoped memory for tpu_custom_call.1']
    #allocation9 [shape = 's32[1]{0}', space=sflag, size = 0x4, scoped, tag = 'scoped memory for tpu_custom_call.1']
    #allocation10 [shape = 'u8[16384]{0}', space=vmem, size = 0x4000, scoped, tag = 'input window, operand 1, single buffered']
    #allocation11 [shape = 's32[1]{0}', space=sflag, size = 0x4, scoped, tag = 'scoped memory for tpu_custom_call.1']
    #allocation12 [shape = 'u8[131072]{0}', space=vmem, size = 0x20000, scoped, tag = 'input window, operand 2, single buffered']
    #allocation13 [shape = 'u8[2048]{0}', space=vmem, size = 0x800, scoped, tag = 'input window, operand 3, single buffered']
    #allocation14 [shape = 's32[1]{0}', space=sflag, size = 0x4, scoped, tag = 'scoped memory for tpu_custom_call.1']
    #allocation15 [shape = 'u8[131072]{0}', space=vmem, size = 0x20000, scoped, tag = 'input window, operand 4, single buffered']
    #allocation16 [shape = 'u8[131072]{0}', space=vmem, size = 0x20000, scoped, tag = 'input window, operand 5, single buffered']
    #allocation17 [shape = 's32[1]{0}', space=sflag, size = 0x4, scoped, tag = 'scoped memory for tpu_custom_call.1']
    #allocation18 [shape = 'u8[2048]{0}', space=vmem, size = 0x800, scoped, tag = 'input window, operand 6, single buffered']
    #allocation19 [shape = 'u8[32768]{0}', space=vmem, size = 0x8000, scoped, tag = 'input window, operand 7, single buffered']
    #allocation20 [shape = 's32[1]{0}', space=sflag, size = 0x4, scoped, tag = 'scoped memory for tpu_custom_call.1']
    #allocation21 [shape = 'u8[512]{0}', space=vmem, size = 0x400, scoped, tag = 'input window, operand 8, single buffered']
    #allocation22 [shape = 'u8[4096]{0}', space=vmem, size = 0x1000, scoped, tag = 'input window, operand 9, single buffered']
    #allocation23 [shape = 's32[1]{0}', space=sflag, size = 0x4, scoped, tag = 'scoped memory for tpu_custom_call.1']
    #allocation24 [shape = 'u8[32768]{0}', space=vmem, size = 0x8000, scoped, tag = 'output window, operand 0, single buffered']
    #allocation25 [shape = 'u8[512]{0}', space=smem, size = 0x200, scoped, tag = 'output window, operand 1, single buffered']
    %17 = vsyncpa [#allocation7], 0
    %18 = vsyncpa [#allocation11], 0
    %19 = vsyncpa [#allocation14], 0
    %20 = vsyncpa [#allocation17], 0
    %21 = vsyncpa [#allocation20], 0
    %22 = vsyncpa [#allocation23], 0
    %23 = vsyncpa [#allocation8], 0
    %24 = vsyncpa [#allocation9], 0
    // Predicated region
    $region2: #{tpu_custom_call.1} parent=1 // pred_check
      _
    $region3: #{tpu_custom_call.1} parent=1 // pred_check_branch
      %26 = sbr.rel (0) target = $region5
    $region4: #{tpu_custom_call.1} parent=1 // pred_region
      %s27 = sadd.s32 0, 0
      %s28 = smul.u32 8, %s27
      %s30 = ssub.s32 512, 512
      %31 = vsyncadd [#allocation7], %s30
      %s32 = smul.addr %s28, 64
      %s33 = scalar_lea.hbm %s0, %s32
      %s34 = sshll.u32 [#allocation6], 4
      %s35 = int_to_ptr.vmem [resolvable:$true] %s34
      %40 = dma.hbm_to_vmem [thread:$0]  %s33, 512, %s35, [#allocation7], 64, 64, 4
    $region5: #{tpu_custom_call.1} parent=1 // pred_fallthru
      _
    // Predicated region
    $region6: #{tpu_custom_call.1} parent=1 // pred_check
      _
    $region7: #{tpu_custom_call.1} parent=1 // pred_check_branch
      %42 = sbr.rel (0) target = $region9
    $region8: #{tpu_custom_call.1} parent=1 // pred_region
      %s44 = ssub.s32 512, 512
      %45 = vsyncadd [#allocation11], %s44
      %s46 = sshll.u32 [#allocation10], 4
      %s47 = int_to_ptr.vmem [resolvable:$true] %s46
      %52 = dma.hbm_to_vmem [thread:$0]  %s1, 512, %s47, [#allocation11], 256, 256, 16
    $region9: #{tpu_custom_call.1} parent=1 // pred_fallthru
      _
    // Predicated region
    $region10: #{tpu_custom_call.1} parent=1 // pred_check
      _
    $region11: #{tpu_custom_call.1} parent=1 // pred_check_branch
      %54 = sbr.rel (0) target = $region13
    $region12: #{tpu_custom_call.1} parent=1 // pred_region
      %s56 = ssub.s32 4096, 4096
      %57 = vsyncadd [#allocation11], %s56
      %s58 = sshll.u32 [#allocation12], 4
      %s59 = int_to_ptr.vmem [resolvable:$true] %s58
      %64 = dma.hbm_to_vmem [thread:$0]  %s2, 4096, %s59, [#allocation11], 256, 256, 16
    $region13: #{tpu_custom_call.1} parent=1 // pred_fallthru
      _
    // Predicated region
    $region14: #{tpu_custom_call.1} parent=1 // pred_check
      _
    $region15: #{tpu_custom_call.1} parent=1 // pred_check_branch
      %66 = sbr.rel (0) target = $region17
    $region16: #{tpu_custom_call.1} parent=1 // pred_region
      %s68 = ssub.s32 64, 64
      %69 = vsyncadd [#allocation14], %s68
      %s71 = sshll.u32 [#allocation13], 4
      %s72 = int_to_ptr.vmem [resolvable:$true] %s71
      %74 = dma.hbm_to_vmem [thread:$0]  %s3, 64, %s72, [#allocation14]
    $region17: #{tpu_custom_call.1} parent=1 // pred_fallthru
      _
    // Predicated region
    $region18: #{tpu_custom_call.1} parent=1 // pred_check
      _
    $region19: #{tpu_custom_call.1} parent=1 // pred_check_branch
      %76 = sbr.rel (0) target = $region21
    $region20: #{tpu_custom_call.1} parent=1 // pred_region
      %s78 = ssub.s32 4096, 4096
      %79 = vsyncadd [#allocation14], %s78
      %s80 = sshll.u32 [#allocation15], 4
      %s81 = int_to_ptr.vmem [resolvable:$true] %s80
      %86 = dma.hbm_to_vmem [thread:$0]  %s4, 4096, %s81, [#allocation14], 256, 256, 16
    $region21: #{tpu_custom_call.1} parent=1 // pred_fallthru
      _
    // Predicated region
    $region22: #{tpu_custom_call.1} parent=1 // pred_check
      _
    $region23: #{tpu_custom_call.1} parent=1 // pred_check_branch
      %88 = sbr.rel (0) target = $region25
    $region24: #{tpu_custom_call.1} parent=1 // pred_region
      %s90 = ssub.s32 4096, 4096
      %91 = vsyncadd [#allocation17], %s90
      %s92 = sshll.u32 [#allocation16], 4
      %s93 = int_to_ptr.vmem [resolvable:$true] %s92
      %98 = dma.hbm_to_vmem [thread:$0]  %s5, 4096, %s93, [#allocation17], 256, 256, 16
    $region25: #{tpu_custom_call.1} parent=1 // pred_fallthru
      _
    // Predicated region
    $region26: #{tpu_custom_call.1} parent=1 // pred_check
      _
    $region27: #{tpu_custom_call.1} parent=1 // pred_check_branch
      %100 = sbr.rel (0) target = $region29
    $region28: #{tpu_custom_call.1} parent=1 // pred_region
      %s102 = ssub.s32 64, 64
      %103 = vsyncadd [#allocation17], %s102
      %s105 = sshll.u32 [#allocation18], 4
      %s106 = int_to_ptr.vmem [resolvable:$true] %s105
      %108 = dma.hbm_to_vmem [thread:$0]  %s6, 64, %s106, [#allocation17]
    $region29: #{tpu_custom_call.1} parent=1 // pred_fallthru
      _
    // Predicated region
    $region30: #{tpu_custom_call.1} parent=1 // pred_check
      _
    $region31: #{tpu_custom_call.1} parent=1 // pred_check_branch
      %110 = sbr.rel (0) target = $region33
    $region32: #{tpu_custom_call.1} parent=1 // pred_region
      %s112 = ssub.s32 1024, 1024
      %113 = vsyncadd [#allocation20], %s112
      %s114 = sshll.u32 [#allocation19], 4
      %s115 = int_to_ptr.vmem [resolvable:$true] %s114
      %120 = dma.hbm_to_vmem [thread:$0]  %s7, 1024, %s115, [#allocation20], 64, 64, 4
    $region33: #{tpu_custom_call.1} parent=1 // pred_fallthru
      _
    // Predicated region
    $region34: #{tpu_custom_call.1} parent=1 // pred_check
      _
    $region35: #{tpu_custom_call.1} parent=1 // pred_check_branch
      %122 = sbr.rel (0) target = $region37
    $region36: #{tpu_custom_call.1} parent=1 // pred_region
      %s124 = ssub.s32 16, 16
      %125 = vsyncadd [#allocation20], %s124
      %s127 = sshll.u32 [#allocation21], 4
      %s128 = int_to_ptr.vmem [resolvable:$true] %s127
      %130 = dma.hbm_to_vmem [thread:$0]  %s8, 16, %s128, [#allocation20]
    $region37: #{tpu_custom_call.1} parent=1 // pred_fallthru
      _
    // Predicated region
    $region38: #{tpu_custom_call.1} parent=1 // pred_check
      _
    $region39: #{tpu_custom_call.1} parent=1 // pred_check_branch
      %132 = sbr.rel (0) target = $region41
    $region40: #{tpu_custom_call.1} parent=1 // pred_region
      %s133 = sadd.s32 0, 0
      %s135 = ssub.s32 128, 128
      %136 = vsyncadd [#allocation23], %s135
      %s137 = smul.addr %s133, 128
      %s138 = scalar_lea.hbm %s9, %s137
      %s140 = sshll.u32 [#allocation22], 4
      %s141 = int_to_ptr.vmem [resolvable:$true] %s140
      %143 = dma.hbm_to_vmem [thread:$0]  %s138, 128, %s141, [#allocation23]
    $region41: #{tpu_custom_call.1} parent=1 // pred_fallthru
      _
    // Predicated region
    $region42: #{tpu_custom_call.1} parent=1 // pred_check
      _
    $region43: #{tpu_custom_call.1} parent=1 // pred_check_branch
      %145 = sbr.rel (0) target = $region45
    $region44: #{tpu_custom_call.1} parent=1 // pred_region
      %146 = dma.done [#allocation7], 512
    $region45: #{tpu_custom_call.1} parent=1 // pred_fallthru
      _
    // Predicated region
    $region46: #{tpu_custom_call.1} parent=1 // pred_check
      _
    $region47: #{tpu_custom_call.1} parent=1 // pred_check_branch
      %148 = sbr.rel (0) target = $region49
    $region48: #{tpu_custom_call.1} parent=1 // pred_region
      %149 = dma.done [#allocation11], 512
    $region49: #{tpu_custom_call.1} parent=1 // pred_fallthru
      _
    // Predicated region
    $region50: #{tpu_custom_call.1} parent=1 // pred_check
      _
    $region51: #{tpu_custom_call.1} parent=1 // pred_check_branch
      %151 = sbr.rel (0) target = $region53
    $region52: #{tpu_custom_call.1} parent=1 // pred_region
      %152 = dma.done [#allocation11], 4096
    $region53: #{tpu_custom_call.1} parent=1 // pred_fallthru
      _
    // Predicated region
    $region54: #{tpu_custom_call.1} parent=1 // pred_check
      _
    $region55: #{tpu_custom_call.1} parent=1 // pred_check_branch
      %154 = sbr.rel (0) target = $region57
    $region56: #{tpu_custom_call.1} parent=1 // pred_region
      %155 = dma.done [#allocation14], 64
    $region57: #{tpu_custom_call.1} parent=1 // pred_fallthru
      _
    // Predicated region
    $region58: #{tpu_custom_call.1} parent=1 // pred_check
      _
    $region59: #{tpu_custom_call.1} parent=1 // pred_check_branch
      %157 = sbr.rel (0) target = $region61
    $region60: #{tpu_custom_call.1} parent=1 // pred_region
      %158 = dma.done [#allocation14], 4096
    $region61: #{tpu_custom_call.1} parent=1 // pred_fallthru
      _
    // Predicated region
    $region62: #{tpu_custom_call.1} parent=1 // pred_check
      _
    $region63: #{tpu_custom_call.1} parent=1 // pred_check_branch
      %160 = sbr.rel (0) target = $region65
    $region64: #{tpu_custom_call.1} parent=1 // pred_region
      %161 = dma.done [#allocation17], 4096
    $region65: #{tpu_custom_call.1} parent=1 // pred_fallthru
      _
    // Predicated region
    $region66: #{tpu_custom_call.1} parent=1 // pred_check
      _
    $region67: #{tpu_custom_call.1} parent=1 // pred_check_branch
      %163 = sbr.rel (0) target = $region69
    $region68: #{tpu_custom_call.1} parent=1 // pred_region
      %164 = dma.done [#allocation17], 64
    $region69: #{tpu_custom_call.1} parent=1 // pred_fallthru
      _
    // Predicated region
    $region70: #{tpu_custom_call.1} parent=1 // pred_check
      _
    $region71: #{tpu_custom_call.1} parent=1 // pred_check_branch
      %166 = sbr.rel (0) target = $region73
    $region72: #{tpu_custom_call.1} parent=1 // pred_region
      %167 = dma.done [#allocation20], 1024
    $region73: #{tpu_custom_call.1} parent=1 // pred_fallthru
      _
    // Predicated region
    $region74: #{tpu_custom_call.1} parent=1 // pred_check
      _
    $region75: #{tpu_custom_call.1} parent=1 // pred_check_branch
      %169 = sbr.rel (0) target = $region77
    $region76: #{tpu_custom_call.1} parent=1 // pred_region
      %170 = dma.done [#allocation20], 16
    $region77: #{tpu_custom_call.1} parent=1 // pred_fallthru
      _
    // Predicated region
    $region78: #{tpu_custom_call.1} parent=1 // pred_check
      _
    $region79: #{tpu_custom_call.1} parent=1 // pred_check_branch
      %172 = sbr.rel (0) target = $region81
    $region80: #{tpu_custom_call.1} parent=1 // pred_region
      %173 = dma.done [#allocation23], 128
    $region81: #{tpu_custom_call.1} parent=1 // pred_fallthru
      _
    %s174 = sadd.s32 0, 0
    %s175 = smul.u32 8, %s174
    %s176 = sadd.s32 0, 0
    %s177 = sadd.s32 0, 0
    %s178 = smul.u32 8, %s177
    %p180 = scmp.eq.s32.totalorder 0, 0
    // Predicated region
    $region82: #{tpu_custom_call.1} parent=1 // pred_check
      %p181 = pneg %p180
    $region83: #{tpu_custom_call.1} parent=1 // pred_check_branch
      %183 = sbr.rel (%p181) target = $region85
    $region84: #{tpu_custom_call.1} parent=1 // pred_region
      %184 = vst [vmem:[#allocation4] sm:$0xff] 0.0
      %185 = vst [vmem:[#allocation4 + $0x8] sm:$0xff] 0.0
      %186 = vst [vmem:[#allocation5] sm:$0xff] 0.0
      %187 = vst [vmem:[#allocation5 + $0x8] sm:$0xff] 0.0
    $region85: #{tpu_custom_call.1} parent=1 // pred_fallthru
      _
    %v188 = vld [vmem:[#allocation6] sm:$0xf]
    %v189 = vld [vmem:[#allocation6 + $0x4] sm:$0xf]
    %v190 = vld [vmem:[#allocation6 + $0x8] sm:$0xf]
    %v191 = vld [vmem:[#allocation6 + $0xc] sm:$0xf]
    %v192 = vld [vmem:[#allocation6 + $0x10] sm:$0xf]
    %v193 = vld [vmem:[#allocation6 + $0x14] sm:$0xf]
    %v194 = vld [vmem:[#allocation6 + $0x18] sm:$0xf]
    %v195 = vld [vmem:[#allocation6 + $0x1c] sm:$0xf]
    %v196 = vld [vmem:[#allocation10] sm:$0xff]
    %v197 = vld [vmem:[#allocation10 + $0x8] sm:$0xff]
    %v198 = vld [vmem:[#allocation10 + $0x10] sm:$0xff]
    %v199 = vld [vmem:[#allocation10 + $0x18] sm:$0xff]
    %v200 = vld [vmem:[#allocation13] sm:$0xf]
    %v202 = vlaneseq
    %v203 = vshrl.u32 %v202, 7
    %v204 = vsub.s32 0, %v203
    %v205 = vrot.slane %v200, %v204
    %v206 = vlaneseq
    %v207 = vshrl.u32 %v206, 7
    %v208 = vsub.s32 1, %v207
    %v209 = vrot.slane %v200, %v208
    %v210 = vlaneseq
    %v211 = vshrl.u32 %v210, 7
    %v212 = vsub.s32 2, %v211
    %v213 = vrot.slane %v200, %v212
    %v214 = vlaneseq
    %v215 = vshrl.u32 %v214, 7
    %v216 = vsub.s32 3, %v215
    %v217 = vrot.slane %v200, %v216
    %v230 = vunpack.c.l.b16 %v188
    %v231 = vunpack.c.l.b16 %v189
    %v232 = vunpack.c.l.b16 %v190
    %v233 = vunpack.c.l.b16 %v191
    %v234 = vunpack.c.l.b16 %v192
    %v235 = vunpack.c.l.b16 %v193
    %v236 = vunpack.c.l.b16 %v194
    %v237 = vunpack.c.l.b16 %v195
    %v238 = vpack.c.b16 %v231, %v230
    %v239 = vpack.c.b16 %v233, %v232
    %v240 = vpack.c.b16 %v235, %v234
    %v241 = vpack.c.b16 %v237, %v236
    %v246 = vunpack.c.l.b16 %v196
    %v247 = vunpack.c.h.b16 %v196
    %v248 = vunpack.c.l.b16 %v197
    %v249 = vunpack.c.h.b16 %v197
    %v250 = vunpack.c.l.b16 %v198
    %v251 = vunpack.c.h.b16 %v198
    %v252 = vunpack.c.l.b16 %v199
    %v253 = vunpack.c.h.b16 %v199
    %v254 = vpack.c.b16 %v250, %v246
    %v255 = vpack.c.b16 %v251, %v247
    %v256 = vpack.c.b16 %v252, %v248
    %v257 = vpack.c.b16 %v253, %v249
    %vm262 = vcmask 130048
    %v264 = vsel %vm262, %v238, 0
    %v267 = vsel %vm262, %v239, 0
    %v270 = vsel %vm262, %v240, 0
    %v273 = vsel %vm262, %v241, 0
    %275 = vmatprep.subr.bf16.mxu0 %v255
    %276 = vmatpush1.bf16.msra.mxu0 %v254
    %277 = vmatprep.subr.bf16.mxu0 0
    %278 = vmatpush1.bf16.msra.mxu0 0
    %279 = vmatprep.subr.bf16.mxu0 0
    %280 = vmatpush1.bf16.msra.mxu0 0
    %281 = vmatprep.subr.bf16.mxu0 0
    %282 = vmatpush1.bf16.msra.mxu0 0
    %283 = vmatprep.subr.bf16.mxu0 0
    %284 = vmatpush1.bf16.msra.mxu0 0
    %285 = vmatprep.subr.bf16.mxu0 0
    %286 = vmatpush1.bf16.msra.mxu0 0
    %287 = vmatprep.subr.bf16.mxu0 0
    %288 = vmatpush1.bf16.msra.mxu0 0
    %289 = vmatprep.subr.bf16.mxu0 0
    %290 = vmatpush1.bf16.msra.mxu0 0
    %291 = vmatprep.subr.bf16.mxu0 0
    %292 = vmatpush1.bf16.msra.mxu0 0
    %293 = vmatprep.subr.bf16.mxu0 0
    %294 = vmatpush1.bf16.msra.mxu0 0
    %295 = vmatprep.subr.bf16.mxu0 0
    %296 = vmatpush1.bf16.msra.mxu0 0
    %297 = vmatprep.subr.bf16.mxu0 0
    %298 = vmatpush1.bf16.msra.mxu0 0
    %299 = vmatprep.subr.bf16.mxu0 0
    %300 = vmatpush1.bf16.msra.mxu0 0
    %301 = vmatprep.subr.bf16.mxu0 0
    %302 = vmatpush1.bf16.msra.mxu0 0
    %303 = vmatprep.subr.bf16.mxu0 0
    %304 = vmatpush1.bf16.msra.mxu0 0
    %305 = vmatprep.subr.bf16.mxu0 0
    %306 = vmatpush1.bf16.msra.mxu0 0
    %307 = vmatprep.mubr.bf16.mxu0 0
    %308 = vmatmul.mubr.bf16.gmra.mrb[0].mxu0 %v264
    %v309 = vpop.f32.mrb[0].mxu0
    %v310 = vadd.f32 %v205, %v309
    %v311 = vpop.f32.mrb[0].mxu0
    %v312 = vadd.f32 %v209, %v311
    %v313 = vpop.f32.mrb[0].mxu0
    %v314 = vadd.f32 %v205, %v313
    %v315 = vpop.f32.mrb[0].mxu0
    %v316 = vadd.f32 %v209, %v315
    %317 = vmatprep.mubr.bf16.mxu0 0
    %318 = vmatmul.mubr.bf16.gmra.mrb[0].mxu0 %v267
    %v319 = vpop.f32.mrb[0].mxu0
    %v320 = vadd.f32 %v205, %v319
    %v321 = vpop.f32.mrb[0].mxu0
    %v322 = vadd.f32 %v209, %v321
    %v323 = vpop.f32.mrb[0].mxu0
    %v324 = vadd.f32 %v205, %v323
    %v325 = vpop.f32.mrb[0].mxu0
    %v326 = vadd.f32 %v209, %v325
    %327 = vmatprep.mubr.bf16.mxu0 0
    %328 = vmatmul.mubr.bf16.gmra.mrb[0].mxu0 %v270
    %v329 = vpop.f32.mrb[0].mxu0
    %v330 = vadd.f32 %v205, %v329
    %v331 = vpop.f32.mrb[0].mxu0
    %v332 = vadd.f32 %v209, %v331
    %v333 = vpop.f32.mrb[0].mxu0
    %v334 = vadd.f32 %v205, %v333
    %v335 = vpop.f32.mrb[0].mxu0
    %v336 = vadd.f32 %v209, %v335
    %337 = vmatprep.mubr.bf16.mxu0 0
    %338 = vmatmul.mubr.bf16.gmra.mrb[0].mxu0 %v273
    %v339 = vpop.f32.mrb[0].mxu0
    %v340 = vadd.f32 %v205, %v339
    %v341 = vpop.f32.mrb[0].mxu0
    %v342 = vadd.f32 %v209, %v341
    %v343 = vpop.f32.mrb[0].mxu0
    %v344 = vadd.f32 %v205, %v343
    %v345 = vpop.f32.mrb[0].mxu0
    %v346 = vadd.f32 %v209, %v345
    %347 = vdwg.mxu0
    %348 = vmatprep.subr.bf16.mxu0 %v257
    %349 = vmatpush1.bf16.msra.mxu0 %v256
    %350 = vmatprep.subr.bf16.mxu0 0
    %351 = vmatpush1.bf16.msra.mxu0 0
    %352 = vmatprep.subr.bf16.mxu0 0
    %353 = vmatpush1.bf16.msra.mxu0 0
    %354 = vmatprep.subr.bf16.mxu0 0
    %355 = vmatpush1.bf16.msra.mxu0 0
    %356 = vmatprep.subr.bf16.mxu0 0
    %357 = vmatpush1.bf16.msra.mxu0 0
    %358 = vmatprep.subr.bf16.mxu0 0
    %359 = vmatpush1.bf16.msra.mxu0 0
    %360 = vmatprep.subr.bf16.mxu0 0
    %361 = vmatpush1.bf16.msra.mxu0 0
    %362 = vmatprep.subr.bf16.mxu0 0
    %363 = vmatpush1.bf16.msra.mxu0 0
    %364 = vmatprep.subr.bf16.mxu0 0
    %365 = vmatpush1.bf16.msra.mxu0 0
    %366 = vmatprep.subr.bf16.mxu0 0
    %367 = vmatpush1.bf16.msra.mxu0 0
    %368 = vmatprep.subr.bf16.mxu0 0
    %369 = vmatpush1.bf16.msra.mxu0 0
    %370 = vmatprep.subr.bf16.mxu0 0
    %371 = vmatpush1.bf16.msra.mxu0 0
    %372 = vmatprep.subr.bf16.mxu0 0
    %373 = vmatpush1.bf16.msra.mxu0 0
    %374 = vmatprep.subr.bf16.mxu0 0
    %375 = vmatpush1.bf16.msra.mxu0 0
    %376 = vmatprep.subr.bf16.mxu0 0
    %377 = vmatpush1.bf16.msra.mxu0 0
    %378 = vmatprep.subr.bf16.mxu0 0
    %379 = vmatpush1.bf16.msra.mxu0 0
    %380 = vmatprep.mubr.bf16.mxu0 0
    %381 = vmatmul.mubr.bf16.gmra.mrb[0].mxu0 %v264
    %v382 = vpop.f32.mrb[0].mxu0
    %v383 = vadd.f32 %v213, %v382
    %v384 = vpop.f32.mrb[0].mxu0
    %v385 = vadd.f32 %v217, %v384
    %v386 = vpop.f32.mrb[0].mxu0
    %v387 = vadd.f32 %v213, %v386
    %v388 = vpop.f32.mrb[0].mxu0
    %v389 = vadd.f32 %v217, %v388
    %390 = vmatprep.mubr.bf16.mxu0 0
    %391 = vmatmul.mubr.bf16.gmra.mrb[0].mxu0 %v267
    %v392 = vpop.f32.mrb[0].mxu0
    %v393 = vadd.f32 %v213, %v392
    %v394 = vpop.f32.mrb[0].mxu0
    %v395 = vadd.f32 %v217, %v394
    %v396 = vpop.f32.mrb[0].mxu0
    %v397 = vadd.f32 %v213, %v396
    %v398 = vpop.f32.mrb[0].mxu0
    %v399 = vadd.f32 %v217, %v398
    %400 = vmatprep.mubr.bf16.mxu0 0
    %401 = vmatmul.mubr.bf16.gmra.mrb[0].mxu0 %v270
    %v402 = vpop.f32.mrb[0].mxu0
    %v403 = vadd.f32 %v213, %v402
    %v404 = vpop.f32.mrb[0].mxu0
    %v405 = vadd.f32 %v217, %v404
    %v406 = vpop.f32.mrb[0].mxu0
    %v407 = vadd.f32 %v213, %v406
    %v408 = vpop.f32.mrb[0].mxu0
    %v409 = vadd.f32 %v217, %v408
    %410 = vmatprep.mubr.bf16.mxu0 0
    %411 = vmatmul.mubr.bf16.gmra.mrb[0].mxu0 %v273
    %v412 = vpop.f32.mrb[0].mxu0
    %v413 = vadd.f32 %v213, %v412
    %v414 = vpop.f32.mrb[0].mxu0
    %v415 = vadd.f32 %v217, %v414
    %v416 = vpop.f32.mrb[0].mxu0
    %v417 = vadd.f32 %v213, %v416
    %v418 = vpop.f32.mrb[0].mxu0
    %v419 = vadd.f32 %v217, %v418
    %420 = vdwg.mxu0
    %421 = vst [vmem:[#allocation2] sm:$0xff] %v310
    %422 = vst [vmem:[#allocation2 + $0x8] sm:$0xff] %v312
    %423 = vst [vmem:[#allocation2 + $0x10] sm:$0xff] %v383
    %424 = vst [vmem:[#allocation2 + $0x18] sm:$0xff] %v385
    %425 = vst [vmem:[#allocation2 + $0x20] sm:$0xff] %v314
    %426 = vst [vmem:[#allocation2 + $0x28] sm:$0xff] %v316
    %427 = vst [vmem:[#allocation2 + $0x30] sm:$0xff] %v387
    %428 = vst [vmem:[#allocation2 + $0x38] sm:$0xff] %v389
    %429 = vst [vmem:[#allocation2 + $0x40] sm:$0xff] %v320
    %430 = vst [vmem:[#allocation2 + $0x48] sm:$0xff] %v322
    %431 = vst [vmem:[#allocation2 + $0x50] sm:$0xff] %v393
    %432 = vst [vmem:[#allocation2 + $0x58] sm:$0xff] %v395
    %433 = vst [vmem:[#allocation2 + $0x60] sm:$0xff] %v324
    %434 = vst [vmem:[#allocation2 + $0x68] sm:$0xff] %v326
    %435 = vst [vmem:[#allocation2 + $0x70] sm:$0xff] %v397
    %436 = vst [vmem:[#allocation2 + $0x78] sm:$0xff] %v399
    %437 = vst [vmem:[#allocation2 + $0x80] sm:$0xff] %v330
    %438 = vst [vmem:[#allocation2 + $0x88] sm:$0xff] %v332
    %439 = vst [vmem:[#allocation2 + $0x90] sm:$0xff] %v403
    %440 = vst [vmem:[#allocation2 + $0x98] sm:$0xff] %v405
    %441 = vst [vmem:[#allocation2 + $0xa0] sm:$0xff] %v334
    %442 = vst [vmem:[#allocation2 + $0xa8] sm:$0xff] %v336
    %443 = vst [vmem:[#allocation2 + $0xb0] sm:$0xff] %v407
    %444 = vst [vmem:[#allocation2 + $0xb8] sm:$0xff] %v409
    %445 = vst [vmem:[#allocation2 + $0xc0] sm:$0xff] %v340
    %446 = vst [vmem:[#allocation2 + $0xc8] sm:$0xff] %v342
    %447 = vst [vmem:[#allocation2 + $0xd0] sm:$0xff] %v413
    %448 = vst [vmem:[#allocation2 + $0xd8] sm:$0xff] %v415
    %449 = vst [vmem:[#allocation2 + $0xe0] sm:$0xff] %v344
    %450 = vst [vmem:[#allocation2 + $0xe8] sm:$0xff] %v346
    %451 = vst [vmem:[#allocation2 + $0xf0] sm:$0xff] %v417
    %452 = vst [vmem:[#allocation2 + $0xf8] sm:$0xff] %v419
    %v453 = vld [vmem:[#allocation4] sm:$0xff]
    %v454 = vld [vmem:[#allocation5] sm:$0xff]
    %s455 = smul.u32 0, 4
    %s456 = smul.addr %s455, 8
    %s457 = scalar_lea.vmem [#allocation2], %s456
    %v458 = vld [vmem:[%s457] sm:$0xff]
    %v459 = vld [vmem:[%s457 + $0x8] sm:$0xff]
    %v460 = vld [vmem:[%s457 + $0x10] sm:$0xff]
    %v461 = vld [vmem:[%s457 + $0x18] sm:$0xff]
    %v462 = vpack.c.bf16 %v453, %v453
    %v463 = vld [vmem:[#allocation12] sm:$0xff]
    %v464 = vld [vmem:[#allocation12 + $0x8] sm:$0xff]
    %v465 = vld [vmem:[#allocation12 + $0x10] sm:$0xff]
    %v466 = vld [vmem:[#allocation12 + $0x18] sm:$0xff]
    %v467 = vld [vmem:[#allocation12 + $0x20] sm:$0xff]
    %v468 = vld [vmem:[#allocation12 + $0x28] sm:$0xff]
    %v469 = vld [vmem:[#allocation12 + $0x30] sm:$0xff]
    %v470 = vld [vmem:[#allocation12 + $0x38] sm:$0xff]
    %v471 = vld [vmem:[#allocation12 + $0x40] sm:$0xff]
    %v472 = vld [vmem:[#allocation12 + $0x48] sm:$0xff]
    %v473 = vld [vmem:[#allocation12 + $0x50] sm:$0xff]
    %v474 = vld [vmem:[#allocation12 + $0x58] sm:$0xff]
    %v475 = vld [vmem:[#allocation12 + $0x60] sm:$0xff]
    %v476 = vld [vmem:[#allocation12 + $0x68] sm:$0xff]
    %v477 = vld [vmem:[#allocation12 + $0x70] sm:$0xff]
    %v478 = vld [vmem:[#allocation12 + $0x78] sm:$0xff]
    %v479 = vld [vmem:[#allocation12 + $0x80] sm:$0xff]
    %v480 = vld [vmem:[#allocation12 + $0x88] sm:$0xff]
    %v481 = vld [vmem:[#allocation12 + $0x90] sm:$0xff]
    %v482 = vld [vmem:[#allocation12 + $0x98] sm:$0xff]
    %v483 = vld [vmem:[#allocation12 + $0xa0] sm:$0xff]
    %v484 = vld [vmem:[#allocation12 + $0xa8] sm:$0xff]
    %v485 = vld [vmem:[#allocation12 + $0xb0] sm:$0xff]
    %v486 = vld [vmem:[#allocation12 + $0xb8] sm:$0xff]
    %v487 = vld [vmem:[#allocation12 + $0xc0] sm:$0xff]
    %v488 = vld [vmem:[#allocation12 + $0xc8] sm:$0xff]
    %v489 = vld [vmem:[#allocation12 + $0xd0] sm:$0xff]
    %v490 = vld [vmem:[#allocation12 + $0xd8] sm:$0xff]
    %v491 = vld [vmem:[#allocation12 + $0xe0] sm:$0xff]
    %v492 = vld [vmem:[#allocation12 + $0xe8] sm:$0xff]
    %v493 = vld [vmem:[#allocation12 + $0xf0] sm:$0xff]
    %v494 = vld [vmem:[#allocation12 + $0xf8] sm:$0xff]
    %v527 = vunpack.c.l.b16 %v463
    %v528 = vunpack.c.h.b16 %v463
    %v529 = vunpack.c.l.b16 %v464
    %v530 = vunpack.c.h.b16 %v464
    %v531 = vunpack.c.l.b16 %v465
    %v532 = vunpack.c.h.b16 %v465
    %v533 = vunpack.c.l.b16 %v466
    %v534 = vunpack.c.h.b16 %v466
    %v535 = vunpack.c.l.b16 %v467
    %v536 = vunpack.c.h.b16 %v467
    %v537 = vunpack.c.l.b16 %v468
    %v538 = vunpack.c.h.b16 %v468
    %v539 = vunpack.c.l.b16 %v469
    %v540 = vunpack.c.h.b16 %v469
    %v541 = vunpack.c.l.b16 %v470
    %v542 = vunpack.c.h.b16 %v470
    %v543 = vunpack.c.l.b16 %v471
    %v544 = vunpack.c.h.b16 %v471
    %v545 = vunpack.c.l.b16 %v472
    %v546 = vunpack.c.h.b16 %v472
    %v547 = vunpack.c.l.b16 %v473
    %v548 = vunpack.c.h.b16 %v473
    %v549 = vunpack.c.l.b16 %v474
    %v550 = vunpack.c.h.b16 %v474
    %v551 = vunpack.c.l.b16 %v475
    %v552 = vunpack.c.h.b16 %v475
    %v553 = vunpack.c.l.b16 %v476
    %v554 = vunpack.c.h.b16 %v476
    %v555 = vunpack.c.l.b16 %v477
    %v556 = vunpack.c.h.b16 %v477
    %v557 = vunpack.c.l.b16 %v478
    %v558 = vunpack.c.h.b16 %v478
    %v559 = vunpack.c.l.b16 %v479
    %v560 = vunpack.c.h.b16 %v479
    %v561 = vunpack.c.l.b16 %v480
    %v562 = vunpack.c.h.b16 %v480
    %v563 = vunpack.c.l.b16 %v481
    %v564 = vunpack.c.h.b16 %v481
    %v565 = vunpack.c.l.b16 %v482
    %v566 = vunpack.c.h.b16 %v482
    %v567 = vunpack.c.l.b16 %v483
    %v568 = vunpack.c.h.b16 %v483
    %v569 = vunpack.c.l.b16 %v484
    %v570 = vunpack.c.h.b16 %v484
    %v571 = vunpack.c.l.b16 %v485
    %v572 = vunpack.c.h.b16 %v485
    %v573 = vunpack.c.l.b16 %v486
    %v574 = vunpack.c.h.b16 %v486
    %v575 = vunpack.c.l.b16 %v487
    %v576 = vunpack.c.h.b16 %v487
    %v577 = vunpack.c.l.b16 %v488
    %v578 = vunpack.c.h.b16 %v488
    %v579 = vunpack.c.l.b16 %v489
    %v580 = vunpack.c.h.b16 %v489
    %v581 = vunpack.c.l.b16 %v490
    %v582 = vunpack.c.h.b16 %v490
    %v583 = vunpack.c.l.b16 %v491
    %v584 = vunpack.c.h.b16 %v491
    %v585 = vunpack.c.l.b16 %v492
    %v586 = vunpack.c.h.b16 %v492
    %v587 = vunpack.c.l.b16 %v493
    %v588 = vunpack.c.h.b16 %v493
    %v589 = vunpack.c.l.b16 %v494
    %v590 = vunpack.c.h.b16 %v494
    %v591 = vpack.c.b16 %v531, %v527
    %v592 = vpack.c.b16 %v532, %v528
    %v593 = vpack.c.b16 %v533, %v529
    %v594 = vpack.c.b16 %v534, %v530
    %v595 = vpack.c.b16 %v539, %v535
    %v596 = vpack.c.b16 %v540, %v536
    %v597 = vpack.c.b16 %v541, %v537
    %v598 = vpack.c.b16 %v542, %v538
    %v599 = vpack.c.b16 %v547, %v543
    %v600 = vpack.c.b16 %v548, %v544
    %v601 = vpack.c.b16 %v549, %v545
    %v602 = vpack.c.b16 %v550, %v546
    %v603 = vpack.c.b16 %v555, %v551
    %v604 = vpack.c.b16 %v556, %v552
    %v605 = vpack.c.b16 %v557, %v553
    %v606 = vpack.c.b16 %v558, %v554
    %v607 = vpack.c.b16 %v563, %v559
    %v608 = vpack.c.b16 %v564, %v560
    %v609 = vpack.c.b16 %v565, %v561
    %v610 = vpack.c.b16 %v566, %v562
    %v611 = vpack.c.b16 %v571, %v567
    %v612 = vpack.c.b16 %v572, %v568
    %v613 = vpack.c.b16 %v573, %v569
    %v614 = vpack.c.b16 %v574, %v570
    %v615 = vpack.c.b16 %v579, %v575
    %v616 = vpack.c.b16 %v580, %v576
    %v617 = vpack.c.b16 %v581, %v577
    %v618 = vpack.c.b16 %v582, %v578
    %v619 = vpack.c.b16 %v587, %v583
    %v620 = vpack.c.b16 %v588, %v584
    %v621 = vpack.c.b16 %v589, %v585
    %v622 = vpack.c.b16 %v590, %v586
    %655 = vmatprep.subr.bf16.mxu0 %v592
    %656 = vmatpush1.bf16.msra.mxu0 %v591
    %657 = vmatprep.subr.bf16.mxu0 %v596
    %658 = vmatpush1.bf16.msra.mxu0 %v595
    %659 = vmatprep.subr.bf16.mxu0 %v600
    %660 = vmatpush1.bf16.msra.mxu0 %v599
    %661 = vmatprep.subr.bf16.mxu0 %v604
    %662 = vmatpush1.bf16.msra.mxu0 %v603
    %663 = vmatprep.subr.bf16.mxu0 %v608
    %664 = vmatpush1.bf16.msra.mxu0 %v607
    %665 = vmatprep.subr.bf16.mxu0 %v612
    %666 = vmatpush1.bf16.msra.mxu0 %v611
    %667 = vmatprep.subr.bf16.mxu0 %v616
    %668 = vmatpush1.bf16.msra.mxu0 %v615
    %669 = vmatprep.subr.bf16.mxu0 %v620
    %670 = vmatpush1.bf16.msra.mxu0 %v619
    %671 = vmatprep.subr.bf16.mxu0 0
    %672 = vmatpush1.bf16.msra.mxu0 0
    %673 = vmatprep.subr.bf16.mxu0 0
    %674 = vmatpush1.bf16.msra.mxu0 0
    %675 = vmatprep.subr.bf16.mxu0 0
    %676 = vmatpush1.bf16.msra.mxu0 0
    %677 = vmatprep.subr.bf16.mxu0 0
    %678 = vmatpush1.bf16.msra.mxu0 0
    %679 = vmatprep.subr.bf16.mxu0 0
    %680 = vmatpush1.bf16.msra.mxu0 0
    %681 = vmatprep.subr.bf16.mxu0 0
    %682 = vmatpush1.bf16.msra.mxu0 0
    %683 = vmatprep.subr.bf16.mxu0 0
    %684 = vmatpush1.bf16.msra.mxu0 0
    %685 = vmatprep.subr.bf16.mxu0 0
    %686 = vmatpush1.bf16.msra.mxu0 0
    %687 = vmatprep.mubr.bf16.mxu0 0
    %688 = vmatmul.mubr.bf16.gmra.mrb[0].mxu0 %v462
    %v689 = vpop.f32.mrb[0].mxu0
    %v690 = vadd.f32 0.0, %v689
    %v691 = vpop.f32.mrb[0].mxu0
    %v692 = vadd.f32 0.0, %v691
    %v693 = vpop.f32.mrb[0].mxu0
    %v694 = vpop.f32.mrb[0].mxu0
    %695 = vdwg.mxu0
    %696 = vmatprep.subr.bf16.mxu0 %v594
    %697 = vmatpush1.bf16.msra.mxu0 %v593
    %698 = vmatprep.subr.bf16.mxu0 %v598
    %699 = vmatpush1.bf16.msra.mxu0 %v597
    %700 = vmatprep.subr.bf16.mxu0 %v602
    %701 = vmatpush1.bf16.msra.mxu0 %v601
    %702 = vmatprep.subr.bf16.mxu0 %v606
    %703 = vmatpush1.bf16.msra.mxu0 %v605
    %704 = vmatprep.subr.bf16.mxu0 %v610
    %705 = vmatpush1.bf16.msra.mxu0 %v609
    %706 = vmatprep.subr.bf16.mxu0 %v614
    %707 = vmatpush1.bf16.msra.mxu0 %v613
    %708 = vmatprep.subr.bf16.mxu0 %v618
    %709 = vmatpush1.bf16.msra.mxu0 %v617
    %710 = vmatprep.subr.bf16.mxu0 %v622
    %711 = vmatpush1.bf16.msra.mxu0 %v621
    %712 = vmatprep.subr.bf16.mxu0 0
    %713 = vmatpush1.bf16.msra.mxu0 0
    %714 = vmatprep.subr.bf16.mxu0 0
    %715 = vmatpush1.bf16.msra.mxu0 0
    %716 = vmatprep.subr.bf16.mxu0 0
    %717 = vmatpush1.bf16.msra.mxu0 0
    %718 = vmatprep.subr.bf16.mxu0 0
    %719 = vmatpush1.bf16.msra.mxu0 0
    %720 = vmatprep.subr.bf16.mxu0 0
    %721 = vmatpush1.bf16.msra.mxu0 0
    %722 = vmatprep.subr.bf16.mxu0 0
    %723 = vmatpush1.bf16.msra.mxu0 0
    %724 = vmatprep.subr.bf16.mxu0 0
    %725 = vmatpush1.bf16.msra.mxu0 0
    %726 = vmatprep.subr.bf16.mxu0 0
    %727 = vmatpush1.bf16.msra.mxu0 0
    %728 = vmatprep.mubr.bf16.mxu0 0
    %729 = vmatmul.mubr.bf16.gmra.mrb[0].mxu0 %v462
    %v730 = vpop.f32.mrb[0].mxu0
    %v731 = vadd.f32 0.0, %v730
    %v732 = vpop.f32.mrb[0].mxu0
    %v733 = vadd.f32 0.0, %v732
    %v734 = vpop.f32.mrb[0].mxu0
    %v735 = vpop.f32.mrb[0].mxu0
    %736 = vdwg.mxu0
    %v737 = vadd.f32 %v458, %v690
    %v738 = vadd.f32 %v459, %v692
    %v739 = vadd.f32 %v460, %v731
    %v740 = vadd.f32 %v461, %v733
    %v741 = vxor.u32 %v737, 2147483648
    %v742 = vmul.f32 %v741, 1.442695
    %v743 = vpow.pop %v742
    %v744 = vadd.f32 %v743, 1.0
    %v745 = vrcp.pop %v744
    %v746 = vmul.f32 1.0, %v745
    %v747 = vxor.u32 %v738, 2147483648
    %v748 = vmul.f32 %v747, 1.442695
    %v749 = vpow.pop %v748
    %v750 = vadd.f32 %v749, 1.0
    %v751 = vrcp.pop %v750
    %v752 = vmul.f32 1.0, %v751
    %v753 = vtanh.pop %v739
    %v754 = vxor.u32 %v740, 2147483648
    %v755 = vmul.f32 %v754, 1.442695
    %v756 = vpow.pop %v755
    %v757 = vadd.f32 %v756, 1.0
    %v758 = vrcp.pop %v757
    %v759 = vmul.f32 1.0, %v758
    %v760 = vmul.f32 %v752, %v454
    %v761 = vmul.f32 %v746, %v753
    %v762 = vadd.f32 %v760, %v761
    %v763 = vtanh.pop %v762
    %v764 = vmul.f32 %v759, %v763
    %765 = vst [vmem:[#allocation3] sm:$0xff] %v764
    %s766 = smul.u32 1, 4
    %s767 = smul.addr %s766, 8
    %s768 = scalar_lea.vmem [#allocation2], %s767
    %v769 = vld [vmem:[%s768] sm:$0xff]
    %v770 = vld [vmem:[%s768 + $0x8] sm:$0xff]
    %v771 = vld [vmem:[%s768 + $0x10] sm:$0xff]
    %v772 = vld [vmem:[%s768 + $0x18] sm:$0xff]
    %v773 = vpack.c.bf16 %v764, %v764
    %v774 = vld [vmem:[#allocation12] sm:$0xff]
    %v775 = vld [vmem:[#allocation12 + $0x8] sm:$0xff]
    %v776 = vld [vmem:[#allocation12 + $0x10] sm:$0xff]
    %v777 = vld [vmem:[#allocation12 + $0x18] sm:$0xff]
    %v778 = vld [vmem:[#allocation12 + $0x20] sm:$0xff]
    %v779 = vld [vmem:[#allocation12 + $0x28] sm:$0xff]
    %v780 = vld [vmem:[#allocation12 + $0x30] sm:$0xff]
    %v781 = vld [vmem:[#allocation12 + $0x38] sm:$0xff]
    %v782 = vld [vmem:[#allocation12 + $0x40] sm:$0xff]
    %v783 = vld [vmem:[#allocation12 + $0x48] sm:$0xff]
    %v784 = vld [vmem:[#allocation12 + $0x50] sm:$0xff]
    %v785 = vld [vmem:[#allocation12 + $0x58] sm:$0xff]
    %v786 = vld [vmem:[#allocation12 + $0x60] sm:$0xff]
    %v787 = vld [vmem:[#allocation12 + $0x68] sm:$0xff]
    %v788 = vld [vmem:[#allocation12 + $0x70] sm:$0xff]
    %v789 = vld [vmem:[#allocation12 + $0x78] sm:$0xff]
    %v790 = vld [vmem:[#allocation12 + $0x80] sm:$0xff]
    %v791 = vld [vmem:[#allocation12 + $0x88] sm:$0xff]
    %v792 = vld [vmem:[#allocation12 + $0x90] sm:$0xff]
    %v793 = vld [vmem:[#allocation12 + $0x98] sm:$0xff]
    %v794 = vld [vmem:[#allocation12 + $0xa0] sm:$0xff]
    %v795 = vld [vmem:[#allocation12 + $0xa8] sm:$0xff]
    %v796 = vld [vmem:[#allocation12 + $0xb0] sm:$0xff]
    %v797 = vld [vmem:[#allocation12 + $0xb8] sm:$0xff]
    %v798 = vld [vmem:[#allocation12 + $0xc0] sm:$0xff]
    %v799 = vld [vmem:[#allocation12 + $0xc8] sm:$0xff]
    %v800 = vld [vmem:[#allocation12 + $0xd0] sm:$0xff]
    %v801 = vld [vmem:[#allocation12 + $0xd8] sm:$0xff]
    %v802 = vld [vmem:[#allocation12 + $0xe0] sm:$0xff]
    %v803 = vld [vmem:[#allocation12 + $0xe8] sm:$0xff]
    %v804 = vld [vmem:[#allocation12 + $0xf0] sm:$0xff]
    %v805 = vld [vmem:[#allocation12 + $0xf8] sm:$0xff]
    %v838 = vunpack.c.l.b16 %v774
    %v839 = vunpack.c.h.b16 %v774
    %v840 = vunpack.c.l.b16 %v775
    %v841 = vunpack.c.h.b16 %v775
    %v842 = vunpack.c.l.b16 %v776
    %v843 = vunpack.c.h.b16 %v776
    %v844 = vunpack.c.l.b16 %v777
    %v845 = vunpack.c.h.b16 %v777
    %v846 = vunpack.c.l.b16 %v778
    %v847 = vunpack.c.h.b16 %v778
    %v848 = vunpack.c.l.b16 %v779
    %v849 = vunpack.c.h.b16 %v779
    %v850 = vunpack.c.l.b16 %v780
    %v851 = vunpack.c.h.b16 %v780
    %v852 = vunpack.c.l.b16 %v781
    %v853 = vunpack.c.h.b16 %v781
    %v854 = vunpack.c.l.b16 %v782
    %v855 = vunpack.c.h.b16 %v782
    %v856 = vunpack.c.l.b16 %v783
    %v857 = vunpack.c.h.b16 %v783
    %v858 = vunpack.c.l.b16 %v784
    %v859 = vunpack.c.h.b16 %v784
    %v860 = vunpack.c.l.b16 %v785
    %v861 = vunpack.c.h.b16 %v785
    %v862 = vunpack.c.l.b16 %v786
    %v863 = vunpack.c.h.b16 %v786
    %v864 = vunpack.c.l.b16 %v787
    %v865 = vunpack.c.h.b16 %v787
    %v866 = vunpack.c.l.b16 %v788
    %v867 = vunpack.c.h.b16 %v788
    %v868 = vunpack.c.l.b16 %v789
    %v869 = vunpack.c.h.b16 %v789
    %v870 = vunpack.c.l.b16 %v790
    %v871 = vunpack.c.h.b16 %v790
    %v872 = vunpack.c.l.b16 %v791
    %v873 = vunpack.c.h.b16 %v791
    %v874 = vunpack.c.l.b16 %v792
    %v875 = vunpack.c.h.b16 %v792
    %v876 = vunpack.c.l.b16 %v793
    %v877 = vunpack.c.h.b16 %v793
    %v878 = vunpack.c.l.b16 %v794
    %v879 = vunpack.c.h.b16 %v794
    %v880 = vunpack.c.l.b16 %v795
    %v881 = vunpack.c.h.b16 %v795
    %v882 = vunpack.c.l.b16 %v796
    %v883 = vunpack.c.h.b16 %v796
    %v884 = vunpack.c.l.b16 %v797
    %v885 = vunpack.c.h.b16 %v797
    %v886 = vunpack.c.l.b16 %v798
    %v887 = vunpack.c.h.b16 %v798
    %v888 = vunpack.c.l.b16 %v799
    %v889 = vunpack.c.h.b16 %v799
    %v890 = vunpack.c.l.b16 %v800
    %v891 = vunpack.c.h.b16 %v800
    %v892 = vunpack.c.l.b16 %v801
    %v893 = vunpack.c.h.b16 %v801
    %v894 = vunpack.c.l.b16 %v802
    %v895 = vunpack.c.h.b16 %v802
    %v896 = vunpack.c.l.b16 %v803
    %v897 = vunpack.c.h.b16 %v803
    %v898 = vunpack.c.l.b16 %v804
    %v899 = vunpack.c.h.b16 %v804
    %v900 = vunpack.c.l.b16 %v805
    %v901 = vunpack.c.h.b16 %v805
    %v902 = vpack.c.b16 %v842, %v838
    %v903 = vpack.c.b16 %v843, %v839
    %v904 = vpack.c.b16 %v844, %v840
    %v905 = vpack.c.b16 %v845, %v841
    %v906 = vpack.c.b16 %v850, %v846
    %v907 = vpack.c.b16 %v851, %v847
    %v908 = vpack.c.b16 %v852, %v848
    %v909 = vpack.c.b16 %v853, %v849
    %v910 = vpack.c.b16 %v858, %v854
    %v911 = vpack.c.b16 %v859, %v855
    %v912 = vpack.c.b16 %v860, %v856
    %v913 = vpack.c.b16 %v861, %v857
    %v914 = vpack.c.b16 %v866, %v862
    %v915 = vpack.c.b16 %v867, %v863
    %v916 = vpack.c.b16 %v868, %v864
    %v917 = vpack.c.b16 %v869, %v865
    %v918 = vpack.c.b16 %v874, %v870
    %v919 = vpack.c.b16 %v875, %v871
    %v920 = vpack.c.b16 %v876, %v872
    %v921 = vpack.c.b16 %v877, %v873
    %v922 = vpack.c.b16 %v882, %v878
    %v923 = vpack.c.b16 %v883, %v879
    %v924 = vpack.c.b16 %v884, %v880
    %v925 = vpack.c.b16 %v885, %v881
    %v926 = vpack.c.b16 %v890, %v886
    %v927 = vpack.c.b16 %v891, %v887
    %v928 = vpack.c.b16 %v892, %v888
    %v929 = vpack.c.b16 %v893, %v889
    %v930 = vpack.c.b16 %v898, %v894
    %v931 = vpack.c.b16 %v899, %v895
    %v932 = vpack.c.b16 %v900, %v896
    %v933 = vpack.c.b16 %v901, %v897
    %966 = vmatprep.subr.bf16.mxu0 %v903
    %967 = vmatpush1.bf16.msra.mxu0 %v902
    %968 = vmatprep.subr.bf16.mxu0 %v907
    %969 = vmatpush1.bf16.msra.mxu0 %v906
    %970 = vmatprep.subr.bf16.mxu0 %v911
    %971 = vmatpush1.bf16.msra.mxu0 %v910
    %972 = vmatprep.subr.bf16.mxu0 %v915
    %973 = vmatpush1.bf16.msra.mxu0 %v914
    %974 = vmatprep.subr.bf16.mxu0 %v919
    %975 = vmatpush1.bf16.msra.mxu0 %v918
    %976 = vmatprep.subr.bf16.mxu0 %v923
    %977 = vmatpush1.bf16.msra.mxu0 %v922
    %978 = vmatprep.subr.bf16.mxu0 %v927
    %979 = vmatpush1.bf16.msra.mxu0 %v926
    %980 = vmatprep.subr.bf16.mxu0 %v931
    %981 = vmatpush1.bf16.msra.mxu0 %v930
    %982 = vmatprep.subr.bf16.mxu0 0
    %983 = vmatpush1.bf16.msra.mxu0 0
    %984 = vmatprep.subr.bf16.mxu0 0
    %985 = vmatpush1.bf16.msra.mxu0 0
    %986 = vmatprep.subr.bf16.mxu0 0
    %987 = vmatpush1.bf16.msra.mxu0 0
    %988 = vmatprep.subr.bf16.mxu0 0
    %989 = vmatpush1.bf16.msra.mxu0 0
    %990 = vmatprep.subr.bf16.mxu0 0
    %991 = vmatpush1.bf16.msra.mxu0 0
    %992 = vmatprep.subr.bf16.mxu0 0
    %993 = vmatpush1.bf16.msra.mxu0 0
    %994 = vmatprep.subr.bf16.mxu0 0
    %995 = vmatpush1.bf16.msra.mxu0 0
    %996 = vmatprep.subr.bf16.mxu0 0
    %997 = vmatpush1.bf16.msra.mxu0 0
    %998 = vmatprep.mubr.bf16.mxu0 0
    %999 = vmatmul.mubr.bf16.gmra.mrb[0].mxu0 %v773
    %v1000 = vpop.f32.mrb[0].mxu0
    %v1001 = vadd.f32 0.0, %v1000
    %v1002 = vpop.f32.mrb[0].mxu0
    %v1003 = vadd.f32 0.0, %v1002
    %v1004 = vpop.f32.mrb[0].mxu0
    %v1005 = vpop.f32.mrb[0].mxu0
    %1006 = vdwg.mxu0
    %1007 = vmatprep.subr.bf16.mxu0 %v905
    %1008 = vmatpush1.bf16.msra.mxu0 %v904
    %1009 = vmatprep.subr.bf16.mxu0 %v909
    %1010 = vmatpush1.bf16.msra.mxu0 %v908
    %1011 = vmatprep.subr.bf16.mxu0 %v913
    %1012 = vmatpush1.bf16.msra.mxu0 %v912
    %1013 = vmatprep.subr.bf16.mxu0 %v917
    %1014 = vmatpush1.bf16.msra.mxu0 %v916
    %1015 = vmatprep.subr.bf16.mxu0 %v921
    %1016 = vmatpush1.bf16.msra.mxu0 %v920
    %1017 = vmatprep.subr.bf16.mxu0 %v925
    %1018 = vmatpush1.bf16.msra.mxu0 %v924
    %1019 = vmatprep.subr.bf16.mxu0 %v929
    %1020 = vmatpush1.bf16.msra.mxu0 %v928
    %1021 = vmatprep.subr.bf16.mxu0 %v933
    %1022 = vmatpush1.bf16.msra.mxu0 %v932
    %1023 = vmatprep.subr.bf16.mxu0 0
    %1024 = vmatpush1.bf16.msra.mxu0 0
    %1025 = vmatprep.subr.bf16.mxu0 0
    %1026 = vmatpush1.bf16.msra.mxu0 0
    %1027 = vmatprep.subr.bf16.mxu0 0
    %1028 = vmatpush1.bf16.msra.mxu0 0
    %1029 = vmatprep.subr.bf16.mxu0 0
    %1030 = vmatpush1.bf16.msra.mxu0 0
    %1031 = vmatprep.subr.bf16.mxu0 0
    %1032 = vmatpush1.bf16.msra.mxu0 0
    %1033 = vmatprep.subr.bf16.mxu0 0
    %1034 = vmatpush1.bf16.msra.mxu0 0
    %1035 = vmatprep.subr.bf16.mxu0 0
    %1036 = vmatpush1.bf16.msra.mxu0 0
    %1037 = vmatprep.subr.bf16.mxu0 0
    %1038 = vmatpush1.bf16.msra.mxu0 0
    %1039 = vmatprep.mubr.bf16.mxu0 0
    %1040 = vmatmul.mubr.bf16.gmra.mrb[0].mxu0 %v773
    %v1041 = vpop.f32.mrb[0].mxu0
    %v1042 = vadd.f32 0.0, %v1041
    %v1043 = vpop.f32.mrb[0].mxu0
    %v1044 = vadd.f32 0.0, %v1043
    %v1045 = vpop.f32.mrb[0].mxu0
    %v1046 = vpop.f32.mrb[0].mxu0
    %1047 = vdwg.mxu0
    %v1048 = vadd.f32 %v769, %v1001
    %v1049 = vadd.f32 %v770, %v1003
    %v1050 = vadd.f32 %v771, %v1042
    %v1051 = vadd.f32 %v772, %v1044
    %v1052 = vxor.u32 %v1048, 2147483648
    %v1053 = vmul.f32 %v1052, 1.442695
    %v1054 = vpow.pop %v1053
    %v1055 = vadd.f32 %v1054, 1.0
    %v1056 = vrcp.pop %v1055
    %v1057 = vmul.f32 1.0, %v1056
    %v1058 = vxor.u32 %v1049, 2147483648
    %v1059 = vmul.f32 %v1058, 1.442695
    %v1060 = vpow.pop %v1059
    %v1061 = vadd.f32 %v1060, 1.0
    %v1062 = vrcp.pop %v1061
    %v1063 = vmul.f32 1.0, %v1062
    %v1064 = vtanh.pop %v1050
    %v1065 = vxor.u32 %v1051, 2147483648
    %v1066 = vmul.f32 %v1065, 1.442695
    %v1067 = vpow.pop %v1066
    %v1068 = vadd.f32 %v1067, 1.0
    %v1069 = vrcp.pop %v1068
    %v1070 = vmul.f32 1.0, %v1069
    %v1071 = vmul.f32 %v1063, %v762
    %v1072 = vmul.f32 %v1057, %v1064
    %v1073 = vadd.f32 %v1071, %v1072
    %v1074 = vtanh.pop %v1073
    %v1075 = vmul.f32 %v1070, %v1074
    %s1076 = scalar_lea.vmem [#allocation3], 8
    %1077 = vst [vmem:[%s1076] sm:$0xff] %v1075
    %s1078 = smul.u32 2, 4
    %s1079 = smul.addr %s1078, 8
    %s1080 = scalar_lea.vmem [#allocation2], %s1079
    %v1081 = vld [vmem:[%s1080] sm:$0xff]
    %v1082 = vld [vmem:[%s1080 + $0x8] sm:$0xff]
    %v1083 = vld [vmem:[%s1080 + $0x10] sm:$0xff]
    %v1084 = vld [vmem:[%s1080 + $0x18] sm:$0xff]
    %v1085 = vpack.c.bf16 %v1075, %v1075
    %v1086 = vld [vmem:[#allocation12] sm:$0xff]
    %v1087 = vld [vmem:[#allocation12 + $0x8] sm:$0xff]
    %v1088 = vld [vmem:[#allocation12 + $0x10] sm:$0xff]
    %v1089 = vld [vmem:[#allocation12 + $0x18] sm:$0xff]
    %v1090 = vld [vmem:[#allocation12 + $0x20] sm:$0xff]
    %v1091 = vld [vmem:[#allocation12 + $0x28] sm:$0xff]
    %v1092 = vld [vmem:[#allocation12 + $0x30] sm:$0xff]
    %v1093 = vld [vmem:[#allocation12 + $0x38] sm:$0xff]
    %v1094 = vld [vmem:[#allocation12 + $0x40] sm:$0xff]
    %v1095 = vld [vmem:[#allocation12 + $0x48] sm:$0xff]
    %v1096 = vld [vmem:[#allocation12 + $0x50] sm:$0xff]
    %v1097 = vld [vmem:[#allocation12 + $0x58] sm:$0xff]
    %v1098 = vld [vmem:[#allocation12 + $0x60] sm:$0xff]
    %v1099 = vld [vmem:[#allocation12 + $0x68] sm:$0xff]
    %v1100 = vld [vmem:[#allocation12 + $0x70] sm:$0xff]
    %v1101 = vld [vmem:[#allocation12 + $0x78] sm:$0xff]
    %v1102 = vld [vmem:[#allocation12 + $0x80] sm:$0xff]
    %v1103 = vld [vmem:[#allocation12 + $0x88] sm:$0xff]
    %v1104 = vld [vmem:[#allocation12 + $0x90] sm:$0xff]
    %v1105 = vld [vmem:[#allocation12 + $0x98] sm:$0xff]
    %v1106 = vld [vmem:[#allocation12 + $0xa0] sm:$0xff]
    %v1107 = vld [vmem:[#allocation12 + $0xa8] sm:$0xff]
    %v1108 = vld [vmem:[#allocation12 + $0xb0] sm:$0xff]
    %v1109 = vld [vmem:[#allocation12 + $0xb8] sm:$0xff]
    %v1110 = vld [vmem:[#allocation12 + $0xc0] sm:$0xff]
    %v1111 = vld [vmem:[#allocation12 + $0xc8] sm:$0xff]
    %v1112 = vld [vmem:[#allocation12 + $0xd0] sm:$0xff]
    %v1113 = vld [vmem:[#allocation12 + $0xd8] sm:$0xff]
    %v1114 = vld [vmem:[#allocation12 + $0xe0] sm:$0xff]
    %v1115 = vld [vmem:[#allocation12 + $0xe8] sm:$0xff]
    %v1116 = vld [vmem:[#allocation12 + $0xf0] sm:$0xff]
    %v1117 = vld [vmem:[#allocation12 + $0xf8] sm:$0xff]
    %v1150 = vunpack.c.l.b16 %v1086
    %v1151 = vunpack.c.h.b16 %v1086
    %v1152 = vunpack.c.l.b16 %v1087
    %v1153 = vunpack.c.h.b16 %v1087
    %v1154 = vunpack.c.l.b16 %v1088
    %v1155 = vunpack.c.h.b16 %v1088
    %v1156 = vunpack.c.l.b16 %v1089
    %v1157 = vunpack.c.h.b16 %v1089
    %v1158 = vunpack.c.l.b16 %v1090
    %v1159 = vunpack.c.h.b16 %v1090
    %v1160 = vunpack.c.l.b16 %v1091
    %v1161 = vunpack.c.h.b16 %v1091
    %v1162 = vunpack.c.l.b16 %v1092
    %v1163 = vunpack.c.h.b16 %v1092
    %v1164 = vunpack.c.l.b16 %v1093
    %v1165 = vunpack.c.h.b16 %v1093
    %v1166 = vunpack.c.l.b16 %v1094
    %v1167 = vunpack.c.h.b16 %v1094
    %v1168 = vunpack.c.l.b16 %v1095
    %v1169 = vunpack.c.h.b16 %v1095
    %v1170 = vunpack.c.l.b16 %v1096
    %v1171 = vunpack.c.h.b16 %v1096
    %v1172 = vunpack.c.l.b16 %v1097
    %v1173 = vunpack.c.h.b16 %v1097
    %v1174 = vunpack.c.l.b16 %v1098
    %v1175 = vunpack.c.h.b16 %v1098
    %v1176 = vunpack.c.l.b16 %v1099
    %v1177 = vunpack.c.h.b16 %v1099
    %v1178 = vunpack.c.l.b16 %v1100
    %v1179 = vunpack.c.h.b16 %v1100
    %v1180 = vunpack.c.l.b16 %v1101
    %v1181 = vunpack.c.h.b16 %v1101
    %v1182 = vunpack.c.l.b16 %v1102
    %v1183 = vunpack.c.h.b16 %v1102
    %v1184 = vunpack.c.l.b16 %v1103
    %v1185 = vunpack.c.h.b16 %v1103
    %v1186 = vunpack.c.l.b16 %v1104
    %v1187 = vunpack.c.h.b16 %v1104
    %v1188 = vunpack.c.l.b16 %v1105
    %v1189 = vunpack.c.h.b16 %v1105
    %v1190 = vunpack.c.l.b16 %v1106
    %v1191 = vunpack.c.h.b16 %v1106
    %v1192 = vunpack.c.l.b16 %v1107
    %v1193 = vunpack.c.h.b16 %v1107
    %v1194 = vunpack.c.l.b16 %v1108
    %v1195 = vunpack.c.h.b16 %v1108
    %v1196 = vunpack.c.l.b16 %v1109
    %v1197 = vunpack.c.h.b16 %v1109
    %v1198 = vunpack.c.l.b16 %v1110
    %v1199 = vunpack.c.h.b16 %v1110
    %v1200 = vunpack.c.l.b16 %v1111
    %v1201 = vunpack.c.h.b16 %v1111
    %v1202 = vunpack.c.l.b16 %v1112
    %v1203 = vunpack.c.h.b16 %v1112
    %v1204 = vunpack.c.l.b16 %v1113
    %v1205 = vunpack.c.h.b16 %v1113
    %v1206 = vunpack.c.l.b16 %v1114
    %v1207 = vunpack.c.h.b16 %v1114
    %v1208 = vunpack.c.l.b16 %v1115
    %v1209 = vunpack.c.h.b16 %v1115
    %v1210 = vunpack.c.l.b16 %v1116
    %v1211 = vunpack.c.h.b16 %v1116
    %v1212 = vunpack.c.l.b16 %v1117
    %v1213 = vunpack.c.h.b16 %v1117
    %v1214 = vpack.c.b16 %v1154, %v1150
    %v1215 = vpack.c.b16 %v1155, %v1151
    %v1216 = vpack.c.b16 %v1156, %v1152
    %v1217 = vpack.c.b16 %v1157, %v1153
    %v1218 = vpack.c.b16 %v1162, %v1158
    %v1219 = vpack.c.b16 %v1163, %v1159
    %v1220 = vpack.c.b16 %v1164, %v1160
    %v1221 = vpack.c.b16 %v1165, %v1161
    %v1222 = vpack.c.b16 %v1170, %v1166
    %v1223 = vpack.c.b16 %v1171, %v1167
    %v1224 = vpack.c.b16 %v1172, %v1168
    %v1225 = vpack.c.b16 %v1173, %v1169
    %v1226 = vpack.c.b16 %v1178, %v1174
    %v1227 = vpack.c.b16 %v1179, %v1175
    %v1228 = vpack.c.b16 %v1180, %v1176
    %v1229 = vpack.c.b16 %v1181, %v1177
    %v1230 = vpack.c.b16 %v1186, %v1182
    %v1231 = vpack.c.b16 %v1187, %v1183
    %v1232 = vpack.c.b16 %v1188, %v1184
    %v1233 = vpack.c.b16 %v1189, %v1185
    %v1234 = vpack.c.b16 %v1194, %v1190
    %v1235 = vpack.c.b16 %v1195, %v1191
    %v1236 = vpack.c.b16 %v1196, %v1192
    %v1237 = vpack.c.b16 %v1197, %v1193
    %v1238 = vpack.c.b16 %v1202, %v1198
    %v1239 = vpack.c.b16 %v1203, %v1199
    %v1240 = vpack.c.b16 %v1204, %v1200
    %v1241 = vpack.c.b16 %v1205, %v1201
    %v1242 = vpack.c.b16 %v1210, %v1206
    %v1243 = vpack.c.b16 %v1211, %v1207
    %v1244 = vpack.c.b16 %v1212, %v1208
    %v1245 = vpack.c.b16 %v1213, %v1209
    %1278 = vmatprep.subr.bf16.mxu0 %v1215
    %1279 = vmatpush1.bf16.msra.mxu0 %v1214
    %1280 = vmatprep.subr.bf16.mxu0 %v1219
    %1281 = vmatpush1.bf16.msra.mxu0 %v1218
    %1282 = vmatprep.subr.bf16.mxu0 %v1223
    %1283 = vmatpush1.bf16.msra.mxu0 %v1222
    %1284 = vmatprep.subr.bf16.mxu0 %v1227
    %1285 = vmatpush1.bf16.msra.mxu0 %v1226
    %1286 = vmatprep.subr.bf16.mxu0 %v1231
    %1287 = vmatpush1.bf16.msra.mxu0 %v1230
    %1288 = vmatprep.subr.bf16.mxu0 %v1235
    %1289 = vmatpush1.bf16.msra.mxu0 %v1234
    %1290 = vmatprep.subr.bf16.mxu0 %v1239
    %1291 = vmatpush1.bf16.msra.mxu0 %v1238
    %1292 = vmatprep.subr.bf16.mxu0 %v1243
    %1293 = vmatpush1.bf16.msra.mxu0 %v1242
    %1294 = vmatprep.subr.bf16.mxu0 0
    %1295 = vmatpush1.bf16.msra.mxu0 0
    %1296 = vmatprep.subr.bf16.mxu0 0
    %1297 = vmatpush1.bf16.msra.mxu0 0
    %1298 = vmatprep.subr.bf16.mxu0 0
    %1299 = vmatpush1.bf16.msra.mxu0 0
    %1300 = vmatprep.subr.bf16.mxu0 0
    %1301 = vmatpush1.bf16.msra.mxu0 0
    %1302 = vmatprep.subr.bf16.mxu0 0
    %1303 = vmatpush1.bf16.msra.mxu0 0
    %1304 = vmatprep.subr.bf16.mxu0 0
    %1305 = vmatpush1.bf16.msra.mxu0 0
    %1306 = vmatprep.subr.bf16.mxu0 0
    %1307 = vmatpush1.bf16.msra.mxu0 0
    %1308 = vmatprep.subr.bf16.mxu0 0
    %1309 = vmatpush1.bf16.msra.mxu0 0
    %1310 = vmatprep.mubr.bf16.mxu0 0
    %1311 = vmatmul.mubr.bf16.gmra.mrb[0].mxu0 %v1085
    %v1312 = vpop.f32.mrb[0].mxu0
    %v1313 = vadd.f32 0.0, %v1312
    %v1314 = vpop.f32.mrb[0].mxu0
    %v1315 = vadd.f32 0.0, %v1314
    %v1316 = vpop.f32.mrb[0].mxu0
    %v1317 = vpop.f32.mrb[0].mxu0
    %1318 = vdwg.mxu0
    %1319 = vmatprep.subr.bf16.mxu0 %v1217
    %1320 = vmatpush1.bf16.msra.mxu0 %v1216
    %1321 = vmatprep.subr.bf16.mxu0 %v1221
    %1322 = vmatpush1.bf16.msra.mxu0 %v1220
    %1323 = vmatprep.subr.bf16.mxu0 %v1225
    %1324 = vmatpush1.bf16.msra.mxu0 %v1224
    %1325 = vmatprep.subr.bf16.mxu0 %v1229
    %1326 = vmatpush1.bf16.msra.mxu0 %v1228
    %1327 = vmatprep.subr.bf16.mxu0 %v1233
    %1328 = vmatpush1.bf16.msra.mxu0 %v1232
    %1329 = vmatprep.subr.bf16.mxu0 %v1237
    %1330 = vmatpush1.bf16.msra.mxu0 %v1236
    %1331 = vmatprep.subr.bf16.mxu0 %v1241
    %1332 = vmatpush1.bf16.msra.mxu0 %v1240
    %1333 = vmatprep.subr.bf16.mxu0 %v1245
    %1334 = vmatpush1.bf16.msra.mxu0 %v1244
    %1335 = vmatprep.subr.bf16.mxu0 0
    %1336 = vmatpush1.bf16.msra.mxu0 0
    %1337 = vmatprep.subr.bf16.mxu0 0
    %1338 = vmatpush1.bf16.msra.mxu0 0
    %1339 = vmatprep.subr.bf16.mxu0 0
    %1340 = vmatpush1.bf16.msra.mxu0 0
    %1341 = vmatprep.subr.bf16.mxu0 0
    %1342 = vmatpush1.bf16.msra.mxu0 0
    %1343 = vmatprep.subr.bf16.mxu0 0
    %1344 = vmatpush1.bf16.msra.mxu0 0
    %1345 = vmatprep.subr.bf16.mxu0 0
    %1346 = vmatpush1.bf16.msra.mxu0 0
    %1347 = vmatprep.subr.bf16.mxu0 0
    %1348 = vmatpush1.bf16.msra.mxu0 0
    %1349 = vmatprep.subr.bf16.mxu0 0
    %1350 = vmatpush1.bf16.msra.mxu0 0
    %1351 = vmatprep.mubr.bf16.mxu0 0
    %1352 = vmatmul.mubr.bf16.gmra.mrb[0].mxu0 %v1085
    %v1353 = vpop.f32.mrb[0].mxu0
    %v1354 = vadd.f32 0.0, %v1353
    %v1355 = vpop.f32.mrb[0].mxu0
    %v1356 = vadd.f32 0.0, %v1355
    %v1357 = vpop.f32.mrb[0].mxu0
    %v1358 = vpop.f32.mrb[0].mxu0
    %1359 = vdwg.mxu0
    %v1360 = vadd.f32 %v1081, %v1313
    %v1361 = vadd.f32 %v1082, %v1315
    %v1362 = vadd.f32 %v1083, %v1354
    %v1363 = vadd.f32 %v1084, %v1356
    %v1364 = vxor.u32 %v1360, 2147483648
    %v1365 = vmul.f32 %v1364, 1.442695
    %v1366 = vpow.pop %v1365
    %v1367 = vadd.f32 %v1366, 1.0
    %v1368 = vrcp.pop %v1367
    %v1369 = vmul.f32 1.0, %v1368
    %v1370 = vxor.u32 %v1361, 2147483648
    %v1371 = vmul.f32 %v1370, 1.442695
    %v1372 = vpow.pop %v1371
    %v1373 = vadd.f32 %v1372, 1.0
    %v1374 = vrcp.pop %v1373
    %v1375 = vmul.f32 1.0, %v1374
    %v1376 = vtanh.pop %v1362
    %v1377 = vxor.u32 %v1363, 2147483648
    %v1378 = vmul.f32 %v1377, 1.442695
    %v1379 = vpow.pop %v1378
    %v1380 = vadd.f32 %v1379, 1.0
    %v1381 = vrcp.pop %v1380
    %v1382 = vmul.f32 1.0, %v1381
    %v1383 = vmul.f32 %v1375, %v1073
    %v1384 = vmul.f32 %v1369, %v1376
    %v1385 = vadd.f32 %v1383, %v1384
    %v1386 = vtanh.pop %v1385
    %v1387 = vmul.f32 %v1382, %v1386
    %s1388 = scalar_lea.vmem [#allocation3], 16
    %1389 = vst [vmem:[%s1388] sm:$0xff] %v1387
    %s1390 = smul.u32 3, 4
    %s1391 = smul.addr %s1390, 8
    %s1392 = scalar_lea.vmem [#allocation2], %s1391
    %v1393 = vld [vmem:[%s1392] sm:$0xff]
    %v1394 = vld [vmem:[%s1392 + $0x8] sm:$0xff]
    %v1395 = vld [vmem:[%s1392 + $0x10] sm:$0xff]
    %v1396 = vld [vmem:[%s1392 + $0x18] sm:$0xff]
    %v1397 = vpack.c.bf16 %v1387, %v1387
    %v1398 = vld [vmem:[#allocation12] sm:$0xff]
    %v1399 = vld [vmem:[#allocation12 + $0x8] sm:$0xff]
    %v1400 = vld [vmem:[#allocation12 + $0x10] sm:$0xff]
    %v1401 = vld [vmem:[#allocation12 + $0x18] sm:$0xff]
    %v1402 = vld [vmem:[#allocation12 + $0x20] sm:$0xff]
    %v1403 = vld [vmem:[#allocation12 + $0x28] sm:$0xff]
    %v1404 = vld [vmem:[#allocation12 + $0x30] sm:$0xff]
    %v1405 = vld [vmem:[#allocation12 + $0x38] sm:$0xff]
    %v1406 = vld [vmem:[#allocation12 + $0x40] sm:$0xff]
    %v1407 = vld [vmem:[#allocation12 + $0x48] sm:$0xff]
    %v1408 = vld [vmem:[#allocation12 + $0x50] sm:$0xff]
    %v1409 = vld [vmem:[#allocation12 + $0x58] sm:$0xff]
    %v1410 = vld [vmem:[#allocation12 + $0x60] sm:$0xff]
    %v1411 = vld [vmem:[#allocation12 + $0x68] sm:$0xff]
    %v1412 = vld [vmem:[#allocation12 + $0x70] sm:$0xff]
    %v1413 = vld [vmem:[#allocation12 + $0x78] sm:$0xff]
    %v1414 = vld [vmem:[#allocation12 + $0x80] sm:$0xff]
    %v1415 = vld [vmem:[#allocation12 + $0x88] sm:$0xff]
    %v1416 = vld [vmem:[#allocation12 + $0x90] sm:$0xff]
    %v1417 = vld [vmem:[#allocation12 + $0x98] sm:$0xff]
    %v1418 = vld [vmem:[#allocation12 + $0xa0] sm:$0xff]
    %v1419 = vld [vmem:[#allocation12 + $0xa8] sm:$0xff]
    %v1420 = vld [vmem:[#allocation12 + $0xb0] sm:$0xff]
    %v1421 = vld [vmem:[#allocation12 + $0xb8] sm:$0xff]
    %v1422 = vld [vmem:[#allocation12 + $0xc0] sm:$0xff]
    %v1423 = vld [vmem:[#allocation12 + $0xc8] sm:$0xff]
    %v1424 = vld [vmem:[#allocation12 + $0xd0] sm:$0xff]
    %v1425 = vld [vmem:[#allocation12 + $0xd8] sm:$0xff]
    %v1426 = vld [vmem:[#allocation12 + $0xe0] sm:$0xff]
    %v1427 = vld [vmem:[#allocation12 + $0xe8] sm:$0xff]
    %v1428 = vld [vmem:[#allocation12 + $0xf0] sm:$0xff]
    %v1429 = vld [vmem:[#allocation12 + $0xf8] sm:$0xff]
    %v1462 = vunpack.c.l.b16 %v1398
    %v1463 = vunpack.c.h.b16 %v1398
    %v1464 = vunpack.c.l.b16 %v1399
    %v1465 = vunpack.c.h.b16 %v1399
    %v1466 = vunpack.c.l.b16 %v1400
    %v1467 = vunpack.c.h.b16 %v1400
    %v1468 = vunpack.c.l.b16 %v1401
    %v1469 = vunpack.c.h.b16 %v1401
    %v1470 = vunpack.c.l.b16 %v1402
    %v1471 = vunpack.c.h.b16 %v1402
    %v1472 = vunpack.c.l.b16 %v1403
    %v1473 = vunpack.c.h.b16 %v1403
    %v1474 = vunpack.c.l.b16 %v1404
    %v1475 = vunpack.c.h.b16 %v1404
    %v1476 = vunpack.c.l.b16 %v1405
    %v1477 = vunpack.c.h.b16 %v1405
    %v1478 = vunpack.c.l.b16 %v1406
    %v1479 = vunpack.c.h.b16 %v1406
    %v1480 = vunpack.c.l.b16 %v1407
    %v1481 = vunpack.c.h.b16 %v1407
    %v1482 = vunpack.c.l.b16 %v1408
    %v1483 = vunpack.c.h.b16 %v1408
    %v1484 = vunpack.c.l.b16 %v1409
    %v1485 = vunpack.c.h.b16 %v1409
    %v1486 = vunpack.c.l.b16 %v1410
    %v1487 = vunpack.c.h.b16 %v1410
    %v1488 = vunpack.c.l.b16 %v1411
    %v1489 = vunpack.c.h.b16 %v1411
    %v1490 = vunpack.c.l.b16 %v1412
    %v1491 = vunpack.c.h.b16 %v1412
    %v1492 = vunpack.c.l.b16 %v1413
    %v1493 = vunpack.c.h.b16 %v1413
    %v1494 = vunpack.c.l.b16 %v1414
    %v1495 = vunpack.c.h.b16 %v1414
    %v1496 = vunpack.c.l.b16 %v1415
    %v1497 = vunpack.c.h.b16 %v1415
    %v1498 = vunpack.c.l.b16 %v1416
    %v1499 = vunpack.c.h.b16 %v1416
    %v1500 = vunpack.c.l.b16 %v1417
    %v1501 = vunpack.c.h.b16 %v1417
    %v1502 = vunpack.c.l.b16 %v1418
    %v1503 = vunpack.c.h.b16 %v1418
    %v1504 = vunpack.c.l.b16 %v1419
    %v1505 = vunpack.c.h.b16 %v1419
    %v1506 = vunpack.c.l.b16 %v1420
    %v1507 = vunpack.c.h.b16 %v1420
    %v1508 = vunpack.c.l.b16 %v1421
    %v1509 = vunpack.c.h.b16 %v1421
    %v1510 = vunpack.c.l.b16 %v1422
    %v1511 = vunpack.c.h.b16 %v1422
    %v1512 = vunpack.c.l.b16 %v1423
    %v1513 = vunpack.c.h.b16 %v1423
    %v1514 = vunpack.c.l.b16 %v1424
    %v1515 = vunpack.c.h.b16 %v1424
    %v1516 = vunpack.c.l.b16 %v1425
    %v1517 = vunpack.c.h.b16 %v1425
    %v1518 = vunpack.c.l.b16 %v1426
    %v1519 = vunpack.c.h.b16 %v1426
    %v1520 = vunpack.c.l.b16 %v1427
    %v1521 = vunpack.c.h.b16 %v1427
    %v1522 = vunpack.c.l.b16 %v1428
    %v1523 = vunpack.c.h.b16 %v1428
    %v1524 = vunpack.c.l.b16 %v1429
    %v1525 = vunpack.c.h.b16 %v1429
    %v1526 = vpack.c.b16 %v1466, %v1462
    %v1527 = vpack.c.b16 %v1467, %v1463
    %v1528 = vpack.c.b16 %v1468, %v1464
    %v1529 = vpack.c.b16 %v1469, %v1465
    %v1530 = vpack.c.b16 %v1474, %v1470
    %v1531 = vpack.c.b16 %v1475, %v1471
    %v1532 = vpack.c.b16 %v1476, %v1472
    %v1533 = vpack.c.b16 %v1477, %v1473
    %v1534 = vpack.c.b16 %v1482, %v1478
    %v1535 = vpack.c.b16 %v1483, %v1479
    %v1536 = vpack.c.b16 %v1484, %v1480
    %v1537 = vpack.c.b16 %v1485, %v1481
    %v1538 = vpack.c.b16 %v1490, %v1486
    %v1539 = vpack.c.b16 %v1491, %v1487
    %v1540 = vpack.c.b16 %v1492, %v1488
    %v1541 = vpack.c.b16 %v1493, %v1489
    %v1542 = vpack.c.b16 %v1498, %v1494
    %v1543 = vpack.c.b16 %v1499, %v1495
    %v1544 = vpack.c.b16 %v1500, %v1496
    %v1545 = vpack.c.b16 %v1501, %v1497
    %v1546 = vpack.c.b16 %v1506, %v1502
    %v1547 = vpack.c.b16 %v1507, %v1503
    %v1548 = vpack.c.b16 %v1508, %v1504
    %v1549 = vpack.c.b16 %v1509, %v1505
    %v1550 = vpack.c.b16 %v1514, %v1510
    %v1551 = vpack.c.b16 %v1515, %v1511
    %v1552 = vpack.c.b16 %v1516, %v1512
    %v1553 = vpack.c.b16 %v1517, %v1513
    %v1554 = vpack.c.b16 %v1522, %v1518
    %v1555 = vpack.c.b16 %v1523, %v1519
    %v1556 = vpack.c.b16 %v1524, %v1520
    %v1557 = vpack.c.b16 %v1525, %v1521
    %1590 = vmatprep.subr.bf16.mxu0 %v1527
    %1591 = vmatpush1.bf16.msra.mxu0 %v1526
    %1592 = vmatprep.subr.bf16.mxu0 %v1531
    %1593 = vmatpush1.bf16.msra.mxu0 %v1530
    %1594 = vmatprep.subr.bf16.mxu0 %v1535
    %1595 = vmatpush1.bf16.msra.mxu0 %v1534
    %1596 = vmatprep.subr.bf16.mxu0 %v1539
    %1597 = vmatpush1.bf16.msra.mxu0 %v1538
    %1598 = vmatprep.subr.bf16.mxu0 %v1543
    %1599 = vmatpush1.bf16.msra.mxu0 %v1542
    %1600 = vmatprep.subr.bf16.mxu0 %v1547
    %1601 = vmatpush1.bf16.msra.mxu0 %v1546
    %1602 = vmatprep.subr.bf16.mxu0 %v1551
    %1603 = vmatpush1.bf16.msra.mxu0 %v1550
    %1604 = vmatprep.subr.bf16.mxu0 %v1555
    %1605 = vmatpush1.bf16.msra.mxu0 %v1554
    %1606 = vmatprep.subr.bf16.mxu0 0
    %1607 = vmatpush1.bf16.msra.mxu0 0
    %1608 = vmatprep.subr.bf16.mxu0 0
    %1609 = vmatpush1.bf16.msra.mxu0 0
    %1610 = vmatprep.subr.bf16.mxu0 0
    %1611 = vmatpush1.bf16.msra.mxu0 0
    %1612 = vmatprep.subr.bf16.mxu0 0
    %1613 = vmatpush1.bf16.msra.mxu0 0
    %1614 = vmatprep.subr.bf16.mxu0 0
    %1615 = vmatpush1.bf16.msra.mxu0 0
    %1616 = vmatprep.subr.bf16.mxu0 0
    %1617 = vmatpush1.bf16.msra.mxu0 0
    %1618 = vmatprep.subr.bf16.mxu0 0
    %1619 = vmatpush1.bf16.msra.mxu0 0
    %1620 = vmatprep.subr.bf16.mxu0 0
    %1621 = vmatpush1.bf16.msra.mxu0 0
    %1622 = vmatprep.mubr.bf16.mxu0 0
    %1623 = vmatmul.mubr.bf16.gmra.mrb[0].mxu0 %v1397
    %v1624 = vpop.f32.mrb[0].mxu0
    %v1625 = vadd.f32 0.0, %v1624
    %v1626 = vpop.f32.mrb[0].mxu0
    %v1627 = vadd.f32 0.0, %v1626
    %v1628 = vpop.f32.mrb[0].mxu0
    %v1629 = vpop.f32.mrb[0].mxu0
    %1630 = vdwg.mxu0
    %1631 = vmatprep.subr.bf16.mxu0 %v1529
    %1632 = vmatpush1.bf16.msra.mxu0 %v1528
    %1633 = vmatprep.subr.bf16.mxu0 %v1533
    %1634 = vmatpush1.bf16.msra.mxu0 %v1532
    %1635 = vmatprep.subr.bf16.mxu0 %v1537
    %1636 = vmatpush1.bf16.msra.mxu0 %v1536
    %1637 = vmatprep.subr.bf16.mxu0 %v1541
    %1638 = vmatpush1.bf16.msra.mxu0 %v1540
    %1639 = vmatprep.subr.bf16.mxu0 %v1545
    %1640 = vmatpush1.bf16.msra.mxu0 %v1544
    %1641 = vmatprep.subr.bf16.mxu0 %v1549
    %1642 = vmatpush1.bf16.msra.mxu0 %v1548
    %1643 = vmatprep.subr.bf16.mxu0 %v1553
    %1644 = vmatpush1.bf16.msra.mxu0 %v1552
    %1645 = vmatprep.subr.bf16.mxu0 %v1557
    %1646 = vmatpush1.bf16.msra.mxu0 %v1556
    %1647 = vmatprep.subr.bf16.mxu0 0
    %1648 = vmatpush1.bf16.msra.mxu0 0
    %1649 = vmatprep.subr.bf16.mxu0 0
    %1650 = vmatpush1.bf16.msra.mxu0 0
    %1651 = vmatprep.subr.bf16.mxu0 0
    %1652 = vmatpush1.bf16.msra.mxu0 0
    %1653 = vmatprep.subr.bf16.mxu0 0
    %1654 = vmatpush1.bf16.msra.mxu0 0
    %1655 = vmatprep.subr.bf16.mxu0 0
    %1656 = vmatpush1.bf16.msra.mxu0 0
    %1657 = vmatprep.subr.bf16.mxu0 0
    %1658 = vmatpush1.bf16.msra.mxu0 0
    %1659 = vmatprep.subr.bf16.mxu0 0
    %1660 = vmatpush1.bf16.msra.mxu0 0
    %1661 = vmatprep.subr.bf16.mxu0 0
    %1662 = vmatpush1.bf16.msra.mxu0 0
    %1663 = vmatprep.mubr.bf16.mxu0 0
    %1664 = vmatmul.mubr.bf16.gmra.mrb[0].mxu0 %v1397
    %v1665 = vpop.f32.mrb[0].mxu0
    %v1666 = vadd.f32 0.0, %v1665
    %v1667 = vpop.f32.mrb[0].mxu0
    %v1668 = vadd.f32 0.0, %v1667
    %v1669 = vpop.f32.mrb[0].mxu0
    %v1670 = vpop.f32.mrb[0].mxu0
    %1671 = vdwg.mxu0
    %v1672 = vadd.f32 %v1393, %v1625
    %v1673 = vadd.f32 %v1394, %v1627
    %v1674 = vadd.f32 %v1395, %v1666
    %v1675 = vadd.f32 %v1396, %v1668
    %v1676 = vxor.u32 %v1672, 2147483648
    %v1677 = vmul.f32 %v1676, 1.442695
    %v1678 = vpow.pop %v1677
    %v1679 = vadd.f32 %v1678, 1.0
    %v1680 = vrcp.pop %v1679
    %v1681 = vmul.f32 1.0, %v1680
    %v1682 = vxor.u32 %v1673, 2147483648
    %v1683 = vmul.f32 %v1682, 1.442695
    %v1684 = vpow.pop %v1683
    %v1685 = vadd.f32 %v1684, 1.0
    %v1686 = vrcp.pop %v1685
    %v1687 = vmul.f32 1.0, %v1686
    %v1688 = vtanh.pop %v1674
    %v1689 = vxor.u32 %v1675, 2147483648
    %v1690 = vmul.f32 %v1689, 1.442695
    %v1691 = vpow.pop %v1690
    %v1692 = vadd.f32 %v1691, 1.0
    %v1693 = vrcp.pop %v1692
    %v1694 = vmul.f32 1.0, %v1693
    %v1695 = vmul.f32 %v1687, %v1385
    %v1696 = vmul.f32 %v1681, %v1688
    %v1697 = vadd.f32 %v1695, %v1696
    %v1698 = vtanh.pop %v1697
    %v1699 = vmul.f32 %v1694, %v1698
    %s1700 = scalar_lea.vmem [#allocation3], 24
    %1701 = vst [vmem:[%s1700] sm:$0xff] %v1699
    %s1702 = smul.u32 4, 4
    %s1703 = smul.addr %s1702, 8
    %s1704 = scalar_lea.vmem [#allocation2], %s1703
    %v1705 = vld [vmem:[%s1704] sm:$0xff]
    %v1706 = vld [vmem:[%s1704 + $0x8] sm:$0xff]
    %v1707 = vld [vmem:[%s1704 + $0x10] sm:$0xff]
    %v1708 = vld [vmem:[%s1704 + $0x18] sm:$0xff]
    %v1709 = vpack.c.bf16 %v1699, %v1699
    %v1710 = vld [vmem:[#allocation12] sm:$0xff]
    %v1711 = vld [vmem:[#allocation12 + $0x8] sm:$0xff]
    %v1712 = vld [vmem:[#allocation12 + $0x10] sm:$0xff]
    %v1713 = vld [vmem:[#allocation12 + $0x18] sm:$0xff]
    %v1714 = vld [vmem:[#allocation12 + $0x20] sm:$0xff]
    %v1715 = vld [vmem:[#allocation12 + $0x28] sm:$0xff]
    %v1716 = vld [vmem:[#allocation12 + $0x30] sm:$0xff]
    %v1717 = vld [vmem:[#allocation12 + $0x38] sm:$0xff]
    %v1718 = vld [vmem:[#allocation12 + $0x40] sm:$0xff]
    %v1719 = vld [vmem:[#allocation12 + $0x48] sm:$0xff]
    %v1720 = vld [vmem:[#allocation12 + $0x50] sm:$0xff]
    %v1721 = vld [vmem:[#allocation12 + $0x58] sm:$0xff]
    %v1722 = vld [vmem:[#allocation12 + $0x60] sm:$0xff]
    %v1723 = vld [vmem:[#allocation12 + $0x68] sm:$0xff]
    %v1724 = vld [vmem:[#allocation12 + $0x70] sm:$0xff]
    %v1725 = vld [vmem:[#allocation12 + $0x78] sm:$0xff]
    %v1726 = vld [vmem:[#allocation12 + $0x80] sm:$0xff]
    %v1727 = vld [vmem:[#allocation12 + $0x88] sm:$0xff]
    %v1728 = vld [vmem:[#allocation12 + $0x90] sm:$0xff]
    %v1729 = vld [vmem:[#allocation12 + $0x98] sm:$0xff]
    %v1730 = vld [vmem:[#allocation12 + $0xa0] sm:$0xff]
    %v1731 = vld [vmem:[#allocation12 + $0xa8] sm:$0xff]
    %v1732 = vld [vmem:[#allocation12 + $0xb0] sm:$0xff]
    %v1733 = vld [vmem:[#allocation12 + $0xb8] sm:$0xff]
    %v1734 = vld [vmem:[#allocation12 + $0xc0] sm:$0xff]
    %v1735 = vld [vmem:[#allocation12 + $0xc8] sm:$0xff]
    %v1736 = vld [vmem:[#allocation12 + $0xd0] sm:$0xff]
    %v1737 = vld [vmem:[#allocation12 + $0xd8] sm:$0xff]
    %v1738 = vld [vmem:[#allocation12 + $0xe0] sm:$0xff]
    %v1739 = vld [vmem:[#allocation12 + $0xe8] sm:$0xff]
    %v1740 = vld [vmem:[#allocation12 + $0xf0] sm:$0xff]
    %v1741 = vld [vmem:[#allocation12 + $0xf8] sm:$0xff]
    %v1774 = vunpack.c.l.b16 %v1710
    %v1775 = vunpack.c.h.b16 %v1710
    %v1776 = vunpack.c.l.b16 %v1711
    %v1777 = vunpack.c.h.b16 %v1711
    %v1778 = vunpack.c.l.b16 %v1712
    %v1779 = vunpack.c.h.b16 %v1712
    %v1780 = vunpack.c.l.b16 %v1713
    %v1781 = vunpack.c.h.b16 %v1713
    %v1782 = vunpack.c.l.b16 %v1714
    %v1783 = vunpack.c.h.b16 %v1714
    %v1784 = vunpack.c.l.b16 %v1715
    %v1785 = vunpack.c.h.b16 %v1715
    %v1786 = vunpack.c.l.b16 %v1716
    %v1787 = vunpack.c.h.b16 %v1716
    %v1788 = vunpack.c.l.b16 %v1717
    %v1789 = vunpack.c.h.b16 %v1717
    %v1790 = vunpack.c.l.b16 %v1718
    %v1791 = vunpack.c.h.b16 %v1718
    %v1792 = vunpack.c.l.b16 %v1719
    %v1793 = vunpack.c.h.b16 %v1719
    %v1794 = vunpack.c.l.b16 %v1720
    %v1795 = vunpack.c.h.b16 %v1720
    %v1796 = vunpack.c.l.b16 %v1721
    %v1797 = vunpack.c.h.b16 %v1721
    %v1798 = vunpack.c.l.b16 %v1722
    %v1799 = vunpack.c.h.b16 %v1722
    %v1800 = vunpack.c.l.b16 %v1723
    %v1801 = vunpack.c.h.b16 %v1723
    %v1802 = vunpack.c.l.b16 %v1724
    %v1803 = vunpack.c.h.b16 %v1724
    %v1804 = vunpack.c.l.b16 %v1725
    %v1805 = vunpack.c.h.b16 %v1725
    %v1806 = vunpack.c.l.b16 %v1726
    %v1807 = vunpack.c.h.b16 %v1726
    %v1808 = vunpack.c.l.b16 %v1727
    %v1809 = vunpack.c.h.b16 %v1727
    %v1810 = vunpack.c.l.b16 %v1728
    %v1811 = vunpack.c.h.b16 %v1728
    %v1812 = vunpack.c.l.b16 %v1729
    %v1813 = vunpack.c.h.b16 %v1729
    %v1814 = vunpack.c.l.b16 %v1730
    %v1815 = vunpack.c.h.b16 %v1730
    %v1816 = vunpack.c.l.b16 %v1731
    %v1817 = vunpack.c.h.b16 %v1731
    %v1818 = vunpack.c.l.b16 %v1732
    %v1819 = vunpack.c.h.b16 %v1732
    %v1820 = vunpack.c.l.b16 %v1733
    %v1821 = vunpack.c.h.b16 %v1733
    %v1822 = vunpack.c.l.b16 %v1734
    %v1823 = vunpack.c.h.b16 %v1734
    %v1824 = vunpack.c.l.b16 %v1735
    %v1825 = vunpack.c.h.b16 %v1735
    %v1826 = vunpack.c.l.b16 %v1736
    %v1827 = vunpack.c.h.b16 %v1736
    %v1828 = vunpack.c.l.b16 %v1737
    %v1829 = vunpack.c.h.b16 %v1737
    %v1830 = vunpack.c.l.b16 %v1738
    %v1831 = vunpack.c.h.b16 %v1738
    %v1832 = vunpack.c.l.b16 %v1739
    %v1833 = vunpack.c.h.b16 %v1739
    %v1834 = vunpack.c.l.b16 %v1740
    %v1835 = vunpack.c.h.b16 %v1740
    %v1836 = vunpack.c.l.b16 %v1741
    %v1837 = vunpack.c.h.b16 %v1741
    %v1838 = vpack.c.b16 %v1778, %v1774
    %v1839 = vpack.c.b16 %v1779, %v1775
    %v1840 = vpack.c.b16 %v1780, %v1776
    %v1841 = vpack.c.b16 %v1781, %v1777
    %v1842 = vpack.c.b16 %v1786, %v1782
    %v1843 = vpack.c.b16 %v1787, %v1783
    %v1844 = vpack.c.b16 %v1788, %v1784
    %v1845 = vpack.c.b16 %v1789, %v1785
    %v1846 = vpack.c.b16 %v1794, %v1790
    %v1847 = vpack.c.b16 %v1795, %v1791
    %v1848 = vpack.c.b16 %v1796, %v1792
    %v1849 = vpack.c.b16 %v1797, %v1793
    %v1850 = vpack.c.b16 %v1802, %v1798
    %v1851 = vpack.c.b16 %v1803, %v1799
    %v1852 = vpack.c.b16 %v1804, %v1800
    %v1853 = vpack.c.b16 %v1805, %v1801
    %v1854 = vpack.c.b16 %v1810, %v1806
    %v1855 = vpack.c.b16 %v1811, %v1807
    %v1856 = vpack.c.b16 %v1812, %v1808
    %v1857 = vpack.c.b16 %v1813, %v1809
    %v1858 = vpack.c.b16 %v1818, %v1814
    %v1859 = vpack.c.b16 %v1819, %v1815
    %v1860 = vpack.c.b16 %v1820, %v1816
    %v1861 = vpack.c.b16 %v1821, %v1817
    %v1862 = vpack.c.b16 %v1826, %v1822
    %v1863 = vpack.c.b16 %v1827, %v1823
    %v1864 = vpack.c.b16 %v1828, %v1824
    %v1865 = vpack.c.b16 %v1829, %v1825
    %v1866 = vpack.c.b16 %v1834, %v1830
    %v1867 = vpack.c.b16 %v1835, %v1831
    %v1868 = vpack.c.b16 %v1836, %v1832
    %v1869 = vpack.c.b16 %v1837, %v1833
    %1902 = vmatprep.subr.bf16.mxu0 %v1839
    %1903 = vmatpush1.bf16.msra.mxu0 %v1838
    %1904 = vmatprep.subr.bf16.mxu0 %v1843
    %1905 = vmatpush1.bf16.msra.mxu0 %v1842
    %1906 = vmatprep.subr.bf16.mxu0 %v1847
    %1907 = vmatpush1.bf16.msra.mxu0 %v1846
    %1908 = vmatprep.subr.bf16.mxu0 %v1851
    %1909 = vmatpush1.bf16.msra.mxu0 %v1850
    %1910 = vmatprep.subr.bf16.mxu0 %v1855
    %1911 = vmatpush1.bf16.msra.mxu0 %v1854
    %1912 = vmatprep.subr.bf16.mxu0 %v1859
    %1913 = vmatpush1.bf16.msra.mxu0 %v1858
    %1914 = vmatprep.subr.bf16.mxu0 %v1863
    %1915 = vmatpush1.bf16.msra.mxu0 %v1862
    %1916 = vmatprep.subr.bf16.mxu0 %v1867
    %1917 = vmatpush1.bf16.msra.mxu0 %v1866
    %1918 = vmatprep.subr.bf16.mxu0 0
    %1919 = vmatpush1.bf16.msra.mxu0 0
    %1920 = vmatprep.subr.bf16.mxu0 0
    %1921 = vmatpush1.bf16.msra.mxu0 0
    %1922 = vmatprep.subr.bf16.mxu0 0
    %1923 = vmatpush1.bf16.msra.mxu0 0
    %1924 = vmatprep.subr.bf16.mxu0 0
    %1925 = vmatpush1.bf16.msra.mxu0 0
    %1926 = vmatprep.subr.bf16.mxu0 0
    %1927 = vmatpush1.bf16.msra.mxu0 0
    %1928 = vmatprep.subr.bf16.mxu0 0
    %1929 = vmatpush1.bf16.msra.mxu0 0
    %1930 = vmatprep.subr.bf16.mxu0 0
    %1931 = vmatpush1.bf16.msra.mxu0 0
    %1932 = vmatprep.subr.bf16.mxu0 0
    %1933 = vmatpush1.bf16.msra.mxu0 0
    %1934 = vmatprep.mubr.bf16.mxu0 0
    %1935 = vmatmul.mubr.bf16.gmra.mrb[0].mxu0 %v1709
    %v1936 = vpop.f32.mrb[0].mxu0
    %v1937 = vadd.f32 0.0, %v1936
    %v1938 = vpop.f32.mrb[0].mxu0
    %v1939 = vadd.f32 0.0, %v1938
    %v1940 = vpop.f32.mrb[0].mxu0
    %v1941 = vpop.f32.mrb[0].mxu0
    %1942 = vdwg.mxu0
    %1943 = vmatprep.subr.bf16.mxu0 %v1841
    %1944 = vmatpush1.bf16.msra.mxu0 %v1840
    %1945 = vmatprep.subr.bf16.mxu0 %v1845
    %1946 = vmatpush1.bf16.msra.mxu0 %v1844
    %1947 = vmatprep.subr.bf16.mxu0 %v1849
    %1948 = vmatpush1.bf16.msra.mxu0 %v1848
    %1949 = vmatprep.subr.bf16.mxu0 %v1853
    %1950 = vmatpush1.bf16.msra.mxu0 %v1852
    %1951 = vmatprep.subr.bf16.mxu0 %v1857
    %1952 = vmatpush1.bf16.msra.mxu0 %v1856
    %1953 = vmatprep.subr.bf16.mxu0 %v1861
    %1954 = vmatpush1.bf16.msra.mxu0 %v1860
    %1955 = vmatprep.subr.bf16.mxu0 %v1865
    %1956 = vmatpush1.bf16.msra.mxu0 %v1864
    %1957 = vmatprep.subr.bf16.mxu0 %v1869
    %1958 = vmatpush1.bf16.msra.mxu0 %v1868
    %1959 = vmatprep.subr.bf16.mxu0 0
    %1960 = vmatpush1.bf16.msra.mxu0 0
    %1961 = vmatprep.subr.bf16.mxu0 0
    %1962 = vmatpush1.bf16.msra.mxu0 0
    %1963 = vmatprep.subr.bf16.mxu0 0
    %1964 = vmatpush1.bf16.msra.mxu0 0
    %1965 = vmatprep.subr.bf16.mxu0 0
    %1966 = vmatpush1.bf16.msra.mxu0 0
    %1967 = vmatprep.subr.bf16.mxu0 0
    %1968 = vmatpush1.bf16.msra.mxu0 0
    %1969 = vmatprep.subr.bf16.mxu0 0
    %1970 = vmatpush1.bf16.msra.mxu0 0
    %1971 = vmatprep.subr.bf16.mxu0 0
    %1972 = vmatpush1.bf16.msra.mxu0 0
    %1973 = vmatprep.subr.bf16.mxu0 0
    %1974 = vmatpush1.bf16.msra.mxu0 0
    %1975 = vmatprep.mubr.bf16.mxu0 0
    %1976 = vmatmul.mubr.bf16.gmra.mrb[0].mxu0 %v1709
    %v1977 = vpop.f32.mrb[0].mxu0
    %v1978 = vadd.f32 0.0, %v1977
    %v1979 = vpop.f32.mrb[0].mxu0
    %v1980 = vadd.f32 0.0, %v1979
    %v1981 = vpop.f32.mrb[0].mxu0
    %v1982 = vpop.f32.mrb[0].mxu0
    %1983 = vdwg.mxu0
    %v1984 = vadd.f32 %v1705, %v1937
    %v1985 = vadd.f32 %v1706, %v1939
    %v1986 = vadd.f32 %v1707, %v1978
    %v1987 = vadd.f32 %v1708, %v1980
    %v1988 = vxor.u32 %v1984, 2147483648
    %v1989 = vmul.f32 %v1988, 1.442695
    %v1990 = vpow.pop %v1989
    %v1991 = vadd.f32 %v1990, 1.0
    %v1992 = vrcp.pop %v1991
    %v1993 = vmul.f32 1.0, %v1992
    %v1994 = vxor.u32 %v1985, 2147483648
    %v1995 = vmul.f32 %v1994, 1.442695
    %v1996 = vpow.pop %v1995
    %v1997 = vadd.f32 %v1996, 1.0
    %v1998 = vrcp.pop %v1997
    %v1999 = vmul.f32 1.0, %v1998
    %v2000 = vtanh.pop %v1986
    %v2001 = vxor.u32 %v1987, 2147483648
    %v2002 = vmul.f32 %v2001, 1.442695
    %v2003 = vpow.pop %v2002
    %v2004 = vadd.f32 %v2003, 1.0
    %v2005 = vrcp.pop %v2004
    %v2006 = vmul.f32 1.0, %v2005
    %v2007 = vmul.f32 %v1999, %v1697
    %v2008 = vmul.f32 %v1993, %v2000
    %v2009 = vadd.f32 %v2007, %v2008
    %v2010 = vtanh.pop %v2009
    %v2011 = vmul.f32 %v2006, %v2010
    %s2012 = scalar_lea.vmem [#allocation3], 32
    %2013 = vst [vmem:[%s2012] sm:$0xff] %v2011
    %s2014 = smul.u32 5, 4
    %s2015 = smul.addr %s2014, 8
    %s2016 = scalar_lea.vmem [#allocation2], %s2015
    %v2017 = vld [vmem:[%s2016] sm:$0xff]
    %v2018 = vld [vmem:[%s2016 + $0x8] sm:$0xff]
    %v2019 = vld [vmem:[%s2016 + $0x10] sm:$0xff]
    %v2020 = vld [vmem:[%s2016 + $0x18] sm:$0xff]
    %v2021 = vpack.c.bf16 %v2011, %v2011
    %v2022 = vld [vmem:[#allocation12] sm:$0xff]
    %v2023 = vld [vmem:[#allocation12 + $0x8] sm:$0xff]
    %v2024 = vld [vmem:[#allocation12 + $0x10] sm:$0xff]
    %v2025 = vld [vmem:[#allocation12 + $0x18] sm:$0xff]
    %v2026 = vld [vmem:[#allocation12 + $0x20] sm:$0xff]
    %v2027 = vld [vmem:[#allocation12 + $0x28] sm:$0xff]
    %v2028 = vld [vmem:[#allocation12 + $0x30] sm:$0xff]
    %v2029 = vld [vmem:[#allocation12 + $0x38] sm:$0xff]
    %v2030 = vld [vmem:[#allocation12 + $0x40] sm:$0xff]
    %v2031 = vld [vmem:[#allocation12 + $0x48] sm:$0xff]
    %v2032 = vld [vmem:[#allocation12 + $0x50] sm:$0xff]
    %v2033 = vld [vmem:[#allocation12 + $0x58] sm:$0xff]
    %v2034 = vld [vmem:[#allocation12 + $0x60] sm:$0xff]
    %v2035 = vld [vmem:[#allocation12 + $0x68] sm:$0xff]
    %v2036 = vld [vmem:[#allocation12 + $0x70] sm:$0xff]
    %v2037 = vld [vmem:[#allocation12 + $0x78] sm:$0xff]
    %v2038 = vld [vmem:[#allocation12 + $0x80] sm:$0xff]
    %v2039 = vld [vmem:[#allocation12 + $0x88] sm:$0xff]
    %v2040 = vld [vmem:[#allocation12 + $0x90] sm:$0xff]
    %v2041 = vld [vmem:[#allocation12 + $0x98] sm:$0xff]
    %v2042 = vld [vmem:[#allocation12 + $0xa0] sm:$0xff]
    %v2043 = vld [vmem:[#allocation12 + $0xa8] sm:$0xff]
    %v2044 = vld [vmem:[#allocation12 + $0xb0] sm:$0xff]
    %v2045 = vld [vmem:[#allocation12 + $0xb8] sm:$0xff]
    %v2046 = vld [vmem:[#allocation12 + $0xc0] sm:$0xff]
    %v2047 = vld [vmem:[#allocation12 + $0xc8] sm:$0xff]
    %v2048 = vld [vmem:[#allocation12 + $0xd0] sm:$0xff]
    %v2049 = vld [vmem:[#allocation12 + $0xd8] sm:$0xff]
    %v2050 = vld [vmem:[#allocation12 + $0xe0] sm:$0xff]
    %v2051 = vld [vmem:[#allocation12 + $0xe8] sm:$0xff]
    %v2052 = vld [vmem:[#allocation12 + $0xf0] sm:$0xff]
    %v2053 = vld [vmem:[#allocation12 + $0xf8] sm:$0xff]
    %v2086 = vunpack.c.l.b16 %v2022
    %v2087 = vunpack.c.h.b16 %v2022
    %v2088 = vunpack.c.l.b16 %v2023
    %v2089 = vunpack.c.h.b16 %v2023
    %v2090 = vunpack.c.l.b16 %v2024
    %v2091 = vunpack.c.h.b16 %v2024
    %v2092 = vunpack.c.l.b16 %v2025
    %v2093 = vunpack.c.h.b16 %v2025
    %v2094 = vunpack.c.l.b16 %v2026
    %v2095 = vunpack.c.h.b16 %v2026
    %v2096 = vunpack.c.l.b16 %v2027
    %v2097 = vunpack.c.h.b16 %v2027
    %v2098 = vunpack.c.l.b16 %v2028
    %v2099 = vunpack.c.h.b16 %v2028
    %v2100 = vunpack.c.l.b16 %v2029
    %v2101 = vunpack.c.h.b16 %v2029
    %v2102 = vunpack.c.l.b16 %v2030
    %v2103 = vunpack.c.h.b16 %v2030
    %v2104 = vunpack.c.l.b16 %v2031
    %v2105 = vunpack.c.h.b16 %v2031
    %v2106 = vunpack.c.l.b16 %v2032
    %v2107 = vunpack.c.h.b16 %v2032
    %v2108 = vunpack.c.l.b16 %v2033
    %v2109 = vunpack.c.h.b16 %v2033
    %v2110 = vunpack.c.l.b16 %v2034
    %v2111 = vunpack.c.h.b16 %v2034
    %v2112 = vunpack.c.l.b16 %v2035
    %v2113 = vunpack.c.h.b16 %v2035
    %v2114 = vunpack.c.l.b16 %v2036
    %v2115 = vunpack.c.h.b16 %v2036
    %v2116 = vunpack.c.l.b16 %v2037
    %v2117 = vunpack.c.h.b16 %v2037
    %v2118 = vunpack.c.l.b16 %v2038
    %v2119 = vunpack.c.h.b16 %v2038
    %v2120 = vunpack.c.l.b16 %v2039
    %v2121 = vunpack.c.h.b16 %v2039
    %v2122 = vunpack.c.l.b16 %v2040
    %v2123 = vunpack.c.h.b16 %v2040
    %v2124 = vunpack.c.l.b16 %v2041
    %v2125 = vunpack.c.h.b16 %v2041
    %v2126 = vunpack.c.l.b16 %v2042
    %v2127 = vunpack.c.h.b16 %v2042
    %v2128 = vunpack.c.l.b16 %v2043
    %v2129 = vunpack.c.h.b16 %v2043
    %v2130 = vunpack.c.l.b16 %v2044
    %v2131 = vunpack.c.h.b16 %v2044
    %v2132 = vunpack.c.l.b16 %v2045
    %v2133 = vunpack.c.h.b16 %v2045
    %v2134 = vunpack.c.l.b16 %v2046
    %v2135 = vunpack.c.h.b16 %v2046
    %v2136 = vunpack.c.l.b16 %v2047
    %v2137 = vunpack.c.h.b16 %v2047
    %v2138 = vunpack.c.l.b16 %v2048
    %v2139 = vunpack.c.h.b16 %v2048
    %v2140 = vunpack.c.l.b16 %v2049
    %v2141 = vunpack.c.h.b16 %v2049
    %v2142 = vunpack.c.l.b16 %v2050
    %v2143 = vunpack.c.h.b16 %v2050
    %v2144 = vunpack.c.l.b16 %v2051
    %v2145 = vunpack.c.h.b16 %v2051
    %v2146 = vunpack.c.l.b16 %v2052
    %v2147 = vunpack.c.h.b16 %v2052
    %v2148 = vunpack.c.l.b16 %v2053
    %v2149 = vunpack.c.h.b16 %v2053
    %v2150 = vpack.c.b16 %v2090, %v2086
    %v2151 = vpack.c.b16 %v2091, %v2087
    %v2152 = vpack.c.b16 %v2092, %v2088
    %v2153 = vpack.c.b16 %v2093, %v2089
    %v2154 = vpack.c.b16 %v2098, %v2094
    %v2155 = vpack.c.b16 %v2099, %v2095
    %v2156 = vpack.c.b16 %v2100, %v2096
    %v2157 = vpack.c.b16 %v2101, %v2097
    %v2158 = vpack.c.b16 %v2106, %v2102
    %v2159 = vpack.c.b16 %v2107, %v2103
    %v2160 = vpack.c.b16 %v2108, %v2104
    %v2161 = vpack.c.b16 %v2109, %v2105
    %v2162 = vpack.c.b16 %v2114, %v2110
    %v2163 = vpack.c.b16 %v2115, %v2111
    %v2164 = vpack.c.b16 %v2116, %v2112
    %v2165 = vpack.c.b16 %v2117, %v2113
    %v2166 = vpack.c.b16 %v2122, %v2118
    %v2167 = vpack.c.b16 %v2123, %v2119
    %v2168 = vpack.c.b16 %v2124, %v2120
    %v2169 = vpack.c.b16 %v2125, %v2121
    %v2170 = vpack.c.b16 %v2130, %v2126
    %v2171 = vpack.c.b16 %v2131, %v2127
    %v2172 = vpack.c.b16 %v2132, %v2128
    %v2173 = vpack.c.b16 %v2133, %v2129
    %v2174 = vpack.c.b16 %v2138, %v2134
    %v2175 = vpack.c.b16 %v2139, %v2135
    %v2176 = vpack.c.b16 %v2140, %v2136
    %v2177 = vpack.c.b16 %v2141, %v2137
    %v2178 = vpack.c.b16 %v2146, %v2142
    %v2179 = vpack.c.b16 %v2147, %v2143
    %v2180 = vpack.c.b16 %v2148, %v2144
    %v2181 = vpack.c.b16 %v2149, %v2145
    %2214 = vmatprep.subr.bf16.mxu0 %v2151
    %2215 = vmatpush1.bf16.msra.mxu0 %v2150
    %2216 = vmatprep.subr.bf16.mxu0 %v2155
    %2217 = vmatpush1.bf16.msra.mxu0 %v2154
    %2218 = vmatprep.subr.bf16.mxu0 %v2159
    %2219 = vmatpush1.bf16.msra.mxu0 %v2158
    %2220 = vmatprep.subr.bf16.mxu0 %v2163
    %2221 = vmatpush1.bf16.msra.mxu0 %v2162
    %2222 = vmatprep.subr.bf16.mxu0 %v2167
    %2223 = vmatpush1.bf16.msra.mxu0 %v2166
    %2224 = vmatprep.subr.bf16.mxu0 %v2171
    %2225 = vmatpush1.bf16.msra.mxu0 %v2170
    %2226 = vmatprep.subr.bf16.mxu0 %v2175
    %2227 = vmatpush1.bf16.msra.mxu0 %v2174
    %2228 = vmatprep.subr.bf16.mxu0 %v2179
    %2229 = vmatpush1.bf16.msra.mxu0 %v2178
    %2230 = vmatprep.subr.bf16.mxu0 0
    %2231 = vmatpush1.bf16.msra.mxu0 0
    %2232 = vmatprep.subr.bf16.mxu0 0
    %2233 = vmatpush1.bf16.msra.mxu0 0
    %2234 = vmatprep.subr.bf16.mxu0 0
    %2235 = vmatpush1.bf16.msra.mxu0 0
    %2236 = vmatprep.subr.bf16.mxu0 0
    %2237 = vmatpush1.bf16.msra.mxu0 0
    %2238 = vmatprep.subr.bf16.mxu0 0
    %2239 = vmatpush1.bf16.msra.mxu0 0
    %2240 = vmatprep.subr.bf16.mxu0 0
    %2241 = vmatpush1.bf16.msra.mxu0 0
    %2242 = vmatprep.subr.bf16.mxu0 0
    %2243 = vmatpush1.bf16.msra.mxu0 0
    %2244 = vmatprep.subr.bf16.mxu0 0
    %2245 = vmatpush1.bf16.msra.mxu0 0
    %2246 = vmatprep.mubr.bf16.mxu0 0
    %2247 = vmatmul.mubr.bf16.gmra.mrb[0].mxu0 %v2021
    %v2248 = vpop.f32.mrb[0].mxu0
    %v2249 = vadd.f32 0.0, %v2248
    %v2250 = vpop.f32.mrb[0].mxu0
    %v2251 = vadd.f32 0.0, %v2250
    %v2252 = vpop.f32.mrb[0].mxu0
    %v2253 = vpop.f32.mrb[0].mxu0
    %2254 = vdwg.mxu0
    %2255 = vmatprep.subr.bf16.mxu0 %v2153
    %2256 = vmatpush1.bf16.msra.mxu0 %v2152
    %2257 = vmatprep.subr.bf16.mxu0 %v2157
    %2258 = vmatpush1.bf16.msra.mxu0 %v2156
    %2259 = vmatprep.subr.bf16.mxu0 %v2161
    %2260 = vmatpush1.bf16.msra.mxu0 %v2160
    %2261 = vmatprep.subr.bf16.mxu0 %v2165
    %2262 = vmatpush1.bf16.msra.mxu0 %v2164
    %2263 = vmatprep.subr.bf16.mxu0 %v2169
    %2264 = vmatpush1.bf16.msra.mxu0 %v2168
    %2265 = vmatprep.subr.bf16.mxu0 %v2173
    %2266 = vmatpush1.bf16.msra.mxu0 %v2172
    %2267 = vmatprep.subr.bf16.mxu0 %v2177
    %2268 = vmatpush1.bf16.msra.mxu0 %v2176
    %2269 = vmatprep.subr.bf16.mxu0 %v2181
    %2270 = vmatpush1.bf16.msra.mxu0 %v2180
    %2271 = vmatprep.subr.bf16.mxu0 0
    %2272 = vmatpush1.bf16.msra.mxu0 0
    %2273 = vmatprep.subr.bf16.mxu0 0
    %2274 = vmatpush1.bf16.msra.mxu0 0
    %2275 = vmatprep.subr.bf16.mxu0 0
    %2276 = vmatpush1.bf16.msra.mxu0 0
    %2277 = vmatprep.subr.bf16.mxu0 0
    %2278 = vmatpush1.bf16.msra.mxu0 0
    %2279 = vmatprep.subr.bf16.mxu0 0
    %2280 = vmatpush1.bf16.msra.mxu0 0
    %2281 = vmatprep.subr.bf16.mxu0 0
    %2282 = vmatpush1.bf16.msra.mxu0 0
    %2283 = vmatprep.subr.bf16.mxu0 0
    %2284 = vmatpush1.bf16.msra.mxu0 0
    %2285 = vmatprep.subr.bf16.mxu0 0
    %2286 = vmatpush1.bf16.msra.mxu0 0
    %2287 = vmatprep.mubr.bf16.mxu0 0
    %2288 = vmatmul.mubr.bf16.gmra.mrb[0].mxu0 %v2021
    %v2289 = vpop.f32.mrb[0].mxu0
    %v2290 = vadd.f32 0.0, %v2289
    %v2291 = vpop.f32.mrb[0].mxu0
    %v2292 = vadd.f32 0.0, %v2291
    %v2293 = vpop.f32.mrb[0].mxu0
    %v2294 = vpop.f32.mrb[0].mxu0
    %2295 = vdwg.mxu0
    %v2296 = vadd.f32 %v2017, %v2249
    %v2297 = vadd.f32 %v2018, %v2251
    %v2298 = vadd.f32 %v2019, %v2290
    %v2299 = vadd.f32 %v2020, %v2292
    %v2300 = vxor.u32 %v2296, 2147483648
    %v2301 = vmul.f32 %v2300, 1.442695
    %v2302 = vpow.pop %v2301
    %v2303 = vadd.f32 %v2302, 1.0
    %v2304 = vrcp.pop %v2303
    %v2305 = vmul.f32 1.0, %v2304
    %v2306 = vxor.u32 %v2297, 2147483648
    %v2307 = vmul.f32 %v2306, 1.442695
    %v2308 = vpow.pop %v2307
    %v2309 = vadd.f32 %v2308, 1.0
    %v2310 = vrcp.pop %v2309
    %v2311 = vmul.f32 1.0, %v2310
    %v2312 = vtanh.pop %v2298
    %v2313 = vxor.u32 %v2299, 2147483648
    %v2314 = vmul.f32 %v2313, 1.442695
    %v2315 = vpow.pop %v2314
    %v2316 = vadd.f32 %v2315, 1.0
    %v2317 = vrcp.pop %v2316
    %v2318 = vmul.f32 1.0, %v2317
    %v2319 = vmul.f32 %v2311, %v2009
    %v2320 = vmul.f32 %v2305, %v2312
    %v2321 = vadd.f32 %v2319, %v2320
    %v2322 = vtanh.pop %v2321
    %v2323 = vmul.f32 %v2318, %v2322
    %s2324 = scalar_lea.vmem [#allocation3], 40
    %2325 = vst [vmem:[%s2324] sm:$0xff] %v2323
    %s2326 = smul.u32 6, 4
    %s2327 = smul.addr %s2326, 8
    %s2328 = scalar_lea.vmem [#allocation2], %s2327
    %v2329 = vld [vmem:[%s2328] sm:$0xff]
    %v2330 = vld [vmem:[%s2328 + $0x8] sm:$0xff]
    %v2331 = vld [vmem:[%s2328 + $0x10] sm:$0xff]
    %v2332 = vld [vmem:[%s2328 + $0x18] sm:$0xff]
    %v2333 = vpack.c.bf16 %v2323, %v2323
    %v2334 = vld [vmem:[#allocation12] sm:$0xff]
    %v2335 = vld [vmem:[#allocation12 + $0x8] sm:$0xff]
    %v2336 = vld [vmem:[#allocation12 + $0x10] sm:$0xff]
    %v2337 = vld [vmem:[#allocation12 + $0x18] sm:$0xff]
    %v2338 = vld [vmem:[#allocation12 + $0x20] sm:$0xff]
    %v2339 = vld [vmem:[#allocation12 + $0x28] sm:$0xff]
    %v2340 = vld [vmem:[#allocation12 + $0x30] sm:$0xff]
    %v2341 = vld [vmem:[#allocation12 + $0x38] sm:$0xff]
    %v2342 = vld [vmem:[#allocation12 + $0x40] sm:$0xff]
    %v2343 = vld [vmem:[#allocation12 + $0x48] sm:$0xff]
    %v2344 = vld [vmem:[#allocation12 + $0x50] sm:$0xff]
    %v2345 = vld [vmem:[#allocation12 + $0x58] sm:$0xff]
    %v2346 = vld [vmem:[#allocation12 + $0x60] sm:$0xff]
    %v2347 = vld [vmem:[#allocation12 + $0x68] sm:$0xff]
    %v2348 = vld [vmem:[#allocation12 + $0x70] sm:$0xff]
    %v2349 = vld [vmem:[#allocation12 + $0x78] sm:$0xff]
    %v2350 = vld [vmem:[#allocation12 + $0x80] sm:$0xff]
    %v2351 = vld [vmem:[#allocation12 + $0x88] sm:$0xff]
    %v2352 = vld [vmem:[#allocation12 + $0x90] sm:$0xff]
    %v2353 = vld [vmem:[#allocation12 + $0x98] sm:$0xff]
    %v2354 = vld [vmem:[#allocation12 + $0xa0] sm:$0xff]
    %v2355 = vld [vmem:[#allocation12 + $0xa8] sm:$0xff]
    %v2356 = vld [vmem:[#allocation12 + $0xb0] sm:$0xff]
    %v2357 = vld [vmem:[#allocation12 + $0xb8] sm:$0xff]
    %v2358 = vld [vmem:[#allocation12 + $0xc0] sm:$0xff]
    %v2359 = vld [vmem:[#allocation12 + $0xc8] sm:$0xff]
    %v2360 = vld [vmem:[#allocation12 + $0xd0] sm:$0xff]
    %v2361 = vld [vmem:[#allocation12 + $0xd8] sm:$0xff]
    %v2362 = vld [vmem:[#allocation12 + $0xe0] sm:$0xff]
    %v2363 = vld [vmem:[#allocation12 + $0xe8] sm:$0xff]
    %v2364 = vld [vmem:[#allocation12 + $0xf0] sm:$0xff]
    %v2365 = vld [vmem:[#allocation12 + $0xf8] sm:$0xff]
    %v2398 = vunpack.c.l.b16 %v2334
    %v2399 = vunpack.c.h.b16 %v2334
    %v2400 = vunpack.c.l.b16 %v2335
    %v2401 = vunpack.c.h.b16 %v2335
    %v2402 = vunpack.c.l.b16 %v2336
    %v2403 = vunpack.c.h.b16 %v2336
    %v2404 = vunpack.c.l.b16 %v2337
    %v2405 = vunpack.c.h.b16 %v2337
    %v2406 = vunpack.c.l.b16 %v2338
    %v2407 = vunpack.c.h.b16 %v2338
    %v2408 = vunpack.c.l.b16 %v2339
    %v2409 = vunpack.c.h.b16 %v2339
    %v2410 = vunpack.c.l.b16 %v2340
    %v2411 = vunpack.c.h.b16 %v2340
    %v2412 = vunpack.c.l.b16 %v2341
    %v2413 = vunpack.c.h.b16 %v2341
    %v2414 = vunpack.c.l.b16 %v2342
    %v2415 = vunpack.c.h.b16 %v2342
    %v2416 = vunpack.c.l.b16 %v2343
    %v2417 = vunpack.c.h.b16 %v2343
    %v2418 = vunpack.c.l.b16 %v2344
    %v2419 = vunpack.c.h.b16 %v2344
    %v2420 = vunpack.c.l.b16 %v2345
    %v2421 = vunpack.c.h.b16 %v2345
    %v2422 = vunpack.c.l.b16 %v2346
    %v2423 = vunpack.c.h.b16 %v2346
    %v2424 = vunpack.c.l.b16 %v2347
    %v2425 = vunpack.c.h.b16 %v2347
    %v2426 = vunpack.c.l.b16 %v2348
    %v2427 = vunpack.c.h.b16 %v2348
    %v2428 = vunpack.c.l.b16 %v2349
    %v2429 = vunpack.c.h.b16 %v2349
    %v2430 = vunpack.c.l.b16 %v2350
    %v2431 = vunpack.c.h.b16 %v2350
    %v2432 = vunpack.c.l.b16 %v2351
    %v2433 = vunpack.c.h.b16 %v2351
    %v2434 = vunpack.c.l.b16 %v2352
    %v2435 = vunpack.c.h.b16 %v2352
    %v2436 = vunpack.c.l.b16 %v2353
    %v2437 = vunpack.c.h.b16 %v2353
    %v2438 = vunpack.c.l.b16 %v2354
    %v2439 = vunpack.c.h.b16 %v2354
    %v2440 = vunpack.c.l.b16 %v2355
    %v2441 = vunpack.c.h.b16 %v2355
    %v2442 = vunpack.c.l.b16 %v2356
    %v2443 = vunpack.c.h.b16 %v2356
    %v2444 = vunpack.c.l.b16 %v2357
    %v2445 = vunpack.c.h.b16 %v2357
    %v2446 = vunpack.c.l.b16 %v2358
    %v2447 = vunpack.c.h.b16 %v2358
    %v2448 = vunpack.c.l.b16 %v2359
    %v2449 = vunpack.c.h.b16 %v2359
    %v2450 = vunpack.c.l.b16 %v2360
    %v2451 = vunpack.c.h.b16 %v2360
    %v2452 = vunpack.c.l.b16 %v2361
    %v2453 = vunpack.c.h.b16 %v2361
    %v2454 = vunpack.c.l.b16 %v2362
    %v2455 = vunpack.c.h.b16 %v2362
    %v2456 = vunpack.c.l.b16 %v2363
    %v2457 = vunpack.c.h.b16 %v2363
    %v2458 = vunpack.c.l.b16 %v2364
    %v2459 = vunpack.c.h.b16 %v2364
    %v2460 = vunpack.c.l.b16 %v2365
    %v2461 = vunpack.c.h.b16 %v2365
    %v2462 = vpack.c.b16 %v2402, %v2398
    %v2463 = vpack.c.b16 %v2403, %v2399
    %v2464 = vpack.c.b16 %v2404, %v2400
    %v2465 = vpack.c.b16 %v2405, %v2401
    %v2466 = vpack.c.b16 %v2410, %v2406
    %v2467 = vpack.c.b16 %v2411, %v2407
    %v2468 = vpack.c.b16 %v2412, %v2408
    %v2469 = vpack.c.b16 %v2413, %v2409
    %v2470 = vpack.c.b16 %v2418, %v2414
    %v2471 = vpack.c.b16 %v2419, %v2415
    %v2472 = vpack.c.b16 %v2420, %v2416
    %v2473 = vpack.c.b16 %v2421, %v2417
    %v2474 = vpack.c.b16 %v2426, %v2422
    %v2475 = vpack.c.b16 %v2427, %v2423
    %v2476 = vpack.c.b16 %v2428, %v2424
    %v2477 = vpack.c.b16 %v2429, %v2425
    %v2478 = vpack.c.b16 %v2434, %v2430
    %v2479 = vpack.c.b16 %v2435, %v2431
    %v2480 = vpack.c.b16 %v2436, %v2432
    %v2481 = vpack.c.b16 %v2437, %v2433
    %v2482 = vpack.c.b16 %v2442, %v2438
    %v2483 = vpack.c.b16 %v2443, %v2439
    %v2484 = vpack.c.b16 %v2444, %v2440
    %v2485 = vpack.c.b16 %v2445, %v2441
    %v2486 = vpack.c.b16 %v2450, %v2446
    %v2487 = vpack.c.b16 %v2451, %v2447
    %v2488 = vpack.c.b16 %v2452, %v2448
    %v2489 = vpack.c.b16 %v2453, %v2449
    %v2490 = vpack.c.b16 %v2458, %v2454
    %v2491 = vpack.c.b16 %v2459, %v2455
    %v2492 = vpack.c.b16 %v2460, %v2456
    %v2493 = vpack.c.b16 %v2461, %v2457
    %2526 = vmatprep.subr.bf16.mxu0 %v2463
    %2527 = vmatpush1.bf16.msra.mxu0 %v2462
    %2528 = vmatprep.subr.bf16.mxu0 %v2467
    %2529 = vmatpush1.bf16.msra.mxu0 %v2466
    %2530 = vmatprep.subr.bf16.mxu0 %v2471
    %2531 = vmatpush1.bf16.msra.mxu0 %v2470
    %2532 = vmatprep.subr.bf16.mxu0 %v2475
    %2533 = vmatpush1.bf16.msra.mxu0 %v2474
    %2534 = vmatprep.subr.bf16.mxu0 %v2479
    %2535 = vmatpush1.bf16.msra.mxu0 %v2478
    %2536 = vmatprep.subr.bf16.mxu0 %v2483
    %2537 = vmatpush1.bf16.msra.mxu0 %v2482
    %2538 = vmatprep.subr.bf16.mxu0 %v2487
    %2539 = vmatpush1.bf16.msra.mxu0 %v2486
    %2540 = vmatprep.subr.bf16.mxu0 %v2491
    %2541 = vmatpush1.bf16.msra.mxu0 %v2490
    %2542 = vmatprep.subr.bf16.mxu0 0
    %2543 = vmatpush1.bf16.msra.mxu0 0
    %2544 = vmatprep.subr.bf16.mxu0 0
    %2545 = vmatpush1.bf16.msra.mxu0 0
    %2546 = vmatprep.subr.bf16.mxu0 0
    %2547 = vmatpush1.bf16.msra.mxu0 0
    %2548 = vmatprep.subr.bf16.mxu0 0
    %2549 = vmatpush1.bf16.msra.mxu0 0
    %2550 = vmatprep.subr.bf16.mxu0 0
    %2551 = vmatpush1.bf16.msra.mxu0 0
    %2552 = vmatprep.subr.bf16.mxu0 0
    %2553 = vmatpush1.bf16.msra.mxu0 0
    %2554 = vmatprep.subr.bf16.mxu0 0
    %2555 = vmatpush1.bf16.msra.mxu0 0
    %2556 = vmatprep.subr.bf16.mxu0 0
    %2557 = vmatpush1.bf16.msra.mxu0 0
    %2558 = vmatprep.mubr.bf16.mxu0 0
    %2559 = vmatmul.mubr.bf16.gmra.mrb[0].mxu0 %v2333
    %v2560 = vpop.f32.mrb[0].mxu0
    %v2561 = vadd.f32 0.0, %v2560
    %v2562 = vpop.f32.mrb[0].mxu0
    %v2563 = vadd.f32 0.0, %v2562
    %v2564 = vpop.f32.mrb[0].mxu0
    %v2565 = vpop.f32.mrb[0].mxu0
    %2566 = vdwg.mxu0
    %2567 = vmatprep.subr.bf16.mxu0 %v2465
    %2568 = vmatpush1.bf16.msra.mxu0 %v2464
    %2569 = vmatprep.subr.bf16.mxu0 %v2469
    %2570 = vmatpush1.bf16.msra.mxu0 %v2468
    %2571 = vmatprep.subr.bf16.mxu0 %v2473
    %2572 = vmatpush1.bf16.msra.mxu0 %v2472
    %2573 = vmatprep.subr.bf16.mxu0 %v2477
    %2574 = vmatpush1.bf16.msra.mxu0 %v2476
    %2575 = vmatprep.subr.bf16.mxu0 %v2481
    %2576 = vmatpush1.bf16.msra.mxu0 %v2480
    %2577 = vmatprep.subr.bf16.mxu0 %v2485
    %2578 = vmatpush1.bf16.msra.mxu0 %v2484
    %2579 = vmatprep.subr.bf16.mxu0 %v2489
    %2580 = vmatpush1.bf16.msra.mxu0 %v2488
    %2581 = vmatprep.subr.bf16.mxu0 %v2493
    %2582 = vmatpush1.bf16.msra.mxu0 %v2492
    %2583 = vmatprep.subr.bf16.mxu0 0
    %2584 = vmatpush1.bf16.msra.mxu0 0
    %2585 = vmatprep.subr.bf16.mxu0 0
    %2586 = vmatpush1.bf16.msra.mxu0 0
    %2587 = vmatprep.subr.bf16.mxu0 0
    %2588 = vmatpush1.bf16.msra.mxu0 0
    %2589 = vmatprep.subr.bf16.mxu0 0
    %2590 = vmatpush1.bf16.msra.mxu0 0
    %2591 = vmatprep.subr.bf16.mxu0 0
    %2592 = vmatpush1.bf16.msra.mxu0 0
    %2593 = vmatprep.subr.bf16.mxu0 0
    %2594 = vmatpush1.bf16.msra.mxu0 0
    %2595 = vmatprep.subr.bf16.mxu0 0
    %2596 = vmatpush1.bf16.msra.mxu0 0
    %2597 = vmatprep.subr.bf16.mxu0 0
    %2598 = vmatpush1.bf16.msra.mxu0 0
    %2599 = vmatprep.mubr.bf16.mxu0 0
    %2600 = vmatmul.mubr.bf16.gmra.mrb[0].mxu0 %v2333
    %v2601 = vpop.f32.mrb[0].mxu0
    %v2602 = vadd.f32 0.0, %v2601
    %v2603 = vpop.f32.mrb[0].mxu0
    %v2604 = vadd.f32 0.0, %v2603
    %v2605 = vpop.f32.mrb[0].mxu0
    %v2606 = vpop.f32.mrb[0].mxu0
    %2607 = vdwg.mxu0
    %v2608 = vadd.f32 %v2329, %v2561
    %v2609 = vadd.f32 %v2330, %v2563
    %v2610 = vadd.f32 %v2331, %v2602
    %v2611 = vadd.f32 %v2332, %v2604
    %v2612 = vxor.u32 %v2608, 2147483648
    %v2613 = vmul.f32 %v2612, 1.442695
    %v2614 = vpow.pop %v2613
    %v2615 = vadd.f32 %v2614, 1.0
    %v2616 = vrcp.pop %v2615
    %v2617 = vmul.f32 1.0, %v2616
    %v2618 = vxor.u32 %v2609, 2147483648
    %v2619 = vmul.f32 %v2618, 1.442695
    %v2620 = vpow.pop %v2619
    %v2621 = vadd.f32 %v2620, 1.0
    %v2622 = vrcp.pop %v2621
    %v2623 = vmul.f32 1.0, %v2622
    %v2624 = vtanh.pop %v2610
    %v2625 = vxor.u32 %v2611, 2147483648
    %v2626 = vmul.f32 %v2625, 1.442695
    %v2627 = vpow.pop %v2626
    %v2628 = vadd.f32 %v2627, 1.0
    %v2629 = vrcp.pop %v2628
    %v2630 = vmul.f32 1.0, %v2629
    %v2631 = vmul.f32 %v2623, %v2321
    %v2632 = vmul.f32 %v2617, %v2624
    %v2633 = vadd.f32 %v2631, %v2632
    %v2634 = vtanh.pop %v2633
    %v2635 = vmul.f32 %v2630, %v2634
    %s2636 = scalar_lea.vmem [#allocation3], 48
    %2637 = vst [vmem:[%s2636] sm:$0xff] %v2635
    %s2638 = smul.u32 7, 4
    %s2639 = smul.addr %s2638, 8
    %s2640 = scalar_lea.vmem [#allocation2], %s2639
    %v2641 = vld [vmem:[%s2640] sm:$0xff]
    %v2642 = vld [vmem:[%s2640 + $0x8] sm:$0xff]
    %v2643 = vld [vmem:[%s2640 + $0x10] sm:$0xff]
    %v2644 = vld [vmem:[%s2640 + $0x18] sm:$0xff]
    %v2645 = vpack.c.bf16 %v2635, %v2635
    %v2646 = vld [vmem:[#allocation12] sm:$0xff]
    %v2647 = vld [vmem:[#allocation12 + $0x8] sm:$0xff]
    %v2648 = vld [vmem:[#allocation12 + $0x10] sm:$0xff]
    %v2649 = vld [vmem:[#allocation12 + $0x18] sm:$0xff]
    %v2650 = vld [vmem:[#allocation12 + $0x20] sm:$0xff]
    %v2651 = vld [vmem:[#allocation12 + $0x28] sm:$0xff]
    %v2652 = vld [vmem:[#allocation12 + $0x30] sm:$0xff]
    %v2653 = vld [vmem:[#allocation12 + $0x38] sm:$0xff]
    %v2654 = vld [vmem:[#allocation12 + $0x40] sm:$0xff]
    %v2655 = vld [vmem:[#allocation12 + $0x48] sm:$0xff]
    %v2656 = vld [vmem:[#allocation12 + $0x50] sm:$0xff]
    %v2657 = vld [vmem:[#allocation12 + $0x58] sm:$0xff]
    %v2658 = vld [vmem:[#allocation12 + $0x60] sm:$0xff]
    %v2659 = vld [vmem:[#allocation12 + $0x68] sm:$0xff]
    %v2660 = vld [vmem:[#allocation12 + $0x70] sm:$0xff]
    %v2661 = vld [vmem:[#allocation12 + $0x78] sm:$0xff]
    %v2662 = vld [vmem:[#allocation12 + $0x80] sm:$0xff]
    %v2663 = vld [vmem:[#allocation12 + $0x88] sm:$0xff]
    %v2664 = vld [vmem:[#allocation12 + $0x90] sm:$0xff]
    %v2665 = vld [vmem:[#allocation12 + $0x98] sm:$0xff]
    %v2666 = vld [vmem:[#allocation12 + $0xa0] sm:$0xff]
    %v2667 = vld [vmem:[#allocation12 + $0xa8] sm:$0xff]
    %v2668 = vld [vmem:[#allocation12 + $0xb0] sm:$0xff]
    %v2669 = vld [vmem:[#allocation12 + $0xb8] sm:$0xff]
    %v2670 = vld [vmem:[#allocation12 + $0xc0] sm:$0xff]
    %v2671 = vld [vmem:[#allocation12 + $0xc8] sm:$0xff]
    %v2672 = vld [vmem:[#allocation12 + $0xd0] sm:$0xff]
    %v2673 = vld [vmem:[#allocation12 + $0xd8] sm:$0xff]
    %v2674 = vld [vmem:[#allocation12 + $0xe0] sm:$0xff]
    %v2675 = vld [vmem:[#allocation12 + $0xe8] sm:$0xff]
    %v2676 = vld [vmem:[#allocation12 + $0xf0] sm:$0xff]
    %v2677 = vld [vmem:[#allocation12 + $0xf8] sm:$0xff]
    %v2710 = vunpack.c.l.b16 %v2646
    %v2711 = vunpack.c.h.b16 %v2646
    %v2712 = vunpack.c.l.b16 %v2647
    %v2713 = vunpack.c.h.b16 %v2647
    %v2714 = vunpack.c.l.b16 %v2648
    %v2715 = vunpack.c.h.b16 %v2648
    %v2716 = vunpack.c.l.b16 %v2649
    %v2717 = vunpack.c.h.b16 %v2649
    %v2718 = vunpack.c.l.b16 %v2650
    %v2719 = vunpack.c.h.b16 %v2650
    %v2720 = vunpack.c.l.b16 %v2651
    %v2721 = vunpack.c.h.b16 %v2651
    %v2722 = vunpack.c.l.b16 %v2652
    %v2723 = vunpack.c.h.b16 %v2652
    %v2724 = vunpack.c.l.b16 %v2653
    %v2725 = vunpack.c.h.b16 %v2653
    %v2726 = vunpack.c.l.b16 %v2654
    %v2727 = vunpack.c.h.b16 %v2654
    %v2728 = vunpack.c.l.b16 %v2655
    %v2729 = vunpack.c.h.b16 %v2655
    %v2730 = vunpack.c.l.b16 %v2656
    %v2731 = vunpack.c.h.b16 %v2656
    %v2732 = vunpack.c.l.b16 %v2657
    %v2733 = vunpack.c.h.b16 %v2657
    %v2734 = vunpack.c.l.b16 %v2658
    %v2735 = vunpack.c.h.b16 %v2658
    %v2736 = vunpack.c.l.b16 %v2659
    %v2737 = vunpack.c.h.b16 %v2659
    %v2738 = vunpack.c.l.b16 %v2660
    %v2739 = vunpack.c.h.b16 %v2660
    %v2740 = vunpack.c.l.b16 %v2661
    %v2741 = vunpack.c.h.b16 %v2661
    %v2742 = vunpack.c.l.b16 %v2662
    %v2743 = vunpack.c.h.b16 %v2662
    %v2744 = vunpack.c.l.b16 %v2663
    %v2745 = vunpack.c.h.b16 %v2663
    %v2746 = vunpack.c.l.b16 %v2664
    %v2747 = vunpack.c.h.b16 %v2664
    %v2748 = vunpack.c.l.b16 %v2665
    %v2749 = vunpack.c.h.b16 %v2665
    %v2750 = vunpack.c.l.b16 %v2666
    %v2751 = vunpack.c.h.b16 %v2666
    %v2752 = vunpack.c.l.b16 %v2667
    %v2753 = vunpack.c.h.b16 %v2667
    %v2754 = vunpack.c.l.b16 %v2668
    %v2755 = vunpack.c.h.b16 %v2668
    %v2756 = vunpack.c.l.b16 %v2669
    %v2757 = vunpack.c.h.b16 %v2669
    %v2758 = vunpack.c.l.b16 %v2670
    %v2759 = vunpack.c.h.b16 %v2670
    %v2760 = vunpack.c.l.b16 %v2671
    %v2761 = vunpack.c.h.b16 %v2671
    %v2762 = vunpack.c.l.b16 %v2672
    %v2763 = vunpack.c.h.b16 %v2672
    %v2764 = vunpack.c.l.b16 %v2673
    %v2765 = vunpack.c.h.b16 %v2673
    %v2766 = vunpack.c.l.b16 %v2674
    %v2767 = vunpack.c.h.b16 %v2674
    %v2768 = vunpack.c.l.b16 %v2675
    %v2769 = vunpack.c.h.b16 %v2675
    %v2770 = vunpack.c.l.b16 %v2676
    %v2771 = vunpack.c.h.b16 %v2676
    %v2772 = vunpack.c.l.b16 %v2677
    %v2773 = vunpack.c.h.b16 %v2677
    %v2774 = vpack.c.b16 %v2714, %v2710
    %v2775 = vpack.c.b16 %v2715, %v2711
    %v2776 = vpack.c.b16 %v2716, %v2712
    %v2777 = vpack.c.b16 %v2717, %v2713
    %v2778 = vpack.c.b16 %v2722, %v2718
    %v2779 = vpack.c.b16 %v2723, %v2719
    %v2780 = vpack.c.b16 %v2724, %v2720
    %v2781 = vpack.c.b16 %v2725, %v2721
    %v2782 = vpack.c.b16 %v2730, %v2726
    %v2783 = vpack.c.b16 %v2731, %v2727
    %v2784 = vpack.c.b16 %v2732, %v2728
    %v2785 = vpack.c.b16 %v2733, %v2729
    %v2786 = vpack.c.b16 %v2738, %v2734
    %v2787 = vpack.c.b16 %v2739, %v2735
    %v2788 = vpack.c.b16 %v2740, %v2736
    %v2789 = vpack.c.b16 %v2741, %v2737
    %v2790 = vpack.c.b16 %v2746, %v2742
    %v2791 = vpack.c.b16 %v2747, %v2743
    %v2792 = vpack.c.b16 %v2748, %v2744
    %v2793 = vpack.c.b16 %v2749, %v2745
    %v2794 = vpack.c.b16 %v2754, %v2750
    %v2795 = vpack.c.b16 %v2755, %v2751
    %v2796 = vpack.c.b16 %v2756, %v2752
    %v2797 = vpack.c.b16 %v2757, %v2753
    %v2798 = vpack.c.b16 %v2762, %v2758
    %v2799 = vpack.c.b16 %v2763, %v2759
    %v2800 = vpack.c.b16 %v2764, %v2760
    %v2801 = vpack.c.b16 %v2765, %v2761
    %v2802 = vpack.c.b16 %v2770, %v2766
    %v2803 = vpack.c.b16 %v2771, %v2767
    %v2804 = vpack.c.b16 %v2772, %v2768
    %v2805 = vpack.c.b16 %v2773, %v2769
    %2838 = vmatprep.subr.bf16.mxu0 %v2775
    %2839 = vmatpush1.bf16.msra.mxu0 %v2774
    %2840 = vmatprep.subr.bf16.mxu0 %v2779
    %2841 = vmatpush1.bf16.msra.mxu0 %v2778
    %2842 = vmatprep.subr.bf16.mxu0 %v2783
    %2843 = vmatpush1.bf16.msra.mxu0 %v2782
    %2844 = vmatprep.subr.bf16.mxu0 %v2787
    %2845 = vmatpush1.bf16.msra.mxu0 %v2786
    %2846 = vmatprep.subr.bf16.mxu0 %v2791
    %2847 = vmatpush1.bf16.msra.mxu0 %v2790
    %2848 = vmatprep.subr.bf16.mxu0 %v2795
    %2849 = vmatpush1.bf16.msra.mxu0 %v2794
    %2850 = vmatprep.subr.bf16.mxu0 %v2799
    %2851 = vmatpush1.bf16.msra.mxu0 %v2798
    %2852 = vmatprep.subr.bf16.mxu0 %v2803
    %2853 = vmatpush1.bf16.msra.mxu0 %v2802
    %2854 = vmatprep.subr.bf16.mxu0 0
    %2855 = vmatpush1.bf16.msra.mxu0 0
    %2856 = vmatprep.subr.bf16.mxu0 0
    %2857 = vmatpush1.bf16.msra.mxu0 0
    %2858 = vmatprep.subr.bf16.mxu0 0
    %2859 = vmatpush1.bf16.msra.mxu0 0
    %2860 = vmatprep.subr.bf16.mxu0 0
    %2861 = vmatpush1.bf16.msra.mxu0 0
    %2862 = vmatprep.subr.bf16.mxu0 0
    %2863 = vmatpush1.bf16.msra.mxu0 0
    %2864 = vmatprep.subr.bf16.mxu0 0
    %2865 = vmatpush1.bf16.msra.mxu0 0
    %2866 = vmatprep.subr.bf16.mxu0 0
    %2867 = vmatpush1.bf16.msra.mxu0 0
    %2868 = vmatprep.subr.bf16.mxu0 0
    %2869 = vmatpush1.bf16.msra.mxu0 0
    %2870 = vmatprep.mubr.bf16.mxu0 0
    %2871 = vmatmul.mubr.bf16.gmra.mrb[0].mxu0 %v2645
    %v2872 = vpop.f32.mrb[0].mxu0
    %v2873 = vadd.f32 0.0, %v2872
    %v2874 = vpop.f32.mrb[0].mxu0
    %v2875 = vadd.f32 0.0, %v2874
    %v2876 = vpop.f32.mrb[0].mxu0
    %v2877 = vpop.f32.mrb[0].mxu0
    %2878 = vdwg.mxu0
    %2879 = vmatprep.subr.bf16.mxu0 %v2777
    %2880 = vmatpush1.bf16.msra.mxu0 %v2776
    %2881 = vmatprep.subr.bf16.mxu0 %v2781
    %2882 = vmatpush1.bf16.msra.mxu0 %v2780
    %2883 = vmatprep.subr.bf16.mxu0 %v2785
    %2884 = vmatpush1.bf16.msra.mxu0 %v2784
    %2885 = vmatprep.subr.bf16.mxu0 %v2789
    %2886 = vmatpush1.bf16.msra.mxu0 %v2788
    %2887 = vmatprep.subr.bf16.mxu0 %v2793
    %2888 = vmatpush1.bf16.msra.mxu0 %v2792
    %2889 = vmatprep.subr.bf16.mxu0 %v2797
    %2890 = vmatpush1.bf16.msra.mxu0 %v2796
    %2891 = vmatprep.subr.bf16.mxu0 %v2801
    %2892 = vmatpush1.bf16.msra.mxu0 %v2800
    %2893 = vmatprep.subr.bf16.mxu0 %v2805
    %2894 = vmatpush1.bf16.msra.mxu0 %v2804
    %2895 = vmatprep.subr.bf16.mxu0 0
    %2896 = vmatpush1.bf16.msra.mxu0 0
    %2897 = vmatprep.subr.bf16.mxu0 0
    %2898 = vmatpush1.bf16.msra.mxu0 0
    %2899 = vmatprep.subr.bf16.mxu0 0
    %2900 = vmatpush1.bf16.msra.mxu0 0
    %2901 = vmatprep.subr.bf16.mxu0 0
    %2902 = vmatpush1.bf16.msra.mxu0 0
    %2903 = vmatprep.subr.bf16.mxu0 0
    %2904 = vmatpush1.bf16.msra.mxu0 0
    %2905 = vmatprep.subr.bf16.mxu0 0
    %2906 = vmatpush1.bf16.msra.mxu0 0
    %2907 = vmatprep.subr.bf16.mxu0 0
    %2908 = vmatpush1.bf16.msra.mxu0 0
    %2909 = vmatprep.subr.bf16.mxu0 0
    %2910 = vmatpush1.bf16.msra.mxu0 0
    %2911 = vmatprep.mubr.bf16.mxu0 0
    %2912 = vmatmul.mubr.bf16.gmra.mrb[0].mxu0 %v2645
    %v2913 = vpop.f32.mrb[0].mxu0
    %v2914 = vadd.f32 0.0, %v2913
    %v2915 = vpop.f32.mrb[0].mxu0
    %v2916 = vadd.f32 0.0, %v2915
    %v2917 = vpop.f32.mrb[0].mxu0
    %v2918 = vpop.f32.mrb[0].mxu0
    %2919 = vdwg.mxu0
    %v2920 = vadd.f32 %v2641, %v2873
    %v2921 = vadd.f32 %v2642, %v2875
    %v2922 = vadd.f32 %v2643, %v2914
    %v2923 = vadd.f32 %v2644, %v2916
    %v2924 = vxor.u32 %v2920, 2147483648
    %v2925 = vmul.f32 %v2924, 1.442695
    %v2926 = vpow.pop %v2925
    %v2927 = vadd.f32 %v2926, 1.0
    %v2928 = vrcp.pop %v2927
    %v2929 = vmul.f32 1.0, %v2928
    %v2930 = vxor.u32 %v2921, 2147483648
    %v2931 = vmul.f32 %v2930, 1.442695
    %v2932 = vpow.pop %v2931
    %v2933 = vadd.f32 %v2932, 1.0
    %v2934 = vrcp.pop %v2933
    %v2935 = vmul.f32 1.0, %v2934
    %v2936 = vtanh.pop %v2922
    %v2937 = vxor.u32 %v2923, 2147483648
    %v2938 = vmul.f32 %v2937, 1.442695
    %v2939 = vpow.pop %v2938
    %v2940 = vadd.f32 %v2939, 1.0
    %v2941 = vrcp.pop %v2940
    %v2942 = vmul.f32 1.0, %v2941
    %v2943 = vmul.f32 %v2935, %v2633
    %v2944 = vmul.f32 %v2929, %v2936
    %v2945 = vadd.f32 %v2943, %v2944
    %v2946 = vtanh.pop %v2945
    %v2947 = vmul.f32 %v2942, %v2946
    %s2948 = scalar_lea.vmem [#allocation3], 56
    %2949 = vst [vmem:[%s2948] sm:$0xff] %v2947
    %2950 = vst [vmem:[#allocation4] sm:$0xff] %v2947
    %2951 = vst [vmem:[#allocation5] sm:$0xff] %v2945
    %v2952 = vld [vmem:[#allocation3] sm:$0xff]
    %v2953 = vld [vmem:[#allocation3 + $0x8] sm:$0xff]
    %v2954 = vld [vmem:[#allocation3 + $0x10] sm:$0xff]
    %v2955 = vld [vmem:[#allocation3 + $0x18] sm:$0xff]
    %v2956 = vld [vmem:[#allocation3 + $0x20] sm:$0xff]
    %v2957 = vld [vmem:[#allocation3 + $0x28] sm:$0xff]
    %v2958 = vld [vmem:[#allocation3 + $0x30] sm:$0xff]
    %v2959 = vld [vmem:[#allocation3 + $0x38] sm:$0xff]
    %v2960 = vpack.c.bf16 %v2953, %v2952
    %v2961 = vpack.c.bf16 %v2955, %v2954
    %v2962 = vpack.c.bf16 %v2957, %v2956
    %v2963 = vpack.c.bf16 %v2959, %v2958
    %v2964 = vld [vmem:[#allocation15] sm:$0xff]
    %v2965 = vld [vmem:[#allocation15 + $0x8] sm:$0xff]
    %v2966 = vld [vmem:[#allocation15 + $0x10] sm:$0xff]
    %v2967 = vld [vmem:[#allocation15 + $0x18] sm:$0xff]
    %v2968 = vld [vmem:[#allocation15 + $0x20] sm:$0xff]
    %v2969 = vld [vmem:[#allocation15 + $0x28] sm:$0xff]
    %v2970 = vld [vmem:[#allocation15 + $0x30] sm:$0xff]
    %v2971 = vld [vmem:[#allocation15 + $0x38] sm:$0xff]
    %v2972 = vld [vmem:[#allocation15 + $0x40] sm:$0xff]
    %v2973 = vld [vmem:[#allocation15 + $0x48] sm:$0xff]
    %v2974 = vld [vmem:[#allocation15 + $0x50] sm:$0xff]
    %v2975 = vld [vmem:[#allocation15 + $0x58] sm:$0xff]
    %v2976 = vld [vmem:[#allocation15 + $0x60] sm:$0xff]
    %v2977 = vld [vmem:[#allocation15 + $0x68] sm:$0xff]
    %v2978 = vld [vmem:[#allocation15 + $0x70] sm:$0xff]
    %v2979 = vld [vmem:[#allocation15 + $0x78] sm:$0xff]
    %v2980 = vld [vmem:[#allocation15 + $0x80] sm:$0xff]
    %v2981 = vld [vmem:[#allocation15 + $0x88] sm:$0xff]
    %v2982 = vld [vmem:[#allocation15 + $0x90] sm:$0xff]
    %v2983 = vld [vmem:[#allocation15 + $0x98] sm:$0xff]
    %v2984 = vld [vmem:[#allocation15 + $0xa0] sm:$0xff]
    %v2985 = vld [vmem:[#allocation15 + $0xa8] sm:$0xff]
    %v2986 = vld [vmem:[#allocation15 + $0xb0] sm:$0xff]
    %v2987 = vld [vmem:[#allocation15 + $0xb8] sm:$0xff]
    %v2988 = vld [vmem:[#allocation15 + $0xc0] sm:$0xff]
    %v2989 = vld [vmem:[#allocation15 + $0xc8] sm:$0xff]
    %v2990 = vld [vmem:[#allocation15 + $0xd0] sm:$0xff]
    %v2991 = vld [vmem:[#allocation15 + $0xd8] sm:$0xff]
    %v2992 = vld [vmem:[#allocation15 + $0xe0] sm:$0xff]
    %v2993 = vld [vmem:[#allocation15 + $0xe8] sm:$0xff]
    %v2994 = vld [vmem:[#allocation15 + $0xf0] sm:$0xff]
    %v2995 = vld [vmem:[#allocation15 + $0xf8] sm:$0xff]
    %v2996 = vld [vmem:[#allocation18] sm:$0xf]
    %v2998 = vlaneseq
    %v2999 = vshrl.u32 %v2998, 7
    %v3000 = vsub.s32 0, %v2999
    %v3001 = vrot.slane %v2996, %v3000
    %v3002 = vlaneseq
    %v3003 = vshrl.u32 %v3002, 7
    %v3004 = vsub.s32 1, %v3003
    %v3005 = vrot.slane %v2996, %v3004
    %v3006 = vlaneseq
    %v3007 = vshrl.u32 %v3006, 7
    %v3008 = vsub.s32 2, %v3007
    %v3009 = vrot.slane %v2996, %v3008
    %v3010 = vlaneseq
    %v3011 = vshrl.u32 %v3010, 7
    %v3012 = vsub.s32 3, %v3011
    %v3013 = vrot.slane %v2996, %v3012
    %v3050 = vunpack.c.l.b16 %v2964
    %v3051 = vunpack.c.h.b16 %v2964
    %v3052 = vunpack.c.l.b16 %v2965
    %v3053 = vunpack.c.h.b16 %v2965
    %v3054 = vunpack.c.l.b16 %v2966
    %v3055 = vunpack.c.h.b16 %v2966
    %v3056 = vunpack.c.l.b16 %v2967
    %v3057 = vunpack.c.h.b16 %v2967
    %v3058 = vunpack.c.l.b16 %v2968
    %v3059 = vunpack.c.h.b16 %v2968
    %v3060 = vunpack.c.l.b16 %v2969
    %v3061 = vunpack.c.h.b16 %v2969
    %v3062 = vunpack.c.l.b16 %v2970
    %v3063 = vunpack.c.h.b16 %v2970
    %v3064 = vunpack.c.l.b16 %v2971
    %v3065 = vunpack.c.h.b16 %v2971
    %v3066 = vunpack.c.l.b16 %v2972
    %v3067 = vunpack.c.h.b16 %v2972
    %v3068 = vunpack.c.l.b16 %v2973
    %v3069 = vunpack.c.h.b16 %v2973
    %v3070 = vunpack.c.l.b16 %v2974
    %v3071 = vunpack.c.h.b16 %v2974
    %v3072 = vunpack.c.l.b16 %v2975
    %v3073 = vunpack.c.h.b16 %v2975
    %v3074 = vunpack.c.l.b16 %v2976
    %v3075 = vunpack.c.h.b16 %v2976
    %v3076 = vunpack.c.l.b16 %v2977
    %v3077 = vunpack.c.h.b16 %v2977
    %v3078 = vunpack.c.l.b16 %v2978
    %v3079 = vunpack.c.h.b16 %v2978
    %v3080 = vunpack.c.l.b16 %v2979
    %v3081 = vunpack.c.h.b16 %v2979
    %v3082 = vunpack.c.l.b16 %v2980
    %v3083 = vunpack.c.h.b16 %v2980
    %v3084 = vunpack.c.l.b16 %v2981
    %v3085 = vunpack.c.h.b16 %v2981
    %v3086 = vunpack.c.l.b16 %v2982
    %v3087 = vunpack.c.h.b16 %v2982
    %v3088 = vunpack.c.l.b16 %v2983
    %v3089 = vunpack.c.h.b16 %v2983
    %v3090 = vunpack.c.l.b16 %v2984
    %v3091 = vunpack.c.h.b16 %v2984
    %v3092 = vunpack.c.l.b16 %v2985
    %v3093 = vunpack.c.h.b16 %v2985
    %v3094 = vunpack.c.l.b16 %v2986
    %v3095 = vunpack.c.h.b16 %v2986
    %v3096 = vunpack.c.l.b16 %v2987
    %v3097 = vunpack.c.h.b16 %v2987
    %v3098 = vunpack.c.l.b16 %v2988
    %v3099 = vunpack.c.h.b16 %v2988
    %v3100 = vunpack.c.l.b16 %v2989
    %v3101 = vunpack.c.h.b16 %v2989
    %v3102 = vunpack.c.l.b16 %v2990
    %v3103 = vunpack.c.h.b16 %v2990
    %v3104 = vunpack.c.l.b16 %v2991
    %v3105 = vunpack.c.h.b16 %v2991
    %v3106 = vunpack.c.l.b16 %v2992
    %v3107 = vunpack.c.h.b16 %v2992
    %v3108 = vunpack.c.l.b16 %v2993
    %v3109 = vunpack.c.h.b16 %v2993
    %v3110 = vunpack.c.l.b16 %v2994
    %v3111 = vunpack.c.h.b16 %v2994
    %v3112 = vunpack.c.l.b16 %v2995
    %v3113 = vunpack.c.h.b16 %v2995
    %v3114 = vpack.c.b16 %v3054, %v3050
    %v3115 = vpack.c.b16 %v3055, %v3051
    %v3116 = vpack.c.b16 %v3056, %v3052
    %v3117 = vpack.c.b16 %v3057, %v3053
    %v3118 = vpack.c.b16 %v3062, %v3058
    %v3119 = vpack.c.b16 %v3063, %v3059
    %v3120 = vpack.c.b16 %v3064, %v3060
    %v3121 = vpack.c.b16 %v3065, %v3061
    %v3122 = vpack.c.b16 %v3070, %v3066
    %v3123 = vpack.c.b16 %v3071, %v3067
    %v3124 = vpack.c.b16 %v3072, %v3068
    %v3125 = vpack.c.b16 %v3073, %v3069
    %v3126 = vpack.c.b16 %v3078, %v3074
    %v3127 = vpack.c.b16 %v3079, %v3075
    %v3128 = vpack.c.b16 %v3080, %v3076
    %v3129 = vpack.c.b16 %v3081, %v3077
    %v3130 = vpack.c.b16 %v3086, %v3082
    %v3131 = vpack.c.b16 %v3087, %v3083
    %v3132 = vpack.c.b16 %v3088, %v3084
    %v3133 = vpack.c.b16 %v3089, %v3085
    %v3134 = vpack.c.b16 %v3094, %v3090
    %v3135 = vpack.c.b16 %v3095, %v3091
    %v3136 = vpack.c.b16 %v3096, %v3092
    %v3137 = vpack.c.b16 %v3097, %v3093
    %v3138 = vpack.c.b16 %v3102, %v3098
    %v3139 = vpack.c.b16 %v3103, %v3099
    %v3140 = vpack.c.b16 %v3104, %v3100
    %v3141 = vpack.c.b16 %v3105, %v3101
    %v3142 = vpack.c.b16 %v3110, %v3106
    %v3143 = vpack.c.b16 %v3111, %v3107
    %v3144 = vpack.c.b16 %v3112, %v3108
    %v3145 = vpack.c.b16 %v3113, %v3109
    %3178 = vmatprep.subr.bf16.mxu0 %v3115
    %3179 = vmatpush1.bf16.msra.mxu0 %v3114
    %3180 = vmatprep.subr.bf16.mxu0 %v3119
    %3181 = vmatpush1.bf16.msra.mxu0 %v3118
    %3182 = vmatprep.subr.bf16.mxu0 %v3123
    %3183 = vmatpush1.bf16.msra.mxu0 %v3122
    %3184 = vmatprep.subr.bf16.mxu0 %v3127
    %3185 = vmatpush1.bf16.msra.mxu0 %v3126
    %3186 = vmatprep.subr.bf16.mxu0 %v3131
    %3187 = vmatpush1.bf16.msra.mxu0 %v3130
    %3188 = vmatprep.subr.bf16.mxu0 %v3135
    %3189 = vmatpush1.bf16.msra.mxu0 %v3134
    %3190 = vmatprep.subr.bf16.mxu0 %v3139
    %3191 = vmatpush1.bf16.msra.mxu0 %v3138
    %3192 = vmatprep.subr.bf16.mxu0 %v3143
    %3193 = vmatpush1.bf16.msra.mxu0 %v3142
    %3194 = vmatprep.subr.bf16.mxu0 0
    %3195 = vmatpush1.bf16.msra.mxu0 0
    %3196 = vmatprep.subr.bf16.mxu0 0
    %3197 = vmatpush1.bf16.msra.mxu0 0
    %3198 = vmatprep.subr.bf16.mxu0 0
    %3199 = vmatpush1.bf16.msra.mxu0 0
    %3200 = vmatprep.subr.bf16.mxu0 0
    %3201 = vmatpush1.bf16.msra.mxu0 0
    %3202 = vmatprep.subr.bf16.mxu0 0
    %3203 = vmatpush1.bf16.msra.mxu0 0
    %3204 = vmatprep.subr.bf16.mxu0 0
    %3205 = vmatpush1.bf16.msra.mxu0 0
    %3206 = vmatprep.subr.bf16.mxu0 0
    %3207 = vmatpush1.bf16.msra.mxu0 0
    %3208 = vmatprep.subr.bf16.mxu0 0
    %3209 = vmatpush1.bf16.msra.mxu0 0
    %3210 = vmatprep.mubr.bf16.mxu0 0
    %3211 = vmatmul.mubr.bf16.gmra.mrb[0].mxu0 %v2960
    %v3212 = vpop.f32.mrb[0].mxu0
    %v3213 = vadd.f32 %v3001, %v3212
    %v3214 = vpop.f32.mrb[0].mxu0
    %v3215 = vadd.f32 %v3005, %v3214
    %v3216 = vpop.f32.mrb[0].mxu0
    %v3217 = vadd.f32 %v3001, %v3216
    %v3218 = vpop.f32.mrb[0].mxu0
    %v3219 = vadd.f32 %v3005, %v3218
    %3220 = vmatprep.mubr.bf16.mxu0 0
    %3221 = vmatmul.mubr.bf16.gmra.mrb[0].mxu0 %v2961
    %v3222 = vpop.f32.mrb[0].mxu0
    %v3223 = vadd.f32 %v3001, %v3222
    %v3224 = vpop.f32.mrb[0].mxu0
    %v3225 = vadd.f32 %v3005, %v3224
    %v3226 = vpop.f32.mrb[0].mxu0
    %v3227 = vadd.f32 %v3001, %v3226
    %v3228 = vpop.f32.mrb[0].mxu0
    %v3229 = vadd.f32 %v3005, %v3228
    %3230 = vmatprep.mubr.bf16.mxu0 0
    %3231 = vmatmul.mubr.bf16.gmra.mrb[0].mxu0 %v2962
    %v3232 = vpop.f32.mrb[0].mxu0
    %v3233 = vadd.f32 %v3001, %v3232
    %v3234 = vpop.f32.mrb[0].mxu0
    %v3235 = vadd.f32 %v3005, %v3234
    %v3236 = vpop.f32.mrb[0].mxu0
    %v3237 = vadd.f32 %v3001, %v3236
    %v3238 = vpop.f32.mrb[0].mxu0
    %v3239 = vadd.f32 %v3005, %v3238
    %3240 = vmatprep.mubr.bf16.mxu0 0
    %3241 = vmatmul.mubr.bf16.gmra.mrb[0].mxu0 %v2963
    %v3242 = vpop.f32.mrb[0].mxu0
    %v3243 = vadd.f32 %v3001, %v3242
    %v3244 = vpop.f32.mrb[0].mxu0
    %v3245 = vadd.f32 %v3005, %v3244
    %v3246 = vpop.f32.mrb[0].mxu0
    %v3247 = vadd.f32 %v3001, %v3246
    %v3248 = vpop.f32.mrb[0].mxu0
    %v3249 = vadd.f32 %v3005, %v3248
    %3250 = vdwg.mxu0
    %3251 = vmatprep.subr.bf16.mxu0 %v3117
    %3252 = vmatpush1.bf16.msra.mxu0 %v3116
    %3253 = vmatprep.subr.bf16.mxu0 %v3121
    %3254 = vmatpush1.bf16.msra.mxu0 %v3120
    %3255 = vmatprep.subr.bf16.mxu0 %v3125
    %3256 = vmatpush1.bf16.msra.mxu0 %v3124
    %3257 = vmatprep.subr.bf16.mxu0 %v3129
    %3258 = vmatpush1.bf16.msra.mxu0 %v3128
    %3259 = vmatprep.subr.bf16.mxu0 %v3133
    %3260 = vmatpush1.bf16.msra.mxu0 %v3132
    %3261 = vmatprep.subr.bf16.mxu0 %v3137
    %3262 = vmatpush1.bf16.msra.mxu0 %v3136
    %3263 = vmatprep.subr.bf16.mxu0 %v3141
    %3264 = vmatpush1.bf16.msra.mxu0 %v3140
    %3265 = vmatprep.subr.bf16.mxu0 %v3145
    %3266 = vmatpush1.bf16.msra.mxu0 %v3144
    %3267 = vmatprep.subr.bf16.mxu0 0
    %3268 = vmatpush1.bf16.msra.mxu0 0
    %3269 = vmatprep.subr.bf16.mxu0 0
    %3270 = vmatpush1.bf16.msra.mxu0 0
    %3271 = vmatprep.subr.bf16.mxu0 0
    %3272 = vmatpush1.bf16.msra.mxu0 0
    %3273 = vmatprep.subr.bf16.mxu0 0
    %3274 = vmatpush1.bf16.msra.mxu0 0
    %3275 = vmatprep.subr.bf16.mxu0 0
    %3276 = vmatpush1.bf16.msra.mxu0 0
    %3277 = vmatprep.subr.bf16.mxu0 0
    %3278 = vmatpush1.bf16.msra.mxu0 0
    %3279 = vmatprep.subr.bf16.mxu0 0
    %3280 = vmatpush1.bf16.msra.mxu0 0
    %3281 = vmatprep.subr.bf16.mxu0 0
    %3282 = vmatpush1.bf16.msra.mxu0 0
    %3283 = vmatprep.mubr.bf16.mxu0 0
    %3284 = vmatmul.mubr.bf16.gmra.mrb[0].mxu0 %v2960
    %v3285 = vpop.f32.mrb[0].mxu0
    %v3286 = vadd.f32 %v3009, %v3285
    %v3287 = vpop.f32.mrb[0].mxu0
    %v3288 = vadd.f32 %v3013, %v3287
    %v3289 = vpop.f32.mrb[0].mxu0
    %v3290 = vadd.f32 %v3009, %v3289
    %v3291 = vpop.f32.mrb[0].mxu0
    %v3292 = vadd.f32 %v3013, %v3291
    %3293 = vmatprep.mubr.bf16.mxu0 0
    %3294 = vmatmul.mubr.bf16.gmra.mrb[0].mxu0 %v2961
    %v3295 = vpop.f32.mrb[0].mxu0
    %v3296 = vadd.f32 %v3009, %v3295
    %v3297 = vpop.f32.mrb[0].mxu0
    %v3298 = vadd.f32 %v3013, %v3297
    %v3299 = vpop.f32.mrb[0].mxu0
    %v3300 = vadd.f32 %v3009, %v3299
    %v3301 = vpop.f32.mrb[0].mxu0
    %v3302 = vadd.f32 %v3013, %v3301
    %3303 = vmatprep.mubr.bf16.mxu0 0
    %3304 = vmatmul.mubr.bf16.gmra.mrb[0].mxu0 %v2962
    %v3305 = vpop.f32.mrb[0].mxu0
    %v3306 = vadd.f32 %v3009, %v3305
    %v3307 = vpop.f32.mrb[0].mxu0
    %v3308 = vadd.f32 %v3013, %v3307
    %v3309 = vpop.f32.mrb[0].mxu0
    %v3310 = vadd.f32 %v3009, %v3309
    %v3311 = vpop.f32.mrb[0].mxu0
    %v3312 = vadd.f32 %v3013, %v3311
    %3313 = vmatprep.mubr.bf16.mxu0 0
    %3314 = vmatmul.mubr.bf16.gmra.mrb[0].mxu0 %v2963
    %v3315 = vpop.f32.mrb[0].mxu0
    %v3316 = vadd.f32 %v3009, %v3315
    %v3317 = vpop.f32.mrb[0].mxu0
    %v3318 = vadd.f32 %v3013, %v3317
    %v3319 = vpop.f32.mrb[0].mxu0
    %v3320 = vadd.f32 %v3009, %v3319
    %v3321 = vpop.f32.mrb[0].mxu0
    %v3322 = vadd.f32 %v3013, %v3321
    %3323 = vdwg.mxu0
    %3324 = vst [vmem:[#allocation2] sm:$0xff] %v3213
    %3325 = vst [vmem:[#allocation2 + $0x8] sm:$0xff] %v3215
    %3326 = vst [vmem:[#allocation2 + $0x10] sm:$0xff] %v3286
    %3327 = vst [vmem:[#allocation2 + $0x18] sm:$0xff] %v3288
    %3328 = vst [vmem:[#allocation2 + $0x20] sm:$0xff] %v3217
    %3329 = vst [vmem:[#allocation2 + $0x28] sm:$0xff] %v3219
    %3330 = vst [vmem:[#allocation2 + $0x30] sm:$0xff] %v3290
    %3331 = vst [vmem:[#allocation2 + $0x38] sm:$0xff] %v3292
    %3332 = vst [vmem:[#allocation2 + $0x40] sm:$0xff] %v3223
    %3333 = vst [vmem:[#allocation2 + $0x48] sm:$0xff] %v3225
    %3334 = vst [vmem:[#allocation2 + $0x50] sm:$0xff] %v3296
    %3335 = vst [vmem:[#allocation2 + $0x58] sm:$0xff] %v3298
    %3336 = vst [vmem:[#allocation2 + $0x60] sm:$0xff] %v3227
    %3337 = vst [vmem:[#allocation2 + $0x68] sm:$0xff] %v3229
    %3338 = vst [vmem:[#allocation2 + $0x70] sm:$0xff] %v3300
    %3339 = vst [vmem:[#allocation2 + $0x78] sm:$0xff] %v3302
    %3340 = vst [vmem:[#allocation2 + $0x80] sm:$0xff] %v3233
    %3341 = vst [vmem:[#allocation2 + $0x88] sm:$0xff] %v3235
    %3342 = vst [vmem:[#allocation2 + $0x90] sm:$0xff] %v3306
    %3343 = vst [vmem:[#allocation2 + $0x98] sm:$0xff] %v3308
    %3344 = vst [vmem:[#allocation2 + $0xa0] sm:$0xff] %v3237
    %3345 = vst [vmem:[#allocation2 + $0xa8] sm:$0xff] %v3239
    %3346 = vst [vmem:[#allocation2 + $0xb0] sm:$0xff] %v3310
    %3347 = vst [vmem:[#allocation2 + $0xb8] sm:$0xff] %v3312
    %3348 = vst [vmem:[#allocation2 + $0xc0] sm:$0xff] %v3243
    %3349 = vst [vmem:[#allocation2 + $0xc8] sm:$0xff] %v3245
    %3350 = vst [vmem:[#allocation2 + $0xd0] sm:$0xff] %v3316
    %3351 = vst [vmem:[#allocation2 + $0xd8] sm:$0xff] %v3318
    %3352 = vst [vmem:[#allocation2 + $0xe0] sm:$0xff] %v3247
    %3353 = vst [vmem:[#allocation2 + $0xe8] sm:$0xff] %v3249
    %3354 = vst [vmem:[#allocation2 + $0xf0] sm:$0xff] %v3320
    %3355 = vst [vmem:[#allocation2 + $0xf8] sm:$0xff] %v3322
    %s3356 = scalar_lea.vmem [#allocation4], 8
    %v3357 = vld [vmem:[%s3356] sm:$0xff]
    %s3358 = scalar_lea.vmem [#allocation5], 8
    %v3359 = vld [vmem:[%s3358] sm:$0xff]
    %v3360 = vld [vmem:[%s457] sm:$0xff]
    %v3361 = vld [vmem:[%s457 + $0x8] sm:$0xff]
    %v3362 = vld [vmem:[%s457 + $0x10] sm:$0xff]
    %v3363 = vld [vmem:[%s457 + $0x18] sm:$0xff]
    %v3364 = vpack.c.bf16 %v3357, %v3357
    %v3365 = vld [vmem:[#allocation16] sm:$0xff]
    %v3366 = vld [vmem:[#allocation16 + $0x8] sm:$0xff]
    %v3367 = vld [vmem:[#allocation16 + $0x10] sm:$0xff]
    %v3368 = vld [vmem:[#allocation16 + $0x18] sm:$0xff]
    %v3369 = vld [vmem:[#allocation16 + $0x20] sm:$0xff]
    %v3370 = vld [vmem:[#allocation16 + $0x28] sm:$0xff]
    %v3371 = vld [vmem:[#allocation16 + $0x30] sm:$0xff]
    %v3372 = vld [vmem:[#allocation16 + $0x38] sm:$0xff]
    %v3373 = vld [vmem:[#allocation16 + $0x40] sm:$0xff]
    %v3374 = vld [vmem:[#allocation16 + $0x48] sm:$0xff]
    %v3375 = vld [vmem:[#allocation16 + $0x50] sm:$0xff]
    %v3376 = vld [vmem:[#allocation16 + $0x58] sm:$0xff]
    %v3377 = vld [vmem:[#allocation16 + $0x60] sm:$0xff]
    %v3378 = vld [vmem:[#allocation16 + $0x68] sm:$0xff]
    %v3379 = vld [vmem:[#allocation16 + $0x70] sm:$0xff]
    %v3380 = vld [vmem:[#allocation16 + $0x78] sm:$0xff]
    %v3381 = vld [vmem:[#allocation16 + $0x80] sm:$0xff]
    %v3382 = vld [vmem:[#allocation16 + $0x88] sm:$0xff]
    %v3383 = vld [vmem:[#allocation16 + $0x90] sm:$0xff]
    %v3384 = vld [vmem:[#allocation16 + $0x98] sm:$0xff]
    %v3385 = vld [vmem:[#allocation16 + $0xa0] sm:$0xff]
    %v3386 = vld [vmem:[#allocation16 + $0xa8] sm:$0xff]
    %v3387 = vld [vmem:[#allocation16 + $0xb0] sm:$0xff]
    %v3388 = vld [vmem:[#allocation16 + $0xb8] sm:$0xff]
    %v3389 = vld [vmem:[#allocation16 + $0xc0] sm:$0xff]
    %v3390 = vld [vmem:[#allocation16 + $0xc8] sm:$0xff]
    %v3391 = vld [vmem:[#allocation16 + $0xd0] sm:$0xff]
    %v3392 = vld [vmem:[#allocation16 + $0xd8] sm:$0xff]
    %v3393 = vld [vmem:[#allocation16 + $0xe0] sm:$0xff]
    %v3394 = vld [vmem:[#allocation16 + $0xe8] sm:$0xff]
    %v3395 = vld [vmem:[#allocation16 + $0xf0] sm:$0xff]
    %v3396 = vld [vmem:[#allocation16 + $0xf8] sm:$0xff]
    %v3429 = vunpack.c.l.b16 %v3365
    %v3430 = vunpack.c.h.b16 %v3365
    %v3431 = vunpack.c.l.b16 %v3366
    %v3432 = vunpack.c.h.b16 %v3366
    %v3433 = vunpack.c.l.b16 %v3367
    %v3434 = vunpack.c.h.b16 %v3367
    %v3435 = vunpack.c.l.b16 %v3368
    %v3436 = vunpack.c.h.b16 %v3368
    %v3437 = vunpack.c.l.b16 %v3369
    %v3438 = vunpack.c.h.b16 %v3369
    %v3439 = vunpack.c.l.b16 %v3370
    %v3440 = vunpack.c.h.b16 %v3370
    %v3441 = vunpack.c.l.b16 %v3371
    %v3442 = vunpack.c.h.b16 %v3371
    %v3443 = vunpack.c.l.b16 %v3372
    %v3444 = vunpack.c.h.b16 %v3372
    %v3445 = vunpack.c.l.b16 %v3373
    %v3446 = vunpack.c.h.b16 %v3373
    %v3447 = vunpack.c.l.b16 %v3374
    %v3448 = vunpack.c.h.b16 %v3374
    %v3449 = vunpack.c.l.b16 %v3375
    %v3450 = vunpack.c.h.b16 %v3375
    %v3451 = vunpack.c.l.b16 %v3376
    %v3452 = vunpack.c.h.b16 %v3376
    %v3453 = vunpack.c.l.b16 %v3377
    %v3454 = vunpack.c.h.b16 %v3377
    %v3455 = vunpack.c.l.b16 %v3378
    %v3456 = vunpack.c.h.b16 %v3378
    %v3457 = vunpack.c.l.b16 %v3379
    %v3458 = vunpack.c.h.b16 %v3379
    %v3459 = vunpack.c.l.b16 %v3380
    %v3460 = vunpack.c.h.b16 %v3380
    %v3461 = vunpack.c.l.b16 %v3381
    %v3462 = vunpack.c.h.b16 %v3381
    %v3463 = vunpack.c.l.b16 %v3382
    %v3464 = vunpack.c.h.b16 %v3382
    %v3465 = vunpack.c.l.b16 %v3383
    %v3466 = vunpack.c.h.b16 %v3383
    %v3467 = vunpack.c.l.b16 %v3384
    %v3468 = vunpack.c.h.b16 %v3384
    %v3469 = vunpack.c.l.b16 %v3385
    %v3470 = vunpack.c.h.b16 %v3385
    %v3471 = vunpack.c.l.b16 %v3386
    %v3472 = vunpack.c.h.b16 %v3386
    %v3473 = vunpack.c.l.b16 %v3387
    %v3474 = vunpack.c.h.b16 %v3387
    %v3475 = vunpack.c.l.b16 %v3388
    %v3476 = vunpack.c.h.b16 %v3388
    %v3477 = vunpack.c.l.b16 %v3389
    %v3478 = vunpack.c.h.b16 %v3389
    %v3479 = vunpack.c.l.b16 %v3390
    %v3480 = vunpack.c.h.b16 %v3390
    %v3481 = vunpack.c.l.b16 %v3391
    %v3482 = vunpack.c.h.b16 %v3391
    %v3483 = vunpack.c.l.b16 %v3392
    %v3484 = vunpack.c.h.b16 %v3392
    %v3485 = vunpack.c.l.b16 %v3393
    %v3486 = vunpack.c.h.b16 %v3393
    %v3487 = vunpack.c.l.b16 %v3394
    %v3488 = vunpack.c.h.b16 %v3394
    %v3489 = vunpack.c.l.b16 %v3395
    %v3490 = vunpack.c.h.b16 %v3395
    %v3491 = vunpack.c.l.b16 %v3396
    %v3492 = vunpack.c.h.b16 %v3396
    %v3493 = vpack.c.b16 %v3433, %v3429
    %v3494 = vpack.c.b16 %v3434, %v3430
    %v3495 = vpack.c.b16 %v3435, %v3431
    %v3496 = vpack.c.b16 %v3436, %v3432
    %v3497 = vpack.c.b16 %v3441, %v3437
    %v3498 = vpack.c.b16 %v3442, %v3438
    %v3499 = vpack.c.b16 %v3443, %v3439
    %v3500 = vpack.c.b16 %v3444, %v3440
    %v3501 = vpack.c.b16 %v3449, %v3445
    %v3502 = vpack.c.b16 %v3450, %v3446
    %v3503 = vpack.c.b16 %v3451, %v3447
    %v3504 = vpack.c.b16 %v3452, %v3448
    %v3505 = vpack.c.b16 %v3457, %v3453
    %v3506 = vpack.c.b16 %v3458, %v3454
    %v3507 = vpack.c.b16 %v3459, %v3455
    %v3508 = vpack.c.b16 %v3460, %v3456
    %v3509 = vpack.c.b16 %v3465, %v3461
    %v3510 = vpack.c.b16 %v3466, %v3462
    %v3511 = vpack.c.b16 %v3467, %v3463
    %v3512 = vpack.c.b16 %v3468, %v3464
    %v3513 = vpack.c.b16 %v3473, %v3469
    %v3514 = vpack.c.b16 %v3474, %v3470
    %v3515 = vpack.c.b16 %v3475, %v3471
    %v3516 = vpack.c.b16 %v3476, %v3472
    %v3517 = vpack.c.b16 %v3481, %v3477
    %v3518 = vpack.c.b16 %v3482, %v3478
    %v3519 = vpack.c.b16 %v3483, %v3479
    %v3520 = vpack.c.b16 %v3484, %v3480
    %v3521 = vpack.c.b16 %v3489, %v3485
    %v3522 = vpack.c.b16 %v3490, %v3486
    %v3523 = vpack.c.b16 %v3491, %v3487
    %v3524 = vpack.c.b16 %v3492, %v3488
    %3557 = vmatprep.subr.bf16.mxu0 %v3494
    %3558 = vmatpush1.bf16.msra.mxu0 %v3493
    %3559 = vmatprep.subr.bf16.mxu0 %v3498
    %3560 = vmatpush1.bf16.msra.mxu0 %v3497
    %3561 = vmatprep.subr.bf16.mxu0 %v3502
    %3562 = vmatpush1.bf16.msra.mxu0 %v3501
    %3563 = vmatprep.subr.bf16.mxu0 %v3506
    %3564 = vmatpush1.bf16.msra.mxu0 %v3505
    %3565 = vmatprep.subr.bf16.mxu0 %v3510
    %3566 = vmatpush1.bf16.msra.mxu0 %v3509
    %3567 = vmatprep.subr.bf16.mxu0 %v3514
    %3568 = vmatpush1.bf16.msra.mxu0 %v3513
    %3569 = vmatprep.subr.bf16.mxu0 %v3518
    %3570 = vmatpush1.bf16.msra.mxu0 %v3517
    %3571 = vmatprep.subr.bf16.mxu0 %v3522
    %3572 = vmatpush1.bf16.msra.mxu0 %v3521
    %3573 = vmatprep.subr.bf16.mxu0 0
    %3574 = vmatpush1.bf16.msra.mxu0 0
    %3575 = vmatprep.subr.bf16.mxu0 0
    %3576 = vmatpush1.bf16.msra.mxu0 0
    %3577 = vmatprep.subr.bf16.mxu0 0
    %3578 = vmatpush1.bf16.msra.mxu0 0
    %3579 = vmatprep.subr.bf16.mxu0 0
    %3580 = vmatpush1.bf16.msra.mxu0 0
    %3581 = vmatprep.subr.bf16.mxu0 0
    %3582 = vmatpush1.bf16.msra.mxu0 0
    %3583 = vmatprep.subr.bf16.mxu0 0
    %3584 = vmatpush1.bf16.msra.mxu0 0
    %3585 = vmatprep.subr.bf16.mxu0 0
    %3586 = vmatpush1.bf16.msra.mxu0 0
    %3587 = vmatprep.subr.bf16.mxu0 0
    %3588 = vmatpush1.bf16.msra.mxu0 0
    %3589 = vmatprep.mubr.bf16.mxu0 0
    %3590 = vmatmul.mubr.bf16.gmra.mrb[0].mxu0 %v3364
    %v3591 = vpop.f32.mrb[0].mxu0
    %v3592 = vadd.f32 0.0, %v3591
    %v3593 = vpop.f32.mrb[0].mxu0
    %v3594 = vadd.f32 0.0, %v3593
    %v3595 = vpop.f32.mrb[0].mxu0
    %v3596 = vpop.f32.mrb[0].mxu0
    %3597 = vdwg.mxu0
    %3598 = vmatprep.subr.bf16.mxu0 %v3496
    %3599 = vmatpush1.bf16.msra.mxu0 %v3495
    %3600 = vmatprep.subr.bf16.mxu0 %v3500
    %3601 = vmatpush1.bf16.msra.mxu0 %v3499
    %3602 = vmatprep.subr.bf16.mxu0 %v3504
    %3603 = vmatpush1.bf16.msra.mxu0 %v3503
    %3604 = vmatprep.subr.bf16.mxu0 %v3508
    %3605 = vmatpush1.bf16.msra.mxu0 %v3507
    %3606 = vmatprep.subr.bf16.mxu0 %v3512
    %3607 = vmatpush1.bf16.msra.mxu0 %v3511
    %3608 = vmatprep.subr.bf16.mxu0 %v3516
    %3609 = vmatpush1.bf16.msra.mxu0 %v3515
    %3610 = vmatprep.subr.bf16.mxu0 %v3520
    %3611 = vmatpush1.bf16.msra.mxu0 %v3519
    %3612 = vmatprep.subr.bf16.mxu0 %v3524
    %3613 = vmatpush1.bf16.msra.mxu0 %v3523
    %3614 = vmatprep.subr.bf16.mxu0 0
    %3615 = vmatpush1.bf16.msra.mxu0 0
    %3616 = vmatprep.subr.bf16.mxu0 0
    %3617 = vmatpush1.bf16.msra.mxu0 0
    %3618 = vmatprep.subr.bf16.mxu0 0
    %3619 = vmatpush1.bf16.msra.mxu0 0
    %3620 = vmatprep.subr.bf16.mxu0 0
    %3621 = vmatpush1.bf16.msra.mxu0 0
    %3622 = vmatprep.subr.bf16.mxu0 0
    %3623 = vmatpush1.bf16.msra.mxu0 0
    %3624 = vmatprep.subr.bf16.mxu0 0
    %3625 = vmatpush1.bf16.msra.mxu0 0
    %3626 = vmatprep.subr.bf16.mxu0 0
    %3627 = vmatpush1.bf16.msra.mxu0 0
    %3628 = vmatprep.subr.bf16.mxu0 0
    %3629 = vmatpush1.bf16.msra.mxu0 0
    %3630 = vmatprep.mubr.bf16.mxu0 0
    %3631 = vmatmul.mubr.bf16.gmra.mrb[0].mxu0 %v3364
    %v3632 = vpop.f32.mrb[0].mxu0
    %v3633 = vadd.f32 0.0, %v3632
    %v3634 = vpop.f32.mrb[0].mxu0
    %v3635 = vadd.f32 0.0, %v3634
    %v3636 = vpop.f32.mrb[0].mxu0
    %v3637 = vpop.f32.mrb[0].mxu0
    %3638 = vdwg.mxu0
    %v3639 = vadd.f32 %v3360, %v3592
    %v3640 = vadd.f32 %v3361, %v3594
    %v3641 = vadd.f32 %v3362, %v3633
    %v3642 = vadd.f32 %v3363, %v3635
    %v3643 = vxor.u32 %v3639, 2147483648
    %v3644 = vmul.f32 %v3643, 1.442695
    %v3645 = vpow.pop %v3644
    %v3646 = vadd.f32 %v3645, 1.0
    %v3647 = vrcp.pop %v3646
    %v3648 = vmul.f32 1.0, %v3647
    %v3649 = vxor.u32 %v3640, 2147483648
    %v3650 = vmul.f32 %v3649, 1.442695
    %v3651 = vpow.pop %v3650
    %v3652 = vadd.f32 %v3651, 1.0
    %v3653 = vrcp.pop %v3652
    %v3654 = vmul.f32 1.0, %v3653
    %v3655 = vtanh.pop %v3641
    %v3656 = vxor.u32 %v3642, 2147483648
    %v3657 = vmul.f32 %v3656, 1.442695
    %v3658 = vpow.pop %v3657
    %v3659 = vadd.f32 %v3658, 1.0
    %v3660 = vrcp.pop %v3659
    %v3661 = vmul.f32 1.0, %v3660
    %v3662 = vmul.f32 %v3654, %v3359
    %v3663 = vmul.f32 %v3648, %v3655
    %v3664 = vadd.f32 %v3662, %v3663
    %v3665 = vtanh.pop %v3664
    %v3666 = vmul.f32 %v3661, %v3665
    %3667 = vst [vmem:[#allocation3] sm:$0xff] %v3666
    %v3668 = vld [vmem:[%s768] sm:$0xff]
    %v3669 = vld [vmem:[%s768 + $0x8] sm:$0xff]
    %v3670 = vld [vmem:[%s768 + $0x10] sm:$0xff]
    %v3671 = vld [vmem:[%s768 + $0x18] sm:$0xff]
    %v3672 = vpack.c.bf16 %v3666, %v3666
    %v3673 = vld [vmem:[#allocation16] sm:$0xff]
    %v3674 = vld [vmem:[#allocation16 + $0x8] sm:$0xff]
    %v3675 = vld [vmem:[#allocation16 + $0x10] sm:$0xff]
    %v3676 = vld [vmem:[#allocation16 + $0x18] sm:$0xff]
    %v3677 = vld [vmem:[#allocation16 + $0x20] sm:$0xff]
    %v3678 = vld [vmem:[#allocation16 + $0x28] sm:$0xff]
    %v3679 = vld [vmem:[#allocation16 + $0x30] sm:$0xff]
    %v3680 = vld [vmem:[#allocation16 + $0x38] sm:$0xff]
    %v3681 = vld [vmem:[#allocation16 + $0x40] sm:$0xff]
    %v3682 = vld [vmem:[#allocation16 + $0x48] sm:$0xff]
    %v3683 = vld [vmem:[#allocation16 + $0x50] sm:$0xff]
    %v3684 = vld [vmem:[#allocation16 + $0x58] sm:$0xff]
    %v3685 = vld [vmem:[#allocation16 + $0x60] sm:$0xff]
    %v3686 = vld [vmem:[#allocation16 + $0x68] sm:$0xff]
    %v3687 = vld [vmem:[#allocation16 + $0x70] sm:$0xff]
    %v3688 = vld [vmem:[#allocation16 + $0x78] sm:$0xff]
    %v3689 = vld [vmem:[#allocation16 + $0x80] sm:$0xff]
    %v3690 = vld [vmem:[#allocation16 + $0x88] sm:$0xff]
    %v3691 = vld [vmem:[#allocation16 + $0x90] sm:$0xff]
    %v3692 = vld [vmem:[#allocation16 + $0x98] sm:$0xff]
    %v3693 = vld [vmem:[#allocation16 + $0xa0] sm:$0xff]
    %v3694 = vld [vmem:[#allocation16 + $0xa8] sm:$0xff]
    %v3695 = vld [vmem:[#allocation16 + $0xb0] sm:$0xff]
    %v3696 = vld [vmem:[#allocation16 + $0xb8] sm:$0xff]
    %v3697 = vld [vmem:[#allocation16 + $0xc0] sm:$0xff]
    %v3698 = vld [vmem:[#allocation16 + $0xc8] sm:$0xff]
    %v3699 = vld [vmem:[#allocation16 + $0xd0] sm:$0xff]
    %v3700 = vld [vmem:[#allocation16 + $0xd8] sm:$0xff]
    %v3701 = vld [vmem:[#allocation16 + $0xe0] sm:$0xff]
    %v3702 = vld [vmem:[#allocation16 + $0xe8] sm:$0xff]
    %v3703 = vld [vmem:[#allocation16 + $0xf0] sm:$0xff]
    %v3704 = vld [vmem:[#allocation16 + $0xf8] sm:$0xff]
    %v3737 = vunpack.c.l.b16 %v3673
    %v3738 = vunpack.c.h.b16 %v3673
    %v3739 = vunpack.c.l.b16 %v3674
    %v3740 = vunpack.c.h.b16 %v3674
    %v3741 = vunpack.c.l.b16 %v3675
    %v3742 = vunpack.c.h.b16 %v3675
    %v3743 = vunpack.c.l.b16 %v3676
    %v3744 = vunpack.c.h.b16 %v3676
    %v3745 = vunpack.c.l.b16 %v3677
    %v3746 = vunpack.c.h.b16 %v3677
    %v3747 = vunpack.c.l.b16 %v3678
    %v3748 = vunpack.c.h.b16 %v3678
    %v3749 = vunpack.c.l.b16 %v3679
    %v3750 = vunpack.c.h.b16 %v3679
    %v3751 = vunpack.c.l.b16 %v3680
    %v3752 = vunpack.c.h.b16 %v3680
    %v3753 = vunpack.c.l.b16 %v3681
    %v3754 = vunpack.c.h.b16 %v3681
    %v3755 = vunpack.c.l.b16 %v3682
    %v3756 = vunpack.c.h.b16 %v3682
    %v3757 = vunpack.c.l.b16 %v3683
    %v3758 = vunpack.c.h.b16 %v3683
    %v3759 = vunpack.c.l.b16 %v3684
    %v3760 = vunpack.c.h.b16 %v3684
    %v3761 = vunpack.c.l.b16 %v3685
    %v3762 = vunpack.c.h.b16 %v3685
    %v3763 = vunpack.c.l.b16 %v3686
    %v3764 = vunpack.c.h.b16 %v3686
    %v3765 = vunpack.c.l.b16 %v3687
    %v3766 = vunpack.c.h.b16 %v3687
    %v3767 = vunpack.c.l.b16 %v3688
    %v3768 = vunpack.c.h.b16 %v3688
    %v3769 = vunpack.c.l.b16 %v3689
    %v3770 = vunpack.c.h.b16 %v3689
    %v3771 = vunpack.c.l.b16 %v3690
    %v3772 = vunpack.c.h.b16 %v3690
    %v3773 = vunpack.c.l.b16 %v3691
    %v3774 = vunpack.c.h.b16 %v3691
    %v3775 = vunpack.c.l.b16 %v3692
    %v3776 = vunpack.c.h.b16 %v3692
    %v3777 = vunpack.c.l.b16 %v3693
    %v3778 = vunpack.c.h.b16 %v3693
    %v3779 = vunpack.c.l.b16 %v3694
    %v3780 = vunpack.c.h.b16 %v3694
    %v3781 = vunpack.c.l.b16 %v3695
    %v3782 = vunpack.c.h.b16 %v3695
    %v3783 = vunpack.c.l.b16 %v3696
    %v3784 = vunpack.c.h.b16 %v3696
    %v3785 = vunpack.c.l.b16 %v3697
    %v3786 = vunpack.c.h.b16 %v3697
    %v3787 = vunpack.c.l.b16 %v3698
    %v3788 = vunpack.c.h.b16 %v3698
    %v3789 = vunpack.c.l.b16 %v3699
    %v3790 = vunpack.c.h.b16 %v3699
    %v3791 = vunpack.c.l.b16 %v3700
    %v3792 = vunpack.c.h.b16 %v3700
    %v3793 = vunpack.c.l.b16 %v3701
    %v3794 = vunpack.c.h.b16 %v3701
    %v3795 = vunpack.c.l.b16 %v3702
    %v3796 = vunpack.c.h.b16 %v3702
    %v3797 = vunpack.c.l.b16 %v3703
    %v3798 = vunpack.c.h.b16 %v3703
    %v3799 = vunpack.c.l.b16 %v3704
    %v3800 = vunpack.c.h.b16 %v3704
    %v3801 = vpack.c.b16 %v3741, %v3737
    %v3802 = vpack.c.b16 %v3742, %v3738
    %v3803 = vpack.c.b16 %v3743, %v3739
    %v3804 = vpack.c.b16 %v3744, %v3740
    %v3805 = vpack.c.b16 %v3749, %v3745
    %v3806 = vpack.c.b16 %v3750, %v3746
    %v3807 = vpack.c.b16 %v3751, %v3747
    %v3808 = vpack.c.b16 %v3752, %v3748
    %v3809 = vpack.c.b16 %v3757, %v3753
    %v3810 = vpack.c.b16 %v3758, %v3754
    %v3811 = vpack.c.b16 %v3759, %v3755
    %v3812 = vpack.c.b16 %v3760, %v3756
    %v3813 = vpack.c.b16 %v3765, %v3761
    %v3814 = vpack.c.b16 %v3766, %v3762
    %v3815 = vpack.c.b16 %v3767, %v3763
    %v3816 = vpack.c.b16 %v3768, %v3764
    %v3817 = vpack.c.b16 %v3773, %v3769
    %v3818 = vpack.c.b16 %v3774, %v3770
    %v3819 = vpack.c.b16 %v3775, %v3771
    %v3820 = vpack.c.b16 %v3776, %v3772
    %v3821 = vpack.c.b16 %v3781, %v3777
    %v3822 = vpack.c.b16 %v3782, %v3778
    %v3823 = vpack.c.b16 %v3783, %v3779
    %v3824 = vpack.c.b16 %v3784, %v3780
    %v3825 = vpack.c.b16 %v3789, %v3785
    %v3826 = vpack.c.b16 %v3790, %v3786
    %v3827 = vpack.c.b16 %v3791, %v3787
    %v3828 = vpack.c.b16 %v3792, %v3788
    %v3829 = vpack.c.b16 %v3797, %v3793
    %v3830 = vpack.c.b16 %v3798, %v3794
    %v3831 = vpack.c.b16 %v3799, %v3795
    %v3832 = vpack.c.b16 %v3800, %v3796
    %3865 = vmatprep.subr.bf16.mxu0 %v3802
    %3866 = vmatpush1.bf16.msra.mxu0 %v3801
    %3867 = vmatprep.subr.bf16.mxu0 %v3806
    %3868 = vmatpush1.bf16.msra.mxu0 %v3805
    %3869 = vmatprep.subr.bf16.mxu0 %v3810
    %3870 = vmatpush1.bf16.msra.mxu0 %v3809
    %3871 = vmatprep.subr.bf16.mxu0 %v3814
    %3872 = vmatpush1.bf16.msra.mxu0 %v3813
    %3873 = vmatprep.subr.bf16.mxu0 %v3818
    %3874 = vmatpush1.bf16.msra.mxu0 %v3817
    %3875 = vmatprep.subr.bf16.mxu0 %v3822
    %3876 = vmatpush1.bf16.msra.mxu0 %v3821
    %3877 = vmatprep.subr.bf16.mxu0 %v3826
    %3878 = vmatpush1.bf16.msra.mxu0 %v3825
    %3879 = vmatprep.subr.bf16.mxu0 %v3830
    %3880 = vmatpush1.bf16.msra.mxu0 %v3829
    %3881 = vmatprep.subr.bf16.mxu0 0
    %3882 = vmatpush1.bf16.msra.mxu0 0
    %3883 = vmatprep.subr.bf16.mxu0 0
    %3884 = vmatpush1.bf16.msra.mxu0 0
    %3885 = vmatprep.subr.bf16.mxu0 0
    %3886 = vmatpush1.bf16.msra.mxu0 0
    %3887 = vmatprep.subr.bf16.mxu0 0
    %3888 = vmatpush1.bf16.msra.mxu0 0
    %3889 = vmatprep.subr.bf16.mxu0 0
    %3890 = vmatpush1.bf16.msra.mxu0 0
    %3891 = vmatprep.subr.bf16.mxu0 0
    %3892 = vmatpush1.bf16.msra.mxu0 0
    %3893 = vmatprep.subr.bf16.mxu0 0
    %3894 = vmatpush1.bf16.msra.mxu0 0
    %3895 = vmatprep.subr.bf16.mxu0 0
    %3896 = vmatpush1.bf16.msra.mxu0 0
    %3897 = vmatprep.mubr.bf16.mxu0 0
    %3898 = vmatmul.mubr.bf16.gmra.mrb[0].mxu0 %v3672
    %v3899 = vpop.f32.mrb[0].mxu0
    %v3900 = vadd.f32 0.0, %v3899
    %v3901 = vpop.f32.mrb[0].mxu0
    %v3902 = vadd.f32 0.0, %v3901
    %v3903 = vpop.f32.mrb[0].mxu0
    %v3904 = vpop.f32.mrb[0].mxu0
    %3905 = vdwg.mxu0
    %3906 = vmatprep.subr.bf16.mxu0 %v3804
    %3907 = vmatpush1.bf16.msra.mxu0 %v3803
    %3908 = vmatprep.subr.bf16.mxu0 %v3808
    %3909 = vmatpush1.bf16.msra.mxu0 %v3807
    %3910 = vmatprep.subr.bf16.mxu0 %v3812
    %3911 = vmatpush1.bf16.msra.mxu0 %v3811
    %3912 = vmatprep.subr.bf16.mxu0 %v3816
    %3913 = vmatpush1.bf16.msra.mxu0 %v3815
    %3914 = vmatprep.subr.bf16.mxu0 %v3820
    %3915 = vmatpush1.bf16.msra.mxu0 %v3819
    %3916 = vmatprep.subr.bf16.mxu0 %v3824
    %3917 = vmatpush1.bf16.msra.mxu0 %v3823
    %3918 = vmatprep.subr.bf16.mxu0 %v3828
    %3919 = vmatpush1.bf16.msra.mxu0 %v3827
    %3920 = vmatprep.subr.bf16.mxu0 %v3832
    %3921 = vmatpush1.bf16.msra.mxu0 %v3831
    %3922 = vmatprep.subr.bf16.mxu0 0
    %3923 = vmatpush1.bf16.msra.mxu0 0
    %3924 = vmatprep.subr.bf16.mxu0 0
    %3925 = vmatpush1.bf16.msra.mxu0 0
    %3926 = vmatprep.subr.bf16.mxu0 0
    %3927 = vmatpush1.bf16.msra.mxu0 0
    %3928 = vmatprep.subr.bf16.mxu0 0
    %3929 = vmatpush1.bf16.msra.mxu0 0
    %3930 = vmatprep.subr.bf16.mxu0 0
    %3931 = vmatpush1.bf16.msra.mxu0 0
    %3932 = vmatprep.subr.bf16.mxu0 0
    %3933 = vmatpush1.bf16.msra.mxu0 0
    %3934 = vmatprep.subr.bf16.mxu0 0
    %3935 = vmatpush1.bf16.msra.mxu0 0
    %3936 = vmatprep.subr.bf16.mxu0 0
    %3937 = vmatpush1.bf16.msra.mxu0 0
    %3938 = vmatprep.mubr.bf16.mxu0 0
    %3939 = vmatmul.mubr.bf16.gmra.mrb[0].mxu0 %v3672
    %v3940 = vpop.f32.mrb[0].mxu0
    %v3941 = vadd.f32 0.0, %v3940
    %v3942 = vpop.f32.mrb[0].mxu0
    %v3943 = vadd.f32 0.0, %v3942
    %v3944 = vpop.f32.mrb[0].mxu0
    %v3945 = vpop.f32.mrb[0].mxu0
    %3946 = vdwg.mxu0
    %v3947 = vadd.f32 %v3668, %v3900
    %v3948 = vadd.f32 %v3669, %v3902
    %v3949 = vadd.f32 %v3670, %v3941
    %v3950 = vadd.f32 %v3671, %v3943
    %v3951 = vxor.u32 %v3947, 2147483648
    %v3952 = vmul.f32 %v3951, 1.442695
    %v3953 = vpow.pop %v3952
    %v3954 = vadd.f32 %v3953, 1.0
    %v3955 = vrcp.pop %v3954
    %v3956 = vmul.f32 1.0, %v3955
    %v3957 = vxor.u32 %v3948, 2147483648
    %v3958 = vmul.f32 %v3957, 1.442695
    %v3959 = vpow.pop %v3958
    %v3960 = vadd.f32 %v3959, 1.0
    %v3961 = vrcp.pop %v3960
    %v3962 = vmul.f32 1.0, %v3961
    %v3963 = vtanh.pop %v3949
    %v3964 = vxor.u32 %v3950, 2147483648
    %v3965 = vmul.f32 %v3964, 1.442695
    %v3966 = vpow.pop %v3965
    %v3967 = vadd.f32 %v3966, 1.0
    %v3968 = vrcp.pop %v3967
    %v3969 = vmul.f32 1.0, %v3968
    %v3970 = vmul.f32 %v3962, %v3664
    %v3971 = vmul.f32 %v3956, %v3963
    %v3972 = vadd.f32 %v3970, %v3971
    %v3973 = vtanh.pop %v3972
    %v3974 = vmul.f32 %v3969, %v3973
    %3975 = vst [vmem:[%s1076] sm:$0xff] %v3974
    %v3976 = vld [vmem:[%s1080] sm:$0xff]
    %v3977 = vld [vmem:[%s1080 + $0x8] sm:$0xff]
    %v3978 = vld [vmem:[%s1080 + $0x10] sm:$0xff]
    %v3979 = vld [vmem:[%s1080 + $0x18] sm:$0xff]
    %v3980 = vpack.c.bf16 %v3974, %v3974
    %v3981 = vld [vmem:[#allocation16] sm:$0xff]
    %v3982 = vld [vmem:[#allocation16 + $0x8] sm:$0xff]
    %v3983 = vld [vmem:[#allocation16 + $0x10] sm:$0xff]
    %v3984 = vld [vmem:[#allocation16 + $0x18] sm:$0xff]
    %v3985 = vld [vmem:[#allocation16 + $0x20] sm:$0xff]
    %v3986 = vld [vmem:[#allocation16 + $0x28] sm:$0xff]
    %v3987 = vld [vmem:[#allocation16 + $0x30] sm:$0xff]
    %v3988 = vld [vmem:[#allocation16 + $0x38] sm:$0xff]
    %v3989 = vld [vmem:[#allocation16 + $0x40] sm:$0xff]
    %v3990 = vld [vmem:[#allocation16 + $0x48] sm:$0xff]
    %v3991 = vld [vmem:[#allocation16 + $0x50] sm:$0xff]
    %v3992 = vld [vmem:[#allocation16 + $0x58] sm:$0xff]
    %v3993 = vld [vmem:[#allocation16 + $0x60] sm:$0xff]
    %v3994 = vld [vmem:[#allocation16 + $0x68] sm:$0xff]
    %v3995 = vld [vmem:[#allocation16 + $0x70] sm:$0xff]
    %v3996 = vld [vmem:[#allocation16 + $0x78] sm:$0xff]
    %v3997 = vld [vmem:[#allocation16 + $0x80] sm:$0xff]
    %v3998 = vld [vmem:[#allocation16 + $0x88] sm:$0xff]
    %v3999 = vld [vmem:[#allocation16 + $0x90] sm:$0xff]
    %v4000 = vld [vmem:[#allocation16 + $0x98] sm:$0xff]
    %v4001 = vld [vmem:[#allocation16 + $0xa0] sm:$0xff]
    %v4002 = vld [vmem:[#allocation16 + $0xa8] sm:$0xff]
    %v4003 = vld [vmem:[#allocation16 + $0xb0] sm:$0xff]
    %v4004 = vld [vmem:[#allocation16 + $0xb8] sm:$0xff]
    %v4005 = vld [vmem:[#allocation16 + $0xc0] sm:$0xff]
    %v4006 = vld [vmem:[#allocation16 + $0xc8] sm:$0xff]
    %v4007 = vld [vmem:[#allocation16 + $0xd0] sm:$0xff]
    %v4008 = vld [vmem:[#allocation16 + $0xd8] sm:$0xff]
    %v4009 = vld [vmem:[#allocation16 + $0xe0] sm:$0xff]
    %v4010 = vld [vmem:[#allocation16 + $0xe8] sm:$0xff]
    %v4011 = vld [vmem:[#allocation16 + $0xf0] sm:$0xff]
    %v4012 = vld [vmem:[#allocation16 + $0xf8] sm:$0xff]
    %v4045 = vunpack.c.l.b16 %v3981
    %v4046 = vunpack.c.h.b16 %v3981
    %v4047 = vunpack.c.l.b16 %v3982
    %v4048 = vunpack.c.h.b16 %v3982
    %v4049 = vunpack.c.l.b16 %v3983
    %v4050 = vunpack.c.h.b16 %v3983
    %v4051 = vunpack.c.l.b16 %v3984
    %v4052 = vunpack.c.h.b16 %v3984
    %v4053 = vunpack.c.l.b16 %v3985
    %v4054 = vunpack.c.h.b16 %v3985
    %v4055 = vunpack.c.l.b16 %v3986
    %v4056 = vunpack.c.h.b16 %v3986
    %v4057 = vunpack.c.l.b16 %v3987
    %v4058 = vunpack.c.h.b16 %v3987
    %v4059 = vunpack.c.l.b16 %v3988
    %v4060 = vunpack.c.h.b16 %v3988
    %v4061 = vunpack.c.l.b16 %v3989
    %v4062 = vunpack.c.h.b16 %v3989
    %v4063 = vunpack.c.l.b16 %v3990
    %v4064 = vunpack.c.h.b16 %v3990
    %v4065 = vunpack.c.l.b16 %v3991
    %v4066 = vunpack.c.h.b16 %v3991
    %v4067 = vunpack.c.l.b16 %v3992
    %v4068 = vunpack.c.h.b16 %v3992
    %v4069 = vunpack.c.l.b16 %v3993
    %v4070 = vunpack.c.h.b16 %v3993
    %v4071 = vunpack.c.l.b16 %v3994
    %v4072 = vunpack.c.h.b16 %v3994
    %v4073 = vunpack.c.l.b16 %v3995
    %v4074 = vunpack.c.h.b16 %v3995
    %v4075 = vunpack.c.l.b16 %v3996
    %v4076 = vunpack.c.h.b16 %v3996
    %v4077 = vunpack.c.l.b16 %v3997
    %v4078 = vunpack.c.h.b16 %v3997
    %v4079 = vunpack.c.l.b16 %v3998
    %v4080 = vunpack.c.h.b16 %v3998
    %v4081 = vunpack.c.l.b16 %v3999
    %v4082 = vunpack.c.h.b16 %v3999
    %v4083 = vunpack.c.l.b16 %v4000
    %v4084 = vunpack.c.h.b16 %v4000
    %v4085 = vunpack.c.l.b16 %v4001
    %v4086 = vunpack.c.h.b16 %v4001
    %v4087 = vunpack.c.l.b16 %v4002
    %v4088 = vunpack.c.h.b16 %v4002
    %v4089 = vunpack.c.l.b16 %v4003
    %v4090 = vunpack.c.h.b16 %v4003
    %v4091 = vunpack.c.l.b16 %v4004
    %v4092 = vunpack.c.h.b16 %v4004
    %v4093 = vunpack.c.l.b16 %v4005
    %v4094 = vunpack.c.h.b16 %v4005
    %v4095 = vunpack.c.l.b16 %v4006
    %v4096 = vunpack.c.h.b16 %v4006
    %v4097 = vunpack.c.l.b16 %v4007
    %v4098 = vunpack.c.h.b16 %v4007
    %v4099 = vunpack.c.l.b16 %v4008
    %v4100 = vunpack.c.h.b16 %v4008
    %v4101 = vunpack.c.l.b16 %v4009
    %v4102 = vunpack.c.h.b16 %v4009
    %v4103 = vunpack.c.l.b16 %v4010
    %v4104 = vunpack.c.h.b16 %v4010
    %v4105 = vunpack.c.l.b16 %v4011
    %v4106 = vunpack.c.h.b16 %v4011
    %v4107 = vunpack.c.l.b16 %v4012
    %v4108 = vunpack.c.h.b16 %v4012
    %v4109 = vpack.c.b16 %v4049, %v4045
    %v4110 = vpack.c.b16 %v4050, %v4046
    %v4111 = vpack.c.b16 %v4051, %v4047
    %v4112 = vpack.c.b16 %v4052, %v4048
    %v4113 = vpack.c.b16 %v4057, %v4053
    %v4114 = vpack.c.b16 %v4058, %v4054
    %v4115 = vpack.c.b16 %v4059, %v4055
    %v4116 = vpack.c.b16 %v4060, %v4056
    %v4117 = vpack.c.b16 %v4065, %v4061
    %v4118 = vpack.c.b16 %v4066, %v4062
    %v4119 = vpack.c.b16 %v4067, %v4063
    %v4120 = vpack.c.b16 %v4068, %v4064
    %v4121 = vpack.c.b16 %v4073, %v4069
    %v4122 = vpack.c.b16 %v4074, %v4070
    %v4123 = vpack.c.b16 %v4075, %v4071
    %v4124 = vpack.c.b16 %v4076, %v4072
    %v4125 = vpack.c.b16 %v4081, %v4077
    %v4126 = vpack.c.b16 %v4082, %v4078
    %v4127 = vpack.c.b16 %v4083, %v4079
    %v4128 = vpack.c.b16 %v4084, %v4080
    %v4129 = vpack.c.b16 %v4089, %v4085
    %v4130 = vpack.c.b16 %v4090, %v4086
    %v4131 = vpack.c.b16 %v4091, %v4087
    %v4132 = vpack.c.b16 %v4092, %v4088
    %v4133 = vpack.c.b16 %v4097, %v4093
    %v4134 = vpack.c.b16 %v4098, %v4094
    %v4135 = vpack.c.b16 %v4099, %v4095
    %v4136 = vpack.c.b16 %v4100, %v4096
    %v4137 = vpack.c.b16 %v4105, %v4101
    %v4138 = vpack.c.b16 %v4106, %v4102
    %v4139 = vpack.c.b16 %v4107, %v4103
    %v4140 = vpack.c.b16 %v4108, %v4104
    %4173 = vmatprep.subr.bf16.mxu0 %v4110
    %4174 = vmatpush1.bf16.msra.mxu0 %v4109
    %4175 = vmatprep.subr.bf16.mxu0 %v4114
    %4176 = vmatpush1.bf16.msra.mxu0 %v4113
    %4177 = vmatprep.subr.bf16.mxu0 %v4118
    %4178 = vmatpush1.bf16.msra.mxu0 %v4117
    %4179 = vmatprep.subr.bf16.mxu0 %v4122
    %4180 = vmatpush1.bf16.msra.mxu0 %v4121
    %4181 = vmatprep.subr.bf16.mxu0 %v4126
    %4182 = vmatpush1.bf16.msra.mxu0 %v4125
    %4183 = vmatprep.subr.bf16.mxu0 %v4130
    %4184 = vmatpush1.bf16.msra.mxu0 %v4129
    %4185 = vmatprep.subr.bf16.mxu0 %v4134
    %4186 = vmatpush1.bf16.msra.mxu0 %v4133
    %4187 = vmatprep.subr.bf16.mxu0 %v4138
    %4188 = vmatpush1.bf16.msra.mxu0 %v4137
    %4189 = vmatprep.subr.bf16.mxu0 0
    %4190 = vmatpush1.bf16.msra.mxu0 0
    %4191 = vmatprep.subr.bf16.mxu0 0
    %4192 = vmatpush1.bf16.msra.mxu0 0
    %4193 = vmatprep.subr.bf16.mxu0 0
    %4194 = vmatpush1.bf16.msra.mxu0 0
    %4195 = vmatprep.subr.bf16.mxu0 0
    %4196 = vmatpush1.bf16.msra.mxu0 0
    %4197 = vmatprep.subr.bf16.mxu0 0
    %4198 = vmatpush1.bf16.msra.mxu0 0
    %4199 = vmatprep.subr.bf16.mxu0 0
    %4200 = vmatpush1.bf16.msra.mxu0 0
    %4201 = vmatprep.subr.bf16.mxu0 0
    %4202 = vmatpush1.bf16.msra.mxu0 0
    %4203 = vmatprep.subr.bf16.mxu0 0
    %4204 = vmatpush1.bf16.msra.mxu0 0
    %4205 = vmatprep.mubr.bf16.mxu0 0
    %4206 = vmatmul.mubr.bf16.gmra.mrb[0].mxu0 %v3980
    %v4207 = vpop.f32.mrb[0].mxu0
    %v4208 = vadd.f32 0.0, %v4207
    %v4209 = vpop.f32.mrb[0].mxu0
    %v4210 = vadd.f32 0.0, %v4209
    %v4211 = vpop.f32.mrb[0].mxu0
    %v4212 = vpop.f32.mrb[0].mxu0
    %4213 = vdwg.mxu0
    %4214 = vmatprep.subr.bf16.mxu0 %v4112
    %4215 = vmatpush1.bf16.msra.mxu0 %v4111
    %4216 = vmatprep.subr.bf16.mxu0 %v4116
    %4217 = vmatpush1.bf16.msra.mxu0 %v4115
    %4218 = vmatprep.subr.bf16.mxu0 %v4120
    %4219 = vmatpush1.bf16.msra.mxu0 %v4119
    %4220 = vmatprep.subr.bf16.mxu0 %v4124
    %4221 = vmatpush1.bf16.msra.mxu0 %v4123
    %4222 = vmatprep.subr.bf16.mxu0 %v4128
    %4223 = vmatpush1.bf16.msra.mxu0 %v4127
    %4224 = vmatprep.subr.bf16.mxu0 %v4132
    %4225 = vmatpush1.bf16.msra.mxu0 %v4131
    %4226 = vmatprep.subr.bf16.mxu0 %v4136
    %4227 = vmatpush1.bf16.msra.mxu0 %v4135
    %4228 = vmatprep.subr.bf16.mxu0 %v4140
    %4229 = vmatpush1.bf16.msra.mxu0 %v4139
    %4230 = vmatprep.subr.bf16.mxu0 0
    %4231 = vmatpush1.bf16.msra.mxu0 0
    %4232 = vmatprep.subr.bf16.mxu0 0
    %4233 = vmatpush1.bf16.msra.mxu0 0
    %4234 = vmatprep.subr.bf16.mxu0 0
    %4235 = vmatpush1.bf16.msra.mxu0 0
    %4236 = vmatprep.subr.bf16.mxu0 0
    %4237 = vmatpush1.bf16.msra.mxu0 0
    %4238 = vmatprep.subr.bf16.mxu0 0
    %4239 = vmatpush1.bf16.msra.mxu0 0
    %4240 = vmatprep.subr.bf16.mxu0 0
    %4241 = vmatpush1.bf16.msra.mxu0 0
    %4242 = vmatprep.subr.bf16.mxu0 0
    %4243 = vmatpush1.bf16.msra.mxu0 0
    %4244 = vmatprep.subr.bf16.mxu0 0
    %4245 = vmatpush1.bf16.msra.mxu0 0
    %4246 = vmatprep.mubr.bf16.mxu0 0
    %4247 = vmatmul.mubr.bf16.gmra.mrb[0].mxu0 %v3980
    %v4248 = vpop.f32.mrb[0].mxu0
    %v4249 = vadd.f32 0.0, %v4248
    %v4250 = vpop.f32.mrb[0].mxu0
    %v4251 = vadd.f32 0.0, %v4250
    %v4252 = vpop.f32.mrb[0].mxu0
    %v4253 = vpop.f32.mrb[0].mxu0
    %4254 = vdwg.mxu0
    %v4255 = vadd.f32 %v3976, %v4208
    %v4256 = vadd.f32 %v3977, %v4210
    %v4257 = vadd.f32 %v3978, %v4249
    %v4258 = vadd.f32 %v3979, %v4251
    %v4259 = vxor.u32 %v4255, 2147483648
    %v4260 = vmul.f32 %v4259, 1.442695
    %v4261 = vpow.pop %v4260
    %v4262 = vadd.f32 %v4261, 1.0
    %v4263 = vrcp.pop %v4262
    %v4264 = vmul.f32 1.0, %v4263
    %v4265 = vxor.u32 %v4256, 2147483648
    %v4266 = vmul.f32 %v4265, 1.442695
    %v4267 = vpow.pop %v4266
    %v4268 = vadd.f32 %v4267, 1.0
    %v4269 = vrcp.pop %v4268
    %v4270 = vmul.f32 1.0, %v4269
    %v4271 = vtanh.pop %v4257
    %v4272 = vxor.u32 %v4258, 2147483648
    %v4273 = vmul.f32 %v4272, 1.442695
    %v4274 = vpow.pop %v4273
    %v4275 = vadd.f32 %v4274, 1.0
    %v4276 = vrcp.pop %v4275
    %v4277 = vmul.f32 1.0, %v4276
    %v4278 = vmul.f32 %v4270, %v3972
    %v4279 = vmul.f32 %v4264, %v4271
    %v4280 = vadd.f32 %v4278, %v4279
    %v4281 = vtanh.pop %v4280
    %v4282 = vmul.f32 %v4277, %v4281
    %4283 = vst [vmem:[%s1388] sm:$0xff] %v4282
    %v4284 = vld [vmem:[%s1392] sm:$0xff]
    %v4285 = vld [vmem:[%s1392 + $0x8] sm:$0xff]
    %v4286 = vld [vmem:[%s1392 + $0x10] sm:$0xff]
    %v4287 = vld [vmem:[%s1392 + $0x18] sm:$0xff]
    %v4288 = vpack.c.bf16 %v4282, %v4282
    %v4289 = vld [vmem:[#allocation16] sm:$0xff]
    %v4290 = vld [vmem:[#allocation16 + $0x8] sm:$0xff]
    %v4291 = vld [vmem:[#allocation16 + $0x10] sm:$0xff]
    %v4292 = vld [vmem:[#allocation16 + $0x18] sm:$0xff]
    %v4293 = vld [vmem:[#allocation16 + $0x20] sm:$0xff]
    %v4294 = vld [vmem:[#allocation16 + $0x28] sm:$0xff]
    %v4295 = vld [vmem:[#allocation16 + $0x30] sm:$0xff]
    %v4296 = vld [vmem:[#allocation16 + $0x38] sm:$0xff]
    %v4297 = vld [vmem:[#allocation16 + $0x40] sm:$0xff]
    %v4298 = vld [vmem:[#allocation16 + $0x48] sm:$0xff]
    %v4299 = vld [vmem:[#allocation16 + $0x50] sm:$0xff]
    %v4300 = vld [vmem:[#allocation16 + $0x58] sm:$0xff]
    %v4301 = vld [vmem:[#allocation16 + $0x60] sm:$0xff]
    %v4302 = vld [vmem:[#allocation16 + $0x68] sm:$0xff]
    %v4303 = vld [vmem:[#allocation16 + $0x70] sm:$0xff]
    %v4304 = vld [vmem:[#allocation16 + $0x78] sm:$0xff]
    %v4305 = vld [vmem:[#allocation16 + $0x80] sm:$0xff]
    %v4306 = vld [vmem:[#allocation16 + $0x88] sm:$0xff]
    %v4307 = vld [vmem:[#allocation16 + $0x90] sm:$0xff]
    %v4308 = vld [vmem:[#allocation16 + $0x98] sm:$0xff]
    %v4309 = vld [vmem:[#allocation16 + $0xa0] sm:$0xff]
    %v4310 = vld [vmem:[#allocation16 + $0xa8] sm:$0xff]
    %v4311 = vld [vmem:[#allocation16 + $0xb0] sm:$0xff]
    %v4312 = vld [vmem:[#allocation16 + $0xb8] sm:$0xff]
    %v4313 = vld [vmem:[#allocation16 + $0xc0] sm:$0xff]
    %v4314 = vld [vmem:[#allocation16 + $0xc8] sm:$0xff]
    %v4315 = vld [vmem:[#allocation16 + $0xd0] sm:$0xff]
    %v4316 = vld [vmem:[#allocation16 + $0xd8] sm:$0xff]
    %v4317 = vld [vmem:[#allocation16 + $0xe0] sm:$0xff]
    %v4318 = vld [vmem:[#allocation16 + $0xe8] sm:$0xff]
    %v4319 = vld [vmem:[#allocation16 + $0xf0] sm:$0xff]
    %v4320 = vld [vmem:[#allocation16 + $0xf8] sm:$0xff]
    %v4353 = vunpack.c.l.b16 %v4289
    %v4354 = vunpack.c.h.b16 %v4289
    %v4355 = vunpack.c.l.b16 %v4290
    %v4356 = vunpack.c.h.b16 %v4290
    %v4357 = vunpack.c.l.b16 %v4291
    %v4358 = vunpack.c.h.b16 %v4291
    %v4359 = vunpack.c.l.b16 %v4292
    %v4360 = vunpack.c.h.b16 %v4292
    %v4361 = vunpack.c.l.b16 %v4293
    %v4362 = vunpack.c.h.b16 %v4293
    %v4363 = vunpack.c.l.b16 %v4294
    %v4364 = vunpack.c.h.b16 %v4294
    %v4365 = vunpack.c.l.b16 %v4295
    %v4366 = vunpack.c.h.b16 %v4295
    %v4367 = vunpack.c.l.b16 %v4296
    %v4368 = vunpack.c.h.b16 %v4296
    %v4369 = vunpack.c.l.b16 %v4297
    %v4370 = vunpack.c.h.b16 %v4297
    %v4371 = vunpack.c.l.b16 %v4298
    %v4372 = vunpack.c.h.b16 %v4298
    %v4373 = vunpack.c.l.b16 %v4299
    %v4374 = vunpack.c.h.b16 %v4299
    %v4375 = vunpack.c.l.b16 %v4300
    %v4376 = vunpack.c.h.b16 %v4300
    %v4377 = vunpack.c.l.b16 %v4301
    %v4378 = vunpack.c.h.b16 %v4301
    %v4379 = vunpack.c.l.b16 %v4302
    %v4380 = vunpack.c.h.b16 %v4302
    %v4381 = vunpack.c.l.b16 %v4303
    %v4382 = vunpack.c.h.b16 %v4303
    %v4383 = vunpack.c.l.b16 %v4304
    %v4384 = vunpack.c.h.b16 %v4304
    %v4385 = vunpack.c.l.b16 %v4305
    %v4386 = vunpack.c.h.b16 %v4305
    %v4387 = vunpack.c.l.b16 %v4306
    %v4388 = vunpack.c.h.b16 %v4306
    %v4389 = vunpack.c.l.b16 %v4307
    %v4390 = vunpack.c.h.b16 %v4307
    %v4391 = vunpack.c.l.b16 %v4308
    %v4392 = vunpack.c.h.b16 %v4308
    %v4393 = vunpack.c.l.b16 %v4309
    %v4394 = vunpack.c.h.b16 %v4309
    %v4395 = vunpack.c.l.b16 %v4310
    %v4396 = vunpack.c.h.b16 %v4310
    %v4397 = vunpack.c.l.b16 %v4311
    %v4398 = vunpack.c.h.b16 %v4311
    %v4399 = vunpack.c.l.b16 %v4312
    %v4400 = vunpack.c.h.b16 %v4312
    %v4401 = vunpack.c.l.b16 %v4313
    %v4402 = vunpack.c.h.b16 %v4313
    %v4403 = vunpack.c.l.b16 %v4314
    %v4404 = vunpack.c.h.b16 %v4314
    %v4405 = vunpack.c.l.b16 %v4315
    %v4406 = vunpack.c.h.b16 %v4315
    %v4407 = vunpack.c.l.b16 %v4316
    %v4408 = vunpack.c.h.b16 %v4316
    %v4409 = vunpack.c.l.b16 %v4317
    %v4410 = vunpack.c.h.b16 %v4317
    %v4411 = vunpack.c.l.b16 %v4318
    %v4412 = vunpack.c.h.b16 %v4318
    %v4413 = vunpack.c.l.b16 %v4319
    %v4414 = vunpack.c.h.b16 %v4319
    %v4415 = vunpack.c.l.b16 %v4320
    %v4416 = vunpack.c.h.b16 %v4320
    %v4417 = vpack.c.b16 %v4357, %v4353
    %v4418 = vpack.c.b16 %v4358, %v4354
    %v4419 = vpack.c.b16 %v4359, %v4355
    %v4420 = vpack.c.b16 %v4360, %v4356
    %v4421 = vpack.c.b16 %v4365, %v4361
    %v4422 = vpack.c.b16 %v4366, %v4362
    %v4423 = vpack.c.b16 %v4367, %v4363
    %v4424 = vpack.c.b16 %v4368, %v4364
    %v4425 = vpack.c.b16 %v4373, %v4369
    %v4426 = vpack.c.b16 %v4374, %v4370
    %v4427 = vpack.c.b16 %v4375, %v4371
    %v4428 = vpack.c.b16 %v4376, %v4372
    %v4429 = vpack.c.b16 %v4381, %v4377
    %v4430 = vpack.c.b16 %v4382, %v4378
    %v4431 = vpack.c.b16 %v4383, %v4379
    %v4432 = vpack.c.b16 %v4384, %v4380
    %v4433 = vpack.c.b16 %v4389, %v4385
    %v4434 = vpack.c.b16 %v4390, %v4386
    %v4435 = vpack.c.b16 %v4391, %v4387
    %v4436 = vpack.c.b16 %v4392, %v4388
    %v4437 = vpack.c.b16 %v4397, %v4393
    %v4438 = vpack.c.b16 %v4398, %v4394
    %v4439 = vpack.c.b16 %v4399, %v4395
    %v4440 = vpack.c.b16 %v4400, %v4396
    %v4441 = vpack.c.b16 %v4405, %v4401
    %v4442 = vpack.c.b16 %v4406, %v4402
    %v4443 = vpack.c.b16 %v4407, %v4403
    %v4444 = vpack.c.b16 %v4408, %v4404
    %v4445 = vpack.c.b16 %v4413, %v4409
    %v4446 = vpack.c.b16 %v4414, %v4410
    %v4447 = vpack.c.b16 %v4415, %v4411
    %v4448 = vpack.c.b16 %v4416, %v4412
    %4481 = vmatprep.subr.bf16.mxu0 %v4418
    %4482 = vmatpush1.bf16.msra.mxu0 %v4417
    %4483 = vmatprep.subr.bf16.mxu0 %v4422
    %4484 = vmatpush1.bf16.msra.mxu0 %v4421
    %4485 = vmatprep.subr.bf16.mxu0 %v4426
    %4486 = vmatpush1.bf16.msra.mxu0 %v4425
    %4487 = vmatprep.subr.bf16.mxu0 %v4430
    %4488 = vmatpush1.bf16.msra.mxu0 %v4429
    %4489 = vmatprep.subr.bf16.mxu0 %v4434
    %4490 = vmatpush1.bf16.msra.mxu0 %v4433
    %4491 = vmatprep.subr.bf16.mxu0 %v4438
    %4492 = vmatpush1.bf16.msra.mxu0 %v4437
    %4493 = vmatprep.subr.bf16.mxu0 %v4442
    %4494 = vmatpush1.bf16.msra.mxu0 %v4441
    %4495 = vmatprep.subr.bf16.mxu0 %v4446
    %4496 = vmatpush1.bf16.msra.mxu0 %v4445
    %4497 = vmatprep.subr.bf16.mxu0 0
    %4498 = vmatpush1.bf16.msra.mxu0 0
    %4499 = vmatprep.subr.bf16.mxu0 0
    %4500 = vmatpush1.bf16.msra.mxu0 0
    %4501 = vmatprep.subr.bf16.mxu0 0
    %4502 = vmatpush1.bf16.msra.mxu0 0
    %4503 = vmatprep.subr.bf16.mxu0 0
    %4504 = vmatpush1.bf16.msra.mxu0 0
    %4505 = vmatprep.subr.bf16.mxu0 0
    %4506 = vmatpush1.bf16.msra.mxu0 0
    %4507 = vmatprep.subr.bf16.mxu0 0
    %4508 = vmatpush1.bf16.msra.mxu0 0
    %4509 = vmatprep.subr.bf16.mxu0 0
    %4510 = vmatpush1.bf16.msra.mxu0 0
    %4511 = vmatprep.subr.bf16.mxu0 0
    %4512 = vmatpush1.bf16.msra.mxu0 0
    %4513 = vmatprep.mubr.bf16.mxu0 0
    %4514 = vmatmul.mubr.bf16.gmra.mrb[0].mxu0 %v4288
    %v4515 = vpop.f32.mrb[0].mxu0
    %v4516 = vadd.f32 0.0, %v4515
    %v4517 = vpop.f32.mrb[0].mxu0
    %v4518 = vadd.f32 0.0, %v4517
    %v4519 = vpop.f32.mrb[0].mxu0
    %v4520 = vpop.f32.mrb[0].mxu0
    %4521 = vdwg.mxu0
    %4522 = vmatprep.subr.bf16.mxu0 %v4420
    %4523 = vmatpush1.bf16.msra.mxu0 %v4419
    %4524 = vmatprep.subr.bf16.mxu0 %v4424
    %4525 = vmatpush1.bf16.msra.mxu0 %v4423
    %4526 = vmatprep.subr.bf16.mxu0 %v4428
    %4527 = vmatpush1.bf16.msra.mxu0 %v4427
    %4528 = vmatprep.subr.bf16.mxu0 %v4432
    %4529 = vmatpush1.bf16.msra.mxu0 %v4431
    %4530 = vmatprep.subr.bf16.mxu0 %v4436
    %4531 = vmatpush1.bf16.msra.mxu0 %v4435
    %4532 = vmatprep.subr.bf16.mxu0 %v4440
    %4533 = vmatpush1.bf16.msra.mxu0 %v4439
    %4534 = vmatprep.subr.bf16.mxu0 %v4444
    %4535 = vmatpush1.bf16.msra.mxu0 %v4443
    %4536 = vmatprep.subr.bf16.mxu0 %v4448
    %4537 = vmatpush1.bf16.msra.mxu0 %v4447
    %4538 = vmatprep.subr.bf16.mxu0 0
    %4539 = vmatpush1.bf16.msra.mxu0 0
    %4540 = vmatprep.subr.bf16.mxu0 0
    %4541 = vmatpush1.bf16.msra.mxu0 0
    %4542 = vmatprep.subr.bf16.mxu0 0
    %4543 = vmatpush1.bf16.msra.mxu0 0
    %4544 = vmatprep.subr.bf16.mxu0 0
    %4545 = vmatpush1.bf16.msra.mxu0 0
    %4546 = vmatprep.subr.bf16.mxu0 0
    %4547 = vmatpush1.bf16.msra.mxu0 0
    %4548 = vmatprep.subr.bf16.mxu0 0
    %4549 = vmatpush1.bf16.msra.mxu0 0
    %4550 = vmatprep.subr.bf16.mxu0 0
    %4551 = vmatpush1.bf16.msra.mxu0 0
    %4552 = vmatprep.subr.bf16.mxu0 0
    %4553 = vmatpush1.bf16.msra.mxu0 0
    %4554 = vmatprep.mubr.bf16.mxu0 0
    %4555 = vmatmul.mubr.bf16.gmra.mrb[0].mxu0 %v4288
    %v4556 = vpop.f32.mrb[0].mxu0
    %v4557 = vadd.f32 0.0, %v4556
    %v4558 = vpop.f32.mrb[0].mxu0
    %v4559 = vadd.f32 0.0, %v4558
    %v4560 = vpop.f32.mrb[0].mxu0
    %v4561 = vpop.f32.mrb[0].mxu0
    %4562 = vdwg.mxu0
    %v4563 = vadd.f32 %v4284, %v4516
    %v4564 = vadd.f32 %v4285, %v4518
    %v4565 = vadd.f32 %v4286, %v4557
    %v4566 = vadd.f32 %v4287, %v4559
    %v4567 = vxor.u32 %v4563, 2147483648
    %v4568 = vmul.f32 %v4567, 1.442695
    %v4569 = vpow.pop %v4568
    %v4570 = vadd.f32 %v4569, 1.0
    %v4571 = vrcp.pop %v4570
    %v4572 = vmul.f32 1.0, %v4571
    %v4573 = vxor.u32 %v4564, 2147483648
    %v4574 = vmul.f32 %v4573, 1.442695
    %v4575 = vpow.pop %v4574
    %v4576 = vadd.f32 %v4575, 1.0
    %v4577 = vrcp.pop %v4576
    %v4578 = vmul.f32 1.0, %v4577
    %v4579 = vtanh.pop %v4565
    %v4580 = vxor.u32 %v4566, 2147483648
    %v4581 = vmul.f32 %v4580, 1.442695
    %v4582 = vpow.pop %v4581
    %v4583 = vadd.f32 %v4582, 1.0
    %v4584 = vrcp.pop %v4583
    %v4585 = vmul.f32 1.0, %v4584
    %v4586 = vmul.f32 %v4578, %v4280
    %v4587 = vmul.f32 %v4572, %v4579
    %v4588 = vadd.f32 %v4586, %v4587
    %v4589 = vtanh.pop %v4588
    %v4590 = vmul.f32 %v4585, %v4589
    %4591 = vst [vmem:[%s1700] sm:$0xff] %v4590
    %v4592 = vld [vmem:[%s1704] sm:$0xff]
    %v4593 = vld [vmem:[%s1704 + $0x8] sm:$0xff]
    %v4594 = vld [vmem:[%s1704 + $0x10] sm:$0xff]
    %v4595 = vld [vmem:[%s1704 + $0x18] sm:$0xff]
    %v4596 = vpack.c.bf16 %v4590, %v4590
    %v4597 = vld [vmem:[#allocation16] sm:$0xff]
    %v4598 = vld [vmem:[#allocation16 + $0x8] sm:$0xff]
    %v4599 = vld [vmem:[#allocation16 + $0x10] sm:$0xff]
    %v4600 = vld [vmem:[#allocation16 + $0x18] sm:$0xff]
    %v4601 = vld [vmem:[#allocation16 + $0x20] sm:$0xff]
    %v4602 = vld [vmem:[#allocation16 + $0x28] sm:$0xff]
    %v4603 = vld [vmem:[#allocation16 + $0x30] sm:$0xff]
    %v4604 = vld [vmem:[#allocation16 + $0x38] sm:$0xff]
    %v4605 = vld [vmem:[#allocation16 + $0x40] sm:$0xff]
    %v4606 = vld [vmem:[#allocation16 + $0x48] sm:$0xff]
    %v4607 = vld [vmem:[#allocation16 + $0x50] sm:$0xff]
    %v4608 = vld [vmem:[#allocation16 + $0x58] sm:$0xff]
    %v4609 = vld [vmem:[#allocation16 + $0x60] sm:$0xff]
    %v4610 = vld [vmem:[#allocation16 + $0x68] sm:$0xff]
    %v4611 = vld [vmem:[#allocation16 + $0x70] sm:$0xff]
    %v4612 = vld [vmem:[#allocation16 + $0x78] sm:$0xff]
    %v4613 = vld [vmem:[#allocation16 + $0x80] sm:$0xff]
    %v4614 = vld [vmem:[#allocation16 + $0x88] sm:$0xff]
    %v4615 = vld [vmem:[#allocation16 + $0x90] sm:$0xff]
    %v4616 = vld [vmem:[#allocation16 + $0x98] sm:$0xff]
    %v4617 = vld [vmem:[#allocation16 + $0xa0] sm:$0xff]
    %v4618 = vld [vmem:[#allocation16 + $0xa8] sm:$0xff]
    %v4619 = vld [vmem:[#allocation16 + $0xb0] sm:$0xff]
    %v4620 = vld [vmem:[#allocation16 + $0xb8] sm:$0xff]
    %v4621 = vld [vmem:[#allocation16 + $0xc0] sm:$0xff]
    %v4622 = vld [vmem:[#allocation16 + $0xc8] sm:$0xff]
    %v4623 = vld [vmem:[#allocation16 + $0xd0] sm:$0xff]
    %v4624 = vld [vmem:[#allocation16 + $0xd8] sm:$0xff]
    %v4625 = vld [vmem:[#allocation16 + $0xe0] sm:$0xff]
    %v4626 = vld [vmem:[#allocation16 + $0xe8] sm:$0xff]
    %v4627 = vld [vmem:[#allocation16 + $0xf0] sm:$0xff]
    %v4628 = vld [vmem:[#allocation16 + $0xf8] sm:$0xff]
    %v4661 = vunpack.c.l.b16 %v4597
    %v4662 = vunpack.c.h.b16 %v4597
    %v4663 = vunpack.c.l.b16 %v4598
    %v4664 = vunpack.c.h.b16 %v4598
    %v4665 = vunpack.c.l.b16 %v4599
    %v4666 = vunpack.c.h.b16 %v4599
    %v4667 = vunpack.c.l.b16 %v4600
    %v4668 = vunpack.c.h.b16 %v4600
    %v4669 = vunpack.c.l.b16 %v4601
    %v4670 = vunpack.c.h.b16 %v4601
    %v4671 = vunpack.c.l.b16 %v4602
    %v4672 = vunpack.c.h.b16 %v4602
    %v4673 = vunpack.c.l.b16 %v4603
    %v4674 = vunpack.c.h.b16 %v4603
    %v4675 = vunpack.c.l.b16 %v4604
    %v4676 = vunpack.c.h.b16 %v4604
    %v4677 = vunpack.c.l.b16 %v4605
    %v4678 = vunpack.c.h.b16 %v4605
    %v4679 = vunpack.c.l.b16 %v4606
    %v4680 = vunpack.c.h.b16 %v4606
    %v4681 = vunpack.c.l.b16 %v4607
    %v4682 = vunpack.c.h.b16 %v4607
    %v4683 = vunpack.c.l.b16 %v4608
    %v4684 = vunpack.c.h.b16 %v4608
    %v4685 = vunpack.c.l.b16 %v4609
    %v4686 = vunpack.c.h.b16 %v4609
    %v4687 = vunpack.c.l.b16 %v4610
    %v4688 = vunpack.c.h.b16 %v4610
    %v4689 = vunpack.c.l.b16 %v4611
    %v4690 = vunpack.c.h.b16 %v4611
    %v4691 = vunpack.c.l.b16 %v4612
    %v4692 = vunpack.c.h.b16 %v4612
    %v4693 = vunpack.c.l.b16 %v4613
    %v4694 = vunpack.c.h.b16 %v4613
    %v4695 = vunpack.c.l.b16 %v4614
    %v4696 = vunpack.c.h.b16 %v4614
    %v4697 = vunpack.c.l.b16 %v4615
    %v4698 = vunpack.c.h.b16 %v4615
    %v4699 = vunpack.c.l.b16 %v4616
    %v4700 = vunpack.c.h.b16 %v4616
    %v4701 = vunpack.c.l.b16 %v4617
    %v4702 = vunpack.c.h.b16 %v4617
    %v4703 = vunpack.c.l.b16 %v4618
    %v4704 = vunpack.c.h.b16 %v4618
    %v4705 = vunpack.c.l.b16 %v4619
    %v4706 = vunpack.c.h.b16 %v4619
    %v4707 = vunpack.c.l.b16 %v4620
    %v4708 = vunpack.c.h.b16 %v4620
    %v4709 = vunpack.c.l.b16 %v4621
    %v4710 = vunpack.c.h.b16 %v4621
    %v4711 = vunpack.c.l.b16 %v4622
    %v4712 = vunpack.c.h.b16 %v4622
    %v4713 = vunpack.c.l.b16 %v4623
    %v4714 = vunpack.c.h.b16 %v4623
    %v4715 = vunpack.c.l.b16 %v4624
    %v4716 = vunpack.c.h.b16 %v4624
    %v4717 = vunpack.c.l.b16 %v4625
    %v4718 = vunpack.c.h.b16 %v4625
    %v4719 = vunpack.c.l.b16 %v4626
    %v4720 = vunpack.c.h.b16 %v4626
    %v4721 = vunpack.c.l.b16 %v4627
    %v4722 = vunpack.c.h.b16 %v4627
    %v4723 = vunpack.c.l.b16 %v4628
    %v4724 = vunpack.c.h.b16 %v4628
    %v4725 = vpack.c.b16 %v4665, %v4661
    %v4726 = vpack.c.b16 %v4666, %v4662
    %v4727 = vpack.c.b16 %v4667, %v4663
    %v4728 = vpack.c.b16 %v4668, %v4664
    %v4729 = vpack.c.b16 %v4673, %v4669
    %v4730 = vpack.c.b16 %v4674, %v4670
    %v4731 = vpack.c.b16 %v4675, %v4671
    %v4732 = vpack.c.b16 %v4676, %v4672
    %v4733 = vpack.c.b16 %v4681, %v4677
    %v4734 = vpack.c.b16 %v4682, %v4678
    %v4735 = vpack.c.b16 %v4683, %v4679
    %v4736 = vpack.c.b16 %v4684, %v4680
    %v4737 = vpack.c.b16 %v4689, %v4685
    %v4738 = vpack.c.b16 %v4690, %v4686
    %v4739 = vpack.c.b16 %v4691, %v4687
    %v4740 = vpack.c.b16 %v4692, %v4688
    %v4741 = vpack.c.b16 %v4697, %v4693
    %v4742 = vpack.c.b16 %v4698, %v4694
    %v4743 = vpack.c.b16 %v4699, %v4695
    %v4744 = vpack.c.b16 %v4700, %v4696
    %v4745 = vpack.c.b16 %v4705, %v4701
    %v4746 = vpack.c.b16 %v4706, %v4702
    %v4747 = vpack.c.b16 %v4707, %v4703
    %v4748 = vpack.c.b16 %v4708, %v4704
    %v4749 = vpack.c.b16 %v4713, %v4709
    %v4750 = vpack.c.b16 %v4714, %v4710
    %v4751 = vpack.c.b16 %v4715, %v4711
    %v4752 = vpack.c.b16 %v4716, %v4712
    %v4753 = vpack.c.b16 %v4721, %v4717
    %v4754 = vpack.c.b16 %v4722, %v4718
    %v4755 = vpack.c.b16 %v4723, %v4719
    %v4756 = vpack.c.b16 %v4724, %v4720
    %4789 = vmatprep.subr.bf16.mxu0 %v4726
    %4790 = vmatpush1.bf16.msra.mxu0 %v4725
    %4791 = vmatprep.subr.bf16.mxu0 %v4730
    %4792 = vmatpush1.bf16.msra.mxu0 %v4729
    %4793 = vmatprep.subr.bf16.mxu0 %v4734
    %4794 = vmatpush1.bf16.msra.mxu0 %v4733
    %4795 = vmatprep.subr.bf16.mxu0 %v4738
    %4796 = vmatpush1.bf16.msra.mxu0 %v4737
    %4797 = vmatprep.subr.bf16.mxu0 %v4742
    %4798 = vmatpush1.bf16.msra.mxu0 %v4741
    %4799 = vmatprep.subr.bf16.mxu0 %v4746
    %4800 = vmatpush1.bf16.msra.mxu0 %v4745
    %4801 = vmatprep.subr.bf16.mxu0 %v4750
    %4802 = vmatpush1.bf16.msra.mxu0 %v4749
    %4803 = vmatprep.subr.bf16.mxu0 %v4754
    %4804 = vmatpush1.bf16.msra.mxu0 %v4753
    %4805 = vmatprep.subr.bf16.mxu0 0
    %4806 = vmatpush1.bf16.msra.mxu0 0
    %4807 = vmatprep.subr.bf16.mxu0 0
    %4808 = vmatpush1.bf16.msra.mxu0 0
    %4809 = vmatprep.subr.bf16.mxu0 0
    %4810 = vmatpush1.bf16.msra.mxu0 0
    %4811 = vmatprep.subr.bf16.mxu0 0
    %4812 = vmatpush1.bf16.msra.mxu0 0
    %4813 = vmatprep.subr.bf16.mxu0 0
    %4814 = vmatpush1.bf16.msra.mxu0 0
    %4815 = vmatprep.subr.bf16.mxu0 0
    %4816 = vmatpush1.bf16.msra.mxu0 0
    %4817 = vmatprep.subr.bf16.mxu0 0
    %4818 = vmatpush1.bf16.msra.mxu0 0
    %4819 = vmatprep.subr.bf16.mxu0 0
    %4820 = vmatpush1.bf16.msra.mxu0 0
    %4821 = vmatprep.mubr.bf16.mxu0 0
    %4822 = vmatmul.mubr.bf16.gmra.mrb[0].mxu0 %v4596
    %v4823 = vpop.f32.mrb[0].mxu0
    %v4824 = vadd.f32 0.0, %v4823
    %v4825 = vpop.f32.mrb[0].mxu0
    %v4826 = vadd.f32 0.0, %v4825
    %v4827 = vpop.f32.mrb[0].mxu0
    %v4828 = vpop.f32.mrb[0].mxu0
    %4829 = vdwg.mxu0
    %4830 = vmatprep.subr.bf16.mxu0 %v4728
    %4831 = vmatpush1.bf16.msra.mxu0 %v4727
    %4832 = vmatprep.subr.bf16.mxu0 %v4732
    %4833 = vmatpush1.bf16.msra.mxu0 %v4731
    %4834 = vmatprep.subr.bf16.mxu0 %v4736
    %4835 = vmatpush1.bf16.msra.mxu0 %v4735
    %4836 = vmatprep.subr.bf16.mxu0 %v4740
    %4837 = vmatpush1.bf16.msra.mxu0 %v4739
    %4838 = vmatprep.subr.bf16.mxu0 %v4744
    %4839 = vmatpush1.bf16.msra.mxu0 %v4743
    %4840 = vmatprep.subr.bf16.mxu0 %v4748
    %4841 = vmatpush1.bf16.msra.mxu0 %v4747
    %4842 = vmatprep.subr.bf16.mxu0 %v4752
    %4843 = vmatpush1.bf16.msra.mxu0 %v4751
    %4844 = vmatprep.subr.bf16.mxu0 %v4756
    %4845 = vmatpush1.bf16.msra.mxu0 %v4755
    %4846 = vmatprep.subr.bf16.mxu0 0
    %4847 = vmatpush1.bf16.msra.mxu0 0
    %4848 = vmatprep.subr.bf16.mxu0 0
    %4849 = vmatpush1.bf16.msra.mxu0 0
    %4850 = vmatprep.subr.bf16.mxu0 0
    %4851 = vmatpush1.bf16.msra.mxu0 0
    %4852 = vmatprep.subr.bf16.mxu0 0
    %4853 = vmatpush1.bf16.msra.mxu0 0
    %4854 = vmatprep.subr.bf16.mxu0 0
    %4855 = vmatpush1.bf16.msra.mxu0 0
    %4856 = vmatprep.subr.bf16.mxu0 0
    %4857 = vmatpush1.bf16.msra.mxu0 0
    %4858 = vmatprep.subr.bf16.mxu0 0
    %4859 = vmatpush1.bf16.msra.mxu0 0
    %4860 = vmatprep.subr.bf16.mxu0 0
    %4861 = vmatpush1.bf16.msra.mxu0 0
    %4862 = vmatprep.mubr.bf16.mxu0 0
    %4863 = vmatmul.mubr.bf16.gmra.mrb[0].mxu0 %v4596
    %v4864 = vpop.f32.mrb[0].mxu0
    %v4865 = vadd.f32 0.0, %v4864
    %v4866 = vpop.f32.mrb[0].mxu0
    %v4867 = vadd.f32 0.0, %v4866
    %v4868 = vpop.f32.mrb[0].mxu0
    %v4869 = vpop.f32.mrb[0].mxu0
    %4870 = vdwg.mxu0
    %v4871 = vadd.f32 %v4592, %v4824
    %v4872 = vadd.f32 %v4593, %v4826
    %v4873 = vadd.f32 %v4594, %v4865
    %v4874 = vadd.f32 %v4595, %v4867
    %v4875 = vxor.u32 %v4871, 2147483648
    %v4876 = vmul.f32 %v4875, 1.442695
    %v4877 = vpow.pop %v4876
    %v4878 = vadd.f32 %v4877, 1.0
    %v4879 = vrcp.pop %v4878
    %v4880 = vmul.f32 1.0, %v4879
    %v4881 = vxor.u32 %v4872, 2147483648
    %v4882 = vmul.f32 %v4881, 1.442695
    %v4883 = vpow.pop %v4882
    %v4884 = vadd.f32 %v4883, 1.0
    %v4885 = vrcp.pop %v4884
    %v4886 = vmul.f32 1.0, %v4885
    %v4887 = vtanh.pop %v4873
    %v4888 = vxor.u32 %v4874, 2147483648
    %v4889 = vmul.f32 %v4888, 1.442695
    %v4890 = vpow.pop %v4889
    %v4891 = vadd.f32 %v4890, 1.0
    %v4892 = vrcp.pop %v4891
    %v4893 = vmul.f32 1.0, %v4892
    %v4894 = vmul.f32 %v4886, %v4588
    %v4895 = vmul.f32 %v4880, %v4887
    %v4896 = vadd.f32 %v4894, %v4895
    %v4897 = vtanh.pop %v4896
    %v4898 = vmul.f32 %v4893, %v4897
    %4899 = vst [vmem:[%s2012] sm:$0xff] %v4898
    %v4900 = vld [vmem:[%s2016] sm:$0xff]
    %v4901 = vld [vmem:[%s2016 + $0x8] sm:$0xff]
    %v4902 = vld [vmem:[%s2016 + $0x10] sm:$0xff]
    %v4903 = vld [vmem:[%s2016 + $0x18] sm:$0xff]
    %v4904 = vpack.c.bf16 %v4898, %v4898
    %v4905 = vld [vmem:[#allocation16] sm:$0xff]
    %v4906 = vld [vmem:[#allocation16 + $0x8] sm:$0xff]
    %v4907 = vld [vmem:[#allocation16 + $0x10] sm:$0xff]
    %v4908 = vld [vmem:[#allocation16 + $0x18] sm:$0xff]
    %v4909 = vld [vmem:[#allocation16 + $0x20] sm:$0xff]
    %v4910 = vld [vmem:[#allocation16 + $0x28] sm:$0xff]
    %v4911 = vld [vmem:[#allocation16 + $0x30] sm:$0xff]
    %v4912 = vld [vmem:[#allocation16 + $0x38] sm:$0xff]
    %v4913 = vld [vmem:[#allocation16 + $0x40] sm:$0xff]
    %v4914 = vld [vmem:[#allocation16 + $0x48] sm:$0xff]
    %v4915 = vld [vmem:[#allocation16 + $0x50] sm:$0xff]
    %v4916 = vld [vmem:[#allocation16 + $0x58] sm:$0xff]
    %v4917 = vld [vmem:[#allocation16 + $0x60] sm:$0xff]
    %v4918 = vld [vmem:[#allocation16 + $0x68] sm:$0xff]
    %v4919 = vld [vmem:[#allocation16 + $0x70] sm:$0xff]
    %v4920 = vld [vmem:[#allocation16 + $0x78] sm:$0xff]
    %v4921 = vld [vmem:[#allocation16 + $0x80] sm:$0xff]
    %v4922 = vld [vmem:[#allocation16 + $0x88] sm:$0xff]
    %v4923 = vld [vmem:[#allocation16 + $0x90] sm:$0xff]
    %v4924 = vld [vmem:[#allocation16 + $0x98] sm:$0xff]
    %v4925 = vld [vmem:[#allocation16 + $0xa0] sm:$0xff]
    %v4926 = vld [vmem:[#allocation16 + $0xa8] sm:$0xff]
    %v4927 = vld [vmem:[#allocation16 + $0xb0] sm:$0xff]
    %v4928 = vld [vmem:[#allocation16 + $0xb8] sm:$0xff]
    %v4929 = vld [vmem:[#allocation16 + $0xc0] sm:$0xff]
    %v4930 = vld [vmem:[#allocation16 + $0xc8] sm:$0xff]
    %v4931 = vld [vmem:[#allocation16 + $0xd0] sm:$0xff]
    %v4932 = vld [vmem:[#allocation16 + $0xd8] sm:$0xff]
    %v4933 = vld [vmem:[#allocation16 + $0xe0] sm:$0xff]
    %v4934 = vld [vmem:[#allocation16 + $0xe8] sm:$0xff]
    %v4935 = vld [vmem:[#allocation16 + $0xf0] sm:$0xff]
    %v4936 = vld [vmem:[#allocation16 + $0xf8] sm:$0xff]
    %v4969 = vunpack.c.l.b16 %v4905
    %v4970 = vunpack.c.h.b16 %v4905
    %v4971 = vunpack.c.l.b16 %v4906
    %v4972 = vunpack.c.h.b16 %v4906
    %v4973 = vunpack.c.l.b16 %v4907
    %v4974 = vunpack.c.h.b16 %v4907
    %v4975 = vunpack.c.l.b16 %v4908
    %v4976 = vunpack.c.h.b16 %v4908
    %v4977 = vunpack.c.l.b16 %v4909
    %v4978 = vunpack.c.h.b16 %v4909
    %v4979 = vunpack.c.l.b16 %v4910
    %v4980 = vunpack.c.h.b16 %v4910
    %v4981 = vunpack.c.l.b16 %v4911
    %v4982 = vunpack.c.h.b16 %v4911
    %v4983 = vunpack.c.l.b16 %v4912
    %v4984 = vunpack.c.h.b16 %v4912
    %v4985 = vunpack.c.l.b16 %v4913
    %v4986 = vunpack.c.h.b16 %v4913
    %v4987 = vunpack.c.l.b16 %v4914
    %v4988 = vunpack.c.h.b16 %v4914
    %v4989 = vunpack.c.l.b16 %v4915
    %v4990 = vunpack.c.h.b16 %v4915
    %v4991 = vunpack.c.l.b16 %v4916
    %v4992 = vunpack.c.h.b16 %v4916
    %v4993 = vunpack.c.l.b16 %v4917
    %v4994 = vunpack.c.h.b16 %v4917
    %v4995 = vunpack.c.l.b16 %v4918
    %v4996 = vunpack.c.h.b16 %v4918
    %v4997 = vunpack.c.l.b16 %v4919
    %v4998 = vunpack.c.h.b16 %v4919
    %v4999 = vunpack.c.l.b16 %v4920
    %v5000 = vunpack.c.h.b16 %v4920
    %v5001 = vunpack.c.l.b16 %v4921
    %v5002 = vunpack.c.h.b16 %v4921
    %v5003 = vunpack.c.l.b16 %v4922
    %v5004 = vunpack.c.h.b16 %v4922
    %v5005 = vunpack.c.l.b16 %v4923
    %v5006 = vunpack.c.h.b16 %v4923
    %v5007 = vunpack.c.l.b16 %v4924
    %v5008 = vunpack.c.h.b16 %v4924
    %v5009 = vunpack.c.l.b16 %v4925
    %v5010 = vunpack.c.h.b16 %v4925
    %v5011 = vunpack.c.l.b16 %v4926
    %v5012 = vunpack.c.h.b16 %v4926
    %v5013 = vunpack.c.l.b16 %v4927
    %v5014 = vunpack.c.h.b16 %v4927
    %v5015 = vunpack.c.l.b16 %v4928
    %v5016 = vunpack.c.h.b16 %v4928
    %v5017 = vunpack.c.l.b16 %v4929
    %v5018 = vunpack.c.h.b16 %v4929
    %v5019 = vunpack.c.l.b16 %v4930
    %v5020 = vunpack.c.h.b16 %v4930
    %v5021 = vunpack.c.l.b16 %v4931
    %v5022 = vunpack.c.h.b16 %v4931
    %v5023 = vunpack.c.l.b16 %v4932
    %v5024 = vunpack.c.h.b16 %v4932
    %v5025 = vunpack.c.l.b16 %v4933
    %v5026 = vunpack.c.h.b16 %v4933
    %v5027 = vunpack.c.l.b16 %v4934
    %v5028 = vunpack.c.h.b16 %v4934
    %v5029 = vunpack.c.l.b16 %v4935
    %v5030 = vunpack.c.h.b16 %v4935
    %v5031 = vunpack.c.l.b16 %v4936
    %v5032 = vunpack.c.h.b16 %v4936
    %v5033 = vpack.c.b16 %v4973, %v4969
    %v5034 = vpack.c.b16 %v4974, %v4970
    %v5035 = vpack.c.b16 %v4975, %v4971
    %v5036 = vpack.c.b16 %v4976, %v4972
    %v5037 = vpack.c.b16 %v4981, %v4977
    %v5038 = vpack.c.b16 %v4982, %v4978
    %v5039 = vpack.c.b16 %v4983, %v4979
    %v5040 = vpack.c.b16 %v4984, %v4980
    %v5041 = vpack.c.b16 %v4989, %v4985
    %v5042 = vpack.c.b16 %v4990, %v4986
    %v5043 = vpack.c.b16 %v4991, %v4987
    %v5044 = vpack.c.b16 %v4992, %v4988
    %v5045 = vpack.c.b16 %v4997, %v4993
    %v5046 = vpack.c.b16 %v4998, %v4994
    %v5047 = vpack.c.b16 %v4999, %v4995
    %v5048 = vpack.c.b16 %v5000, %v4996
    %v5049 = vpack.c.b16 %v5005, %v5001
    %v5050 = vpack.c.b16 %v5006, %v5002
    %v5051 = vpack.c.b16 %v5007, %v5003
    %v5052 = vpack.c.b16 %v5008, %v5004
    %v5053 = vpack.c.b16 %v5013, %v5009
    %v5054 = vpack.c.b16 %v5014, %v5010
    %v5055 = vpack.c.b16 %v5015, %v5011
    %v5056 = vpack.c.b16 %v5016, %v5012
    %v5057 = vpack.c.b16 %v5021, %v5017
    %v5058 = vpack.c.b16 %v5022, %v5018
    %v5059 = vpack.c.b16 %v5023, %v5019
    %v5060 = vpack.c.b16 %v5024, %v5020
    %v5061 = vpack.c.b16 %v5029, %v5025
    %v5062 = vpack.c.b16 %v5030, %v5026
    %v5063 = vpack.c.b16 %v5031, %v5027
    %v5064 = vpack.c.b16 %v5032, %v5028
    %5097 = vmatprep.subr.bf16.mxu0 %v5034
    %5098 = vmatpush1.bf16.msra.mxu0 %v5033
    %5099 = vmatprep.subr.bf16.mxu0 %v5038
    %5100 = vmatpush1.bf16.msra.mxu0 %v5037
    %5101 = vmatprep.subr.bf16.mxu0 %v5042
    %5102 = vmatpush1.bf16.msra.mxu0 %v5041
    %5103 = vmatprep.subr.bf16.mxu0 %v5046
    %5104 = vmatpush1.bf16.msra.mxu0 %v5045
    %5105 = vmatprep.subr.bf16.mxu0 %v5050
    %5106 = vmatpush1.bf16.msra.mxu0 %v5049
    %5107 = vmatprep.subr.bf16.mxu0 %v5054
    %5108 = vmatpush1.bf16.msra.mxu0 %v5053
    %5109 = vmatprep.subr.bf16.mxu0 %v5058
    %5110 = vmatpush1.bf16.msra.mxu0 %v5057
    %5111 = vmatprep.subr.bf16.mxu0 %v5062
    %5112 = vmatpush1.bf16.msra.mxu0 %v5061
    %5113 = vmatprep.subr.bf16.mxu0 0
    %5114 = vmatpush1.bf16.msra.mxu0 0
    %5115 = vmatprep.subr.bf16.mxu0 0
    %5116 = vmatpush1.bf16.msra.mxu0 0
    %5117 = vmatprep.subr.bf16.mxu0 0
    %5118 = vmatpush1.bf16.msra.mxu0 0
    %5119 = vmatprep.subr.bf16.mxu0 0
    %5120 = vmatpush1.bf16.msra.mxu0 0
    %5121 = vmatprep.subr.bf16.mxu0 0
    %5122 = vmatpush1.bf16.msra.mxu0 0
    %5123 = vmatprep.subr.bf16.mxu0 0
    %5124 = vmatpush1.bf16.msra.mxu0 0
    %5125 = vmatprep.subr.bf16.mxu0 0
    %5126 = vmatpush1.bf16.msra.mxu0 0
    %5127 = vmatprep.subr.bf16.mxu0 0
    %5128 = vmatpush1.bf16.msra.mxu0 0
    %5129 = vmatprep.mubr.bf16.mxu0 0
    %5130 = vmatmul.mubr.bf16.gmra.mrb[0].mxu0 %v4904
    %v5131 = vpop.f32.mrb[0].mxu0
    %v5132 = vadd.f32 0.0, %v5131
    %v5133 = vpop.f32.mrb[0].mxu0
    %v5134 = vadd.f32 0.0, %v5133
    %v5135 = vpop.f32.mrb[0].mxu0
    %v5136 = vpop.f32.mrb[0].mxu0
    %5137 = vdwg.mxu0
    %5138 = vmatprep.subr.bf16.mxu0 %v5036
    %5139 = vmatpush1.bf16.msra.mxu0 %v5035
    %5140 = vmatprep.subr.bf16.mxu0 %v5040
    %5141 = vmatpush1.bf16.msra.mxu0 %v5039
    %5142 = vmatprep.subr.bf16.mxu0 %v5044
    %5143 = vmatpush1.bf16.msra.mxu0 %v5043
    %5144 = vmatprep.subr.bf16.mxu0 %v5048
    %5145 = vmatpush1.bf16.msra.mxu0 %v5047
    %5146 = vmatprep.subr.bf16.mxu0 %v5052
    %5147 = vmatpush1.bf16.msra.mxu0 %v5051
    %5148 = vmatprep.subr.bf16.mxu0 %v5056
    %5149 = vmatpush1.bf16.msra.mxu0 %v5055
    %5150 = vmatprep.subr.bf16.mxu0 %v5060
    %5151 = vmatpush1.bf16.msra.mxu0 %v5059
    %5152 = vmatprep.subr.bf16.mxu0 %v5064
    %5153 = vmatpush1.bf16.msra.mxu0 %v5063
    %5154 = vmatprep.subr.bf16.mxu0 0
    %5155 = vmatpush1.bf16.msra.mxu0 0
    %5156 = vmatprep.subr.bf16.mxu0 0
    %5157 = vmatpush1.bf16.msra.mxu0 0
    %5158 = vmatprep.subr.bf16.mxu0 0
    %5159 = vmatpush1.bf16.msra.mxu0 0
    %5160 = vmatprep.subr.bf16.mxu0 0
    %5161 = vmatpush1.bf16.msra.mxu0 0
    %5162 = vmatprep.subr.bf16.mxu0 0
    %5163 = vmatpush1.bf16.msra.mxu0 0
    %5164 = vmatprep.subr.bf16.mxu0 0
    %5165 = vmatpush1.bf16.msra.mxu0 0
    %5166 = vmatprep.subr.bf16.mxu0 0
    %5167 = vmatpush1.bf16.msra.mxu0 0
    %5168 = vmatprep.subr.bf16.mxu0 0
    %5169 = vmatpush1.bf16.msra.mxu0 0
    %5170 = vmatprep.mubr.bf16.mxu0 0
    %5171 = vmatmul.mubr.bf16.gmra.mrb[0].mxu0 %v4904
    %v5172 = vpop.f32.mrb[0].mxu0
    %v5173 = vadd.f32 0.0, %v5172
    %v5174 = vpop.f32.mrb[0].mxu0
    %v5175 = vadd.f32 0.0, %v5174
    %v5176 = vpop.f32.mrb[0].mxu0
    %v5177 = vpop.f32.mrb[0].mxu0
    %5178 = vdwg.mxu0
    %v5179 = vadd.f32 %v4900, %v5132
    %v5180 = vadd.f32 %v4901, %v5134
    %v5181 = vadd.f32 %v4902, %v5173
    %v5182 = vadd.f32 %v4903, %v5175
    %v5183 = vxor.u32 %v5179, 2147483648
    %v5184 = vmul.f32 %v5183, 1.442695
    %v5185 = vpow.pop %v5184
    %v5186 = vadd.f32 %v5185, 1.0
    %v5187 = vrcp.pop %v5186
    %v5188 = vmul.f32 1.0, %v5187
    %v5189 = vxor.u32 %v5180, 2147483648
    %v5190 = vmul.f32 %v5189, 1.442695
    %v5191 = vpow.pop %v5190
    %v5192 = vadd.f32 %v5191, 1.0
    %v5193 = vrcp.pop %v5192
    %v5194 = vmul.f32 1.0, %v5193
    %v5195 = vtanh.pop %v5181
    %v5196 = vxor.u32 %v5182, 2147483648
    %v5197 = vmul.f32 %v5196, 1.442695
    %v5198 = vpow.pop %v5197
    %v5199 = vadd.f32 %v5198, 1.0
    %v5200 = vrcp.pop %v5199
    %v5201 = vmul.f32 1.0, %v5200
    %v5202 = vmul.f32 %v5194, %v4896
    %v5203 = vmul.f32 %v5188, %v5195
    %v5204 = vadd.f32 %v5202, %v5203
    %v5205 = vtanh.pop %v5204
    %v5206 = vmul.f32 %v5201, %v5205
    %5207 = vst [vmem:[%s2324] sm:$0xff] %v5206
    %v5208 = vld [vmem:[%s2328] sm:$0xff]
    %v5209 = vld [vmem:[%s2328 + $0x8] sm:$0xff]
    %v5210 = vld [vmem:[%s2328 + $0x10] sm:$0xff]
    %v5211 = vld [vmem:[%s2328 + $0x18] sm:$0xff]
    %v5212 = vpack.c.bf16 %v5206, %v5206
    %v5213 = vld [vmem:[#allocation16] sm:$0xff]
    %v5214 = vld [vmem:[#allocation16 + $0x8] sm:$0xff]
    %v5215 = vld [vmem:[#allocation16 + $0x10] sm:$0xff]
    %v5216 = vld [vmem:[#allocation16 + $0x18] sm:$0xff]
    %v5217 = vld [vmem:[#allocation16 + $0x20] sm:$0xff]
    %v5218 = vld [vmem:[#allocation16 + $0x28] sm:$0xff]
    %v5219 = vld [vmem:[#allocation16 + $0x30] sm:$0xff]
    %v5220 = vld [vmem:[#allocation16 + $0x38] sm:$0xff]
    %v5221 = vld [vmem:[#allocation16 + $0x40] sm:$0xff]
    %v5222 = vld [vmem:[#allocation16 + $0x48] sm:$0xff]
    %v5223 = vld [vmem:[#allocation16 + $0x50] sm:$0xff]
    %v5224 = vld [vmem:[#allocation16 + $0x58] sm:$0xff]
    %v5225 = vld [vmem:[#allocation16 + $0x60] sm:$0xff]
    %v5226 = vld [vmem:[#allocation16 + $0x68] sm:$0xff]
    %v5227 = vld [vmem:[#allocation16 + $0x70] sm:$0xff]
    %v5228 = vld [vmem:[#allocation16 + $0x78] sm:$0xff]
    %v5229 = vld [vmem:[#allocation16 + $0x80] sm:$0xff]
    %v5230 = vld [vmem:[#allocation16 + $0x88] sm:$0xff]
    %v5231 = vld [vmem:[#allocation16 + $0x90] sm:$0xff]
    %v5232 = vld [vmem:[#allocation16 + $0x98] sm:$0xff]
    %v5233 = vld [vmem:[#allocation16 + $0xa0] sm:$0xff]
    %v5234 = vld [vmem:[#allocation16 + $0xa8] sm:$0xff]
    %v5235 = vld [vmem:[#allocation16 + $0xb0] sm:$0xff]
    %v5236 = vld [vmem:[#allocation16 + $0xb8] sm:$0xff]
    %v5237 = vld [vmem:[#allocation16 + $0xc0] sm:$0xff]
    %v5238 = vld [vmem:[#allocation16 + $0xc8] sm:$0xff]
    %v5239 = vld [vmem:[#allocation16 + $0xd0] sm:$0xff]
    %v5240 = vld [vmem:[#allocation16 + $0xd8] sm:$0xff]
    %v5241 = vld [vmem:[#allocation16 + $0xe0] sm:$0xff]
    %v5242 = vld [vmem:[#allocation16 + $0xe8] sm:$0xff]
    %v5243 = vld [vmem:[#allocation16 + $0xf0] sm:$0xff]
    %v5244 = vld [vmem:[#allocation16 + $0xf8] sm:$0xff]
    %v5277 = vunpack.c.l.b16 %v5213
    %v5278 = vunpack.c.h.b16 %v5213
    %v5279 = vunpack.c.l.b16 %v5214
    %v5280 = vunpack.c.h.b16 %v5214
    %v5281 = vunpack.c.l.b16 %v5215
    %v5282 = vunpack.c.h.b16 %v5215
    %v5283 = vunpack.c.l.b16 %v5216
    %v5284 = vunpack.c.h.b16 %v5216
    %v5285 = vunpack.c.l.b16 %v5217
    %v5286 = vunpack.c.h.b16 %v5217
    %v5287 = vunpack.c.l.b16 %v5218
    %v5288 = vunpack.c.h.b16 %v5218
    %v5289 = vunpack.c.l.b16 %v5219
    %v5290 = vunpack.c.h.b16 %v5219
    %v5291 = vunpack.c.l.b16 %v5220
    %v5292 = vunpack.c.h.b16 %v5220
    %v5293 = vunpack.c.l.b16 %v5221
    %v5294 = vunpack.c.h.b16 %v5221
    %v5295 = vunpack.c.l.b16 %v5222
    %v5296 = vunpack.c.h.b16 %v5222
    %v5297 = vunpack.c.l.b16 %v5223
    %v5298 = vunpack.c.h.b16 %v5223
    %v5299 = vunpack.c.l.b16 %v5224
    %v5300 = vunpack.c.h.b16 %v5224
    %v5301 = vunpack.c.l.b16 %v5225
    %v5302 = vunpack.c.h.b16 %v5225
    %v5303 = vunpack.c.l.b16 %v5226
    %v5304 = vunpack.c.h.b16 %v5226
    %v5305 = vunpack.c.l.b16 %v5227
    %v5306 = vunpack.c.h.b16 %v5227
    %v5307 = vunpack.c.l.b16 %v5228
    %v5308 = vunpack.c.h.b16 %v5228
    %v5309 = vunpack.c.l.b16 %v5229
    %v5310 = vunpack.c.h.b16 %v5229
    %v5311 = vunpack.c.l.b16 %v5230
    %v5312 = vunpack.c.h.b16 %v5230
    %v5313 = vunpack.c.l.b16 %v5231
    %v5314 = vunpack.c.h.b16 %v5231
    %v5315 = vunpack.c.l.b16 %v5232
    %v5316 = vunpack.c.h.b16 %v5232
    %v5317 = vunpack.c.l.b16 %v5233
    %v5318 = vunpack.c.h.b16 %v5233
    %v5319 = vunpack.c.l.b16 %v5234
    %v5320 = vunpack.c.h.b16 %v5234
    %v5321 = vunpack.c.l.b16 %v5235
    %v5322 = vunpack.c.h.b16 %v5235
    %v5323 = vunpack.c.l.b16 %v5236
    %v5324 = vunpack.c.h.b16 %v5236
    %v5325 = vunpack.c.l.b16 %v5237
    %v5326 = vunpack.c.h.b16 %v5237
    %v5327 = vunpack.c.l.b16 %v5238
    %v5328 = vunpack.c.h.b16 %v5238
    %v5329 = vunpack.c.l.b16 %v5239
    %v5330 = vunpack.c.h.b16 %v5239
    %v5331 = vunpack.c.l.b16 %v5240
    %v5332 = vunpack.c.h.b16 %v5240
    %v5333 = vunpack.c.l.b16 %v5241
    %v5334 = vunpack.c.h.b16 %v5241
    %v5335 = vunpack.c.l.b16 %v5242
    %v5336 = vunpack.c.h.b16 %v5242
    %v5337 = vunpack.c.l.b16 %v5243
    %v5338 = vunpack.c.h.b16 %v5243
    %v5339 = vunpack.c.l.b16 %v5244
    %v5340 = vunpack.c.h.b16 %v5244
    %v5341 = vpack.c.b16 %v5281, %v5277
    %v5342 = vpack.c.b16 %v5282, %v5278
    %v5343 = vpack.c.b16 %v5283, %v5279
    %v5344 = vpack.c.b16 %v5284, %v5280
    %v5345 = vpack.c.b16 %v5289, %v5285
    %v5346 = vpack.c.b16 %v5290, %v5286
    %v5347 = vpack.c.b16 %v5291, %v5287
    %v5348 = vpack.c.b16 %v5292, %v5288
    %v5349 = vpack.c.b16 %v5297, %v5293
    %v5350 = vpack.c.b16 %v5298, %v5294
    %v5351 = vpack.c.b16 %v5299, %v5295
    %v5352 = vpack.c.b16 %v5300, %v5296
    %v5353 = vpack.c.b16 %v5305, %v5301
    %v5354 = vpack.c.b16 %v5306, %v5302
    %v5355 = vpack.c.b16 %v5307, %v5303
    %v5356 = vpack.c.b16 %v5308, %v5304
    %v5357 = vpack.c.b16 %v5313, %v5309
    %v5358 = vpack.c.b16 %v5314, %v5310
    %v5359 = vpack.c.b16 %v5315, %v5311
    %v5360 = vpack.c.b16 %v5316, %v5312
    %v5361 = vpack.c.b16 %v5321, %v5317
    %v5362 = vpack.c.b16 %v5322, %v5318
    %v5363 = vpack.c.b16 %v5323, %v5319
    %v5364 = vpack.c.b16 %v5324, %v5320
    %v5365 = vpack.c.b16 %v5329, %v5325
    %v5366 = vpack.c.b16 %v5330, %v5326
    %v5367 = vpack.c.b16 %v5331, %v5327
    %v5368 = vpack.c.b16 %v5332, %v5328
    %v5369 = vpack.c.b16 %v5337, %v5333
    %v5370 = vpack.c.b16 %v5338, %v5334
    %v5371 = vpack.c.b16 %v5339, %v5335
    %v5372 = vpack.c.b16 %v5340, %v5336
    %5405 = vmatprep.subr.bf16.mxu0 %v5342
    %5406 = vmatpush1.bf16.msra.mxu0 %v5341
    %5407 = vmatprep.subr.bf16.mxu0 %v5346
    %5408 = vmatpush1.bf16.msra.mxu0 %v5345
    %5409 = vmatprep.subr.bf16.mxu0 %v5350
    %5410 = vmatpush1.bf16.msra.mxu0 %v5349
    %5411 = vmatprep.subr.bf16.mxu0 %v5354
    %5412 = vmatpush1.bf16.msra.mxu0 %v5353
    %5413 = vmatprep.subr.bf16.mxu0 %v5358
    %5414 = vmatpush1.bf16.msra.mxu0 %v5357
    %5415 = vmatprep.subr.bf16.mxu0 %v5362
    %5416 = vmatpush1.bf16.msra.mxu0 %v5361
    %5417 = vmatprep.subr.bf16.mxu0 %v5366
    %5418 = vmatpush1.bf16.msra.mxu0 %v5365
    %5419 = vmatprep.subr.bf16.mxu0 %v5370
    %5420 = vmatpush1.bf16.msra.mxu0 %v5369
    %5421 = vmatprep.subr.bf16.mxu0 0
    %5422 = vmatpush1.bf16.msra.mxu0 0
    %5423 = vmatprep.subr.bf16.mxu0 0
    %5424 = vmatpush1.bf16.msra.mxu0 0
    %5425 = vmatprep.subr.bf16.mxu0 0
    %5426 = vmatpush1.bf16.msra.mxu0 0
    %5427 = vmatprep.subr.bf16.mxu0 0
    %5428 = vmatpush1.bf16.msra.mxu0 0
    %5429 = vmatprep.subr.bf16.mxu0 0
    %5430 = vmatpush1.bf16.msra.mxu0 0
    %5431 = vmatprep.subr.bf16.mxu0 0
    %5432 = vmatpush1.bf16.msra.mxu0 0
    %5433 = vmatprep.subr.bf16.mxu0 0
    %5434 = vmatpush1.bf16.msra.mxu0 0
    %5435 = vmatprep.subr.bf16.mxu0 0
    %5436 = vmatpush1.bf16.msra.mxu0 0
    %5437 = vmatprep.mubr.bf16.mxu0 0
    %5438 = vmatmul.mubr.bf16.gmra.mrb[0].mxu0 %v5212
    %v5439 = vpop.f32.mrb[0].mxu0
    %v5440 = vadd.f32 0.0, %v5439
    %v5441 = vpop.f32.mrb[0].mxu0
    %v5442 = vadd.f32 0.0, %v5441
    %v5443 = vpop.f32.mrb[0].mxu0
    %v5444 = vpop.f32.mrb[0].mxu0
    %5445 = vdwg.mxu0
    %5446 = vmatprep.subr.bf16.mxu0 %v5344
    %5447 = vmatpush1.bf16.msra.mxu0 %v5343
    %5448 = vmatprep.subr.bf16.mxu0 %v5348
    %5449 = vmatpush1.bf16.msra.mxu0 %v5347
    %5450 = vmatprep.subr.bf16.mxu0 %v5352
    %5451 = vmatpush1.bf16.msra.mxu0 %v5351
    %5452 = vmatprep.subr.bf16.mxu0 %v5356
    %5453 = vmatpush1.bf16.msra.mxu0 %v5355
    %5454 = vmatprep.subr.bf16.mxu0 %v5360
    %5455 = vmatpush1.bf16.msra.mxu0 %v5359
    %5456 = vmatprep.subr.bf16.mxu0 %v5364
    %5457 = vmatpush1.bf16.msra.mxu0 %v5363
    %5458 = vmatprep.subr.bf16.mxu0 %v5368
    %5459 = vmatpush1.bf16.msra.mxu0 %v5367
    %5460 = vmatprep.subr.bf16.mxu0 %v5372
    %5461 = vmatpush1.bf16.msra.mxu0 %v5371
    %5462 = vmatprep.subr.bf16.mxu0 0
    %5463 = vmatpush1.bf16.msra.mxu0 0
    %5464 = vmatprep.subr.bf16.mxu0 0
    %5465 = vmatpush1.bf16.msra.mxu0 0
    %5466 = vmatprep.subr.bf16.mxu0 0
    %5467 = vmatpush1.bf16.msra.mxu0 0
    %5468 = vmatprep.subr.bf16.mxu0 0
    %5469 = vmatpush1.bf16.msra.mxu0 0
    %5470 = vmatprep.subr.bf16.mxu0 0
    %5471 = vmatpush1.bf16.msra.mxu0 0
    %5472 = vmatprep.subr.bf16.mxu0 0
    %5473 = vmatpush1.bf16.msra.mxu0 0
    %5474 = vmatprep.subr.bf16.mxu0 0
    %5475 = vmatpush1.bf16.msra.mxu0 0
    %5476 = vmatprep.subr.bf16.mxu0 0
    %5477 = vmatpush1.bf16.msra.mxu0 0
    %5478 = vmatprep.mubr.bf16.mxu0 0
    %5479 = vmatmul.mubr.bf16.gmra.mrb[0].mxu0 %v5212
    %v5480 = vpop.f32.mrb[0].mxu0
    %v5481 = vadd.f32 0.0, %v5480
    %v5482 = vpop.f32.mrb[0].mxu0
    %v5483 = vadd.f32 0.0, %v5482
    %v5484 = vpop.f32.mrb[0].mxu0
    %v5485 = vpop.f32.mrb[0].mxu0
    %5486 = vdwg.mxu0
    %v5487 = vadd.f32 %v5208, %v5440
    %v5488 = vadd.f32 %v5209, %v5442
    %v5489 = vadd.f32 %v5210, %v5481
    %v5490 = vadd.f32 %v5211, %v5483
    %v5491 = vxor.u32 %v5487, 2147483648
    %v5492 = vmul.f32 %v5491, 1.442695
    %v5493 = vpow.pop %v5492
    %v5494 = vadd.f32 %v5493, 1.0
    %v5495 = vrcp.pop %v5494
    %v5496 = vmul.f32 1.0, %v5495
    %v5497 = vxor.u32 %v5488, 2147483648
    %v5498 = vmul.f32 %v5497, 1.442695
    %v5499 = vpow.pop %v5498
    %v5500 = vadd.f32 %v5499, 1.0
    %v5501 = vrcp.pop %v5500
    %v5502 = vmul.f32 1.0, %v5501
    %v5503 = vtanh.pop %v5489
    %v5504 = vxor.u32 %v5490, 2147483648
    %v5505 = vmul.f32 %v5504, 1.442695
    %v5506 = vpow.pop %v5505
    %v5507 = vadd.f32 %v5506, 1.0
    %v5508 = vrcp.pop %v5507
    %v5509 = vmul.f32 1.0, %v5508
    %v5510 = vmul.f32 %v5502, %v5204
    %v5511 = vmul.f32 %v5496, %v5503
    %v5512 = vadd.f32 %v5510, %v5511
    %v5513 = vtanh.pop %v5512
    %v5514 = vmul.f32 %v5509, %v5513
    %5515 = vst [vmem:[%s2636] sm:$0xff] %v5514
    %v5516 = vld [vmem:[%s2640] sm:$0xff]
    %v5517 = vld [vmem:[%s2640 + $0x8] sm:$0xff]
    %v5518 = vld [vmem:[%s2640 + $0x10] sm:$0xff]
    %v5519 = vld [vmem:[%s2640 + $0x18] sm:$0xff]
    %v5520 = vpack.c.bf16 %v5514, %v5514
    %v5521 = vld [vmem:[#allocation16] sm:$0xff]
    %v5522 = vld [vmem:[#allocation16 + $0x8] sm:$0xff]
    %v5523 = vld [vmem:[#allocation16 + $0x10] sm:$0xff]
    %v5524 = vld [vmem:[#allocation16 + $0x18] sm:$0xff]
    %v5525 = vld [vmem:[#allocation16 + $0x20] sm:$0xff]
    %v5526 = vld [vmem:[#allocation16 + $0x28] sm:$0xff]
    %v5527 = vld [vmem:[#allocation16 + $0x30] sm:$0xff]
    %v5528 = vld [vmem:[#allocation16 + $0x38] sm:$0xff]
    %v5529 = vld [vmem:[#allocation16 + $0x40] sm:$0xff]
    %v5530 = vld [vmem:[#allocation16 + $0x48] sm:$0xff]
    %v5531 = vld [vmem:[#allocation16 + $0x50] sm:$0xff]
    %v5532 = vld [vmem:[#allocation16 + $0x58] sm:$0xff]
    %v5533 = vld [vmem:[#allocation16 + $0x60] sm:$0xff]
    %v5534 = vld [vmem:[#allocation16 + $0x68] sm:$0xff]
    %v5535 = vld [vmem:[#allocation16 + $0x70] sm:$0xff]
    %v5536 = vld [vmem:[#allocation16 + $0x78] sm:$0xff]
    %v5537 = vld [vmem:[#allocation16 + $0x80] sm:$0xff]
    %v5538 = vld [vmem:[#allocation16 + $0x88] sm:$0xff]
    %v5539 = vld [vmem:[#allocation16 + $0x90] sm:$0xff]
    %v5540 = vld [vmem:[#allocation16 + $0x98] sm:$0xff]
    %v5541 = vld [vmem:[#allocation16 + $0xa0] sm:$0xff]
    %v5542 = vld [vmem:[#allocation16 + $0xa8] sm:$0xff]
    %v5543 = vld [vmem:[#allocation16 + $0xb0] sm:$0xff]
    %v5544 = vld [vmem:[#allocation16 + $0xb8] sm:$0xff]
    %v5545 = vld [vmem:[#allocation16 + $0xc0] sm:$0xff]
    %v5546 = vld [vmem:[#allocation16 + $0xc8] sm:$0xff]
    %v5547 = vld [vmem:[#allocation16 + $0xd0] sm:$0xff]
    %v5548 = vld [vmem:[#allocation16 + $0xd8] sm:$0xff]
    %v5549 = vld [vmem:[#allocation16 + $0xe0] sm:$0xff]
    %v5550 = vld [vmem:[#allocation16 + $0xe8] sm:$0xff]
    %v5551 = vld [vmem:[#allocation16 + $0xf0] sm:$0xff]
    %v5552 = vld [vmem:[#allocation16 + $0xf8] sm:$0xff]
    %v5585 = vunpack.c.l.b16 %v5521
    %v5586 = vunpack.c.h.b16 %v5521
    %v5587 = vunpack.c.l.b16 %v5522
    %v5588 = vunpack.c.h.b16 %v5522
    %v5589 = vunpack.c.l.b16 %v5523
    %v5590 = vunpack.c.h.b16 %v5523
    %v5591 = vunpack.c.l.b16 %v5524
    %v5592 = vunpack.c.h.b16 %v5524
    %v5593 = vunpack.c.l.b16 %v5525
    %v5594 = vunpack.c.h.b16 %v5525
    %v5595 = vunpack.c.l.b16 %v5526
    %v5596 = vunpack.c.h.b16 %v5526
    %v5597 = vunpack.c.l.b16 %v5527
    %v5598 = vunpack.c.h.b16 %v5527
    %v5599 = vunpack.c.l.b16 %v5528
    %v5600 = vunpack.c.h.b16 %v5528
    %v5601 = vunpack.c.l.b16 %v5529
    %v5602 = vunpack.c.h.b16 %v5529
    %v5603 = vunpack.c.l.b16 %v5530
    %v5604 = vunpack.c.h.b16 %v5530
    %v5605 = vunpack.c.l.b16 %v5531
    %v5606 = vunpack.c.h.b16 %v5531
    %v5607 = vunpack.c.l.b16 %v5532
    %v5608 = vunpack.c.h.b16 %v5532
    %v5609 = vunpack.c.l.b16 %v5533
    %v5610 = vunpack.c.h.b16 %v5533
    %v5611 = vunpack.c.l.b16 %v5534
    %v5612 = vunpack.c.h.b16 %v5534
    %v5613 = vunpack.c.l.b16 %v5535
    %v5614 = vunpack.c.h.b16 %v5535
    %v5615 = vunpack.c.l.b16 %v5536
    %v5616 = vunpack.c.h.b16 %v5536
    %v5617 = vunpack.c.l.b16 %v5537
    %v5618 = vunpack.c.h.b16 %v5537
    %v5619 = vunpack.c.l.b16 %v5538
    %v5620 = vunpack.c.h.b16 %v5538
    %v5621 = vunpack.c.l.b16 %v5539
    %v5622 = vunpack.c.h.b16 %v5539
    %v5623 = vunpack.c.l.b16 %v5540
    %v5624 = vunpack.c.h.b16 %v5540
    %v5625 = vunpack.c.l.b16 %v5541
    %v5626 = vunpack.c.h.b16 %v5541
    %v5627 = vunpack.c.l.b16 %v5542
    %v5628 = vunpack.c.h.b16 %v5542
    %v5629 = vunpack.c.l.b16 %v5543
    %v5630 = vunpack.c.h.b16 %v5543
    %v5631 = vunpack.c.l.b16 %v5544
    %v5632 = vunpack.c.h.b16 %v5544
    %v5633 = vunpack.c.l.b16 %v5545
    %v5634 = vunpack.c.h.b16 %v5545
    %v5635 = vunpack.c.l.b16 %v5546
    %v5636 = vunpack.c.h.b16 %v5546
    %v5637 = vunpack.c.l.b16 %v5547
    %v5638 = vunpack.c.h.b16 %v5547
    %v5639 = vunpack.c.l.b16 %v5548
    %v5640 = vunpack.c.h.b16 %v5548
    %v5641 = vunpack.c.l.b16 %v5549
    %v5642 = vunpack.c.h.b16 %v5549
    %v5643 = vunpack.c.l.b16 %v5550
    %v5644 = vunpack.c.h.b16 %v5550
    %v5645 = vunpack.c.l.b16 %v5551
    %v5646 = vunpack.c.h.b16 %v5551
    %v5647 = vunpack.c.l.b16 %v5552
    %v5648 = vunpack.c.h.b16 %v5552
    %v5649 = vpack.c.b16 %v5589, %v5585
    %v5650 = vpack.c.b16 %v5590, %v5586
    %v5651 = vpack.c.b16 %v5591, %v5587
    %v5652 = vpack.c.b16 %v5592, %v5588
    %v5653 = vpack.c.b16 %v5597, %v5593
    %v5654 = vpack.c.b16 %v5598, %v5594
    %v5655 = vpack.c.b16 %v5599, %v5595
    %v5656 = vpack.c.b16 %v5600, %v5596
    %v5657 = vpack.c.b16 %v5605, %v5601
    %v5658 = vpack.c.b16 %v5606, %v5602
    %v5659 = vpack.c.b16 %v5607, %v5603
    %v5660 = vpack.c.b16 %v5608, %v5604
    %v5661 = vpack.c.b16 %v5613, %v5609
    %v5662 = vpack.c.b16 %v5614, %v5610
    %v5663 = vpack.c.b16 %v5615, %v5611
    %v5664 = vpack.c.b16 %v5616, %v5612
    %v5665 = vpack.c.b16 %v5621, %v5617
    %v5666 = vpack.c.b16 %v5622, %v5618
    %v5667 = vpack.c.b16 %v5623, %v5619
    %v5668 = vpack.c.b16 %v5624, %v5620
    %v5669 = vpack.c.b16 %v5629, %v5625
    %v5670 = vpack.c.b16 %v5630, %v5626
    %v5671 = vpack.c.b16 %v5631, %v5627
    %v5672 = vpack.c.b16 %v5632, %v5628
    %v5673 = vpack.c.b16 %v5637, %v5633
    %v5674 = vpack.c.b16 %v5638, %v5634
    %v5675 = vpack.c.b16 %v5639, %v5635
    %v5676 = vpack.c.b16 %v5640, %v5636
    %v5677 = vpack.c.b16 %v5645, %v5641
    %v5678 = vpack.c.b16 %v5646, %v5642
    %v5679 = vpack.c.b16 %v5647, %v5643
    %v5680 = vpack.c.b16 %v5648, %v5644
    %5713 = vmatprep.subr.bf16.mxu0 %v5650
    %5714 = vmatpush1.bf16.msra.mxu0 %v5649
    %5715 = vmatprep.subr.bf16.mxu0 %v5654
    %5716 = vmatpush1.bf16.msra.mxu0 %v5653
    %5717 = vmatprep.subr.bf16.mxu0 %v5658
    %5718 = vmatpush1.bf16.msra.mxu0 %v5657
    %5719 = vmatprep.subr.bf16.mxu0 %v5662
    %5720 = vmatpush1.bf16.msra.mxu0 %v5661
    %5721 = vmatprep.subr.bf16.mxu0 %v5666
    %5722 = vmatpush1.bf16.msra.mxu0 %v5665
    %5723 = vmatprep.subr.bf16.mxu0 %v5670
    %5724 = vmatpush1.bf16.msra.mxu0 %v5669
    %5725 = vmatprep.subr.bf16.mxu0 %v5674
    %5726 = vmatpush1.bf16.msra.mxu0 %v5673
    %5727 = vmatprep.subr.bf16.mxu0 %v5678
    %5728 = vmatpush1.bf16.msra.mxu0 %v5677
    %5729 = vmatprep.subr.bf16.mxu0 0
    %5730 = vmatpush1.bf16.msra.mxu0 0
    %5731 = vmatprep.subr.bf16.mxu0 0
    %5732 = vmatpush1.bf16.msra.mxu0 0
    %5733 = vmatprep.subr.bf16.mxu0 0
    %5734 = vmatpush1.bf16.msra.mxu0 0
    %5735 = vmatprep.subr.bf16.mxu0 0
    %5736 = vmatpush1.bf16.msra.mxu0 0
    %5737 = vmatprep.subr.bf16.mxu0 0
    %5738 = vmatpush1.bf16.msra.mxu0 0
    %5739 = vmatprep.subr.bf16.mxu0 0
    %5740 = vmatpush1.bf16.msra.mxu0 0
    %5741 = vmatprep.subr.bf16.mxu0 0
    %5742 = vmatpush1.bf16.msra.mxu0 0
    %5743 = vmatprep.subr.bf16.mxu0 0
    %5744 = vmatpush1.bf16.msra.mxu0 0
    %5745 = vmatprep.mubr.bf16.mxu0 0
    %5746 = vmatmul.mubr.bf16.gmra.mrb[0].mxu0 %v5520
    %v5747 = vpop.f32.mrb[0].mxu0
    %v5748 = vadd.f32 0.0, %v5747
    %v5749 = vpop.f32.mrb[0].mxu0
    %v5750 = vadd.f32 0.0, %v5749
    %v5751 = vpop.f32.mrb[0].mxu0
    %v5752 = vpop.f32.mrb[0].mxu0
    %5753 = vdwg.mxu0
    %5754 = vmatprep.subr.bf16.mxu0 %v5652
    %5755 = vmatpush1.bf16.msra.mxu0 %v5651
    %5756 = vmatprep.subr.bf16.mxu0 %v5656
    %5757 = vmatpush1.bf16.msra.mxu0 %v5655
    %5758 = vmatprep.subr.bf16.mxu0 %v5660
    %5759 = vmatpush1.bf16.msra.mxu0 %v5659
    %5760 = vmatprep.subr.bf16.mxu0 %v5664
    %5761 = vmatpush1.bf16.msra.mxu0 %v5663
    %5762 = vmatprep.subr.bf16.mxu0 %v5668
    %5763 = vmatpush1.bf16.msra.mxu0 %v5667
    %5764 = vmatprep.subr.bf16.mxu0 %v5672
    %5765 = vmatpush1.bf16.msra.mxu0 %v5671
    %5766 = vmatprep.subr.bf16.mxu0 %v5676
    %5767 = vmatpush1.bf16.msra.mxu0 %v5675
    %5768 = vmatprep.subr.bf16.mxu0 %v5680
    %5769 = vmatpush1.bf16.msra.mxu0 %v5679
    %5770 = vmatprep.subr.bf16.mxu0 0
    %5771 = vmatpush1.bf16.msra.mxu0 0
    %5772 = vmatprep.subr.bf16.mxu0 0
    %5773 = vmatpush1.bf16.msra.mxu0 0
    %5774 = vmatprep.subr.bf16.mxu0 0
    %5775 = vmatpush1.bf16.msra.mxu0 0
    %5776 = vmatprep.subr.bf16.mxu0 0
    %5777 = vmatpush1.bf16.msra.mxu0 0
    %5778 = vmatprep.subr.bf16.mxu0 0
    %5779 = vmatpush1.bf16.msra.mxu0 0
    %5780 = vmatprep.subr.bf16.mxu0 0
    %5781 = vmatpush1.bf16.msra.mxu0 0
    %5782 = vmatprep.subr.bf16.mxu0 0
    %5783 = vmatpush1.bf16.msra.mxu0 0
    %5784 = vmatprep.subr.bf16.mxu0 0
    %5785 = vmatpush1.bf16.msra.mxu0 0
    %5786 = vmatprep.mubr.bf16.mxu0 0
    %5787 = vmatmul.mubr.bf16.gmra.mrb[0].mxu0 %v5520
    %v5788 = vpop.f32.mrb[0].mxu0
    %v5789 = vadd.f32 0.0, %v5788
    %v5790 = vpop.f32.mrb[0].mxu0
    %v5791 = vadd.f32 0.0, %v5790
    %v5792 = vpop.f32.mrb[0].mxu0
    %v5793 = vpop.f32.mrb[0].mxu0
    %5794 = vdwg.mxu0
    %v5795 = vadd.f32 %v5516, %v5748
    %v5796 = vadd.f32 %v5517, %v5750
    %v5797 = vadd.f32 %v5518, %v5789
    %v5798 = vadd.f32 %v5519, %v5791
    %v5799 = vxor.u32 %v5795, 2147483648
    %v5800 = vmul.f32 %v5799, 1.442695
    %v5801 = vpow.pop %v5800
    %v5802 = vadd.f32 %v5801, 1.0
    %v5803 = vrcp.pop %v5802
    %v5804 = vmul.f32 1.0, %v5803
    %v5805 = vxor.u32 %v5796, 2147483648
    %v5806 = vmul.f32 %v5805, 1.442695
    %v5807 = vpow.pop %v5806
    %v5808 = vadd.f32 %v5807, 1.0
    %v5809 = vrcp.pop %v5808
    %v5810 = vmul.f32 1.0, %v5809
    %v5811 = vtanh.pop %v5797
    %v5812 = vxor.u32 %v5798, 2147483648
    %v5813 = vmul.f32 %v5812, 1.442695
    %v5814 = vpow.pop %v5813
    %v5815 = vadd.f32 %v5814, 1.0
    %v5816 = vrcp.pop %v5815
    %v5817 = vmul.f32 1.0, %v5816
    %v5818 = vmul.f32 %v5810, %v5512
    %v5819 = vmul.f32 %v5804, %v5811
    %v5820 = vadd.f32 %v5818, %v5819
    %v5821 = vtanh.pop %v5820
    %v5822 = vmul.f32 %v5817, %v5821
    %5823 = vst [vmem:[%s2948] sm:$0xff] %v5822
    %5824 = vst [vmem:[%s3356] sm:$0xff] %v5822
    %5825 = vst [vmem:[%s3358] sm:$0xff] %v5820
    %v5826 = vld [vmem:[#allocation3] sm:$0xff]
    %v5827 = vld [vmem:[#allocation3 + $0x8] sm:$0xff]
    %v5828 = vld [vmem:[#allocation3 + $0x10] sm:$0xff]
    %v5829 = vld [vmem:[#allocation3 + $0x18] sm:$0xff]
    %v5830 = vld [vmem:[#allocation3 + $0x20] sm:$0xff]
    %v5831 = vld [vmem:[#allocation3 + $0x28] sm:$0xff]
    %v5832 = vld [vmem:[#allocation3 + $0x30] sm:$0xff]
    %v5833 = vld [vmem:[#allocation3 + $0x38] sm:$0xff]
    %v5834 = vpack.c.bf16 %v5827, %v5826
    %v5835 = vpack.c.bf16 %v5829, %v5828
    %v5836 = vpack.c.bf16 %v5831, %v5830
    %v5837 = vpack.c.bf16 %v5833, %v5832
    %v5838 = vld [vmem:[#allocation19] sm:$0xf]
    %v5839 = vld [vmem:[#allocation19 + $0x4] sm:$0xf]
    %v5840 = vld [vmem:[#allocation19 + $0x8] sm:$0xf]
    %v5841 = vld [vmem:[#allocation19 + $0xc] sm:$0xf]
    %v5842 = vld [vmem:[#allocation19 + $0x10] sm:$0xf]
    %v5843 = vld [vmem:[#allocation19 + $0x14] sm:$0xf]
    %v5844 = vld [vmem:[#allocation19 + $0x18] sm:$0xf]
    %v5845 = vld [vmem:[#allocation19 + $0x1c] sm:$0xf]
    %v5846 = vld [vmem:[#allocation19 + $0x20] sm:$0xf]
    %v5847 = vld [vmem:[#allocation19 + $0x24] sm:$0xf]
    %v5848 = vld [vmem:[#allocation19 + $0x28] sm:$0xf]
    %v5849 = vld [vmem:[#allocation19 + $0x2c] sm:$0xf]
    %v5850 = vld [vmem:[#allocation19 + $0x30] sm:$0xf]
    %v5851 = vld [vmem:[#allocation19 + $0x34] sm:$0xf]
    %v5852 = vld [vmem:[#allocation19 + $0x38] sm:$0xf]
    %v5853 = vld [vmem:[#allocation19 + $0x3c] sm:$0xf]
    %v5854 = vld [vmem:[#allocation21] sm:$0x1]
    %v5856 = vlaneseq
    %v5857 = vshrl.u32 %v5856, 7
    %v5858 = vsub.s32 0, %v5857
    %v5859 = vrot.slane %v5854, %v5858
    %v5877 = vunpack.c.l.b16 %v5838
    %v5878 = vunpack.c.l.b16 %v5839
    %v5879 = vunpack.c.l.b16 %v5840
    %v5880 = vunpack.c.l.b16 %v5841
    %v5881 = vunpack.c.l.b16 %v5842
    %v5882 = vunpack.c.l.b16 %v5843
    %v5883 = vunpack.c.l.b16 %v5844
    %v5884 = vunpack.c.l.b16 %v5845
    %v5885 = vunpack.c.l.b16 %v5846
    %v5886 = vunpack.c.l.b16 %v5847
    %v5887 = vunpack.c.l.b16 %v5848
    %v5888 = vunpack.c.l.b16 %v5849
    %v5889 = vunpack.c.l.b16 %v5850
    %v5890 = vunpack.c.l.b16 %v5851
    %v5891 = vunpack.c.l.b16 %v5852
    %v5892 = vunpack.c.l.b16 %v5853
    %v5893 = vpack.c.b16 %v5878, %v5877
    %v5894 = vpack.c.b16 %v5880, %v5879
    %v5895 = vpack.c.b16 %v5882, %v5881
    %v5896 = vpack.c.b16 %v5884, %v5883
    %v5897 = vpack.c.b16 %v5886, %v5885
    %v5898 = vpack.c.b16 %v5888, %v5887
    %v5899 = vpack.c.b16 %v5890, %v5889
    %v5900 = vpack.c.b16 %v5892, %v5891
    %5909 = vmatprep.subr.bf16.mxu0 0
    %5910 = vmatpush1.bf16.msra.mxu0 %v5893
    %5911 = vmatprep.subr.bf16.mxu0 0
    %5912 = vmatpush1.bf16.msra.mxu0 %v5894
    %5913 = vmatprep.subr.bf16.mxu0 0
    %5914 = vmatpush1.bf16.msra.mxu0 %v5895
    %5915 = vmatprep.subr.bf16.mxu0 0
    %5916 = vmatpush1.bf16.msra.mxu0 %v5896
    %5917 = vmatprep.subr.bf16.mxu0 0
    %5918 = vmatpush1.bf16.msra.mxu0 %v5897
    %5919 = vmatprep.subr.bf16.mxu0 0
    %5920 = vmatpush1.bf16.msra.mxu0 %v5898
    %5921 = vmatprep.subr.bf16.mxu0 0
    %5922 = vmatpush1.bf16.msra.mxu0 %v5899
    %5923 = vmatprep.subr.bf16.mxu0 0
    %5924 = vmatpush1.bf16.msra.mxu0 %v5900
    %5925 = vmatprep.subr.bf16.mxu0 0
    %5926 = vmatpush1.bf16.msra.mxu0 0
    %5927 = vmatprep.subr.bf16.mxu0 0
    %5928 = vmatpush1.bf16.msra.mxu0 0
    %5929 = vmatprep.subr.bf16.mxu0 0
    %5930 = vmatpush1.bf16.msra.mxu0 0
    %5931 = vmatprep.subr.bf16.mxu0 0
    %5932 = vmatpush1.bf16.msra.mxu0 0
    %5933 = vmatprep.subr.bf16.mxu0 0
    %5934 = vmatpush1.bf16.msra.mxu0 0
    %5935 = vmatprep.subr.bf16.mxu0 0
    %5936 = vmatpush1.bf16.msra.mxu0 0
    %5937 = vmatprep.subr.bf16.mxu0 0
    %5938 = vmatpush1.bf16.msra.mxu0 0
    %5939 = vmatprep.subr.bf16.mxu0 0
    %5940 = vmatpush1.bf16.msra.mxu0 0
    %5941 = vmatprep.mubr.bf16.mxu0 0
    %5942 = vmatmul.mubr.bf16.gmra.mrb[0].mxu0 %v5834
    %v5943 = vpop.f32.mrb[0].mxu0
    %v5944 = vadd.f32 %v5859, %v5943
    %v5945 = vpop.f32.mrb[0].mxu0
    %v5946 = vpop.f32.mrb[0].mxu0
    %v5947 = vadd.f32 %v5859, %v5946
    %v5948 = vpop.f32.mrb[0].mxu0
    %5949 = vmatprep.mubr.bf16.mxu0 0
    %5950 = vmatmul.mubr.bf16.gmra.mrb[0].mxu0 %v5835
    %v5951 = vpop.f32.mrb[0].mxu0
    %v5952 = vadd.f32 %v5859, %v5951
    %v5953 = vpop.f32.mrb[0].mxu0
    %v5954 = vpop.f32.mrb[0].mxu0
    %v5955 = vadd.f32 %v5859, %v5954
    %v5956 = vpop.f32.mrb[0].mxu0
    %5957 = vmatprep.mubr.bf16.mxu0 0
    %5958 = vmatmul.mubr.bf16.gmra.mrb[0].mxu0 %v5836
    %v5959 = vpop.f32.mrb[0].mxu0
    %v5960 = vadd.f32 %v5859, %v5959
    %v5961 = vpop.f32.mrb[0].mxu0
    %v5962 = vpop.f32.mrb[0].mxu0
    %v5963 = vadd.f32 %v5859, %v5962
    %v5964 = vpop.f32.mrb[0].mxu0
    %5965 = vmatprep.mubr.bf16.mxu0 0
    %5966 = vmatmul.mubr.bf16.gmra.mrb[0].mxu0 %v5837
    %v5967 = vpop.f32.mrb[0].mxu0
    %v5968 = vadd.f32 %v5859, %v5967
    %v5969 = vpop.f32.mrb[0].mxu0
    %v5970 = vpop.f32.mrb[0].mxu0
    %v5971 = vadd.f32 %v5859, %v5970
    %v5972 = vpop.f32.mrb[0].mxu0
    %5973 = vdwg.mxu0
    %5974 = vst [vmem:[#allocation24] sm:$0xff] %v5944
    %5975 = vst [vmem:[#allocation24 + $0x8] sm:$0xff] %v5947
    %5976 = vst [vmem:[#allocation24 + $0x10] sm:$0xff] %v5952
    %5977 = vst [vmem:[#allocation24 + $0x18] sm:$0xff] %v5955
    %5978 = vst [vmem:[#allocation24 + $0x20] sm:$0xff] %v5960
    %5979 = vst [vmem:[#allocation24 + $0x28] sm:$0xff] %v5963
    %5980 = vst [vmem:[#allocation24 + $0x30] sm:$0xff] %v5968
    %5981 = vst [vmem:[#allocation24 + $0x38] sm:$0xff] %v5971
    %v5982 = vld [vmem:[#allocation22] sm:$0xff]
    %v5983 = vlaneseq
    %v5984 = vand.u32 %v5983, 127
    %vm5985 = vcmp.lt.s32.totalorder %v5984, 32
    %v5986 = vsel %vm5985, %v5944, -1e+30
    %v5987 = vsel %vm5985, %v5947, -1e+30
    %v5988 = vsel %vm5985, %v5952, -1e+30
    %v5989 = vsel %vm5985, %v5955, -1e+30
    %v5990 = vsel %vm5985, %v5960, -1e+30
    %v5991 = vsel %vm5985, %v5963, -1e+30
    %v5992 = vsel %vm5985, %v5968, -1e+30
    %v5993 = vsel %vm5985, %v5971, -1e+30
    %5994 = vmax.xlane.f32.xlu0 %v5986
    %v5995 = vpop.xlane.xlu0 %5994
    %5996 = vmax.xlane.f32.xlu0 %v5987
    %v5997 = vpop.xlane.xlu0 %5996
    %5998 = vmax.xlane.f32.xlu0 %v5988
    %v5999 = vpop.xlane.xlu0 %5998
    %6000 = vmax.xlane.f32.xlu0 %v5989
    %v6001 = vpop.xlane.xlu0 %6000
    %6002 = vmax.xlane.f32.xlu0 %v5990
    %v6003 = vpop.xlane.xlu0 %6002
    %6004 = vmax.xlane.f32.xlu0 %v5991
    %v6005 = vpop.xlane.xlu0 %6004
    %6006 = vmax.xlane.f32.xlu0 %v5992
    %v6007 = vpop.xlane.xlu0 %6006
    %6008 = vmax.xlane.f32.xlu0 %v5993
    %v6009 = vpop.xlane.xlu0 %6008
    %v6010 = vsub.f32 %v5986, %v5995
    %v6011 = vsub.f32 %v5987, %v5997
    %v6012 = vsub.f32 %v5988, %v5999
    %v6013 = vsub.f32 %v5989, %v6001
    %v6014 = vsub.f32 %v5990, %v6003
    %v6015 = vsub.f32 %v5991, %v6005
    %v6016 = vsub.f32 %v5992, %v6007
    %v6017 = vsub.f32 %v5993, %v6009
    %v6018 = vmul.f32 %v6010, 1.442695
    %v6019 = vpow.pop %v6018
    %v6020 = vmul.f32 %v6011, 1.442695
    %v6021 = vpow.pop %v6020
    %v6022 = vmul.f32 %v6012, 1.442695
    %v6023 = vpow.pop %v6022
    %v6024 = vmul.f32 %v6013, 1.442695
    %v6025 = vpow.pop %v6024
    %v6026 = vmul.f32 %v6014, 1.442695
    %v6027 = vpow.pop %v6026
    %v6028 = vmul.f32 %v6015, 1.442695
    %v6029 = vpow.pop %v6028
    %v6030 = vmul.f32 %v6016, 1.442695
    %v6031 = vpow.pop %v6030
    %v6032 = vmul.f32 %v6017, 1.442695
    %v6033 = vpow.pop %v6032
    %6034 = vadd.xlane.f32.xlu0 %v6019
    %v6035 = vpop.xlane.xlu0 %6034
    %6036 = vadd.xlane.f32.xlu0 %v6021
    %v6037 = vpop.xlane.xlu0 %6036
    %6038 = vadd.xlane.f32.xlu0 %v6023
    %v6039 = vpop.xlane.xlu0 %6038
    %6040 = vadd.xlane.f32.xlu0 %v6025
    %v6041 = vpop.xlane.xlu0 %6040
    %6042 = vadd.xlane.f32.xlu0 %v6027
    %v6043 = vpop.xlane.xlu0 %6042
    %6044 = vadd.xlane.f32.xlu0 %v6029
    %v6045 = vpop.xlane.xlu0 %6044
    %6046 = vadd.xlane.f32.xlu0 %v6031
    %v6047 = vpop.xlane.xlu0 %6046
    %6048 = vadd.xlane.f32.xlu0 %v6033
    %v6049 = vpop.xlane.xlu0 %6048
    %v6050 = vlog2.pop %v6035
    %v6051 = vmul.f32 %v6050, 0.6931472
    %v6052 = vlog2.pop %v6037
    %v6053 = vmul.f32 %v6052, 0.6931472
    %v6054 = vlog2.pop %v6039
    %v6055 = vmul.f32 %v6054, 0.6931472
    %v6056 = vlog2.pop %v6041
    %v6057 = vmul.f32 %v6056, 0.6931472
    %v6058 = vlog2.pop %v6043
    %v6059 = vmul.f32 %v6058, 0.6931472
    %v6060 = vlog2.pop %v6045
    %v6061 = vmul.f32 %v6060, 0.6931472
    %v6062 = vlog2.pop %v6047
    %v6063 = vmul.f32 %v6062, 0.6931472
    %v6064 = vlog2.pop %v6049
    %v6065 = vmul.f32 %v6064, 0.6931472
    %v6066 = vadd.f32 %v6051, %v5995
    %v6067 = vadd.f32 %v6053, %v5997
    %v6068 = vadd.f32 %v6055, %v5999
    %v6069 = vadd.f32 %v6057, %v6001
    %v6070 = vadd.f32 %v6059, %v6003
    %v6071 = vadd.f32 %v6061, %v6005
    %v6072 = vadd.f32 %v6063, %v6007
    %v6073 = vadd.f32 %v6065, %v6009
    %v6074 = vlaneseq
    %v6075 = vshrl.u32 %v6074, 7
    %v6076 = vsub.s32 0, %v6075
    %v6077 = vrot.slane %v5982, %v6076
    %6079 = vbcast.lane.b32.xlu0 %v6077, 256
    %v6080 = vpop.permute.xlu0 %6079
    %v6081 = vlaneseq
    %v6082 = vshrl.u32 %v6081, 7
    %v6083 = vsub.s32 1, %v6082
    %v6084 = vrot.slane %v5982, %v6083
    %6086 = vbcast.lane.b32.xlu0 %v6084, 256
    %v6087 = vpop.permute.xlu0 %6086
    %v6088 = vlaneseq
    %v6089 = vshrl.u32 %v6088, 7
    %v6090 = vsub.s32 2, %v6089
    %v6091 = vrot.slane %v5982, %v6090
    %6093 = vbcast.lane.b32.xlu0 %v6091, 256
    %v6094 = vpop.permute.xlu0 %6093
    %v6095 = vlaneseq
    %v6096 = vshrl.u32 %v6095, 7
    %v6097 = vsub.s32 3, %v6096
    %v6098 = vrot.slane %v5982, %v6097
    %6100 = vbcast.lane.b32.xlu0 %v6098, 256
    %v6101 = vpop.permute.xlu0 %6100
    %v6102 = vlaneseq
    %v6103 = vshrl.u32 %v6102, 7
    %v6104 = vsub.s32 4, %v6103
    %v6105 = vrot.slane %v5982, %v6104
    %6107 = vbcast.lane.b32.xlu0 %v6105, 256
    %v6108 = vpop.permute.xlu0 %6107
    %v6109 = vlaneseq
    %v6110 = vshrl.u32 %v6109, 7
    %v6111 = vsub.s32 5, %v6110
    %v6112 = vrot.slane %v5982, %v6111
    %6114 = vbcast.lane.b32.xlu0 %v6112, 256
    %v6115 = vpop.permute.xlu0 %6114
    %v6116 = vlaneseq
    %v6117 = vshrl.u32 %v6116, 7
    %v6118 = vsub.s32 6, %v6117
    %v6119 = vrot.slane %v5982, %v6118
    %6121 = vbcast.lane.b32.xlu0 %v6119, 256
    %v6122 = vpop.permute.xlu0 %6121
    %v6123 = vlaneseq
    %v6124 = vshrl.u32 %v6123, 7
    %v6125 = vsub.s32 7, %v6124
    %v6126 = vrot.slane %v5982, %v6125
    %6128 = vbcast.lane.b32.xlu0 %v6126, 256
    %v6129 = vpop.permute.xlu0 %6128
    %vm6130 = vcmp.eq.s32.totalorder %v5984, %v6080
    %vm6131 = vcmp.eq.s32.totalorder %v5984, %v6087
    %vm6132 = vcmp.eq.s32.totalorder %v5984, %v6094
    %vm6133 = vcmp.eq.s32.totalorder %v5984, %v6101
    %vm6134 = vcmp.eq.s32.totalorder %v5984, %v6108
    %vm6135 = vcmp.eq.s32.totalorder %v5984, %v6115
    %vm6136 = vcmp.eq.s32.totalorder %v5984, %v6122
    %vm6137 = vcmp.eq.s32.totalorder %v5984, %v6129
    %v6138 = vsel %vm6130, 1, 0
    %v6139 = vsel %vm6131, 1, 0
    %v6140 = vsel %vm6132, 1, 0
    %v6141 = vsel %vm6133, 1, 0
    %v6142 = vsel %vm6134, 1, 0
    %v6143 = vsel %vm6135, 1, 0
    %v6144 = vsel %vm6136, 1, 0
    %v6145 = vsel %vm6137, 1, 0
    %v6146 = vcvt.s32.f32 %v6138
    %v6147 = vcvt.s32.f32 %v6139
    %v6148 = vcvt.s32.f32 %v6140
    %v6149 = vcvt.s32.f32 %v6141
    %v6150 = vcvt.s32.f32 %v6142
    %v6151 = vcvt.s32.f32 %v6143
    %v6152 = vcvt.s32.f32 %v6144
    %v6153 = vcvt.s32.f32 %v6145
    %v6154 = vmul.f32 %v5944, %v6146
    %v6155 = vmul.f32 %v5947, %v6147
    %v6156 = vmul.f32 %v5952, %v6148
    %v6157 = vmul.f32 %v5955, %v6149
    %v6158 = vmul.f32 %v5960, %v6150
    %v6159 = vmul.f32 %v5963, %v6151
    %v6160 = vmul.f32 %v5968, %v6152
    %v6161 = vmul.f32 %v5971, %v6153
    %6162 = vadd.xlane.f32.xlu0 %v6154
    %v6163 = vpop.xlane.xlu0 %6162
    %6164 = vadd.xlane.f32.xlu0 %v6155
    %v6165 = vpop.xlane.xlu0 %6164
    %6166 = vadd.xlane.f32.xlu0 %v6156
    %v6167 = vpop.xlane.xlu0 %6166
    %6168 = vadd.xlane.f32.xlu0 %v6157
    %v6169 = vpop.xlane.xlu0 %6168
    %6170 = vadd.xlane.f32.xlu0 %v6158
    %v6171 = vpop.xlane.xlu0 %6170
    %6172 = vadd.xlane.f32.xlu0 %v6159
    %v6173 = vpop.xlane.xlu0 %6172
    %6174 = vadd.xlane.f32.xlu0 %v6160
    %v6175 = vpop.xlane.xlu0 %6174
    %6176 = vadd.xlane.f32.xlu0 %v6161
    %v6177 = vpop.xlane.xlu0 %6176
    %s6178 = smul.u32 0, 8
    %v6179 = vstv %s6178
    %v6180 = vadd.s32 %v6179, 1
    %v6181 = vadd.s32 %v6179, 2
    %v6182 = vadd.s32 %v6179, 3
    %v6183 = vadd.s32 %v6179, 4
    %v6184 = vadd.s32 %v6179, 5
    %v6185 = vadd.s32 %v6179, 6
    %v6186 = vadd.s32 %v6179, 7
    %v6187 = vlaneseq
    %v6188 = vshrl.u32 %v6187, 7
    %s6189 = smul.u32 0, 8
    %v6190 = vstv %s6189
    %v6191 = vadd.s32 %v6188, %v6190
    %vm6192 = vcmp.lt.s32.totalorder %v6179, 8
    %vm6193 = vcmp.lt.s32.totalorder %v6180, 8
    %vm6194 = vcmp.lt.s32.totalorder %v6181, 8
    %vm6195 = vcmp.lt.s32.totalorder %v6182, 8
    %vm6196 = vcmp.lt.s32.totalorder %v6183, 8
    %vm6197 = vcmp.lt.s32.totalorder %v6184, 8
    %vm6198 = vcmp.lt.s32.totalorder %v6185, 8
    %vm6199 = vcmp.lt.s32.totalorder %v6186, 8
    %vm6200 = vcmp.lt.s32.totalorder %v6191, 2
    %vm6201 = vmand %vm6192, %vm6200
    %vm6202 = vmand %vm6193, %vm6200
    %vm6203 = vmand %vm6194, %vm6200
    %vm6204 = vmand %vm6195, %vm6200
    %vm6205 = vmand %vm6196, %vm6200
    %vm6206 = vmand %vm6197, %vm6200
    %vm6207 = vmand %vm6198, %vm6200
    %vm6208 = vmand %vm6199, %vm6200
    %v6209 = vsel %vm6201, 1, 0
    %v6210 = vsel %vm6202, 1, 0
    %v6211 = vsel %vm6203, 1, 0
    %v6212 = vsel %vm6204, 1, 0
    %v6213 = vsel %vm6205, 1, 0
    %v6214 = vsel %vm6206, 1, 0
    %v6215 = vsel %vm6207, 1, 0
    %v6216 = vsel %vm6208, 1, 0
    %v6217 = vcvt.s32.f32 %v6209
    %v6218 = vcvt.s32.f32 %v6210
    %v6219 = vcvt.s32.f32 %v6211
    %v6220 = vcvt.s32.f32 %v6212
    %v6221 = vcvt.s32.f32 %v6213
    %v6222 = vcvt.s32.f32 %v6214
    %v6223 = vcvt.s32.f32 %v6215
    %v6224 = vcvt.s32.f32 %v6216
    %v6225 = vsub.f32 %v6066, %v6163
    %v6226 = vsub.f32 %v6067, %v6165
    %v6227 = vsub.f32 %v6068, %v6167
    %v6228 = vsub.f32 %v6069, %v6169
    %v6229 = vsub.f32 %v6070, %v6171
    %v6230 = vsub.f32 %v6071, %v6173
    %v6231 = vsub.f32 %v6072, %v6175
    %v6232 = vsub.f32 %v6073, %v6177
    %v6233 = vmul.f32 %v6225, %v6217
    %v6234 = vmul.f32 %v6226, %v6218
    %v6235 = vmul.f32 %v6227, %v6219
    %v6236 = vmul.f32 %v6228, %v6220
    %v6237 = vmul.f32 %v6229, %v6221
    %v6238 = vmul.f32 %v6230, %v6222
    %v6239 = vmul.f32 %v6231, %v6223
    %v6240 = vmul.f32 %v6232, %v6224
    %vm6241 = vcmask 7168
    %v6242 = vsel %vm6241, %v6233, 0.0
    %v6243 = vsel %vm6241, %v6234, 0.0
    %v6244 = vadd.f32 %v6242, %v6243
    %v6245 = vsel %vm6241, %v6235, 0.0
    %v6246 = vadd.f32 %v6244, %v6245
    %v6247 = vsel %vm6241, %v6236, 0.0
    %v6248 = vadd.f32 %v6246, %v6247
    %v6249 = vsel %vm6241, %v6237, 0.0
    %v6250 = vadd.f32 %v6248, %v6249
    %v6251 = vsel %vm6241, %v6238, 0.0
    %v6252 = vadd.f32 %v6250, %v6251
    %v6253 = vsel %vm6241, %v6239, 0.0
    %v6254 = vadd.f32 %v6252, %v6253
    %v6255 = vsel %vm6241, %v6240, 0.0
    %v6256 = vadd.f32 %v6254, %v6255
    %6257 = vadd.xlane.f32.xlu0 %v6256
    %v6258 = vpop.xlane.xlu0 %6257
    %v6259 = vrot.slane %v6258, 4
    %v6260 = vadd.f32 %v6258, %v6259
    %v6261 = vrot.slane %v6260, 2
    %v6262 = vadd.f32 %v6260, %v6261
    %v6263 = vrot.slane %v6262, 1
    %v6264 = vadd.f32 %v6262, %v6263
    %s6265 = vtos %v6264
    %s6266 = scalar_lea.smem [#allocation25], 0
    %6267 = sst [smem:[%s6266]] %s6265
    // Predicated region
    $region86: #{tpu_custom_call.1} parent=1 // pred_check
      _
    $region87: #{tpu_custom_call.1} parent=1 // pred_check_branch
      %6269 = sbr.rel (0) target = $region89
    $region88: #{tpu_custom_call.1} parent=1 // pred_region
      %s6270 = sadd.s32 0, 0
      %s6271 = smul.u32 8, %s6270
      %s6273 = ssub.s32 1024, 1024
      %6274 = vsyncadd [#allocation8], %s6273
      %s6275 = smul.addr %s6271, 128
      %s6276 = scalar_lea.hbm %s10, %s6275
      %s6277 = sshll.u32 [#allocation24], 4
      %s6278 = int_to_ptr.vmem [resolvable:$true] %s6277
      %6283 = dma.vmem_to_hbm [thread:$0]  %s6278, 1024, %s6276, [#allocation8], 128, 128, 8
    $region89: #{tpu_custom_call.1} parent=1 // pred_fallthru
      _
    // Predicated region
    $region90: #{tpu_custom_call.1} parent=1 // pred_check
      _
    $region91: #{tpu_custom_call.1} parent=1 // pred_check_branch
      %6285 = sbr.rel (0) target = $region93
    $region92: #{tpu_custom_call.1} parent=1 // pred_region
      %s6287 = ssub.s32 16, 16
      %6288 = vsyncadd [#allocation9], %s6287
      %6291 = dma.smem_to_hbm [#allocation25], 16, %s11, [#allocation9]
    $region93: #{tpu_custom_call.1} parent=1 // pred_fallthru
      _
    // Predicated region
    $region94: #{tpu_custom_call.1} parent=1 // pred_check
      _
    $region95: #{tpu_custom_call.1} parent=1 // pred_check_branch
      %6293 = sbr.rel (0) target = $region97
    $region96: #{tpu_custom_call.1} parent=1 // pred_region
      %6294 = dma.done [#allocation8], 1024
    $region97: #{tpu_custom_call.1} parent=1 // pred_fallthru
      _
    // Predicated region
    $region98: #{tpu_custom_call.1} parent=1 // pred_check
      _
    $region99: #{tpu_custom_call.1} parent=1 // pred_check_branch
      %6296 = sbr.rel (0) target = $region101
    $region100: #{tpu_custom_call.1} parent=1 // pred_region
      %6297 = dma.done [#allocation9], 16
    $region101: #{tpu_custom_call.1} parent=1 // pred_fallthru
      _
    %6298 = sfence
    %6299 = vsyncpa [#allocation7], 1
    %6300 = vsyncpa [#allocation11], 1
    %6301 = vsyncpa [#allocation14], 1
    %6302 = vsyncpa [#allocation17], 1
    %6303 = vsyncpa [#allocation20], 1
    %6304 = vsyncpa [#allocation23], 1
    %6305 = vsyncpa [#allocation8], 1
    %6306 = vsyncpa [#allocation9], 1

</llo_original>
